<compile_context>
chip_gen: v7x
topology: tpu7x:2x2x1
jax: 0.10.0
libtpu: 0.0.40
codegen_flags: <defaults>
</compile_context>

<pallas_src>
import jax
import jax.numpy as jnp
from jax.experimental import pallas as pl
from jax.experimental.pallas import tpu as pltpu


_WPAD = 8  # sublane offset of the image inside the padded conv scratch


# --------------------------------------------------------------------------
# Parameter construction (inference-mode BN folded into scale/shift).
# --------------------------------------------------------------------------

class KeyGen:
    def __init__(self, key):
        self.key = key

    def __call__(self):
        self.key, k = jax.random.split(self.key)
        return k


def _bn_folded(kg, c, eps=1e-5):
    gamma = jax.random.uniform(kg(), (c,), jnp.float32, 0.8, 1.2)
    beta = 0.1 * jax.random.normal(kg(), (c,), jnp.float32)
    mean = 0.1 * jax.random.normal(kg(), (c,), jnp.float32)
    var = jax.random.uniform(kg(), (c,), jnp.float32, 0.5, 1.5)
    scale = gamma / jnp.sqrt(var + eps)
    shift = beta - mean * scale
    return scale.reshape(1, c), shift.reshape(1, c)


def _conv_w(kg, cout, cin, k):
    fan_in = cin * k * k
    return jax.random.normal(kg(), (cout, cin, k, k), jnp.float32) / jnp.sqrt(
        float(fan_in))


def _as_w3x3(w, cin_pad):
    # (Cout, Cin, 3, 3) -> (9*cin_pad, Cout) bf16; tap t = kh*3+kw occupies
    # rows [t*cin_pad, t*cin_pad+Cin); extra rows (padded channels) are zero.
    cout, cin = w.shape[0], w.shape[1]
    wt = jnp.transpose(w, (2, 3, 1, 0)).reshape(9, cin, cout)
    if cin_pad != cin:
        wt = jnp.pad(wt, ((0, 0), (0, cin_pad - cin), (0, 0)))
    return wt.reshape(9 * cin_pad, cout).astype(jnp.bfloat16)


def _as_w1x1(w):
    # (Cout, Cin, 1, 1) -> (Cin, Cout) bf16
    return jnp.transpose(w.reshape(w.shape[0], w.shape[1]), (1, 0)).astype(
        jnp.bfloat16)


def _pool_matrix(h, w):
    # (h/2*w/2, h*w) constant matrix of a 2x2 / stride-2 average pool.
    h2, w2 = h // 2, w // 2
    rows = jnp.arange(h * w)
    i, j = rows // w, rows % w
    m = (i // 2) * w2 + (j // 2)
    out_rows = jnp.arange(h2 * w2)
    p = (out_rows[:, None] == m[None, :]).astype(jnp.float32) * 0.25
    return p.astype(jnp.bfloat16)


def init_params(key, growth_rate, nblocks, reduction, num_class, image_hw):
    kg = KeyGen(key)
    g = growth_rate
    cb = 4 * g                       # bottleneck width == 3x3-conv input chans
    assert cb >= 3
    H, W = image_hw
    inner = 2 * g
    params = {"g": g, "cb": cb, "num_class": num_class}
    params["conv1_w"] = _as_w3x3(_conv_w(kg, inner, 3, 3), cb)

    stages, transitions = [], []
    for idx, nb in enumerate(nblocks):
        layers = []
        for _ in range(nb):
            s1, b1 = _bn_folded(kg, inner)
            w1 = _as_w1x1(_conv_w(kg, cb, inner, 1))
            s2, b2 = _bn_folded(kg, cb)
            w2 = _as_w3x3(_conv_w(kg, g, cb, 3), cb)
            layers.append(dict(s1=s1, b1=b1, w1=w1, s2=s2, b2=b2, w2=w2))
            inner += g
        stages.append(dict(hw=(H, W), layers=layers))
        if idx != len(nblocks) - 1:
            st, bt = _bn_folded(kg, inner)
            outc = int(reduction * inner)
            wt = _as_w1x1(_conv_w(kg, outc, inner, 1))
            transitions.append(dict(pmat=_pool_matrix(H, W), st=st, bt=bt, wt=wt))
            inner = outc
            H, W = H // 2, W // 2
    params["stages"] = stages
    params["transitions"] = transitions

    sf, bfold = _bn_folded(kg, inner)
    lw = jax.random.normal(kg(), (num_class, inner), jnp.float32) / jnp.sqrt(
        float(inner))
    lb = 0.01 * jax.random.normal(kg(), (num_class,), jnp.float32)
    params["head"] = dict(sf=sf, bf=bfold, wlin=jnp.transpose(lw),
                          blin=lb.reshape(1, num_class))
    return params


# --------------------------------------------------------------------------
# Fully fused forward pass (one pallas_call for the whole network).
# --------------------------------------------------------------------------

def densenet_forward(params, x_nchw):
    g = params["g"]
    cb = params["cb"]
    ncls = params["num_class"]
    stages = params["stages"]
    transitions = params["transitions"]
    head = params["head"]
    nstage = len(stages)

    x = jnp.transpose(x_nchw, (0, 2, 3, 1)).astype(jnp.float32)  # NCHW -> NHWC
    N, H0, W0, cin_img = x.shape
    assert (H0, W0) == stages[0]["hw"]
    # Zero-pad image channels up to the bottleneck width so the stem reuses
    # the same padded conv scratch / im2col path as the 3x3 convs.
    x = jnp.pad(x, ((0, 0), (0, 0), (0, 0), (0, cb - cin_img)))

    # ---- flatten parameters in the canonical order the kernel expects ----
    flat = [params["conv1_w"]]
    for s_idx, stg in enumerate(stages):
        for ly in stg["layers"]:
            flat += [ly["s1"], ly["b1"], ly["w1"], ly["s2"], ly["b2"], ly["w2"]]
        if s_idx != nstage - 1:
            tr = transitions[s_idx]
            flat += [tr["pmat"], tr["st"], tr["bt"], tr["wt"]]
    flat += [head["sf"], head["bf"], head["wlin"], head["blin"]]
    n_params = len(flat)

    # ---- static per-stage config -----------------------------------------
    stage_cfg = []
    for stg in stages:
        h, w = stg["hw"]
        c0 = stg["layers"][0]["w1"].shape[0]
        nl = len(stg["layers"])
        stage_cfg.append(dict(h=h, w=w, c0=c0, nl=nl, cap=c0 + g * nl))

    # ---- VMEM scratch: per stage a channel slab, a padded conv buffer and
    # an im2col buffer (everything stays resident inside the kernel) --------
    scratch = []
    for cfg in stage_cfg:
        hw = cfg["h"] * cfg["w"]
        scratch.append(pltpu.VMEM((hw, cfg["cap"]), jnp.float32))              # slab
        scratch.append(pltpu.VMEM((cfg["h"] + 2, cfg["w"] + 2 * _WPAD, cb),
                                  jnp.float32))                               # ypad
        scratch.append(pltpu.VMEM((hw, 9 * cb), jnp.bfloat16))                 # im2col

    def kernel(*refs):
        x_ref = refs[0]
        p_refs = refs[1:1 + n_params]
        out_ref = refs[1 + n_params]
        s_refs = refs[2 + n_params:]

        it = iter(p_refs)
        conv1_w = next(it)
        stage_layers, trans_refs = [], []
        for s_idx, cfg in enumerate(stage_cfg):
            stage_layers.append([tuple(next(it) for _ in range(6))
                                 for _ in range(cfg["nl"])])
            if s_idx != nstage - 1:
                trans_refs.append(tuple(next(it) for _ in range(4)))
        sf_r, bf_r, wlin_r, blin_r = next(it), next(it), next(it), next(it)

        slabs = [s_refs[3 * i + 0] for i in range(nstage)]
        ypads = [s_refs[3 * i + 1] for i in range(nstage)]
        cols = [s_refs[3 * i + 2] for i in range(nstage)]

        def conv3x3(ypad, col, w_ref, h, w):
            # im2col (one shifted-window copy per tap) + a single K=9*cb dot.
            hw = h * w
            for t in range(9):
                kh, kw = t // 3, t % 3
                win = ypad[kh:kh + h, _WPAD - 1 + kw:_WPAD - 1 + kw + w, :]
                col[:, t * cb:(t + 1) * cb] = (
                    win.reshape(hw, cb).astype(jnp.bfloat16))
            return jnp.dot(col[...], w_ref[...],
                           preferred_element_type=jnp.float32)

        # ----- stem: 3x3 conv (image channels already zero-padded to cb) ---
        cfg0 = stage_cfg[0]
        h0, w0 = cfg0["h"], cfg0["w"]
        ypads[0][...] = jnp.zeros(ypads[0].shape, jnp.float32)
        ypads[0][1:h0 + 1, _WPAD:_WPAD + w0, :] = x_ref[0]
        slabs[0][:, 0:cfg0["c0"]] = conv3x3(ypads[0], cols[0], conv1_w, h0, w0)

        # ----- dense stages + fused transitions ----------------------------
        for s_idx, cfg in enumerate(stage_cfg):
            h, w = cfg["h"], cfg["w"]
            slab, ypad, col = slabs[s_idx], ypads[s_idx], cols[s_idx]
            if s_idx > 0:
                ypad[...] = jnp.zeros(ypad.shape, jnp.float32)
            c = cfg["c0"]
            for (s1, b1, w1, s2, b2, w2) in stage_layers[s_idx]:
                a = jnp.maximum(slab[:, 0:c] * s1[...] + b1[...], 0.0)  # BN+ReLU
                y1 = jnp.dot(a.astype(jnp.bfloat16), w1[...],
                             preferred_element_type=jnp.float32)        # 1x1 conv
                y2 = jnp.maximum(y1 * s2[...] + b2[...], 0.0)           # BN+ReLU
                ypad[1:h + 1, _WPAD:_WPAD + w, :] = y2.reshape(h, w, cb)
                z = conv3x3(ypad, col, w2, h, w)                        # 3x3 conv
                slab[:, c:c + g] = z             # channel append, in place
                c += g

            if s_idx != nstage - 1:
                pmat, st_r, bt_r, wt_r = trans_refs[s_idx]
                # 2x2 avg pool as a constant matmul (exact: no ReLU in the
                # transition, so pooling commutes with BN and the 1x1 conv).
                pooled = jnp.dot(pmat[...], slab[...].astype(jnp.bfloat16),
                                 preferred_element_type=jnp.float32)
                tt = pooled * st_r[...] + bt_r[...]                     # BN
                nxt = jnp.dot(tt.astype(jnp.bfloat16), wt_r[...],
                              preferred_element_type=jnp.float32)       # 1x1 conv
                slabs[s_idx + 1][:, 0:stage_cfg[s_idx + 1]["c0"]] = nxt

        # ----- head: BN + ReLU + global average pool + linear --------------
        hwL = stage_cfg[-1]["h"] * stage_cfg[-1]["w"]
        fL = jnp.maximum(slabs[-1][...] * sf_r[...] + bf_r[...], 0.0)
        # project then average (equivalent to GAP-then-linear, avoids M=1 dot)
        proj = jnp.dot(fL, wlin_r[...], preferred_element_type=jnp.float32)
        logits = jnp.sum(proj, axis=0, keepdims=True) * (1.0 / hwL) + blin_r[...]
        out_ref[0] = logits.astype(out_ref.dtype)

    def _rep_spec(shape):
        nd = len(shape)
        return pl.BlockSpec(shape, lambda n, _nd=nd: (0,) * _nd)

    in_specs = [pl.BlockSpec((1, H0, W0, cb), lambda n: (n, 0, 0, 0))]
    in_specs += [_rep_spec(a.shape) for a in flat]

    out = pl.pallas_call(
        kernel,
        out_shape=jax.ShapeDtypeStruct((N, 1, ncls), jnp.float32),
        grid=(N,),
        in_specs=in_specs,
        out_specs=pl.BlockSpec((1, 1, ncls), lambda n: (n, 0, 0)),
        scratch_shapes=scratch,
        compiler_params=pltpu.CompilerParams(
            dimension_semantics=("parallel",)),
    )(x, *flat)
    return out.reshape(N, ncls)


# ------------------------------------ main ----------------------------------

if __name__ == "__main__":
    key = jax.random.PRNGKey(0)
    kx, kp = jax.random.split(key)

    growth_rate = 8
    nblocks = [2, 2]
    reduction = 0.5
    num_class = 10
    batch, H, W = 2, 16, 16

    x = jax.random.normal(kx, (batch, 3, H, W), jnp.float32)   # NCHW like PyTorch
    params = init_params(kp, growth_rate, nblocks, reduction, num_class, (H, W))

    fwd = jax.jit(lambda inp: densenet_forward(params, inp))
    out = jax.block_until_ready(fwd(x))

    assert out.shape == (batch, num_class), out.shape
    assert bool(jnp.all(jnp.isfinite(out)))
    print("KERNEL_OK")
</pallas_src>

<mosaic_0001>
module attributes {stable_mosaic.version = 11 : i64} {
  func.func @kernel(%arg0: i32, %arg1: memref<1x16x16x32xf32, #tpu.memory_space<vmem>>, %arg2: memref<288x16xbf16, #tpu.memory_space<vmem>>, %arg3: memref<1x16xf32, #tpu.memory_space<vmem>>, %arg4: memref<1x16xf32, #tpu.memory_space<vmem>>, %arg5: memref<16x32xbf16, #tpu.memory_space<vmem>>, %arg6: memref<1x32xf32, #tpu.memory_space<vmem>>, %arg7: memref<1x32xf32, #tpu.memory_space<vmem>>, %arg8: memref<288x8xbf16, #tpu.memory_space<vmem>>, %arg9: memref<1x24xf32, #tpu.memory_space<vmem>>, %arg10: memref<1x24xf32, #tpu.memory_space<vmem>>, %arg11: memref<24x32xbf16, #tpu.memory_space<vmem>>, %arg12: memref<1x32xf32, #tpu.memory_space<vmem>>, %arg13: memref<1x32xf32, #tpu.memory_space<vmem>>, %arg14: memref<288x8xbf16, #tpu.memory_space<vmem>>, %arg15: memref<64x256xbf16, #tpu.memory_space<vmem>>, %arg16: memref<1x32xf32, #tpu.memory_space<vmem>>, %arg17: memref<1x32xf32, #tpu.memory_space<vmem>>, %arg18: memref<32x16xbf16, #tpu.memory_space<vmem>>, %arg19: memref<1x16xf32, #tpu.memory_space<vmem>>, %arg20: memref<1x16xf32, #tpu.memory_space<vmem>>, %arg21: memref<16x32xbf16, #tpu.memory_space<vmem>>, %arg22: memref<1x32xf32, #tpu.memory_space<vmem>>, %arg23: memref<1x32xf32, #tpu.memory_space<vmem>>, %arg24: memref<288x8xbf16, #tpu.memory_space<vmem>>, %arg25: memref<1x24xf32, #tpu.memory_space<vmem>>, %arg26: memref<1x24xf32, #tpu.memory_space<vmem>>, %arg27: memref<24x32xbf16, #tpu.memory_space<vmem>>, %arg28: memref<1x32xf32, #tpu.memory_space<vmem>>, %arg29: memref<1x32xf32, #tpu.memory_space<vmem>>, %arg30: memref<288x8xbf16, #tpu.memory_space<vmem>>, %arg31: memref<1x32xf32, #tpu.memory_space<vmem>>, %arg32: memref<1x32xf32, #tpu.memory_space<vmem>>, %arg33: memref<32x10xf32, #tpu.memory_space<vmem>>, %arg34: memref<1x10xf32, #tpu.memory_space<vmem>>, %arg35: memref<1x1x10xf32, #tpu.memory_space<vmem>>, %arg36: memref<256x32xf32, #tpu.memory_space<vmem>>, %arg37: memref<18x32x32xf32, #tpu.memory_space<vmem>>, %arg38: memref<256x288xbf16, #tpu.memory_space<vmem>>, %arg39: memref<64x32xf32, #tpu.memory_space<vmem>>, %arg40: memref<10x24x32xf32, #tpu.memory_space<vmem>>, %arg41: memref<64x288xbf16, #tpu.memory_space<vmem>>) attributes {dimension_semantics = [#tpu.dimension_semantics<parallel>], iteration_bounds = array<i64: 2>, scalar_prefetch = 0 : i64, scratch_operands = 6 : i64, tpu.core_type = #tpu.core_type<tc>, window_params = [{transform_indices = @transform_0, window_bounds = array<i64: 1, 16, 16, 32>}, {pipeline_mode = #tpu.pipeline_mode<synchronous>, transform_indices = @transform_1, window_bounds = array<i64: 288, 16>}, {pipeline_mode = #tpu.pipeline_mode<synchronous>, transform_indices = @transform_2, window_bounds = array<i64: 1, 16>}, {pipeline_mode = #tpu.pipeline_mode<synchronous>, transform_indices = @transform_3, window_bounds = array<i64: 1, 16>}, {pipeline_mode = #tpu.pipeline_mode<synchronous>, transform_indices = @transform_4, window_bounds = array<i64: 16, 32>}, {pipeline_mode = #tpu.pipeline_mode<synchronous>, transform_indices = @transform_5, window_bounds = array<i64: 1, 32>}, {pipeline_mode = #tpu.pipeline_mode<synchronous>, transform_indices = @transform_6, window_bounds = array<i64: 1, 32>}, {pipeline_mode = #tpu.pipeline_mode<synchronous>, transform_indices = @transform_7, window_bounds = array<i64: 288, 8>}, {pipeline_mode = #tpu.pipeline_mode<synchronous>, transform_indices = @transform_8, window_bounds = array<i64: 1, 24>}, {pipeline_mode = #tpu.pipeline_mode<synchronous>, transform_indices = @transform_9, window_bounds = array<i64: 1, 24>}, {pipeline_mode = #tpu.pipeline_mode<synchronous>, transform_indices = @transform_10, window_bounds = array<i64: 24, 32>}, {pipeline_mode = #tpu.pipeline_mode<synchronous>, transform_indices = @transform_11, window_bounds = array<i64: 1, 32>}, {pipeline_mode = #tpu.pipeline_mode<synchronous>, transform_indices = @transform_12, window_bounds = array<i64: 1, 32>}, {pipeline_mode = #tpu.pipeline_mode<synchronous>, transform_indices = @transform_13, window_bounds = array<i64: 288, 8>}, {pipeline_mode = #tpu.pipeline_mode<synchronous>, transform_indices = @transform_14, window_bounds = array<i64: 64, 256>}, {pipeline_mode = #tpu.pipeline_mode<synchronous>, transform_indices = @transform_15, window_bounds = array<i64: 1, 32>}, {pipeline_mode = #tpu.pipeline_mode<synchronous>, transform_indices = @transform_16, window_bounds = array<i64: 1, 32>}, {pipeline_mode = #tpu.pipeline_mode<synchronous>, transform_indices = @transform_17, window_bounds = array<i64: 32, 16>}, {pipeline_mode = #tpu.pipeline_mode<synchronous>, transform_indices = @transform_18, window_bounds = array<i64: 1, 16>}, {pipeline_mode = #tpu.pipeline_mode<synchronous>, transform_indices = @transform_19, window_bounds = array<i64: 1, 16>}, {pipeline_mode = #tpu.pipeline_mode<synchronous>, transform_indices = @transform_20, window_bounds = array<i64: 16, 32>}, {pipeline_mode = #tpu.pipeline_mode<synchronous>, transform_indices = @transform_21, window_bounds = array<i64: 1, 32>}, {pipeline_mode = #tpu.pipeline_mode<synchronous>, transform_indices = @transform_22, window_bounds = array<i64: 1, 32>}, {pipeline_mode = #tpu.pipeline_mode<synchronous>, transform_indices = @transform_23, window_bounds = array<i64: 288, 8>}, {pipeline_mode = #tpu.pipeline_mode<synchronous>, transform_indices = @transform_24, window_bounds = array<i64: 1, 24>}, {pipeline_mode = #tpu.pipeline_mode<synchronous>, transform_indices = @transform_25, window_bounds = array<i64: 1, 24>}, {pipeline_mode = #tpu.pipeline_mode<synchronous>, transform_indices = @transform_26, window_bounds = array<i64: 24, 32>}, {pipeline_mode = #tpu.pipeline_mode<synchronous>, transform_indices = @transform_27, window_bounds = array<i64: 1, 32>}, {pipeline_mode = #tpu.pipeline_mode<synchronous>, transform_indices = @transform_28, window_bounds = array<i64: 1, 32>}, {pipeline_mode = #tpu.pipeline_mode<synchronous>, transform_indices = @transform_29, window_bounds = array<i64: 288, 8>}, {pipeline_mode = #tpu.pipeline_mode<synchronous>, transform_indices = @transform_30, window_bounds = array<i64: 1, 32>}, {pipeline_mode = #tpu.pipeline_mode<synchronous>, transform_indices = @transform_31, window_bounds = array<i64: 1, 32>}, {pipeline_mode = #tpu.pipeline_mode<synchronous>, transform_indices = @transform_32, window_bounds = array<i64: 32, 10>}, {pipeline_mode = #tpu.pipeline_mode<synchronous>, transform_indices = @transform_33, window_bounds = array<i64: 1, 10>}, {transform_indices = @transform_34, window_bounds = array<i64: 1, 1, 10>}]} {
    %cst = arith.constant 0.000000e+00 : f32
    %0 = vector.broadcast %cst : f32 to vector<18x32x32xf32>
    %c0 = arith.constant 0 : index
    %c0_0 = arith.constant 0 : index
    %c0_1 = arith.constant 0 : index
    %1 = vector.load %arg37[%c0, %c0_0, %c0_1] : memref<18x32x32xf32, #tpu.memory_space<vmem>>, vector<18x32x32xf32>
    tpu.vector_store %arg37[%c0, %c0_0, %c0_1], %0 {strides = array<i32>} : memref<18x32x32xf32, #tpu.memory_space<vmem>>, vector<18x32x32xf32>,
    %c0_2 = arith.constant 0 : index
    %c0_3 = arith.constant 0 : index
    %c0_4 = arith.constant 0 : index
    %c0_5 = arith.constant 0 : index
    %2 = vector.load %arg1[%c0_2, %c0_3, %c0_4, %c0_5] : memref<1x16x16x32xf32, #tpu.memory_space<vmem>>, vector<1x16x16x32xf32>
    %3 = vector.shape_cast %2 : vector<1x16x16x32xf32> to vector<16x16x32xf32>
    %c1 = arith.constant 1 : index
    %c8 = arith.constant 8 : index
    %c0_6 = arith.constant 0 : index
    %4 = vector.load %arg37[%c1, %c8, %c0_6] : memref<18x32x32xf32, #tpu.memory_space<vmem>>, vector<16x16x32xf32>
    tpu.vector_store %arg37[%c1, %c8, %c0_6], %3 {strides = array<i32>} : memref<18x32x32xf32, #tpu.memory_space<vmem>>, vector<16x16x32xf32>,
    %c0_7 = arith.constant 0 : index
    %c7 = arith.constant 7 : index
    %c0_8 = arith.constant 0 : index
    %5 = vector.load %arg37[%c0_7, %c7, %c0_8] : memref<18x32x32xf32, #tpu.memory_space<vmem>>, vector<16x16x32xf32>
    %6 = vector.shape_cast %5 : vector<16x16x32xf32> to vector<256x32xf32>
    %7 = arith.truncf %6 : vector<256x32xf32> to vector<256x32xbf16>
    %c0_9 = arith.constant 0 : index
    %c0_10 = arith.constant 0 : index
    %8 = vector.load %arg38[%c0_9, %c0_10] : memref<256x288xbf16, #tpu.memory_space<vmem>>, vector<256x32xbf16>
    tpu.vector_store %arg38[%c0_9, %c0_10], %7 {strides = array<i32>} : memref<256x288xbf16, #tpu.memory_space<vmem>>, vector<256x32xbf16>,
    %c0_11 = arith.constant 0 : index
    %c8_12 = arith.constant 8 : index
    %c0_13 = arith.constant 0 : index
    %9 = vector.load %arg37[%c0_11, %c8_12, %c0_13] : memref<18x32x32xf32, #tpu.memory_space<vmem>>, vector<16x16x32xf32>
    %10 = vector.shape_cast %9 : vector<16x16x32xf32> to vector<256x32xf32>
    %11 = arith.truncf %10 : vector<256x32xf32> to vector<256x32xbf16>
    %c0_14 = arith.constant 0 : index
    %c32 = arith.constant 32 : index
    %12 = vector.load %arg38[%c0_14, %c32] : memref<256x288xbf16, #tpu.memory_space<vmem>>, vector<256x32xbf16>
    tpu.vector_store %arg38[%c0_14, %c32], %11 {strides = array<i32>} : memref<256x288xbf16, #tpu.memory_space<vmem>>, vector<256x32xbf16>,
    %c0_15 = arith.constant 0 : index
    %c9 = arith.constant 9 : index
    %c0_16 = arith.constant 0 : index
    %13 = vector.load %arg37[%c0_15, %c9, %c0_16] : memref<18x32x32xf32, #tpu.memory_space<vmem>>, vector<16x16x32xf32>
    %14 = vector.shape_cast %13 : vector<16x16x32xf32> to vector<256x32xf32>
    %15 = arith.truncf %14 : vector<256x32xf32> to vector<256x32xbf16>
    %c0_17 = arith.constant 0 : index
    %c64 = arith.constant 64 : index
    %16 = vector.load %arg38[%c0_17, %c64] : memref<256x288xbf16, #tpu.memory_space<vmem>>, vector<256x32xbf16>
    tpu.vector_store %arg38[%c0_17, %c64], %15 {strides = array<i32>} : memref<256x288xbf16, #tpu.memory_space<vmem>>, vector<256x32xbf16>,
    %c1_18 = arith.constant 1 : index
    %c7_19 = arith.constant 7 : index
    %c0_20 = arith.constant 0 : index
    %17 = vector.load %arg37[%c1_18, %c7_19, %c0_20] : memref<18x32x32xf32, #tpu.memory_space<vmem>>, vector<16x16x32xf32>
    %18 = vector.shape_cast %17 : vector<16x16x32xf32> to vector<256x32xf32>
    %19 = arith.truncf %18 : vector<256x32xf32> to vector<256x32xbf16>
    %c0_21 = arith.constant 0 : index
    %c96 = arith.constant 96 : index
    %20 = vector.load %arg38[%c0_21, %c96] : memref<256x288xbf16, #tpu.memory_space<vmem>>, vector<256x32xbf16>
    tpu.vector_store %arg38[%c0_21, %c96], %19 {strides = array<i32>} : memref<256x288xbf16, #tpu.memory_space<vmem>>, vector<256x32xbf16>,
    %c1_22 = arith.constant 1 : index
    %c8_23 = arith.constant 8 : index
    %c0_24 = arith.constant 0 : index
    %21 = vector.load %arg37[%c1_22, %c8_23, %c0_24] : memref<18x32x32xf32, #tpu.memory_space<vmem>>, vector<16x16x32xf32>
    %22 = vector.shape_cast %21 : vector<16x16x32xf32> to vector<256x32xf32>
    %23 = arith.truncf %22 : vector<256x32xf32> to vector<256x32xbf16>
    %c0_25 = arith.constant 0 : index
    %c128 = arith.constant 128 : index
    %24 = vector.load %arg38[%c0_25, %c128] : memref<256x288xbf16, #tpu.memory_space<vmem>>, vector<256x32xbf16>
    tpu.vector_store %arg38[%c0_25, %c128], %23 {strides = array<i32>} : memref<256x288xbf16, #tpu.memory_space<vmem>>, vector<256x32xbf16>,
    %c1_26 = arith.constant 1 : index
    %c9_27 = arith.constant 9 : index
    %c0_28 = arith.constant 0 : index
    %25 = vector.load %arg37[%c1_26, %c9_27, %c0_28] : memref<18x32x32xf32, #tpu.memory_space<vmem>>, vector<16x16x32xf32>
    %26 = vector.shape_cast %25 : vector<16x16x32xf32> to vector<256x32xf32>
    %27 = arith.truncf %26 : vector<256x32xf32> to vector<256x32xbf16>
    %c0_29 = arith.constant 0 : index
    %c160 = arith.constant 160 : index
    %28 = vector.load %arg38[%c0_29, %c160] : memref<256x288xbf16, #tpu.memory_space<vmem>>, vector<256x32xbf16>
    tpu.vector_store %arg38[%c0_29, %c160], %27 {strides = array<i32>} : memref<256x288xbf16, #tpu.memory_space<vmem>>, vector<256x32xbf16>,
    %c2 = arith.constant 2 : index
    %c7_30 = arith.constant 7 : index
    %c0_31 = arith.constant 0 : index
    %29 = vector.load %arg37[%c2, %c7_30, %c0_31] : memref<18x32x32xf32, #tpu.memory_space<vmem>>, vector<16x16x32xf32>
    %30 = vector.shape_cast %29 : vector<16x16x32xf32> to vector<256x32xf32>
    %31 = arith.truncf %30 : vector<256x32xf32> to vector<256x32xbf16>
    %c0_32 = arith.constant 0 : index
    %c192 = arith.constant 192 : index
    %32 = vector.load %arg38[%c0_32, %c192] : memref<256x288xbf16, #tpu.memory_space<vmem>>, vector<256x32xbf16>
    tpu.vector_store %arg38[%c0_32, %c192], %31 {strides = array<i32>} : memref<256x288xbf16, #tpu.memory_space<vmem>>, vector<256x32xbf16>,
    %c2_33 = arith.constant 2 : index
    %c8_34 = arith.constant 8 : index
    %c0_35 = arith.constant 0 : index
    %33 = vector.load %arg37[%c2_33, %c8_34, %c0_35] : memref<18x32x32xf32, #tpu.memory_space<vmem>>, vector<16x16x32xf32>
    %34 = vector.shape_cast %33 : vector<16x16x32xf32> to vector<256x32xf32>
    %35 = arith.truncf %34 : vector<256x32xf32> to vector<256x32xbf16>
    %c0_36 = arith.constant 0 : index
    %c224 = arith.constant 224 : index
    %36 = vector.load %arg38[%c0_36, %c224] : memref<256x288xbf16, #tpu.memory_space<vmem>>, vector<256x32xbf16>
    tpu.vector_store %arg38[%c0_36, %c224], %35 {strides = array<i32>} : memref<256x288xbf16, #tpu.memory_space<vmem>>, vector<256x32xbf16>,
    %c2_37 = arith.constant 2 : index
    %c9_38 = arith.constant 9 : index
    %c0_39 = arith.constant 0 : index
    %37 = vector.load %arg37[%c2_37, %c9_38, %c0_39] : memref<18x32x32xf32, #tpu.memory_space<vmem>>, vector<16x16x32xf32>
    %38 = vector.shape_cast %37 : vector<16x16x32xf32> to vector<256x32xf32>
    %39 = arith.truncf %38 : vector<256x32xf32> to vector<256x32xbf16>
    %c0_40 = arith.constant 0 : index
    %c256 = arith.constant 256 : index
    %40 = vector.load %arg38[%c0_40, %c256] : memref<256x288xbf16, #tpu.memory_space<vmem>>, vector<256x32xbf16>
    tpu.vector_store %arg38[%c0_40, %c256], %39 {strides = array<i32>} : memref<256x288xbf16, #tpu.memory_space<vmem>>, vector<256x32xbf16>,
    %c0_41 = arith.constant 0 : index
    %c0_42 = arith.constant 0 : index
    %41 = vector.load %arg38[%c0_41, %c0_42] : memref<256x288xbf16, #tpu.memory_space<vmem>>, vector<256x288xbf16>
    %c0_43 = arith.constant 0 : index
    %c0_44 = arith.constant 0 : index
    %42 = vector.load %arg2[%c0_43, %c0_44] : memref<288x16xbf16, #tpu.memory_space<vmem>>, vector<288x16xbf16>
    %cst_45 = arith.constant dense<0.000000e+00> : vector<256x16xf32>
    %43 = tpu.matmul %41, %42, %cst_45 {dimension_numbers = #tpu.dot_dimension_numbers<[1], [0], [0], [1], [0, 0, 1, 1], [], []>} : vector<256x288xbf16>, vector<288x16xbf16>, vector<256x16xf32> -> vector<256x16xf32>
    %c0_46 = arith.constant 0 : index
    %c0_47 = arith.constant 0 : index
    %44 = vector.load %arg36[%c0_46, %c0_47] : memref<256x32xf32, #tpu.memory_space<vmem>>, vector<256x16xf32>
    tpu.vector_store %arg36[%c0_46, %c0_47], %43 {strides = array<i32>} : memref<256x32xf32, #tpu.memory_space<vmem>>, vector<256x16xf32>,
    %c0_48 = arith.constant 0 : index
    %c0_49 = arith.constant 0 : index
    %45 = vector.load %arg36[%c0_48, %c0_49] : memref<256x32xf32, #tpu.memory_space<vmem>>, vector<256x16xf32>
    %c0_50 = arith.constant 0 : index
    %c0_51 = arith.constant 0 : index
    %46 = vector.load %arg3[%c0_50, %c0_51] : memref<1x16xf32, #tpu.memory_space<vmem>>, vector<1x16xf32>
    %47 = vector.broadcast %46 : vector<1x16xf32> to vector<256x16xf32>
    %48 = arith.mulf %45, %47 : vector<256x16xf32>
    %c0_52 = arith.constant 0 : index
    %c0_53 = arith.constant 0 : index
    %49 = vector.load %arg4[%c0_52, %c0_53] : memref<1x16xf32, #tpu.memory_space<vmem>>, vector<1x16xf32>
    %50 = vector.broadcast %49 : vector<1x16xf32> to vector<256x16xf32>
    %51 = arith.addf %48, %50 : vector<256x16xf32>
    %cst_54 = arith.constant 0.000000e+00 : f32
    %52 = vector.broadcast %cst_54 : f32 to vector<256x16xf32>
    %53 = arith.maximumf %51, %52 : vector<256x16xf32>
    %54 = arith.truncf %53 : vector<256x16xf32> to vector<256x16xbf16>
    %c0_55 = arith.constant 0 : index
    %c0_56 = arith.constant 0 : index
    %55 = vector.load %arg5[%c0_55, %c0_56] : memref<16x32xbf16, #tpu.memory_space<vmem>>, vector<16x32xbf16>
    %cst_57 = arith.constant dense<0.000000e+00> : vector<256x32xf32>
    %56 = tpu.matmul %54, %55, %cst_57 {dimension_numbers = #tpu.dot_dimension_numbers<[1], [0], [0], [1], [0, 0, 1, 1], [], []>} : vector<256x16xbf16>, vector<16x32xbf16>, vector<256x32xf32> -> vector<256x32xf32>
    %c0_58 = arith.constant 0 : index
    %c0_59 = arith.constant 0 : index
    %57 = vector.load %arg6[%c0_58, %c0_59] : memref<1x32xf32, #tpu.memory_space<vmem>>, vector<1x32xf32>
    %58 = vector.broadcast %57 : vector<1x32xf32> to vector<256x32xf32>
    %59 = arith.mulf %56, %58 : vector<256x32xf32>
    %c0_60 = arith.constant 0 : index
    %c0_61 = arith.constant 0 : index
    %60 = vector.load %arg7[%c0_60, %c0_61] : memref<1x32xf32, #tpu.memory_space<vmem>>, vector<1x32xf32>
    %61 = vector.broadcast %60 : vector<1x32xf32> to vector<256x32xf32>
    %62 = arith.addf %59, %61 : vector<256x32xf32>
    %cst_62 = arith.constant 0.000000e+00 : f32
    %63 = vector.broadcast %cst_62 : f32 to vector<256x32xf32>
    %64 = arith.maximumf %62, %63 : vector<256x32xf32>
    %65 = vector.shape_cast %64 : vector<256x32xf32> to vector<16x16x32xf32>
    %c1_63 = arith.constant 1 : index
    %c8_64 = arith.constant 8 : index
    %c0_65 = arith.constant 0 : index
    %66 = vector.load %arg37[%c1_63, %c8_64, %c0_65] : memref<18x32x32xf32, #tpu.memory_space<vmem>>, vector<16x16x32xf32>
    tpu.vector_store %arg37[%c1_63, %c8_64, %c0_65], %65 {strides = array<i32>} : memref<18x32x32xf32, #tpu.memory_space<vmem>>, vector<16x16x32xf32>,
    %c0_66 = arith.constant 0 : index
    %c7_67 = arith.constant 7 : index
    %c0_68 = arith.constant 0 : index
    %67 = vector.load %arg37[%c0_66, %c7_67, %c0_68] : memref<18x32x32xf32, #tpu.memory_space<vmem>>, vector<16x16x32xf32>
    %68 = vector.shape_cast %67 : vector<16x16x32xf32> to vector<256x32xf32>
    %69 = arith.truncf %68 : vector<256x32xf32> to vector<256x32xbf16>
    %c0_69 = arith.constant 0 : index
    %c0_70 = arith.constant 0 : index
    %70 = vector.load %arg38[%c0_69, %c0_70] : memref<256x288xbf16, #tpu.memory_space<vmem>>, vector<256x32xbf16>
    tpu.vector_store %arg38[%c0_69, %c0_70], %69 {strides = array<i32>} : memref<256x288xbf16, #tpu.memory_space<vmem>>, vector<256x32xbf16>,
    %c0_71 = arith.constant 0 : index
    %c8_72 = arith.constant 8 : index
    %c0_73 = arith.constant 0 : index
    %71 = vector.load %arg37[%c0_71, %c8_72, %c0_73] : memref<18x32x32xf32, #tpu.memory_space<vmem>>, vector<16x16x32xf32>
    %72 = vector.shape_cast %71 : vector<16x16x32xf32> to vector<256x32xf32>
    %73 = arith.truncf %72 : vector<256x32xf32> to vector<256x32xbf16>
    %c0_74 = arith.constant 0 : index
    %c32_75 = arith.constant 32 : index
    %74 = vector.load %arg38[%c0_74, %c32_75] : memref<256x288xbf16, #tpu.memory_space<vmem>>, vector<256x32xbf16>
    tpu.vector_store %arg38[%c0_74, %c32_75], %73 {strides = array<i32>} : memref<256x288xbf16, #tpu.memory_space<vmem>>, vector<256x32xbf16>,
    %c0_76 = arith.constant 0 : index
    %c9_77 = arith.constant 9 : index
    %c0_78 = arith.constant 0 : index
    %75 = vector.load %arg37[%c0_76, %c9_77, %c0_78] : memref<18x32x32xf32, #tpu.memory_space<vmem>>, vector<16x16x32xf32>
    %76 = vector.shape_cast %75 : vector<16x16x32xf32> to vector<256x32xf32>
    %77 = arith.truncf %76 : vector<256x32xf32> to vector<256x32xbf16>
    %c0_79 = arith.constant 0 : index
    %c64_80 = arith.constant 64 : index
    %78 = vector.load %arg38[%c0_79, %c64_80] : memref<256x288xbf16, #tpu.memory_space<vmem>>, vector<256x32xbf16>
    tpu.vector_store %arg38[%c0_79, %c64_80], %77 {strides = array<i32>} : memref<256x288xbf16, #tpu.memory_space<vmem>>, vector<256x32xbf16>,
    %c1_81 = arith.constant 1 : index
    %c7_82 = arith.constant 7 : index
    %c0_83 = arith.constant 0 : index
    %79 = vector.load %arg37[%c1_81, %c7_82, %c0_83] : memref<18x32x32xf32, #tpu.memory_space<vmem>>, vector<16x16x32xf32>
    %80 = vector.shape_cast %79 : vector<16x16x32xf32> to vector<256x32xf32>
    %81 = arith.truncf %80 : vector<256x32xf32> to vector<256x32xbf16>
    %c0_84 = arith.constant 0 : index
    %c96_85 = arith.constant 96 : index
    %82 = vector.load %arg38[%c0_84, %c96_85] : memref<256x288xbf16, #tpu.memory_space<vmem>>, vector<256x32xbf16>
    tpu.vector_store %arg38[%c0_84, %c96_85], %81 {strides = array<i32>} : memref<256x288xbf16, #tpu.memory_space<vmem>>, vector<256x32xbf16>,
    %c1_86 = arith.constant 1 : index
    %c8_87 = arith.constant 8 : index
    %c0_88 = arith.constant 0 : index
    %83 = vector.load %arg37[%c1_86, %c8_87, %c0_88] : memref<18x32x32xf32, #tpu.memory_space<vmem>>, vector<16x16x32xf32>
    %84 = vector.shape_cast %83 : vector<16x16x32xf32> to vector<256x32xf32>
    %85 = arith.truncf %84 : vector<256x32xf32> to vector<256x32xbf16>
    %c0_89 = arith.constant 0 : index
    %c128_90 = arith.constant 128 : index
    %86 = vector.load %arg38[%c0_89, %c128_90] : memref<256x288xbf16, #tpu.memory_space<vmem>>, vector<256x32xbf16>
    tpu.vector_store %arg38[%c0_89, %c128_90], %85 {strides = array<i32>} : memref<256x288xbf16, #tpu.memory_space<vmem>>, vector<256x32xbf16>,
    %c1_91 = arith.constant 1 : index
    %c9_92 = arith.constant 9 : index
    %c0_93 = arith.constant 0 : index
    %87 = vector.load %arg37[%c1_91, %c9_92, %c0_93] : memref<18x32x32xf32, #tpu.memory_space<vmem>>, vector<16x16x32xf32>
    %88 = vector.shape_cast %87 : vector<16x16x32xf32> to vector<256x32xf32>
    %89 = arith.truncf %88 : vector<256x32xf32> to vector<256x32xbf16>
    %c0_94 = arith.constant 0 : index
    %c160_95 = arith.constant 160 : index
    %90 = vector.load %arg38[%c0_94, %c160_95] : memref<256x288xbf16, #tpu.memory_space<vmem>>, vector<256x32xbf16>
    tpu.vector_store %arg38[%c0_94, %c160_95], %89 {strides = array<i32>} : memref<256x288xbf16, #tpu.memory_space<vmem>>, vector<256x32xbf16>,
    %c2_96 = arith.constant 2 : index
    %c7_97 = arith.constant 7 : index
    %c0_98 = arith.constant 0 : index
    %91 = vector.load %arg37[%c2_96, %c7_97, %c0_98] : memref<18x32x32xf32, #tpu.memory_space<vmem>>, vector<16x16x32xf32>
    %92 = vector.shape_cast %91 : vector<16x16x32xf32> to vector<256x32xf32>
    %93 = arith.truncf %92 : vector<256x32xf32> to vector<256x32xbf16>
    %c0_99 = arith.constant 0 : index
    %c192_100 = arith.constant 192 : index
    %94 = vector.load %arg38[%c0_99, %c192_100] : memref<256x288xbf16, #tpu.memory_space<vmem>>, vector<256x32xbf16>
    tpu.vector_store %arg38[%c0_99, %c192_100], %93 {strides = array<i32>} : memref<256x288xbf16, #tpu.memory_space<vmem>>, vector<256x32xbf16>,
    %c2_101 = arith.constant 2 : index
    %c8_102 = arith.constant 8 : index
    %c0_103 = arith.constant 0 : index
    %95 = vector.load %arg37[%c2_101, %c8_102, %c0_103] : memref<18x32x32xf32, #tpu.memory_space<vmem>>, vector<16x16x32xf32>
    %96 = vector.shape_cast %95 : vector<16x16x32xf32> to vector<256x32xf32>
    %97 = arith.truncf %96 : vector<256x32xf32> to vector<256x32xbf16>
    %c0_104 = arith.constant 0 : index
    %c224_105 = arith.constant 224 : index
    %98 = vector.load %arg38[%c0_104, %c224_105] : memref<256x288xbf16, #tpu.memory_space<vmem>>, vector<256x32xbf16>
    tpu.vector_store %arg38[%c0_104, %c224_105], %97 {strides = array<i32>} : memref<256x288xbf16, #tpu.memory_space<vmem>>, vector<256x32xbf16>,
    %c2_106 = arith.constant 2 : index
    %c9_107 = arith.constant 9 : index
    %c0_108 = arith.constant 0 : index
    %99 = vector.load %arg37[%c2_106, %c9_107, %c0_108] : memref<18x32x32xf32, #tpu.memory_space<vmem>>, vector<16x16x32xf32>
    %100 = vector.shape_cast %99 : vector<16x16x32xf32> to vector<256x32xf32>
    %101 = arith.truncf %100 : vector<256x32xf32> to vector<256x32xbf16>
    %c0_109 = arith.constant 0 : index
    %c256_110 = arith.constant 256 : index
    %102 = vector.load %arg38[%c0_109, %c256_110] : memref<256x288xbf16, #tpu.memory_space<vmem>>, vector<256x32xbf16>
    tpu.vector_store %arg38[%c0_109, %c256_110], %101 {strides = array<i32>} : memref<256x288xbf16, #tpu.memory_space<vmem>>, vector<256x32xbf16>,
    %c0_111 = arith.constant 0 : index
    %c0_112 = arith.constant 0 : index
    %103 = vector.load %arg38[%c0_111, %c0_112] : memref<256x288xbf16, #tpu.memory_space<vmem>>, vector<256x288xbf16>
    %c0_113 = arith.constant 0 : index
    %c0_114 = arith.constant 0 : index
    %104 = vector.load %arg8[%c0_113, %c0_114] : memref<288x8xbf16, #tpu.memory_space<vmem>>, vector<288x8xbf16>
    %cst_115 = arith.constant dense<0.000000e+00> : vector<256x8xf32>
    %105 = tpu.matmul %103, %104, %cst_115 {dimension_numbers = #tpu.dot_dimension_numbers<[1], [0], [0], [1], [0, 0, 1, 1], [], []>} : vector<256x288xbf16>, vector<288x8xbf16>, vector<256x8xf32> -> vector<256x8xf32>
    %c0_116 = arith.constant 0 : index
    %c16 = arith.constant 16 : index
    %106 = vector.load %arg36[%c0_116, %c16] : memref<256x32xf32, #tpu.memory_space<vmem>>, vector<256x8xf32>
    tpu.vector_store %arg36[%c0_116, %c16], %105 {strides = array<i32>} : memref<256x32xf32, #tpu.memory_space<vmem>>, vector<256x8xf32>,
    %c0_117 = arith.constant 0 : index
    %c0_118 = arith.constant 0 : index
    %107 = vector.load %arg36[%c0_117, %c0_118] : memref<256x32xf32, #tpu.memory_space<vmem>>, vector<256x24xf32>
    %c0_119 = arith.constant 0 : index
    %c0_120 = arith.constant 0 : index
    %108 = vector.load %arg9[%c0_119, %c0_120] : memref<1x24xf32, #tpu.memory_space<vmem>>, vector<1x24xf32>
    %109 = vector.broadcast %108 : vector<1x24xf32> to vector<256x24xf32>
    %110 = arith.mulf %107, %109 : vector<256x24xf32>
    %c0_121 = arith.constant 0 : index
    %c0_122 = arith.constant 0 : index
    %111 = vector.load %arg10[%c0_121, %c0_122] : memref<1x24xf32, #tpu.memory_space<vmem>>, vector<1x24xf32>
    %112 = vector.broadcast %111 : vector<1x24xf32> to vector<256x24xf32>
    %113 = arith.addf %110, %112 : vector<256x24xf32>
    %cst_123 = arith.constant 0.000000e+00 : f32
    %114 = vector.broadcast %cst_123 : f32 to vector<256x24xf32>
    %115 = arith.maximumf %113, %114 : vector<256x24xf32>
    %116 = arith.truncf %115 : vector<256x24xf32> to vector<256x24xbf16>
    %c0_124 = arith.constant 0 : index
    %c0_125 = arith.constant 0 : index
    %117 = vector.load %arg11[%c0_124, %c0_125] : memref<24x32xbf16, #tpu.memory_space<vmem>>, vector<24x32xbf16>
    %cst_126 = arith.constant dense<0.000000e+00> : vector<256x32xf32>
    %118 = tpu.matmul %116, %117, %cst_126 {dimension_numbers = #tpu.dot_dimension_numbers<[1], [0], [0], [1], [0, 0, 1, 1], [], []>} : vector<256x24xbf16>, vector<24x32xbf16>, vector<256x32xf32> -> vector<256x32xf32>
    %c0_127 = arith.constant 0 : index
    %c0_128 = arith.constant 0 : index
    %119 = vector.load %arg12[%c0_127, %c0_128] : memref<1x32xf32, #tpu.memory_space<vmem>>, vector<1x32xf32>
    %120 = vector.broadcast %119 : vector<1x32xf32> to vector<256x32xf32>
    %121 = arith.mulf %118, %120 : vector<256x32xf32>
    %c0_129 = arith.constant 0 : index
    %c0_130 = arith.constant 0 : index
    %122 = vector.load %arg13[%c0_129, %c0_130] : memref<1x32xf32, #tpu.memory_space<vmem>>, vector<1x32xf32>
    %123 = vector.broadcast %122 : vector<1x32xf32> to vector<256x32xf32>
    %124 = arith.addf %121, %123 : vector<256x32xf32>
    %cst_131 = arith.constant 0.000000e+00 : f32
    %125 = vector.broadcast %cst_131 : f32 to vector<256x32xf32>
    %126 = arith.maximumf %124, %125 : vector<256x32xf32>
    %127 = vector.shape_cast %126 : vector<256x32xf32> to vector<16x16x32xf32>
    %c1_132 = arith.constant 1 : index
    %c8_133 = arith.constant 8 : index
    %c0_134 = arith.constant 0 : index
    %128 = vector.load %arg37[%c1_132, %c8_133, %c0_134] : memref<18x32x32xf32, #tpu.memory_space<vmem>>, vector<16x16x32xf32>
    tpu.vector_store %arg37[%c1_132, %c8_133, %c0_134], %127 {strides = array<i32>} : memref<18x32x32xf32, #tpu.memory_space<vmem>>, vector<16x16x32xf32>,
    %c0_135 = arith.constant 0 : index
    %c7_136 = arith.constant 7 : index
    %c0_137 = arith.constant 0 : index
    %129 = vector.load %arg37[%c0_135, %c7_136, %c0_137] : memref<18x32x32xf32, #tpu.memory_space<vmem>>, vector<16x16x32xf32>
    %130 = vector.shape_cast %129 : vector<16x16x32xf32> to vector<256x32xf32>
    %131 = arith.truncf %130 : vector<256x32xf32> to vector<256x32xbf16>
    %c0_138 = arith.constant 0 : index
    %c0_139 = arith.constant 0 : index
    %132 = vector.load %arg38[%c0_138, %c0_139] : memref<256x288xbf16, #tpu.memory_space<vmem>>, vector<256x32xbf16>
    tpu.vector_store %arg38[%c0_138, %c0_139], %131 {strides = array<i32>} : memref<256x288xbf16, #tpu.memory_space<vmem>>, vector<256x32xbf16>,
    %c0_140 = arith.constant 0 : index
    %c8_141 = arith.constant 8 : index
    %c0_142 = arith.constant 0 : index
    %133 = vector.load %arg37[%c0_140, %c8_141, %c0_142] : memref<18x32x32xf32, #tpu.memory_space<vmem>>, vector<16x16x32xf32>
    %134 = vector.shape_cast %133 : vector<16x16x32xf32> to vector<256x32xf32>
    %135 = arith.truncf %134 : vector<256x32xf32> to vector<256x32xbf16>
    %c0_143 = arith.constant 0 : index
    %c32_144 = arith.constant 32 : index
    %136 = vector.load %arg38[%c0_143, %c32_144] : memref<256x288xbf16, #tpu.memory_space<vmem>>, vector<256x32xbf16>
    tpu.vector_store %arg38[%c0_143, %c32_144], %135 {strides = array<i32>} : memref<256x288xbf16, #tpu.memory_space<vmem>>, vector<256x32xbf16>,
    %c0_145 = arith.constant 0 : index
    %c9_146 = arith.constant 9 : index
    %c0_147 = arith.constant 0 : index
    %137 = vector.load %arg37[%c0_145, %c9_146, %c0_147] : memref<18x32x32xf32, #tpu.memory_space<vmem>>, vector<16x16x32xf32>
    %138 = vector.shape_cast %137 : vector<16x16x32xf32> to vector<256x32xf32>
    %139 = arith.truncf %138 : vector<256x32xf32> to vector<256x32xbf16>
    %c0_148 = arith.constant 0 : index
    %c64_149 = arith.constant 64 : index
    %140 = vector.load %arg38[%c0_148, %c64_149] : memref<256x288xbf16, #tpu.memory_space<vmem>>, vector<256x32xbf16>
    tpu.vector_store %arg38[%c0_148, %c64_149], %139 {strides = array<i32>} : memref<256x288xbf16, #tpu.memory_space<vmem>>, vector<256x32xbf16>,
    %c1_150 = arith.constant 1 : index
    %c7_151 = arith.constant 7 : index
    %c0_152 = arith.constant 0 : index
    %141 = vector.load %arg37[%c1_150, %c7_151, %c0_152] : memref<18x32x32xf32, #tpu.memory_space<vmem>>, vector<16x16x32xf32>
    %142 = vector.shape_cast %141 : vector<16x16x32xf32> to vector<256x32xf32>
    %143 = arith.truncf %142 : vector<256x32xf32> to vector<256x32xbf16>
    %c0_153 = arith.constant 0 : index
    %c96_154 = arith.constant 96 : index
    %144 = vector.load %arg38[%c0_153, %c96_154] : memref<256x288xbf16, #tpu.memory_space<vmem>>, vector<256x32xbf16>
    tpu.vector_store %arg38[%c0_153, %c96_154], %143 {strides = array<i32>} : memref<256x288xbf16, #tpu.memory_space<vmem>>, vector<256x32xbf16>,
    %c1_155 = arith.constant 1 : index
    %c8_156 = arith.constant 8 : index
    %c0_157 = arith.constant 0 : index
    %145 = vector.load %arg37[%c1_155, %c8_156, %c0_157] : memref<18x32x32xf32, #tpu.memory_space<vmem>>, vector<16x16x32xf32>
    %146 = vector.shape_cast %145 : vector<16x16x32xf32> to vector<256x32xf32>
    %147 = arith.truncf %146 : vector<256x32xf32> to vector<256x32xbf16>
    %c0_158 = arith.constant 0 : index
    %c128_159 = arith.constant 128 : index
    %148 = vector.load %arg38[%c0_158, %c128_159] : memref<256x288xbf16, #tpu.memory_space<vmem>>, vector<256x32xbf16>
    tpu.vector_store %arg38[%c0_158, %c128_159], %147 {strides = array<i32>} : memref<256x288xbf16, #tpu.memory_space<vmem>>, vector<256x32xbf16>,
    %c1_160 = arith.constant 1 : index
    %c9_161 = arith.constant 9 : index
    %c0_162 = arith.constant 0 : index
    %149 = vector.load %arg37[%c1_160, %c9_161, %c0_162] : memref<18x32x32xf32, #tpu.memory_space<vmem>>, vector<16x16x32xf32>
    %150 = vector.shape_cast %149 : vector<16x16x32xf32> to vector<256x32xf32>
    %151 = arith.truncf %150 : vector<256x32xf32> to vector<256x32xbf16>
    %c0_163 = arith.constant 0 : index
    %c160_164 = arith.constant 160 : index
    %152 = vector.load %arg38[%c0_163, %c160_164] : memref<256x288xbf16, #tpu.memory_space<vmem>>, vector<256x32xbf16>
    tpu.vector_store %arg38[%c0_163, %c160_164], %151 {strides = array<i32>} : memref<256x288xbf16, #tpu.memory_space<vmem>>, vector<256x32xbf16>,
    %c2_165 = arith.constant 2 : index
    %c7_166 = arith.constant 7 : index
    %c0_167 = arith.constant 0 : index
    %153 = vector.load %arg37[%c2_165, %c7_166, %c0_167] : memref<18x32x32xf32, #tpu.memory_space<vmem>>, vector<16x16x32xf32>
    %154 = vector.shape_cast %153 : vector<16x16x32xf32> to vector<256x32xf32>
    %155 = arith.truncf %154 : vector<256x32xf32> to vector<256x32xbf16>
    %c0_168 = arith.constant 0 : index
    %c192_169 = arith.constant 192 : index
    %156 = vector.load %arg38[%c0_168, %c192_169] : memref<256x288xbf16, #tpu.memory_space<vmem>>, vector<256x32xbf16>
    tpu.vector_store %arg38[%c0_168, %c192_169], %155 {strides = array<i32>} : memref<256x288xbf16, #tpu.memory_space<vmem>>, vector<256x32xbf16>,
    %c2_170 = arith.constant 2 : index
    %c8_171 = arith.constant 8 : index
    %c0_172 = arith.constant 0 : index
    %157 = vector.load %arg37[%c2_170, %c8_171, %c0_172] : memref<18x32x32xf32, #tpu.memory_space<vmem>>, vector<16x16x32xf32>
    %158 = vector.shape_cast %157 : vector<16x16x32xf32> to vector<256x32xf32>
    %159 = arith.truncf %158 : vector<256x32xf32> to vector<256x32xbf16>
    %c0_173 = arith.constant 0 : index
    %c224_174 = arith.constant 224 : index
    %160 = vector.load %arg38[%c0_173, %c224_174] : memref<256x288xbf16, #tpu.memory_space<vmem>>, vector<256x32xbf16>
    tpu.vector_store %arg38[%c0_173, %c224_174], %159 {strides = array<i32>} : memref<256x288xbf16, #tpu.memory_space<vmem>>, vector<256x32xbf16>,
    %c2_175 = arith.constant 2 : index
    %c9_176 = arith.constant 9 : index
    %c0_177 = arith.constant 0 : index
    %161 = vector.load %arg37[%c2_175, %c9_176, %c0_177] : memref<18x32x32xf32, #tpu.memory_space<vmem>>, vector<16x16x32xf32>
    %162 = vector.shape_cast %161 : vector<16x16x32xf32> to vector<256x32xf32>
    %163 = arith.truncf %162 : vector<256x32xf32> to vector<256x32xbf16>
    %c0_178 = arith.constant 0 : index
    %c256_179 = arith.constant 256 : index
    %164 = vector.load %arg38[%c0_178, %c256_179] : memref<256x288xbf16, #tpu.memory_space<vmem>>, vector<256x32xbf16>
    tpu.vector_store %arg38[%c0_178, %c256_179], %163 {strides = array<i32>} : memref<256x288xbf16, #tpu.memory_space<vmem>>, vector<256x32xbf16>,
    %c0_180 = arith.constant 0 : index
    %c0_181 = arith.constant 0 : index
    %165 = vector.load %arg38[%c0_180, %c0_181] : memref<256x288xbf16, #tpu.memory_space<vmem>>, vector<256x288xbf16>
    %c0_182 = arith.constant 0 : index
    %c0_183 = arith.constant 0 : index
    %166 = vector.load %arg14[%c0_182, %c0_183] : memref<288x8xbf16, #tpu.memory_space<vmem>>, vector<288x8xbf16>
    %cst_184 = arith.constant dense<0.000000e+00> : vector<256x8xf32>
    %167 = tpu.matmul %165, %166, %cst_184 {dimension_numbers = #tpu.dot_dimension_numbers<[1], [0], [0], [1], [0, 0, 1, 1], [], []>} : vector<256x288xbf16>, vector<288x8xbf16>, vector<256x8xf32> -> vector<256x8xf32>
    %c0_185 = arith.constant 0 : index
    %c24 = arith.constant 24 : index
    %168 = vector.load %arg36[%c0_185, %c24] : memref<256x32xf32, #tpu.memory_space<vmem>>, vector<256x8xf32>
    tpu.vector_store %arg36[%c0_185, %c24], %167 {strides = array<i32>} : memref<256x32xf32, #tpu.memory_space<vmem>>, vector<256x8xf32>,
    %c0_186 = arith.constant 0 : index
    %c0_187 = arith.constant 0 : index
    %169 = vector.load %arg15[%c0_186, %c0_187] : memref<64x256xbf16, #tpu.memory_space<vmem>>, vector<64x256xbf16>
    %c0_188 = arith.constant 0 : index
    %c0_189 = arith.constant 0 : index
    %170 = vector.load %arg36[%c0_188, %c0_189] : memref<256x32xf32, #tpu.memory_space<vmem>>, vector<256x32xf32>
    %171 = arith.truncf %170 : vector<256x32xf32> to vector<256x32xbf16>
    %cst_190 = arith.constant dense<0.000000e+00> : vector<64x32xf32>
    %172 = tpu.matmul %169, %171, %cst_190 {dimension_numbers = #tpu.dot_dimension_numbers<[1], [0], [0], [1], [0, 0, 1, 1], [], []>} : vector<64x256xbf16>, vector<256x32xbf16>, vector<64x32xf32> -> vector<64x32xf32>
    %c0_191 = arith.constant 0 : index
    %c0_192 = arith.constant 0 : index
    %173 = vector.load %arg16[%c0_191, %c0_192] : memref<1x32xf32, #tpu.memory_space<vmem>>, vector<1x32xf32>
    %174 = vector.broadcast %173 : vector<1x32xf32> to vector<64x32xf32>
    %175 = arith.mulf %172, %174 : vector<64x32xf32>
    %c0_193 = arith.constant 0 : index
    %c0_194 = arith.constant 0 : index
    %176 = vector.load %arg17[%c0_193, %c0_194] : memref<1x32xf32, #tpu.memory_space<vmem>>, vector<1x32xf32>
    %177 = vector.broadcast %176 : vector<1x32xf32> to vector<64x32xf32>
    %178 = arith.addf %175, %177 : vector<64x32xf32>
    %179 = arith.truncf %178 : vector<64x32xf32> to vector<64x32xbf16>
    %c0_195 = arith.constant 0 : index
    %c0_196 = arith.constant 0 : index
    %180 = vector.load %arg18[%c0_195, %c0_196] : memref<32x16xbf16, #tpu.memory_space<vmem>>, vector<32x16xbf16>
    %cst_197 = arith.constant dense<0.000000e+00> : vector<64x16xf32>
    %181 = tpu.matmul %179, %180, %cst_197 {dimension_numbers = #tpu.dot_dimension_numbers<[1], [0], [0], [1], [0, 0, 1, 1], [], []>} : vector<64x32xbf16>, vector<32x16xbf16>, vector<64x16xf32> -> vector<64x16xf32>
    %c0_198 = arith.constant 0 : index
    %c0_199 = arith.constant 0 : index
    %182 = vector.load %arg39[%c0_198, %c0_199] : memref<64x32xf32, #tpu.memory_space<vmem>>, vector<64x16xf32>
    tpu.vector_store %arg39[%c0_198, %c0_199], %181 {strides = array<i32>} : memref<64x32xf32, #tpu.memory_space<vmem>>, vector<64x16xf32>,
    %cst_200 = arith.constant 0.000000e+00 : f32
    %183 = vector.broadcast %cst_200 : f32 to vector<10x24x32xf32>
    %c0_201 = arith.constant 0 : index
    %c0_202 = arith.constant 0 : index
    %c0_203 = arith.constant 0 : index
    %184 = vector.load %arg40[%c0_201, %c0_202, %c0_203] : memref<10x24x32xf32, #tpu.memory_space<vmem>>, vector<10x24x32xf32>
    tpu.vector_store %arg40[%c0_201, %c0_202, %c0_203], %183 {strides = array<i32>} : memref<10x24x32xf32, #tpu.memory_space<vmem>>, vector<10x24x32xf32>,
    %c0_204 = arith.constant 0 : index
    %c0_205 = arith.constant 0 : index
    %185 = vector.load %arg39[%c0_204, %c0_205] : memref<64x32xf32, #tpu.memory_space<vmem>>, vector<64x16xf32>
    %c0_206 = arith.constant 0 : index
    %c0_207 = arith.constant 0 : index
    %186 = vector.load %arg19[%c0_206, %c0_207] : memref<1x16xf32, #tpu.memory_space<vmem>>, vector<1x16xf32>
    %187 = vector.broadcast %186 : vector<1x16xf32> to vector<64x16xf32>
    %188 = arith.mulf %185, %187 : vector<64x16xf32>
    %c0_208 = arith.constant 0 : index
    %c0_209 = arith.constant 0 : index
    %189 = vector.load %arg20[%c0_208, %c0_209] : memref<1x16xf32, #tpu.memory_space<vmem>>, vector<1x16xf32>
    %190 = vector.broadcast %189 : vector<1x16xf32> to vector<64x16xf32>
    %191 = arith.addf %188, %190 : vector<64x16xf32>
    %cst_210 = arith.constant 0.000000e+00 : f32
    %192 = vector.broadcast %cst_210 : f32 to vector<64x16xf32>
    %193 = arith.maximumf %191, %192 : vector<64x16xf32>
    %194 = arith.truncf %193 : vector<64x16xf32> to vector<64x16xbf16>
    %c0_211 = arith.constant 0 : index
    %c0_212 = arith.constant 0 : index
    %195 = vector.load %arg21[%c0_211, %c0_212] : memref<16x32xbf16, #tpu.memory_space<vmem>>, vector<16x32xbf16>
    %cst_213 = arith.constant dense<0.000000e+00> : vector<64x32xf32>
    %196 = tpu.matmul %194, %195, %cst_213 {dimension_numbers = #tpu.dot_dimension_numbers<[1], [0], [0], [1], [0, 0, 1, 1], [], []>} : vector<64x16xbf16>, vector<16x32xbf16>, vector<64x32xf32> -> vector<64x32xf32>
    %c0_214 = arith.constant 0 : index
    %c0_215 = arith.constant 0 : index
    %197 = vector.load %arg22[%c0_214, %c0_215] : memref<1x32xf32, #tpu.memory_space<vmem>>, vector<1x32xf32>
    %198 = vector.broadcast %197 : vector<1x32xf32> to vector<64x32xf32>
    %199 = arith.mulf %196, %198 : vector<64x32xf32>
    %c0_216 = arith.constant 0 : index
    %c0_217 = arith.constant 0 : index
    %200 = vector.load %arg23[%c0_216, %c0_217] : memref<1x32xf32, #tpu.memory_space<vmem>>, vector<1x32xf32>
    %201 = vector.broadcast %200 : vector<1x32xf32> to vector<64x32xf32>
    %202 = arith.addf %199, %201 : vector<64x32xf32>
    %cst_218 = arith.constant 0.000000e+00 : f32
    %203 = vector.broadcast %cst_218 : f32 to vector<64x32xf32>
    %204 = arith.maximumf %202, %203 : vector<64x32xf32>
    %205 = vector.shape_cast %204 : vector<64x32xf32> to vector<8x8x32xf32>
    %c1_219 = arith.constant 1 : index
    %c8_220 = arith.constant 8 : index
    %c0_221 = arith.constant 0 : index
    %206 = vector.load %arg40[%c1_219, %c8_220, %c0_221] : memref<10x24x32xf32, #tpu.memory_space<vmem>>, vector<8x8x32xf32>
    tpu.vector_store %arg40[%c1_219, %c8_220, %c0_221], %205 {strides = array<i32>} : memref<10x24x32xf32, #tpu.memory_space<vmem>>, vector<8x8x32xf32>,
    %c0_222 = arith.constant 0 : index
    %c7_223 = arith.constant 7 : index
    %c0_224 = arith.constant 0 : index
    %207 = vector.load %arg40[%c0_222, %c7_223, %c0_224] : memref<10x24x32xf32, #tpu.memory_space<vmem>>, vector<8x8x32xf32>
    %208 = vector.shape_cast %207 : vector<8x8x32xf32> to vector<64x32xf32>
    %209 = arith.truncf %208 : vector<64x32xf32> to vector<64x32xbf16>
    %c0_225 = arith.constant 0 : index
    %c0_226 = arith.constant 0 : index
    %210 = vector.load %arg41[%c0_225, %c0_226] : memref<64x288xbf16, #tpu.memory_space<vmem>>, vector<64x32xbf16>
    tpu.vector_store %arg41[%c0_225, %c0_226], %209 {strides = array<i32>} : memref<64x288xbf16, #tpu.memory_space<vmem>>, vector<64x32xbf16>,
    %c0_227 = arith.constant 0 : index
    %c8_228 = arith.constant 8 : index
    %c0_229 = arith.constant 0 : index
    %211 = vector.load %arg40[%c0_227, %c8_228, %c0_229] : memref<10x24x32xf32, #tpu.memory_space<vmem>>, vector<8x8x32xf32>
    %212 = vector.shape_cast %211 : vector<8x8x32xf32> to vector<64x32xf32>
    %213 = arith.truncf %212 : vector<64x32xf32> to vector<64x32xbf16>
    %c0_230 = arith.constant 0 : index
    %c32_231 = arith.constant 32 : index
    %214 = vector.load %arg41[%c0_230, %c32_231] : memref<64x288xbf16, #tpu.memory_space<vmem>>, vector<64x32xbf16>
    tpu.vector_store %arg41[%c0_230, %c32_231], %213 {strides = array<i32>} : memref<64x288xbf16, #tpu.memory_space<vmem>>, vector<64x32xbf16>,
    %c0_232 = arith.constant 0 : index
    %c9_233 = arith.constant 9 : index
    %c0_234 = arith.constant 0 : index
    %215 = vector.load %arg40[%c0_232, %c9_233, %c0_234] : memref<10x24x32xf32, #tpu.memory_space<vmem>>, vector<8x8x32xf32>
    %216 = vector.shape_cast %215 : vector<8x8x32xf32> to vector<64x32xf32>
    %217 = arith.truncf %216 : vector<64x32xf32> to vector<64x32xbf16>
    %c0_235 = arith.constant 0 : index
    %c64_236 = arith.constant 64 : index
    %218 = vector.load %arg41[%c0_235, %c64_236] : memref<64x288xbf16, #tpu.memory_space<vmem>>, vector<64x32xbf16>
    tpu.vector_store %arg41[%c0_235, %c64_236], %217 {strides = array<i32>} : memref<64x288xbf16, #tpu.memory_space<vmem>>, vector<64x32xbf16>,
    %c1_237 = arith.constant 1 : index
    %c7_238 = arith.constant 7 : index
    %c0_239 = arith.constant 0 : index
    %219 = vector.load %arg40[%c1_237, %c7_238, %c0_239] : memref<10x24x32xf32, #tpu.memory_space<vmem>>, vector<8x8x32xf32>
    %220 = vector.shape_cast %219 : vector<8x8x32xf32> to vector<64x32xf32>
    %221 = arith.truncf %220 : vector<64x32xf32> to vector<64x32xbf16>
    %c0_240 = arith.constant 0 : index
    %c96_241 = arith.constant 96 : index
    %222 = vector.load %arg41[%c0_240, %c96_241] : memref<64x288xbf16, #tpu.memory_space<vmem>>, vector<64x32xbf16>
    tpu.vector_store %arg41[%c0_240, %c96_241], %221 {strides = array<i32>} : memref<64x288xbf16, #tpu.memory_space<vmem>>, vector<64x32xbf16>,
    %c1_242 = arith.constant 1 : index
    %c8_243 = arith.constant 8 : index
    %c0_244 = arith.constant 0 : index
    %223 = vector.load %arg40[%c1_242, %c8_243, %c0_244] : memref<10x24x32xf32, #tpu.memory_space<vmem>>, vector<8x8x32xf32>
    %224 = vector.shape_cast %223 : vector<8x8x32xf32> to vector<64x32xf32>
    %225 = arith.truncf %224 : vector<64x32xf32> to vector<64x32xbf16>
    %c0_245 = arith.constant 0 : index
    %c128_246 = arith.constant 128 : index
    %226 = vector.load %arg41[%c0_245, %c128_246] : memref<64x288xbf16, #tpu.memory_space<vmem>>, vector<64x32xbf16>
    tpu.vector_store %arg41[%c0_245, %c128_246], %225 {strides = array<i32>} : memref<64x288xbf16, #tpu.memory_space<vmem>>, vector<64x32xbf16>,
    %c1_247 = arith.constant 1 : index
    %c9_248 = arith.constant 9 : index
    %c0_249 = arith.constant 0 : index
    %227 = vector.load %arg40[%c1_247, %c9_248, %c0_249] : memref<10x24x32xf32, #tpu.memory_space<vmem>>, vector<8x8x32xf32>
    %228 = vector.shape_cast %227 : vector<8x8x32xf32> to vector<64x32xf32>
    %229 = arith.truncf %228 : vector<64x32xf32> to vector<64x32xbf16>
    %c0_250 = arith.constant 0 : index
    %c160_251 = arith.constant 160 : index
    %230 = vector.load %arg41[%c0_250, %c160_251] : memref<64x288xbf16, #tpu.memory_space<vmem>>, vector<64x32xbf16>
    tpu.vector_store %arg41[%c0_250, %c160_251], %229 {strides = array<i32>} : memref<64x288xbf16, #tpu.memory_space<vmem>>, vector<64x32xbf16>,
    %c2_252 = arith.constant 2 : index
    %c7_253 = arith.constant 7 : index
    %c0_254 = arith.constant 0 : index
    %231 = vector.load %arg40[%c2_252, %c7_253, %c0_254] : memref<10x24x32xf32, #tpu.memory_space<vmem>>, vector<8x8x32xf32>
    %232 = vector.shape_cast %231 : vector<8x8x32xf32> to vector<64x32xf32>
    %233 = arith.truncf %232 : vector<64x32xf32> to vector<64x32xbf16>
    %c0_255 = arith.constant 0 : index
    %c192_256 = arith.constant 192 : index
    %234 = vector.load %arg41[%c0_255, %c192_256] : memref<64x288xbf16, #tpu.memory_space<vmem>>, vector<64x32xbf16>
    tpu.vector_store %arg41[%c0_255, %c192_256], %233 {strides = array<i32>} : memref<64x288xbf16, #tpu.memory_space<vmem>>, vector<64x32xbf16>,
    %c2_257 = arith.constant 2 : index
    %c8_258 = arith.constant 8 : index
    %c0_259 = arith.constant 0 : index
    %235 = vector.load %arg40[%c2_257, %c8_258, %c0_259] : memref<10x24x32xf32, #tpu.memory_space<vmem>>, vector<8x8x32xf32>
    %236 = vector.shape_cast %235 : vector<8x8x32xf32> to vector<64x32xf32>
    %237 = arith.truncf %236 : vector<64x32xf32> to vector<64x32xbf16>
    %c0_260 = arith.constant 0 : index
    %c224_261 = arith.constant 224 : index
    %238 = vector.load %arg41[%c0_260, %c224_261] : memref<64x288xbf16, #tpu.memory_space<vmem>>, vector<64x32xbf16>
    tpu.vector_store %arg41[%c0_260, %c224_261], %237 {strides = array<i32>} : memref<64x288xbf16, #tpu.memory_space<vmem>>, vector<64x32xbf16>,
    %c2_262 = arith.constant 2 : index
    %c9_263 = arith.constant 9 : index
    %c0_264 = arith.constant 0 : index
    %239 = vector.load %arg40[%c2_262, %c9_263, %c0_264] : memref<10x24x32xf32, #tpu.memory_space<vmem>>, vector<8x8x32xf32>
    %240 = vector.shape_cast %239 : vector<8x8x32xf32> to vector<64x32xf32>
    %241 = arith.truncf %240 : vector<64x32xf32> to vector<64x32xbf16>
    %c0_265 = arith.constant 0 : index
    %c256_266 = arith.constant 256 : index
    %242 = vector.load %arg41[%c0_265, %c256_266] : memref<64x288xbf16, #tpu.memory_space<vmem>>, vector<64x32xbf16>
    tpu.vector_store %arg41[%c0_265, %c256_266], %241 {strides = array<i32>} : memref<64x288xbf16, #tpu.memory_space<vmem>>, vector<64x32xbf16>,
    %c0_267 = arith.constant 0 : index
    %c0_268 = arith.constant 0 : index
    %243 = vector.load %arg41[%c0_267, %c0_268] : memref<64x288xbf16, #tpu.memory_space<vmem>>, vector<64x288xbf16>
    %c0_269 = arith.constant 0 : index
    %c0_270 = arith.constant 0 : index
    %244 = vector.load %arg24[%c0_269, %c0_270] : memref<288x8xbf16, #tpu.memory_space<vmem>>, vector<288x8xbf16>
    %cst_271 = arith.constant dense<0.000000e+00> : vector<64x8xf32>
    %245 = tpu.matmul %243, %244, %cst_271 {dimension_numbers = #tpu.dot_dimension_numbers<[1], [0], [0], [1], [0, 0, 1, 1], [], []>} : vector<64x288xbf16>, vector<288x8xbf16>, vector<64x8xf32> -> vector<64x8xf32>
    %c0_272 = arith.constant 0 : index
    %c16_273 = arith.constant 16 : index
    %246 = vector.load %arg39[%c0_272, %c16_273] : memref<64x32xf32, #tpu.memory_space<vmem>>, vector<64x8xf32>
    tpu.vector_store %arg39[%c0_272, %c16_273], %245 {strides = array<i32>} : memref<64x32xf32, #tpu.memory_space<vmem>>, vector<64x8xf32>,
    %c0_274 = arith.constant 0 : index
    %c0_275 = arith.constant 0 : index
    %247 = vector.load %arg39[%c0_274, %c0_275] : memref<64x32xf32, #tpu.memory_space<vmem>>, vector<64x24xf32>
    %c0_276 = arith.constant 0 : index
    %c0_277 = arith.constant 0 : index
    %248 = vector.load %arg25[%c0_276, %c0_277] : memref<1x24xf32, #tpu.memory_space<vmem>>, vector<1x24xf32>
    %249 = vector.broadcast %248 : vector<1x24xf32> to vector<64x24xf32>
    %250 = arith.mulf %247, %249 : vector<64x24xf32>
    %c0_278 = arith.constant 0 : index
    %c0_279 = arith.constant 0 : index
    %251 = vector.load %arg26[%c0_278, %c0_279] : memref<1x24xf32, #tpu.memory_space<vmem>>, vector<1x24xf32>
    %252 = vector.broadcast %251 : vector<1x24xf32> to vector<64x24xf32>
    %253 = arith.addf %250, %252 : vector<64x24xf32>
    %cst_280 = arith.constant 0.000000e+00 : f32
    %254 = vector.broadcast %cst_280 : f32 to vector<64x24xf32>
    %255 = arith.maximumf %253, %254 : vector<64x24xf32>
    %256 = arith.truncf %255 : vector<64x24xf32> to vector<64x24xbf16>
    %c0_281 = arith.constant 0 : index
    %c0_282 = arith.constant 0 : index
    %257 = vector.load %arg27[%c0_281, %c0_282] : memref<24x32xbf16, #tpu.memory_space<vmem>>, vector<24x32xbf16>
    %cst_283 = arith.constant dense<0.000000e+00> : vector<64x32xf32>
    %258 = tpu.matmul %256, %257, %cst_283 {dimension_numbers = #tpu.dot_dimension_numbers<[1], [0], [0], [1], [0, 0, 1, 1], [], []>} : vector<64x24xbf16>, vector<24x32xbf16>, vector<64x32xf32> -> vector<64x32xf32>
    %c0_284 = arith.constant 0 : index
    %c0_285 = arith.constant 0 : index
    %259 = vector.load %arg28[%c0_284, %c0_285] : memref<1x32xf32, #tpu.memory_space<vmem>>, vector<1x32xf32>
    %260 = vector.broadcast %259 : vector<1x32xf32> to vector<64x32xf32>
    %261 = arith.mulf %258, %260 : vector<64x32xf32>
    %c0_286 = arith.constant 0 : index
    %c0_287 = arith.constant 0 : index
    %262 = vector.load %arg29[%c0_286, %c0_287] : memref<1x32xf32, #tpu.memory_space<vmem>>, vector<1x32xf32>
    %263 = vector.broadcast %262 : vector<1x32xf32> to vector<64x32xf32>
    %264 = arith.addf %261, %263 : vector<64x32xf32>
    %cst_288 = arith.constant 0.000000e+00 : f32
    %265 = vector.broadcast %cst_288 : f32 to vector<64x32xf32>
    %266 = arith.maximumf %264, %265 : vector<64x32xf32>
    %267 = vector.shape_cast %266 : vector<64x32xf32> to vector<8x8x32xf32>
    %c1_289 = arith.constant 1 : index
    %c8_290 = arith.constant 8 : index
    %c0_291 = arith.constant 0 : index
    %268 = vector.load %arg40[%c1_289, %c8_290, %c0_291] : memref<10x24x32xf32, #tpu.memory_space<vmem>>, vector<8x8x32xf32>
    tpu.vector_store %arg40[%c1_289, %c8_290, %c0_291], %267 {strides = array<i32>} : memref<10x24x32xf32, #tpu.memory_space<vmem>>, vector<8x8x32xf32>,
    %c0_292 = arith.constant 0 : index
    %c7_293 = arith.constant 7 : index
    %c0_294 = arith.constant 0 : index
    %269 = vector.load %arg40[%c0_292, %c7_293, %c0_294] : memref<10x24x32xf32, #tpu.memory_space<vmem>>, vector<8x8x32xf32>
    %270 = vector.shape_cast %269 : vector<8x8x32xf32> to vector<64x32xf32>
    %271 = arith.truncf %270 : vector<64x32xf32> to vector<64x32xbf16>
    %c0_295 = arith.constant 0 : index
    %c0_296 = arith.constant 0 : index
    %272 = vector.load %arg41[%c0_295, %c0_296] : memref<64x288xbf16, #tpu.memory_space<vmem>>, vector<64x32xbf16>
    tpu.vector_store %arg41[%c0_295, %c0_296], %271 {strides = array<i32>} : memref<64x288xbf16, #tpu.memory_space<vmem>>, vector<64x32xbf16>,
    %c0_297 = arith.constant 0 : index
    %c8_298 = arith.constant 8 : index
    %c0_299 = arith.constant 0 : index
    %273 = vector.load %arg40[%c0_297, %c8_298, %c0_299] : memref<10x24x32xf32, #tpu.memory_space<vmem>>, vector<8x8x32xf32>
    %274 = vector.shape_cast %273 : vector<8x8x32xf32> to vector<64x32xf32>
    %275 = arith.truncf %274 : vector<64x32xf32> to vector<64x32xbf16>
    %c0_300 = arith.constant 0 : index
    %c32_301 = arith.constant 32 : index
    %276 = vector.load %arg41[%c0_300, %c32_301] : memref<64x288xbf16, #tpu.memory_space<vmem>>, vector<64x32xbf16>
    tpu.vector_store %arg41[%c0_300, %c32_301], %275 {strides = array<i32>} : memref<64x288xbf16, #tpu.memory_space<vmem>>, vector<64x32xbf16>,
    %c0_302 = arith.constant 0 : index
    %c9_303 = arith.constant 9 : index
    %c0_304 = arith.constant 0 : index
    %277 = vector.load %arg40[%c0_302, %c9_303, %c0_304] : memref<10x24x32xf32, #tpu.memory_space<vmem>>, vector<8x8x32xf32>
    %278 = vector.shape_cast %277 : vector<8x8x32xf32> to vector<64x32xf32>
    %279 = arith.truncf %278 : vector<64x32xf32> to vector<64x32xbf16>
    %c0_305 = arith.constant 0 : index
    %c64_306 = arith.constant 64 : index
    %280 = vector.load %arg41[%c0_305, %c64_306] : memref<64x288xbf16, #tpu.memory_space<vmem>>, vector<64x32xbf16>
    tpu.vector_store %arg41[%c0_305, %c64_306], %279 {strides = array<i32>} : memref<64x288xbf16, #tpu.memory_space<vmem>>, vector<64x32xbf16>,
    %c1_307 = arith.constant 1 : index
    %c7_308 = arith.constant 7 : index
    %c0_309 = arith.constant 0 : index
    %281 = vector.load %arg40[%c1_307, %c7_308, %c0_309] : memref<10x24x32xf32, #tpu.memory_space<vmem>>, vector<8x8x32xf32>
    %282 = vector.shape_cast %281 : vector<8x8x32xf32> to vector<64x32xf32>
    %283 = arith.truncf %282 : vector<64x32xf32> to vector<64x32xbf16>
    %c0_310 = arith.constant 0 : index
    %c96_311 = arith.constant 96 : index
    %284 = vector.load %arg41[%c0_310, %c96_311] : memref<64x288xbf16, #tpu.memory_space<vmem>>, vector<64x32xbf16>
    tpu.vector_store %arg41[%c0_310, %c96_311], %283 {strides = array<i32>} : memref<64x288xbf16, #tpu.memory_space<vmem>>, vector<64x32xbf16>,
    %c1_312 = arith.constant 1 : index
    %c8_313 = arith.constant 8 : index
    %c0_314 = arith.constant 0 : index
    %285 = vector.load %arg40[%c1_312, %c8_313, %c0_314] : memref<10x24x32xf32, #tpu.memory_space<vmem>>, vector<8x8x32xf32>
    %286 = vector.shape_cast %285 : vector<8x8x32xf32> to vector<64x32xf32>
    %287 = arith.truncf %286 : vector<64x32xf32> to vector<64x32xbf16>
    %c0_315 = arith.constant 0 : index
    %c128_316 = arith.constant 128 : index
    %288 = vector.load %arg41[%c0_315, %c128_316] : memref<64x288xbf16, #tpu.memory_space<vmem>>, vector<64x32xbf16>
    tpu.vector_store %arg41[%c0_315, %c128_316], %287 {strides = array<i32>} : memref<64x288xbf16, #tpu.memory_space<vmem>>, vector<64x32xbf16>,
    %c1_317 = arith.constant 1 : index
    %c9_318 = arith.constant 9 : index
    %c0_319 = arith.constant 0 : index
    %289 = vector.load %arg40[%c1_317, %c9_318, %c0_319] : memref<10x24x32xf32, #tpu.memory_space<vmem>>, vector<8x8x32xf32>
    %290 = vector.shape_cast %289 : vector<8x8x32xf32> to vector<64x32xf32>
    %291 = arith.truncf %290 : vector<64x32xf32> to vector<64x32xbf16>
    %c0_320 = arith.constant 0 : index
    %c160_321 = arith.constant 160 : index
    %292 = vector.load %arg41[%c0_320, %c160_321] : memref<64x288xbf16, #tpu.memory_space<vmem>>, vector<64x32xbf16>
    tpu.vector_store %arg41[%c0_320, %c160_321], %291 {strides = array<i32>} : memref<64x288xbf16, #tpu.memory_space<vmem>>, vector<64x32xbf16>,
    %c2_322 = arith.constant 2 : index
    %c7_323 = arith.constant 7 : index
    %c0_324 = arith.constant 0 : index
    %293 = vector.load %arg40[%c2_322, %c7_323, %c0_324] : memref<10x24x32xf32, #tpu.memory_space<vmem>>, vector<8x8x32xf32>
    %294 = vector.shape_cast %293 : vector<8x8x32xf32> to vector<64x32xf32>
    %295 = arith.truncf %294 : vector<64x32xf32> to vector<64x32xbf16>
    %c0_325 = arith.constant 0 : index
    %c192_326 = arith.constant 192 : index
    %296 = vector.load %arg41[%c0_325, %c192_326] : memref<64x288xbf16, #tpu.memory_space<vmem>>, vector<64x32xbf16>
    tpu.vector_store %arg41[%c0_325, %c192_326], %295 {strides = array<i32>} : memref<64x288xbf16, #tpu.memory_space<vmem>>, vector<64x32xbf16>,
    %c2_327 = arith.constant 2 : index
    %c8_328 = arith.constant 8 : index
    %c0_329 = arith.constant 0 : index
    %297 = vector.load %arg40[%c2_327, %c8_328, %c0_329] : memref<10x24x32xf32, #tpu.memory_space<vmem>>, vector<8x8x32xf32>
    %298 = vector.shape_cast %297 : vector<8x8x32xf32> to vector<64x32xf32>
    %299 = arith.truncf %298 : vector<64x32xf32> to vector<64x32xbf16>
    %c0_330 = arith.constant 0 : index
    %c224_331 = arith.constant 224 : index
    %300 = vector.load %arg41[%c0_330, %c224_331] : memref<64x288xbf16, #tpu.memory_space<vmem>>, vector<64x32xbf16>
    tpu.vector_store %arg41[%c0_330, %c224_331], %299 {strides = array<i32>} : memref<64x288xbf16, #tpu.memory_space<vmem>>, vector<64x32xbf16>,
    %c2_332 = arith.constant 2 : index
    %c9_333 = arith.constant 9 : index
    %c0_334 = arith.constant 0 : index
    %301 = vector.load %arg40[%c2_332, %c9_333, %c0_334] : memref<10x24x32xf32, #tpu.memory_space<vmem>>, vector<8x8x32xf32>
    %302 = vector.shape_cast %301 : vector<8x8x32xf32> to vector<64x32xf32>
    %303 = arith.truncf %302 : vector<64x32xf32> to vector<64x32xbf16>
    %c0_335 = arith.constant 0 : index
    %c256_336 = arith.constant 256 : index
    %304 = vector.load %arg41[%c0_335, %c256_336] : memref<64x288xbf16, #tpu.memory_space<vmem>>, vector<64x32xbf16>
    tpu.vector_store %arg41[%c0_335, %c256_336], %303 {strides = array<i32>} : memref<64x288xbf16, #tpu.memory_space<vmem>>, vector<64x32xbf16>,
    %c0_337 = arith.constant 0 : index
    %c0_338 = arith.constant 0 : index
    %305 = vector.load %arg41[%c0_337, %c0_338] : memref<64x288xbf16, #tpu.memory_space<vmem>>, vector<64x288xbf16>
    %c0_339 = arith.constant 0 : index
    %c0_340 = arith.constant 0 : index
    %306 = vector.load %arg30[%c0_339, %c0_340] : memref<288x8xbf16, #tpu.memory_space<vmem>>, vector<288x8xbf16>
    %cst_341 = arith.constant dense<0.000000e+00> : vector<64x8xf32>
    %307 = tpu.matmul %305, %306, %cst_341 {dimension_numbers = #tpu.dot_dimension_numbers<[1], [0], [0], [1], [0, 0, 1, 1], [], []>} : vector<64x288xbf16>, vector<288x8xbf16>, vector<64x8xf32> -> vector<64x8xf32>
    %c0_342 = arith.constant 0 : index
    %c24_343 = arith.constant 24 : index
    %308 = vector.load %arg39[%c0_342, %c24_343] : memref<64x32xf32, #tpu.memory_space<vmem>>, vector<64x8xf32>
    tpu.vector_store %arg39[%c0_342, %c24_343], %307 {strides = array<i32>} : memref<64x32xf32, #tpu.memory_space<vmem>>, vector<64x8xf32>,
    %c0_344 = arith.constant 0 : index
    %c0_345 = arith.constant 0 : index
    %309 = vector.load %arg39[%c0_344, %c0_345] : memref<64x32xf32, #tpu.memory_space<vmem>>, vector<64x32xf32>
    %c0_346 = arith.constant 0 : index
    %c0_347 = arith.constant 0 : index
    %310 = vector.load %arg31[%c0_346, %c0_347] : memref<1x32xf32, #tpu.memory_space<vmem>>, vector<1x32xf32>
    %311 = vector.broadcast %310 : vector<1x32xf32> to vector<64x32xf32>
    %312 = arith.mulf %309, %311 : vector<64x32xf32>
    %c0_348 = arith.constant 0 : index
    %c0_349 = arith.constant 0 : index
    %313 = vector.load %arg32[%c0_348, %c0_349] : memref<1x32xf32, #tpu.memory_space<vmem>>, vector<1x32xf32>
    %314 = vector.broadcast %313 : vector<1x32xf32> to vector<64x32xf32>
    %315 = arith.addf %312, %314 : vector<64x32xf32>
    %cst_350 = arith.constant 0.000000e+00 : f32
    %316 = vector.broadcast %cst_350 : f32 to vector<64x32xf32>
    %317 = arith.maximumf %315, %316 : vector<64x32xf32>
    %c0_351 = arith.constant 0 : index
    %c0_352 = arith.constant 0 : index
    %318 = vector.load %arg33[%c0_351, %c0_352] : memref<32x10xf32, #tpu.memory_space<vmem>>, vector<32x10xf32>
    %cst_353 = arith.constant dense<0.000000e+00> : vector<64x10xf32>
    %319 = tpu.matmul %317, %318, %cst_353 {dimension_numbers = #tpu.dot_dimension_numbers<[1], [0], [0], [1], [0, 0, 1, 1], [], []>} : vector<64x32xf32>, vector<32x10xf32>, vector<64x10xf32> -> vector<64x10xf32>
    %cst_354 = arith.constant dense<0.000000e+00> : vector<10xf32>
    %320 = vector.multi_reduction <add>, %319, %cst_354 [0] : vector<64x10xf32> to vector<10xf32>
    %321 = vector.shape_cast %320 : vector<10xf32> to vector<1x10xf32>
    %cst_355 = arith.constant 1.562500e-02 : f32
    %322 = vector.broadcast %cst_355 : f32 to vector<1x10xf32>
    %323 = arith.mulf %321, %322 : vector<1x10xf32>
    %c0_356 = arith.constant 0 : index
    %c0_357 = arith.constant 0 : index
    %324 = vector.load %arg34[%c0_356, %c0_357] : memref<1x10xf32, #tpu.memory_space<vmem>>, vector<1x10xf32>
    %325 = arith.addf %323, %324 : vector<1x10xf32>
    %c0_358 = arith.constant 0 : index
    %c0_359 = arith.constant 0 : index
    %c0_360 = arith.constant 0 : index
    %326 = vector.load %arg35[%c0_358, %c0_359, %c0_360] : memref<1x1x10xf32, #tpu.memory_space<vmem>>, vector<1x1x10xf32>
    %327 = vector.shape_cast %326 : vector<1x1x10xf32> to vector<1x10xf32>
    %328 = vector.shape_cast %325 : vector<1x10xf32> to vector<1x1x10xf32>
    tpu.vector_store %arg35[%c0_358, %c0_359, %c0_360], %328 {strides = array<i32>} : memref<1x1x10xf32, #tpu.memory_space<vmem>>, vector<1x1x10xf32>,
    return
  }
  func.func @transform_0(%arg0: i32) -> (i32, i32, i32, i32) {
    %c0_i32 = arith.constant 0 : i32
    %c0_i32_0 = arith.constant 0 : i32
    %c0_i32_1 = arith.constant 0 : i32
    %c0_i32_2 = arith.constant 0 : i32
    return %arg0, %c0_i32, %c0_i32_0, %c0_i32_1 : i32, i32, i32, i32
  }
  func.func @transform_1(%arg0: i32) -> (i32, i32) {
    %c0_i32 = arith.constant 0 : i32
    %c0_i32_0 = arith.constant 0 : i32
    %c0_i32_1 = arith.constant 0 : i32
    return %c0_i32, %c0_i32_0 : i32, i32
  }
  func.func @transform_2(%arg0: i32) -> (i32, i32) {
    %c0_i32 = arith.constant 0 : i32
    %c0_i32_0 = arith.constant 0 : i32
    %c0_i32_1 = arith.constant 0 : i32
    return %c0_i32, %c0_i32_0 : i32, i32
  }
  func.func @transform_3(%arg0: i32) -> (i32, i32) {
    %c0_i32 = arith.constant 0 : i32
    %c0_i32_0 = arith.constant 0 : i32
    %c0_i32_1 = arith.constant 0 : i32
    return %c0_i32, %c0_i32_0 : i32, i32
  }
  func.func @transform_4(%arg0: i32) -> (i32, i32) {
    %c0_i32 = arith.constant 0 : i32
    %c0_i32_0 = arith.constant 0 : i32
    %c0_i32_1 = arith.constant 0 : i32
    return %c0_i32, %c0_i32_0 : i32, i32
  }
  func.func @transform_5(%arg0: i32) -> (i32, i32) {
    %c0_i32 = arith.constant 0 : i32
    %c0_i32_0 = arith.constant 0 : i32
    %c0_i32_1 = arith.constant 0 : i32
    return %c0_i32, %c0_i32_0 : i32, i32
  }
  func.func @transform_6(%arg0: i32) -> (i32, i32) {
    %c0_i32 = arith.constant 0 : i32
    %c0_i32_0 = arith.constant 0 : i32
    %c0_i32_1 = arith.constant 0 : i32
    return %c0_i32, %c0_i32_0 : i32, i32
  }
  func.func @transform_7(%arg0: i32) -> (i32, i32) {
    %c0_i32 = arith.constant 0 : i32
    %c0_i32_0 = arith.constant 0 : i32
    %c0_i32_1 = arith.constant 0 : i32
    return %c0_i32, %c0_i32_0 : i32, i32
  }
  func.func @transform_8(%arg0: i32) -> (i32, i32) {
    %c0_i32 = arith.constant 0 : i32
    %c0_i32_0 = arith.constant 0 : i32
    %c0_i32_1 = arith.constant 0 : i32
    return %c0_i32, %c0_i32_0 : i32, i32
  }
  func.func @transform_9(%arg0: i32) -> (i32, i32) {
    %c0_i32 = arith.constant 0 : i32
    %c0_i32_0 = arith.constant 0 : i32
    %c0_i32_1 = arith.constant 0 : i32
    return %c0_i32, %c0_i32_0 : i32, i32
  }
  func.func @transform_10(%arg0: i32) -> (i32, i32) {
    %c0_i32 = arith.constant 0 : i32
    %c0_i32_0 = arith.constant 0 : i32
    %c0_i32_1 = arith.constant 0 : i32
    return %c0_i32, %c0_i32_0 : i32, i32
  }
  func.func @transform_11(%arg0: i32) -> (i32, i32) {
    %c0_i32 = arith.constant 0 : i32
    %c0_i32_0 = arith.constant 0 : i32
    %c0_i32_1 = arith.constant 0 : i32
    return %c0_i32, %c0_i32_0 : i32, i32
  }
  func.func @transform_12(%arg0: i32) -> (i32, i32) {
    %c0_i32 = arith.constant 0 : i32
    %c0_i32_0 = arith.constant 0 : i32
    %c0_i32_1 = arith.constant 0 : i32
    return %c0_i32, %c0_i32_0 : i32, i32
  }
  func.func @transform_13(%arg0: i32) -> (i32, i32) {
    %c0_i32 = arith.constant 0 : i32
    %c0_i32_0 = arith.constant 0 : i32
    %c0_i32_1 = arith.constant 0 : i32
    return %c0_i32, %c0_i32_0 : i32, i32
  }
  func.func @transform_14(%arg0: i32) -> (i32, i32) {
    %c0_i32 = arith.constant 0 : i32
    %c0_i32_0 = arith.constant 0 : i32
    %c0_i32_1 = arith.constant 0 : i32
    return %c0_i32, %c0_i32_0 : i32, i32
  }
  func.func @transform_15(%arg0: i32) -> (i32, i32) {
    %c0_i32 = arith.constant 0 : i32
    %c0_i32_0 = arith.constant 0 : i32
    %c0_i32_1 = arith.constant 0 : i32
    return %c0_i32, %c0_i32_0 : i32, i32
  }
  func.func @transform_16(%arg0: i32) -> (i32, i32) {
    %c0_i32 = arith.constant 0 : i32
    %c0_i32_0 = arith.constant 0 : i32
    %c0_i32_1 = arith.constant 0 : i32
    return %c0_i32, %c0_i32_0 : i32, i32
  }
  func.func @transform_17(%arg0: i32) -> (i32, i32) {
    %c0_i32 = arith.constant 0 : i32
    %c0_i32_0 = arith.constant 0 : i32
    %c0_i32_1 = arith.constant 0 : i32
    return %c0_i32, %c0_i32_0 : i32, i32
  }
  func.func @transform_18(%arg0: i32) -> (i32, i32) {
    %c0_i32 = arith.constant 0 : i32
    %c0_i32_0 = arith.constant 0 : i32
    %c0_i32_1 = arith.constant 0 : i32
    return %c0_i32, %c0_i32_0 : i32, i32
  }
  func.func @transform_19(%arg0: i32) -> (i32, i32) {
    %c0_i32 = arith.constant 0 : i32
    %c0_i32_0 = arith.constant 0 : i32
    %c0_i32_1 = arith.constant 0 : i32
    return %c0_i32, %c0_i32_0 : i32, i32
  }
  func.func @transform_20(%arg0: i32) -> (i32, i32) {
    %c0_i32 = arith.constant 0 : i32
    %c0_i32_0 = arith.constant 0 : i32
    %c0_i32_1 = arith.constant 0 : i32
    return %c0_i32, %c0_i32_0 : i32, i32
  }
  func.func @transform_21(%arg0: i32) -> (i32, i32) {
    %c0_i32 = arith.constant 0 : i32
    %c0_i32_0 = arith.constant 0 : i32
    %c0_i32_1 = arith.constant 0 : i32
    return %c0_i32, %c0_i32_0 : i32, i32
  }
  func.func @transform_22(%arg0: i32) -> (i32, i32) {
    %c0_i32 = arith.constant 0 : i32
    %c0_i32_0 = arith.constant 0 : i32
    %c0_i32_1 = arith.constant 0 : i32
    return %c0_i32, %c0_i32_0 : i32, i32
  }
  func.func @transform_23(%arg0: i32) -> (i32, i32) {
    %c0_i32 = arith.constant 0 : i32
    %c0_i32_0 = arith.constant 0 : i32
    %c0_i32_1 = arith.constant 0 : i32
    return %c0_i32, %c0_i32_0 : i32, i32
  }
  func.func @transform_24(%arg0: i32) -> (i32, i32) {
    %c0_i32 = arith.constant 0 : i32
    %c0_i32_0 = arith.constant 0 : i32
    %c0_i32_1 = arith.constant 0 : i32
    return %c0_i32, %c0_i32_0 : i32, i32
  }
  func.func @transform_25(%arg0: i32) -> (i32, i32) {
    %c0_i32 = arith.constant 0 : i32
    %c0_i32_0 = arith.constant 0 : i32
    %c0_i32_1 = arith.constant 0 : i32
    return %c0_i32, %c0_i32_0 : i32, i32
  }
  func.func @transform_26(%arg0: i32) -> (i32, i32) {
    %c0_i32 = arith.constant 0 : i32
    %c0_i32_0 = arith.constant 0 : i32
    %c0_i32_1 = arith.constant 0 : i32
    return %c0_i32, %c0_i32_0 : i32, i32
  }
  func.func @transform_27(%arg0: i32) -> (i32, i32) {
    %c0_i32 = arith.constant 0 : i32
    %c0_i32_0 = arith.constant 0 : i32
    %c0_i32_1 = arith.constant 0 : i32
    return %c0_i32, %c0_i32_0 : i32, i32
  }
  func.func @transform_28(%arg0: i32) -> (i32, i32) {
    %c0_i32 = arith.constant 0 : i32
    %c0_i32_0 = arith.constant 0 : i32
    %c0_i32_1 = arith.constant 0 : i32
    return %c0_i32, %c0_i32_0 : i32, i32
  }
  func.func @transform_29(%arg0: i32) -> (i32, i32) {
    %c0_i32 = arith.constant 0 : i32
    %c0_i32_0 = arith.constant 0 : i32
    %c0_i32_1 = arith.constant 0 : i32
    return %c0_i32, %c0_i32_0 : i32, i32
  }
  func.func @transform_30(%arg0: i32) -> (i32, i32) {
    %c0_i32 = arith.constant 0 : i32
    %c0_i32_0 = arith.constant 0 : i32
    %c0_i32_1 = arith.constant 0 : i32
    return %c0_i32, %c0_i32_0 : i32, i32
  }
  func.func @transform_31(%arg0: i32) -> (i32, i32) {
    %c0_i32 = arith.constant 0 : i32
    %c0_i32_0 = arith.constant 0 : i32
    %c0_i32_1 = arith.constant 0 : i32
    return %c0_i32, %c0_i32_0 : i32, i32
  }
  func.func @transform_32(%arg0: i32) -> (i32, i32) {
    %c0_i32 = arith.constant 0 : i32
    %c0_i32_0 = arith.constant 0 : i32
    %c0_i32_1 = arith.constant 0 : i32
    return %c0_i32, %c0_i32_0 : i32, i32
  }
  func.func @transform_33(%arg0: i32) -> (i32, i32) {
    %c0_i32 = arith.constant 0 : i32
    %c0_i32_0 = arith.constant 0 : i32
    %c0_i32_1 = arith.constant 0 : i32
    return %c0_i32, %c0_i32_0 : i32, i32
  }
  func.func @transform_34(%arg0: i32) -> (i32, i32, i32) {
    %c0_i32 = arith.constant 0 : i32
    %c0_i32_0 = arith.constant 0 : i32
    %c0_i32_1 = arith.constant 0 : i32
    return %arg0, %c0_i32, %c0_i32_0 : i32, i32, i32
  }
}

</mosaic_0001>

<llo_original>
// kernel: _lambda_.1
$region0: #{_lambda_.1}
  #allocation0 [shape = 'u32[]', space=smem, size = 0x4, offset = 0x4, fixed_abs, tag = 'smem constant byte address 0x4 - core index']
  #allocation1 [shape = 'u32[144,128]{1,0:T(1,128)}', space=vmem, size = 0x12000, scoped, tag = 'internal scratch']
  #allocation2 [shape = 'f32[256,32]{1,0:T(8,128)}', space=vmem, size = 0x20000, scoped, tag = 'scratch operand']
  #allocation3 [shape = 'f32[18,32,32]{2,1,0:T(8,128)}', space=vmem, size = 0x48000, scoped, tag = 'scratch operand']
  #allocation4 [shape = 'bf16[256,288]{1,0:T(16,128)(2,1)}', space=vmem, size = 0x30000, scoped, tag = 'scratch operand']
  #allocation5 [shape = 'f32[64,32]{1,0:T(8,128)}', space=vmem, size = 0x8000, scoped, tag = 'scratch operand']
  #allocation6 [shape = 'f32[10,24,32]{2,1,0:T(8,128)}', space=vmem, size = 0x1e000, scoped, tag = 'scratch operand']
  #allocation7 [shape = 'bf16[64,288]{1,0:T(16,128)(2,1)}', space=vmem, size = 0xc000, scoped, tag = 'scratch operand']
  %s0 = inlined_call_operand.smem [shape: u32[35], index: -1, kind: input, shape index: {}]
  %s1 = sld [smem:[%s0]]
  %s2 = scalar_lea.smem %s0, 1
  %s3 = sld [smem:[%s2]]
  %s4 = scalar_lea.smem %s0, 2
  %s5 = sld [smem:[%s4]]
  %s6 = scalar_lea.smem %s0, 3
  %s7 = sld [smem:[%s6]]
  %s8 = scalar_lea.smem %s0, 4
  %s9 = sld [smem:[%s8]]
  %s10 = scalar_lea.smem %s0, 5
  %s11 = sld [smem:[%s10]]
  %s12 = scalar_lea.smem %s0, 6
  %s13 = sld [smem:[%s12]]
  %s14 = scalar_lea.smem %s0, 7
  %s15 = sld [smem:[%s14]]
  %s16 = scalar_lea.smem %s0, 8
  %s17 = sld [smem:[%s16]]
  %s18 = scalar_lea.smem %s0, 9
  %s19 = sld [smem:[%s18]]
  %s20 = scalar_lea.smem %s0, 10
  %s21 = sld [smem:[%s20]]
  %s22 = scalar_lea.smem %s0, 11
  %s23 = sld [smem:[%s22]]
  %s24 = scalar_lea.smem %s0, 12
  %s25 = sld [smem:[%s24]]
  %s26 = scalar_lea.smem %s0, 13
  %s27 = sld [smem:[%s26]]
  %s28 = scalar_lea.smem %s0, 14
  %s29 = sld [smem:[%s28]]
  %s30 = scalar_lea.smem %s0, 15
  %s31 = sld [smem:[%s30]]
  %s32 = scalar_lea.smem %s0, 16
  %s33 = sld [smem:[%s32]]
  %s34 = scalar_lea.smem %s0, 17
  %s35 = sld [smem:[%s34]]
  %s36 = scalar_lea.smem %s0, 18
  %s37 = sld [smem:[%s36]]
  %s38 = scalar_lea.smem %s0, 19
  %s39 = sld [smem:[%s38]]
  %s40 = scalar_lea.smem %s0, 20
  %s41 = sld [smem:[%s40]]
  %s42 = scalar_lea.smem %s0, 21
  %s43 = sld [smem:[%s42]]
  %s44 = scalar_lea.smem %s0, 22
  %s45 = sld [smem:[%s44]]
  %s46 = scalar_lea.smem %s0, 23
  %s47 = sld [smem:[%s46]]
  %s48 = scalar_lea.smem %s0, 24
  %s49 = sld [smem:[%s48]]
  %s50 = scalar_lea.smem %s0, 25
  %s51 = sld [smem:[%s50]]
  %s52 = scalar_lea.smem %s0, 26
  %s53 = sld [smem:[%s52]]
  %s54 = scalar_lea.smem %s0, 27
  %s55 = sld [smem:[%s54]]
  %s56 = scalar_lea.smem %s0, 28
  %s57 = sld [smem:[%s56]]
  %s58 = scalar_lea.smem %s0, 29
  %s59 = sld [smem:[%s58]]
  %s60 = scalar_lea.smem %s0, 30
  %s61 = sld [smem:[%s60]]
  %s62 = scalar_lea.smem %s0, 31
  %s63 = sld [smem:[%s62]]
  %s64 = scalar_lea.smem %s0, 32
  %s65 = sld [smem:[%s64]]
  %s66 = scalar_lea.smem %s0, 33
  %s67 = sld [smem:[%s66]]
  %s68 = scalar_lea.smem %s0, 34
  %s69 = sld [smem:[%s68]]
  %s70 = sld [smem:[#allocation0]]
  $region169: #{_lambda_.1} parent=0
    _
  %s72 = ssub.s32 1, %s70
  %s73 = scalar_select 0, %s72, %s70
  $region1: #{_lambda_.1} parent=0
    #allocation8 [shape = 'u8[1024]{0}', space=vmem, size = 0x400, scoped, tag = 'output window, operand 0']
    #allocation9 [shape = 's32[2]{0}', space=sflag, size = 0x8, scoped, tag = 'scoped memory for _lambda_.1']
    %74 = vsyncpa [#allocation9], 0
    %s75 = scalar_lea.sflag [#allocation9], 1
    %76 = vsyncpa %s75, 0
    loop: start=0, step=1, limit=4
    $region2: #{_lambda_.1} parent=1 // loop_pre_header
      _
    $region3: #{_lambda_.1} parent=1 // loop_header
      %s78 = sphi 0, %s82
      %p79 = scmp.ge.s32.totalorder %s78, 4
      %s88 = sphi 0, %s90
      %s91 = sphi 0, %s88
      %s92 = sphi 0, %s91
      %s108 = sphi 0, %s92
      %s112 = sphi 0, %s112
      %s114 = sphi 0, %s112
      %s115 = sphi 0, %s114
      %s129 = sphi 0, %s115
      %s133 = sphi 0, %s133
      %s135 = sphi 0, %s133
      %s136 = sphi 0, %s135
      %s150 = sphi 0, %s136
      %s154 = sphi 0, %s154
      %s156 = sphi 0, %s154
      %s157 = sphi 0, %s156
      %s171 = sphi 0, %s157
      %s175 = sphi 0, %s175
      %s177 = sphi 0, %s175
      %s178 = sphi 0, %s177
      %s192 = sphi 0, %s178
      %s196 = sphi 0, %s196
      %s198 = sphi 0, %s196
      %s199 = sphi 0, %s198
      %s213 = sphi 0, %s199
      %s217 = sphi 0, %s217
      %s219 = sphi 0, %s217
      %s220 = sphi 0, %s219
      %s234 = sphi 0, %s220
      %s238 = sphi 0, %s238
      %s240 = sphi 0, %s238
      %s241 = sphi 0, %s240
      %s255 = sphi 0, %s241
      %s259 = sphi 0, %s259
      %s261 = sphi 0, %s259
      %s262 = sphi 0, %s261
      %s276 = sphi 0, %s262
      %s280 = sphi 0, %s280
      %s282 = sphi 0, %s280
      %s283 = sphi 0, %s282
      %s297 = sphi 0, %s283
      %s301 = sphi 0, %s301
      %s303 = sphi 0, %s301
      %s304 = sphi 0, %s303
      %s318 = sphi 0, %s304
      %s322 = sphi 0, %s322
      %s324 = sphi 0, %s322
      %s325 = sphi 0, %s324
      %s339 = sphi 0, %s325
      %s343 = sphi 0, %s343
      %s345 = sphi 0, %s343
      %s346 = sphi 0, %s345
      %s360 = sphi 0, %s346
      %s364 = sphi 0, %s364
      %s366 = sphi 0, %s364
      %s367 = sphi 0, %s366
      %s381 = sphi 0, %s367
      %s385 = sphi 0, %s385
      %s387 = sphi 0, %s385
      %s388 = sphi 0, %s387
      %s402 = sphi 0, %s388
      %s406 = sphi 0, %s406
      %s408 = sphi 0, %s406
      %s409 = sphi 0, %s408
      %s423 = sphi 0, %s409
      %s427 = sphi 0, %s427
      %s429 = sphi 0, %s427
      %s430 = sphi 0, %s429
      %s444 = sphi 0, %s430
      %s448 = sphi 0, %s448
      %s450 = sphi 0, %s448
      %s451 = sphi 0, %s450
      %s465 = sphi 0, %s451
      %s469 = sphi 0, %s469
      %s471 = sphi 0, %s469
      %s472 = sphi 0, %s471
      %s486 = sphi 0, %s472
      %s490 = sphi 0, %s490
      %s492 = sphi 0, %s490
      %s493 = sphi 0, %s492
      %s507 = sphi 0, %s493
      %s511 = sphi 0, %s511
      %s513 = sphi 0, %s511
      %s514 = sphi 0, %s513
      %s528 = sphi 0, %s514
      %s532 = sphi 0, %s532
      %s534 = sphi 0, %s532
      %s535 = sphi 0, %s534
      %s549 = sphi 0, %s535
      %s553 = sphi 0, %s553
      %s555 = sphi 0, %s553
      %s556 = sphi 0, %s555
      %s570 = sphi 0, %s556
      %s574 = sphi 0, %s574
      %s576 = sphi 0, %s574
      %s577 = sphi 0, %s576
      %s591 = sphi 0, %s577
      %s595 = sphi 0, %s595
      %s597 = sphi 0, %s595
      %s598 = sphi 0, %s597
      %s612 = sphi 0, %s598
      %s616 = sphi 0, %s616
      %s618 = sphi 0, %s616
      %s619 = sphi 0, %s618
      %s633 = sphi 0, %s619
      %s637 = sphi 0, %s637
      %s639 = sphi 0, %s637
      %s640 = sphi 0, %s639
      %s654 = sphi 0, %s640
      %s658 = sphi 0, %s658
      %s660 = sphi 0, %s658
      %s661 = sphi 0, %s660
      %s675 = sphi 0, %s661
      %s679 = sphi 0, %s679
      %s681 = sphi 0, %s679
      %s682 = sphi 0, %s681
      %s696 = sphi 0, %s682
      %s700 = sphi 0, %s700
      %s702 = sphi 0, %s700
      %s703 = sphi 0, %s702
      %s717 = sphi 0, %s703
      %s721 = sphi 0, %s721
      %s723 = sphi 0, %s721
      %s724 = sphi 0, %s723
      %s738 = sphi 0, %s724
      %s742 = sphi 0, %s742
      %s744 = sphi 0, %s742
      %s745 = sphi 0, %s744
      %s759 = sphi 0, %s745
      %s763 = sphi 0, %s763
      %s765 = sphi 0, %s763
      %s766 = sphi 0, %s765
      %s780 = sphi 0, %s766
      %s784 = sphi 0, %s784
      %s786 = sphi 0, %s784
      %s787 = sphi 0, %s786
      %s801 = sphi 0, %s787
      %s807 = sphi 0, %s809
      %s810 = sphi 0, %s807
      %s811 = sphi 0, %s810
      %s827 = sphi 0, %s811
    $region4: #{_lambda_.1} parent=1 // loop_header_branch
      %81 = sbr.rel (%p79) target = $region8
    $region5: #{_lambda_.1} parent=1 // loop_body
      %s83 = ssub.s32 %s78, 1
      %s84 = ssub.s32 %s78, 2
      %s85 = sadd.s32 %s78, 1
      %s86 = ssub.s32 %s78, %s85
      %p87 = scmp.eq.s32.totalorder %s86, 0
      %s89 = sadd.s32 %s88, 1
      %s90 = scalar_select %p87, %s88, %s89
      %p93 = pneg %p87
      %p94 = scmp.eq.s32.totalorder %s78, 1
      %p95 = por %p93, %p94
      %p96 = scmp.ne.s32.totalorder %s88, %s91
      %p97 = scmp.eq.s32.totalorder %s78, 0
      %p98 = por %p96, %p97
      %p99 = scmp.ne.s32.totalorder %s88, %s91
      %p100 = scmp.eq.s32.totalorder %s83, 1
      %p101 = por %p99, %p100
      %p102 = scmp.ne.s32.totalorder %s91, %s92
      %p103 = scmp.eq.s32.totalorder %s83, 0
      %p104 = por %p102, %p103
      %p105 = scmp.ne.s32.totalorder %s91, %s92
      %p106 = scmp.eq.s32.totalorder %s84, 1
      %p107 = por %p105, %p106
      %p109 = scmp.ne.s32.totalorder %s92, %s108
      %p110 = scmp.eq.s32.totalorder %s84, 0
      %p111 = por %p109, %p110
      %s113 = sadd.s32 %s112, 1
      %p116 = scmp.eq.s32.totalorder %s78, 1
      %p117 = scmp.ne.s32.totalorder %s112, %s114
      %p118 = scmp.eq.s32.totalorder %s78, 0
      %p119 = por %p117, %p118
      %p120 = scmp.ne.s32.totalorder %s112, %s114
      %p121 = scmp.eq.s32.totalorder %s83, 1
      %p122 = por %p120, %p121
      %p123 = scmp.ne.s32.totalorder %s114, %s115
      %p124 = scmp.eq.s32.totalorder %s83, 0
      %p125 = por %p123, %p124
      %p126 = scmp.ne.s32.totalorder %s114, %s115
      %p127 = scmp.eq.s32.totalorder %s84, 1
      %p128 = por %p126, %p127
      %p130 = scmp.ne.s32.totalorder %s115, %s129
      %p131 = scmp.eq.s32.totalorder %s84, 0
      %p132 = por %p130, %p131
      %s134 = sadd.s32 %s133, 1
      %p137 = scmp.eq.s32.totalorder %s78, 1
      %p138 = scmp.ne.s32.totalorder %s133, %s135
      %p139 = scmp.eq.s32.totalorder %s78, 0
      %p140 = por %p138, %p139
      %p141 = scmp.ne.s32.totalorder %s133, %s135
      %p142 = scmp.eq.s32.totalorder %s83, 1
      %p143 = por %p141, %p142
      %p144 = scmp.ne.s32.totalorder %s135, %s136
      %p145 = scmp.eq.s32.totalorder %s83, 0
      %p146 = por %p144, %p145
      %p147 = scmp.ne.s32.totalorder %s135, %s136
      %p148 = scmp.eq.s32.totalorder %s84, 1
      %p149 = por %p147, %p148
      %p151 = scmp.ne.s32.totalorder %s136, %s150
      %p152 = scmp.eq.s32.totalorder %s84, 0
      %p153 = por %p151, %p152
      %s155 = sadd.s32 %s154, 1
      %p158 = scmp.eq.s32.totalorder %s78, 1
      %p159 = scmp.ne.s32.totalorder %s154, %s156
      %p160 = scmp.eq.s32.totalorder %s78, 0
      %p161 = por %p159, %p160
      %p162 = scmp.ne.s32.totalorder %s154, %s156
      %p163 = scmp.eq.s32.totalorder %s83, 1
      %p164 = por %p162, %p163
      %p165 = scmp.ne.s32.totalorder %s156, %s157
      %p166 = scmp.eq.s32.totalorder %s83, 0
      %p167 = por %p165, %p166
      %p168 = scmp.ne.s32.totalorder %s156, %s157
      %p169 = scmp.eq.s32.totalorder %s84, 1
      %p170 = por %p168, %p169
      %p172 = scmp.ne.s32.totalorder %s157, %s171
      %p173 = scmp.eq.s32.totalorder %s84, 0
      %p174 = por %p172, %p173
      %s176 = sadd.s32 %s175, 1
      %p179 = scmp.eq.s32.totalorder %s78, 1
      %p180 = scmp.ne.s32.totalorder %s175, %s177
      %p181 = scmp.eq.s32.totalorder %s78, 0
      %p182 = por %p180, %p181
      %p183 = scmp.ne.s32.totalorder %s175, %s177
      %p184 = scmp.eq.s32.totalorder %s83, 1
      %p185 = por %p183, %p184
      %p186 = scmp.ne.s32.totalorder %s177, %s178
      %p187 = scmp.eq.s32.totalorder %s83, 0
      %p188 = por %p186, %p187
      %p189 = scmp.ne.s32.totalorder %s177, %s178
      %p190 = scmp.eq.s32.totalorder %s84, 1
      %p191 = por %p189, %p190
      %p193 = scmp.ne.s32.totalorder %s178, %s192
      %p194 = scmp.eq.s32.totalorder %s84, 0
      %p195 = por %p193, %p194
      %s197 = sadd.s32 %s196, 1
      %p200 = scmp.eq.s32.totalorder %s78, 1
      %p201 = scmp.ne.s32.totalorder %s196, %s198
      %p202 = scmp.eq.s32.totalorder %s78, 0
      %p203 = por %p201, %p202
      %p204 = scmp.ne.s32.totalorder %s196, %s198
      %p205 = scmp.eq.s32.totalorder %s83, 1
      %p206 = por %p204, %p205
      %p207 = scmp.ne.s32.totalorder %s198, %s199
      %p208 = scmp.eq.s32.totalorder %s83, 0
      %p209 = por %p207, %p208
      %p210 = scmp.ne.s32.totalorder %s198, %s199
      %p211 = scmp.eq.s32.totalorder %s84, 1
      %p212 = por %p210, %p211
      %p214 = scmp.ne.s32.totalorder %s199, %s213
      %p215 = scmp.eq.s32.totalorder %s84, 0
      %p216 = por %p214, %p215
      %s218 = sadd.s32 %s217, 1
      %p221 = scmp.eq.s32.totalorder %s78, 1
      %p222 = scmp.ne.s32.totalorder %s217, %s219
      %p223 = scmp.eq.s32.totalorder %s78, 0
      %p224 = por %p222, %p223
      %p225 = scmp.ne.s32.totalorder %s217, %s219
      %p226 = scmp.eq.s32.totalorder %s83, 1
      %p227 = por %p225, %p226
      %p228 = scmp.ne.s32.totalorder %s219, %s220
      %p229 = scmp.eq.s32.totalorder %s83, 0
      %p230 = por %p228, %p229
      %p231 = scmp.ne.s32.totalorder %s219, %s220
      %p232 = scmp.eq.s32.totalorder %s84, 1
      %p233 = por %p231, %p232
      %p235 = scmp.ne.s32.totalorder %s220, %s234
      %p236 = scmp.eq.s32.totalorder %s84, 0
      %p237 = por %p235, %p236
      %s239 = sadd.s32 %s238, 1
      %p242 = scmp.eq.s32.totalorder %s78, 1
      %p243 = scmp.ne.s32.totalorder %s238, %s240
      %p244 = scmp.eq.s32.totalorder %s78, 0
      %p245 = por %p243, %p244
      %p246 = scmp.ne.s32.totalorder %s238, %s240
      %p247 = scmp.eq.s32.totalorder %s83, 1
      %p248 = por %p246, %p247
      %p249 = scmp.ne.s32.totalorder %s240, %s241
      %p250 = scmp.eq.s32.totalorder %s83, 0
      %p251 = por %p249, %p250
      %p252 = scmp.ne.s32.totalorder %s240, %s241
      %p253 = scmp.eq.s32.totalorder %s84, 1
      %p254 = por %p252, %p253
      %p256 = scmp.ne.s32.totalorder %s241, %s255
      %p257 = scmp.eq.s32.totalorder %s84, 0
      %p258 = por %p256, %p257
      %s260 = sadd.s32 %s259, 1
      %p263 = scmp.eq.s32.totalorder %s78, 1
      %p264 = scmp.ne.s32.totalorder %s259, %s261
      %p265 = scmp.eq.s32.totalorder %s78, 0
      %p266 = por %p264, %p265
      %p267 = scmp.ne.s32.totalorder %s259, %s261
      %p268 = scmp.eq.s32.totalorder %s83, 1
      %p269 = por %p267, %p268
      %p270 = scmp.ne.s32.totalorder %s261, %s262
      %p271 = scmp.eq.s32.totalorder %s83, 0
      %p272 = por %p270, %p271
      %p273 = scmp.ne.s32.totalorder %s261, %s262
      %p274 = scmp.eq.s32.totalorder %s84, 1
      %p275 = por %p273, %p274
      %p277 = scmp.ne.s32.totalorder %s262, %s276
      %p278 = scmp.eq.s32.totalorder %s84, 0
      %p279 = por %p277, %p278
      %s281 = sadd.s32 %s280, 1
      %p284 = scmp.eq.s32.totalorder %s78, 1
      %p285 = scmp.ne.s32.totalorder %s280, %s282
      %p286 = scmp.eq.s32.totalorder %s78, 0
      %p287 = por %p285, %p286
      %p288 = scmp.ne.s32.totalorder %s280, %s282
      %p289 = scmp.eq.s32.totalorder %s83, 1
      %p290 = por %p288, %p289
      %p291 = scmp.ne.s32.totalorder %s282, %s283
      %p292 = scmp.eq.s32.totalorder %s83, 0
      %p293 = por %p291, %p292
      %p294 = scmp.ne.s32.totalorder %s282, %s283
      %p295 = scmp.eq.s32.totalorder %s84, 1
      %p296 = por %p294, %p295
      %p298 = scmp.ne.s32.totalorder %s283, %s297
      %p299 = scmp.eq.s32.totalorder %s84, 0
      %p300 = por %p298, %p299
      %s302 = sadd.s32 %s301, 1
      %p305 = scmp.eq.s32.totalorder %s78, 1
      %p306 = scmp.ne.s32.totalorder %s301, %s303
      %p307 = scmp.eq.s32.totalorder %s78, 0
      %p308 = por %p306, %p307
      %p309 = scmp.ne.s32.totalorder %s301, %s303
      %p310 = scmp.eq.s32.totalorder %s83, 1
      %p311 = por %p309, %p310
      %p312 = scmp.ne.s32.totalorder %s303, %s304
      %p313 = scmp.eq.s32.totalorder %s83, 0
      %p314 = por %p312, %p313
      %p315 = scmp.ne.s32.totalorder %s303, %s304
      %p316 = scmp.eq.s32.totalorder %s84, 1
      %p317 = por %p315, %p316
      %p319 = scmp.ne.s32.totalorder %s304, %s318
      %p320 = scmp.eq.s32.totalorder %s84, 0
      %p321 = por %p319, %p320
      %s323 = sadd.s32 %s322, 1
      %p326 = scmp.eq.s32.totalorder %s78, 1
      %p327 = scmp.ne.s32.totalorder %s322, %s324
      %p328 = scmp.eq.s32.totalorder %s78, 0
      %p329 = por %p327, %p328
      %p330 = scmp.ne.s32.totalorder %s322, %s324
      %p331 = scmp.eq.s32.totalorder %s83, 1
      %p332 = por %p330, %p331
      %p333 = scmp.ne.s32.totalorder %s324, %s325
      %p334 = scmp.eq.s32.totalorder %s83, 0
      %p335 = por %p333, %p334
      %p336 = scmp.ne.s32.totalorder %s324, %s325
      %p337 = scmp.eq.s32.totalorder %s84, 1
      %p338 = por %p336, %p337
      %p340 = scmp.ne.s32.totalorder %s325, %s339
      %p341 = scmp.eq.s32.totalorder %s84, 0
      %p342 = por %p340, %p341
      %s344 = sadd.s32 %s343, 1
      %p347 = scmp.eq.s32.totalorder %s78, 1
      %p348 = scmp.ne.s32.totalorder %s343, %s345
      %p349 = scmp.eq.s32.totalorder %s78, 0
      %p350 = por %p348, %p349
      %p351 = scmp.ne.s32.totalorder %s343, %s345
      %p352 = scmp.eq.s32.totalorder %s83, 1
      %p353 = por %p351, %p352
      %p354 = scmp.ne.s32.totalorder %s345, %s346
      %p355 = scmp.eq.s32.totalorder %s83, 0
      %p356 = por %p354, %p355
      %p357 = scmp.ne.s32.totalorder %s345, %s346
      %p358 = scmp.eq.s32.totalorder %s84, 1
      %p359 = por %p357, %p358
      %p361 = scmp.ne.s32.totalorder %s346, %s360
      %p362 = scmp.eq.s32.totalorder %s84, 0
      %p363 = por %p361, %p362
      %s365 = sadd.s32 %s364, 1
      %p368 = scmp.eq.s32.totalorder %s78, 1
      %p369 = scmp.ne.s32.totalorder %s364, %s366
      %p370 = scmp.eq.s32.totalorder %s78, 0
      %p371 = por %p369, %p370
      %p372 = scmp.ne.s32.totalorder %s364, %s366
      %p373 = scmp.eq.s32.totalorder %s83, 1
      %p374 = por %p372, %p373
      %p375 = scmp.ne.s32.totalorder %s366, %s367
      %p376 = scmp.eq.s32.totalorder %s83, 0
      %p377 = por %p375, %p376
      %p378 = scmp.ne.s32.totalorder %s366, %s367
      %p379 = scmp.eq.s32.totalorder %s84, 1
      %p380 = por %p378, %p379
      %p382 = scmp.ne.s32.totalorder %s367, %s381
      %p383 = scmp.eq.s32.totalorder %s84, 0
      %p384 = por %p382, %p383
      %s386 = sadd.s32 %s385, 1
      %p389 = scmp.eq.s32.totalorder %s78, 1
      %p390 = scmp.ne.s32.totalorder %s385, %s387
      %p391 = scmp.eq.s32.totalorder %s78, 0
      %p392 = por %p390, %p391
      %p393 = scmp.ne.s32.totalorder %s385, %s387
      %p394 = scmp.eq.s32.totalorder %s83, 1
      %p395 = por %p393, %p394
      %p396 = scmp.ne.s32.totalorder %s387, %s388
      %p397 = scmp.eq.s32.totalorder %s83, 0
      %p398 = por %p396, %p397
      %p399 = scmp.ne.s32.totalorder %s387, %s388
      %p400 = scmp.eq.s32.totalorder %s84, 1
      %p401 = por %p399, %p400
      %p403 = scmp.ne.s32.totalorder %s388, %s402
      %p404 = scmp.eq.s32.totalorder %s84, 0
      %p405 = por %p403, %p404
      %s407 = sadd.s32 %s406, 1
      %p410 = scmp.eq.s32.totalorder %s78, 1
      %p411 = scmp.ne.s32.totalorder %s406, %s408
      %p412 = scmp.eq.s32.totalorder %s78, 0
      %p413 = por %p411, %p412
      %p414 = scmp.ne.s32.totalorder %s406, %s408
      %p415 = scmp.eq.s32.totalorder %s83, 1
      %p416 = por %p414, %p415
      %p417 = scmp.ne.s32.totalorder %s408, %s409
      %p418 = scmp.eq.s32.totalorder %s83, 0
      %p419 = por %p417, %p418
      %p420 = scmp.ne.s32.totalorder %s408, %s409
      %p421 = scmp.eq.s32.totalorder %s84, 1
      %p422 = por %p420, %p421
      %p424 = scmp.ne.s32.totalorder %s409, %s423
      %p425 = scmp.eq.s32.totalorder %s84, 0
      %p426 = por %p424, %p425
      %s428 = sadd.s32 %s427, 1
      %p431 = scmp.eq.s32.totalorder %s78, 1
      %p432 = scmp.ne.s32.totalorder %s427, %s429
      %p433 = scmp.eq.s32.totalorder %s78, 0
      %p434 = por %p432, %p433
      %p435 = scmp.ne.s32.totalorder %s427, %s429
      %p436 = scmp.eq.s32.totalorder %s83, 1
      %p437 = por %p435, %p436
      %p438 = scmp.ne.s32.totalorder %s429, %s430
      %p439 = scmp.eq.s32.totalorder %s83, 0
      %p440 = por %p438, %p439
      %p441 = scmp.ne.s32.totalorder %s429, %s430
      %p442 = scmp.eq.s32.totalorder %s84, 1
      %p443 = por %p441, %p442
      %p445 = scmp.ne.s32.totalorder %s430, %s444
      %p446 = scmp.eq.s32.totalorder %s84, 0
      %p447 = por %p445, %p446
      %s449 = sadd.s32 %s448, 1
      %p452 = scmp.eq.s32.totalorder %s78, 1
      %p453 = scmp.ne.s32.totalorder %s448, %s450
      %p454 = scmp.eq.s32.totalorder %s78, 0
      %p455 = por %p453, %p454
      %p456 = scmp.ne.s32.totalorder %s448, %s450
      %p457 = scmp.eq.s32.totalorder %s83, 1
      %p458 = por %p456, %p457
      %p459 = scmp.ne.s32.totalorder %s450, %s451
      %p460 = scmp.eq.s32.totalorder %s83, 0
      %p461 = por %p459, %p460
      %p462 = scmp.ne.s32.totalorder %s450, %s451
      %p463 = scmp.eq.s32.totalorder %s84, 1
      %p464 = por %p462, %p463
      %p466 = scmp.ne.s32.totalorder %s451, %s465
      %p467 = scmp.eq.s32.totalorder %s84, 0
      %p468 = por %p466, %p467
      %s470 = sadd.s32 %s469, 1
      %p473 = scmp.eq.s32.totalorder %s78, 1
      %p474 = scmp.ne.s32.totalorder %s469, %s471
      %p475 = scmp.eq.s32.totalorder %s78, 0
      %p476 = por %p474, %p475
      %p477 = scmp.ne.s32.totalorder %s469, %s471
      %p478 = scmp.eq.s32.totalorder %s83, 1
      %p479 = por %p477, %p478
      %p480 = scmp.ne.s32.totalorder %s471, %s472
      %p481 = scmp.eq.s32.totalorder %s83, 0
      %p482 = por %p480, %p481
      %p483 = scmp.ne.s32.totalorder %s471, %s472
      %p484 = scmp.eq.s32.totalorder %s84, 1
      %p485 = por %p483, %p484
      %p487 = scmp.ne.s32.totalorder %s472, %s486
      %p488 = scmp.eq.s32.totalorder %s84, 0
      %p489 = por %p487, %p488
      %s491 = sadd.s32 %s490, 1
      %p494 = scmp.eq.s32.totalorder %s78, 1
      %p495 = scmp.ne.s32.totalorder %s490, %s492
      %p496 = scmp.eq.s32.totalorder %s78, 0
      %p497 = por %p495, %p496
      %p498 = scmp.ne.s32.totalorder %s490, %s492
      %p499 = scmp.eq.s32.totalorder %s83, 1
      %p500 = por %p498, %p499
      %p501 = scmp.ne.s32.totalorder %s492, %s493
      %p502 = scmp.eq.s32.totalorder %s83, 0
      %p503 = por %p501, %p502
      %p504 = scmp.ne.s32.totalorder %s492, %s493
      %p505 = scmp.eq.s32.totalorder %s84, 1
      %p506 = por %p504, %p505
      %p508 = scmp.ne.s32.totalorder %s493, %s507
      %p509 = scmp.eq.s32.totalorder %s84, 0
      %p510 = por %p508, %p509
      %s512 = sadd.s32 %s511, 1
      %p515 = scmp.eq.s32.totalorder %s78, 1
      %p516 = scmp.ne.s32.totalorder %s511, %s513
      %p517 = scmp.eq.s32.totalorder %s78, 0
      %p518 = por %p516, %p517
      %p519 = scmp.ne.s32.totalorder %s511, %s513
      %p520 = scmp.eq.s32.totalorder %s83, 1
      %p521 = por %p519, %p520
      %p522 = scmp.ne.s32.totalorder %s513, %s514
      %p523 = scmp.eq.s32.totalorder %s83, 0
      %p524 = por %p522, %p523
      %p525 = scmp.ne.s32.totalorder %s513, %s514
      %p526 = scmp.eq.s32.totalorder %s84, 1
      %p527 = por %p525, %p526
      %p529 = scmp.ne.s32.totalorder %s514, %s528
      %p530 = scmp.eq.s32.totalorder %s84, 0
      %p531 = por %p529, %p530
      %s533 = sadd.s32 %s532, 1
      %p536 = scmp.eq.s32.totalorder %s78, 1
      %p537 = scmp.ne.s32.totalorder %s532, %s534
      %p538 = scmp.eq.s32.totalorder %s78, 0
      %p539 = por %p537, %p538
      %p540 = scmp.ne.s32.totalorder %s532, %s534
      %p541 = scmp.eq.s32.totalorder %s83, 1
      %p542 = por %p540, %p541
      %p543 = scmp.ne.s32.totalorder %s534, %s535
      %p544 = scmp.eq.s32.totalorder %s83, 0
      %p545 = por %p543, %p544
      %p546 = scmp.ne.s32.totalorder %s534, %s535
      %p547 = scmp.eq.s32.totalorder %s84, 1
      %p548 = por %p546, %p547
      %p550 = scmp.ne.s32.totalorder %s535, %s549
      %p551 = scmp.eq.s32.totalorder %s84, 0
      %p552 = por %p550, %p551
      %s554 = sadd.s32 %s553, 1
      %p557 = scmp.eq.s32.totalorder %s78, 1
      %p558 = scmp.ne.s32.totalorder %s553, %s555
      %p559 = scmp.eq.s32.totalorder %s78, 0
      %p560 = por %p558, %p559
      %p561 = scmp.ne.s32.totalorder %s553, %s555
      %p562 = scmp.eq.s32.totalorder %s83, 1
      %p563 = por %p561, %p562
      %p564 = scmp.ne.s32.totalorder %s555, %s556
      %p565 = scmp.eq.s32.totalorder %s83, 0
      %p566 = por %p564, %p565
      %p567 = scmp.ne.s32.totalorder %s555, %s556
      %p568 = scmp.eq.s32.totalorder %s84, 1
      %p569 = por %p567, %p568
      %p571 = scmp.ne.s32.totalorder %s556, %s570
      %p572 = scmp.eq.s32.totalorder %s84, 0
      %p573 = por %p571, %p572
      %s575 = sadd.s32 %s574, 1
      %p578 = scmp.eq.s32.totalorder %s78, 1
      %p579 = scmp.ne.s32.totalorder %s574, %s576
      %p580 = scmp.eq.s32.totalorder %s78, 0
      %p581 = por %p579, %p580
      %p582 = scmp.ne.s32.totalorder %s574, %s576
      %p583 = scmp.eq.s32.totalorder %s83, 1
      %p584 = por %p582, %p583
      %p585 = scmp.ne.s32.totalorder %s576, %s577
      %p586 = scmp.eq.s32.totalorder %s83, 0
      %p587 = por %p585, %p586
      %p588 = scmp.ne.s32.totalorder %s576, %s577
      %p589 = scmp.eq.s32.totalorder %s84, 1
      %p590 = por %p588, %p589
      %p592 = scmp.ne.s32.totalorder %s577, %s591
      %p593 = scmp.eq.s32.totalorder %s84, 0
      %p594 = por %p592, %p593
      %s596 = sadd.s32 %s595, 1
      %p599 = scmp.eq.s32.totalorder %s78, 1
      %p600 = scmp.ne.s32.totalorder %s595, %s597
      %p601 = scmp.eq.s32.totalorder %s78, 0
      %p602 = por %p600, %p601
      %p603 = scmp.ne.s32.totalorder %s595, %s597
      %p604 = scmp.eq.s32.totalorder %s83, 1
      %p605 = por %p603, %p604
      %p606 = scmp.ne.s32.totalorder %s597, %s598
      %p607 = scmp.eq.s32.totalorder %s83, 0
      %p608 = por %p606, %p607
      %p609 = scmp.ne.s32.totalorder %s597, %s598
      %p610 = scmp.eq.s32.totalorder %s84, 1
      %p611 = por %p609, %p610
      %p613 = scmp.ne.s32.totalorder %s598, %s612
      %p614 = scmp.eq.s32.totalorder %s84, 0
      %p615 = por %p613, %p614
      %s617 = sadd.s32 %s616, 1
      %p620 = scmp.eq.s32.totalorder %s78, 1
      %p621 = scmp.ne.s32.totalorder %s616, %s618
      %p622 = scmp.eq.s32.totalorder %s78, 0
      %p623 = por %p621, %p622
      %p624 = scmp.ne.s32.totalorder %s616, %s618
      %p625 = scmp.eq.s32.totalorder %s83, 1
      %p626 = por %p624, %p625
      %p627 = scmp.ne.s32.totalorder %s618, %s619
      %p628 = scmp.eq.s32.totalorder %s83, 0
      %p629 = por %p627, %p628
      %p630 = scmp.ne.s32.totalorder %s618, %s619
      %p631 = scmp.eq.s32.totalorder %s84, 1
      %p632 = por %p630, %p631
      %p634 = scmp.ne.s32.totalorder %s619, %s633
      %p635 = scmp.eq.s32.totalorder %s84, 0
      %p636 = por %p634, %p635
      %s638 = sadd.s32 %s637, 1
      %p641 = scmp.eq.s32.totalorder %s78, 1
      %p642 = scmp.ne.s32.totalorder %s637, %s639
      %p643 = scmp.eq.s32.totalorder %s78, 0
      %p644 = por %p642, %p643
      %p645 = scmp.ne.s32.totalorder %s637, %s639
      %p646 = scmp.eq.s32.totalorder %s83, 1
      %p647 = por %p645, %p646
      %p648 = scmp.ne.s32.totalorder %s639, %s640
      %p649 = scmp.eq.s32.totalorder %s83, 0
      %p650 = por %p648, %p649
      %p651 = scmp.ne.s32.totalorder %s639, %s640
      %p652 = scmp.eq.s32.totalorder %s84, 1
      %p653 = por %p651, %p652
      %p655 = scmp.ne.s32.totalorder %s640, %s654
      %p656 = scmp.eq.s32.totalorder %s84, 0
      %p657 = por %p655, %p656
      %s659 = sadd.s32 %s658, 1
      %p662 = scmp.eq.s32.totalorder %s78, 1
      %p663 = scmp.ne.s32.totalorder %s658, %s660
      %p664 = scmp.eq.s32.totalorder %s78, 0
      %p665 = por %p663, %p664
      %p666 = scmp.ne.s32.totalorder %s658, %s660
      %p667 = scmp.eq.s32.totalorder %s83, 1
      %p668 = por %p666, %p667
      %p669 = scmp.ne.s32.totalorder %s660, %s661
      %p670 = scmp.eq.s32.totalorder %s83, 0
      %p671 = por %p669, %p670
      %p672 = scmp.ne.s32.totalorder %s660, %s661
      %p673 = scmp.eq.s32.totalorder %s84, 1
      %p674 = por %p672, %p673
      %p676 = scmp.ne.s32.totalorder %s661, %s675
      %p677 = scmp.eq.s32.totalorder %s84, 0
      %p678 = por %p676, %p677
      %s680 = sadd.s32 %s679, 1
      %p683 = scmp.eq.s32.totalorder %s78, 1
      %p684 = scmp.ne.s32.totalorder %s679, %s681
      %p685 = scmp.eq.s32.totalorder %s78, 0
      %p686 = por %p684, %p685
      %p687 = scmp.ne.s32.totalorder %s679, %s681
      %p688 = scmp.eq.s32.totalorder %s83, 1
      %p689 = por %p687, %p688
      %p690 = scmp.ne.s32.totalorder %s681, %s682
      %p691 = scmp.eq.s32.totalorder %s83, 0
      %p692 = por %p690, %p691
      %p693 = scmp.ne.s32.totalorder %s681, %s682
      %p694 = scmp.eq.s32.totalorder %s84, 1
      %p695 = por %p693, %p694
      %p697 = scmp.ne.s32.totalorder %s682, %s696
      %p698 = scmp.eq.s32.totalorder %s84, 0
      %p699 = por %p697, %p698
      %s701 = sadd.s32 %s700, 1
      %p704 = scmp.eq.s32.totalorder %s78, 1
      %p705 = scmp.ne.s32.totalorder %s700, %s702
      %p706 = scmp.eq.s32.totalorder %s78, 0
      %p707 = por %p705, %p706
      %p708 = scmp.ne.s32.totalorder %s700, %s702
      %p709 = scmp.eq.s32.totalorder %s83, 1
      %p710 = por %p708, %p709
      %p711 = scmp.ne.s32.totalorder %s702, %s703
      %p712 = scmp.eq.s32.totalorder %s83, 0
      %p713 = por %p711, %p712
      %p714 = scmp.ne.s32.totalorder %s702, %s703
      %p715 = scmp.eq.s32.totalorder %s84, 1
      %p716 = por %p714, %p715
      %p718 = scmp.ne.s32.totalorder %s703, %s717
      %p719 = scmp.eq.s32.totalorder %s84, 0
      %p720 = por %p718, %p719
      %s722 = sadd.s32 %s721, 1
      %p725 = scmp.eq.s32.totalorder %s78, 1
      %p726 = scmp.ne.s32.totalorder %s721, %s723
      %p727 = scmp.eq.s32.totalorder %s78, 0
      %p728 = por %p726, %p727
      %p729 = scmp.ne.s32.totalorder %s721, %s723
      %p730 = scmp.eq.s32.totalorder %s83, 1
      %p731 = por %p729, %p730
      %p732 = scmp.ne.s32.totalorder %s723, %s724
      %p733 = scmp.eq.s32.totalorder %s83, 0
      %p734 = por %p732, %p733
      %p735 = scmp.ne.s32.totalorder %s723, %s724
      %p736 = scmp.eq.s32.totalorder %s84, 1
      %p737 = por %p735, %p736
      %p739 = scmp.ne.s32.totalorder %s724, %s738
      %p740 = scmp.eq.s32.totalorder %s84, 0
      %p741 = por %p739, %p740
      %s743 = sadd.s32 %s742, 1
      %p746 = scmp.eq.s32.totalorder %s78, 1
      %p747 = scmp.ne.s32.totalorder %s742, %s744
      %p748 = scmp.eq.s32.totalorder %s78, 0
      %p749 = por %p747, %p748
      %p750 = scmp.ne.s32.totalorder %s742, %s744
      %p751 = scmp.eq.s32.totalorder %s83, 1
      %p752 = por %p750, %p751
      %p753 = scmp.ne.s32.totalorder %s744, %s745
      %p754 = scmp.eq.s32.totalorder %s83, 0
      %p755 = por %p753, %p754
      %p756 = scmp.ne.s32.totalorder %s744, %s745
      %p757 = scmp.eq.s32.totalorder %s84, 1
      %p758 = por %p756, %p757
      %p760 = scmp.ne.s32.totalorder %s745, %s759
      %p761 = scmp.eq.s32.totalorder %s84, 0
      %p762 = por %p760, %p761
      %s764 = sadd.s32 %s763, 1
      %p767 = scmp.eq.s32.totalorder %s78, 1
      %p768 = scmp.ne.s32.totalorder %s763, %s765
      %p769 = scmp.eq.s32.totalorder %s78, 0
      %p770 = por %p768, %p769
      %p771 = scmp.ne.s32.totalorder %s763, %s765
      %p772 = scmp.eq.s32.totalorder %s83, 1
      %p773 = por %p771, %p772
      %p774 = scmp.ne.s32.totalorder %s765, %s766
      %p775 = scmp.eq.s32.totalorder %s83, 0
      %p776 = por %p774, %p775
      %p777 = scmp.ne.s32.totalorder %s765, %s766
      %p778 = scmp.eq.s32.totalorder %s84, 1
      %p779 = por %p777, %p778
      %p781 = scmp.ne.s32.totalorder %s766, %s780
      %p782 = scmp.eq.s32.totalorder %s84, 0
      %p783 = por %p781, %p782
      %s785 = sadd.s32 %s784, 1
      %p788 = scmp.eq.s32.totalorder %s78, 1
      %p789 = scmp.ne.s32.totalorder %s784, %s786
      %p790 = scmp.eq.s32.totalorder %s78, 0
      %p791 = por %p789, %p790
      %p792 = scmp.ne.s32.totalorder %s784, %s786
      %p793 = scmp.eq.s32.totalorder %s83, 1
      %p794 = por %p792, %p793
      %p795 = scmp.ne.s32.totalorder %s786, %s787
      %p796 = scmp.eq.s32.totalorder %s83, 0
      %p797 = por %p795, %p796
      %p798 = scmp.ne.s32.totalorder %s786, %s787
      %p799 = scmp.eq.s32.totalorder %s84, 1
      %p800 = por %p798, %p799
      %p802 = scmp.ne.s32.totalorder %s787, %s801
      %p803 = scmp.eq.s32.totalorder %s84, 0
      %p804 = por %p802, %p803
      %s805 = ssub.s32 %s78, %s85
      %p806 = scmp.eq.s32.totalorder %s805, 0
      %s808 = sadd.s32 %s807, 1
      %s809 = scalar_select %p806, %s807, %s808
      %p812 = pneg %p806
      %p813 = scmp.eq.s32.totalorder %s78, 1
      %p814 = por %p812, %p813
      %p815 = scmp.ne.s32.totalorder %s807, %s810
      %p816 = scmp.eq.s32.totalorder %s78, 0
      %p817 = por %p815, %p816
      %p818 = scmp.ne.s32.totalorder %s807, %s810
      %p819 = scmp.eq.s32.totalorder %s83, 1
      %p820 = por %p818, %p819
      %p821 = scmp.ne.s32.totalorder %s810, %s811
      %p822 = scmp.eq.s32.totalorder %s83, 0
      %p823 = por %p821, %p822
      %p824 = scmp.ne.s32.totalorder %s810, %s811
      %p825 = scmp.eq.s32.totalorder %s84, 1
      %p826 = por %p824, %p825
      %p828 = scmp.ne.s32.totalorder %s811, %s827
      %p829 = scmp.eq.s32.totalorder %s84, 0
      %p830 = por %p828, %p829
      %p831 = scmp.le.s32.totalorder 1, %s78
      %p832 = scmp.lt.s32.totalorder %s78, 3
      %p833 = pnand %p831, %p832
      %p834 = pneg %p833
      // Predicated region
      $region9: #{_lambda_.1} parent=5 // pred_check
        _
      $region10: #{_lambda_.1} parent=5 // pred_check_branch
        %836 = sbr.rel (%p833) target = $region12
      $region11: #{_lambda_.1} parent=5 // pred_region
        %s837 = ssub.s32 %s78, 1
        // Predicated region
        $region13: #{_lambda_.1} parent=11 // pred_check
          %p838 = pneg %p125
        $region14: #{_lambda_.1} parent=11 // pred_check_branch
          %840 = sbr.rel (%p838) target = $region16
        $region15: #{_lambda_.1} parent=11 // pred_region
          _
        $region16: #{_lambda_.1} parent=11 // pred_fallthru
          _
        // Predicated region
        $region17: #{_lambda_.1} parent=11 // pred_check
          %p841 = pneg %p146
        $region18: #{_lambda_.1} parent=11 // pred_check_branch
          %843 = sbr.rel (%p841) target = $region20
        $region19: #{_lambda_.1} parent=11 // pred_region
          _
        $region20: #{_lambda_.1} parent=11 // pred_fallthru
          _
        // Predicated region
        $region21: #{_lambda_.1} parent=11 // pred_check
          %p844 = pneg %p167
        $region22: #{_lambda_.1} parent=11 // pred_check_branch
          %846 = sbr.rel (%p844) target = $region24
        $region23: #{_lambda_.1} parent=11 // pred_region
          _
        $region24: #{_lambda_.1} parent=11 // pred_fallthru
          _
        // Predicated region
        $region25: #{_lambda_.1} parent=11 // pred_check
          %p847 = pneg %p188
        $region26: #{_lambda_.1} parent=11 // pred_check_branch
          %849 = sbr.rel (%p847) target = $region28
        $region27: #{_lambda_.1} parent=11 // pred_region
          _
        $region28: #{_lambda_.1} parent=11 // pred_fallthru
          _
        // Predicated region
        $region29: #{_lambda_.1} parent=11 // pred_check
          %p850 = pneg %p209
        $region30: #{_lambda_.1} parent=11 // pred_check_branch
          %852 = sbr.rel (%p850) target = $region32
        $region31: #{_lambda_.1} parent=11 // pred_region
          _
        $region32: #{_lambda_.1} parent=11 // pred_fallthru
          _
        // Predicated region
        $region33: #{_lambda_.1} parent=11 // pred_check
          %p853 = pneg %p230
        $region34: #{_lambda_.1} parent=11 // pred_check_branch
          %855 = sbr.rel (%p853) target = $region36
        $region35: #{_lambda_.1} parent=11 // pred_region
          _
        $region36: #{_lambda_.1} parent=11 // pred_fallthru
          _
        // Predicated region
        $region37: #{_lambda_.1} parent=11 // pred_check
          %p856 = pneg %p251
        $region38: #{_lambda_.1} parent=11 // pred_check_branch
          %858 = sbr.rel (%p856) target = $region40
        $region39: #{_lambda_.1} parent=11 // pred_region
          _
        $region40: #{_lambda_.1} parent=11 // pred_fallthru
          _
        // Predicated region
        $region41: #{_lambda_.1} parent=11 // pred_check
          %p859 = pneg %p272
        $region42: #{_lambda_.1} parent=11 // pred_check_branch
          %861 = sbr.rel (%p859) target = $region44
        $region43: #{_lambda_.1} parent=11 // pred_region
          _
        $region44: #{_lambda_.1} parent=11 // pred_fallthru
          _
        // Predicated region
        $region45: #{_lambda_.1} parent=11 // pred_check
          %p862 = pneg %p293
        $region46: #{_lambda_.1} parent=11 // pred_check_branch
          %864 = sbr.rel (%p862) target = $region48
        $region47: #{_lambda_.1} parent=11 // pred_region
          _
        $region48: #{_lambda_.1} parent=11 // pred_fallthru
          _
        // Predicated region
        $region49: #{_lambda_.1} parent=11 // pred_check
          %p865 = pneg %p314
        $region50: #{_lambda_.1} parent=11 // pred_check_branch
          %867 = sbr.rel (%p865) target = $region52
        $region51: #{_lambda_.1} parent=11 // pred_region
          _
        $region52: #{_lambda_.1} parent=11 // pred_fallthru
          _
        // Predicated region
        $region53: #{_lambda_.1} parent=11 // pred_check
          %p868 = pneg %p335
        $region54: #{_lambda_.1} parent=11 // pred_check_branch
          %870 = sbr.rel (%p868) target = $region56
        $region55: #{_lambda_.1} parent=11 // pred_region
          _
        $region56: #{_lambda_.1} parent=11 // pred_fallthru
          _
        // Predicated region
        $region57: #{_lambda_.1} parent=11 // pred_check
          %p871 = pneg %p356
        $region58: #{_lambda_.1} parent=11 // pred_check_branch
          %873 = sbr.rel (%p871) target = $region60
        $region59: #{_lambda_.1} parent=11 // pred_region
          _
        $region60: #{_lambda_.1} parent=11 // pred_fallthru
          _
        // Predicated region
        $region61: #{_lambda_.1} parent=11 // pred_check
          %p874 = pneg %p377
        $region62: #{_lambda_.1} parent=11 // pred_check_branch
          %876 = sbr.rel (%p874) target = $region64
        $region63: #{_lambda_.1} parent=11 // pred_region
          _
        $region64: #{_lambda_.1} parent=11 // pred_fallthru
          _
        // Predicated region
        $region65: #{_lambda_.1} parent=11 // pred_check
          %p877 = pneg %p398
        $region66: #{_lambda_.1} parent=11 // pred_check_branch
          %879 = sbr.rel (%p877) target = $region68
        $region67: #{_lambda_.1} parent=11 // pred_region
          _
        $region68: #{_lambda_.1} parent=11 // pred_fallthru
          _
        // Predicated region
        $region69: #{_lambda_.1} parent=11 // pred_check
          %p880 = pneg %p419
        $region70: #{_lambda_.1} parent=11 // pred_check_branch
          %882 = sbr.rel (%p880) target = $region72
        $region71: #{_lambda_.1} parent=11 // pred_region
          _
        $region72: #{_lambda_.1} parent=11 // pred_fallthru
          _
        // Predicated region
        $region73: #{_lambda_.1} parent=11 // pred_check
          %p883 = pneg %p440
        $region74: #{_lambda_.1} parent=11 // pred_check_branch
          %885 = sbr.rel (%p883) target = $region76
        $region75: #{_lambda_.1} parent=11 // pred_region
          _
        $region76: #{_lambda_.1} parent=11 // pred_fallthru
          _
        // Predicated region
        $region77: #{_lambda_.1} parent=11 // pred_check
          %p886 = pneg %p461
        $region78: #{_lambda_.1} parent=11 // pred_check_branch
          %888 = sbr.rel (%p886) target = $region80
        $region79: #{_lambda_.1} parent=11 // pred_region
          _
        $region80: #{_lambda_.1} parent=11 // pred_fallthru
          _
        // Predicated region
        $region81: #{_lambda_.1} parent=11 // pred_check
          %p889 = pneg %p482
        $region82: #{_lambda_.1} parent=11 // pred_check_branch
          %891 = sbr.rel (%p889) target = $region84
        $region83: #{_lambda_.1} parent=11 // pred_region
          _
        $region84: #{_lambda_.1} parent=11 // pred_fallthru
          _
        // Predicated region
        $region85: #{_lambda_.1} parent=11 // pred_check
          %p892 = pneg %p503
        $region86: #{_lambda_.1} parent=11 // pred_check_branch
          %894 = sbr.rel (%p892) target = $region88
        $region87: #{_lambda_.1} parent=11 // pred_region
          _
        $region88: #{_lambda_.1} parent=11 // pred_fallthru
          _
        // Predicated region
        $region89: #{_lambda_.1} parent=11 // pred_check
          %p895 = pneg %p524
        $region90: #{_lambda_.1} parent=11 // pred_check_branch
          %897 = sbr.rel (%p895) target = $region92
        $region91: #{_lambda_.1} parent=11 // pred_region
          _
        $region92: #{_lambda_.1} parent=11 // pred_fallthru
          _
        // Predicated region
        $region93: #{_lambda_.1} parent=11 // pred_check
          %p898 = pneg %p545
        $region94: #{_lambda_.1} parent=11 // pred_check_branch
          %900 = sbr.rel (%p898) target = $region96
        $region95: #{_lambda_.1} parent=11 // pred_region
          _
        $region96: #{_lambda_.1} parent=11 // pred_fallthru
          _
        // Predicated region
        $region97: #{_lambda_.1} parent=11 // pred_check
          %p901 = pneg %p566
        $region98: #{_lambda_.1} parent=11 // pred_check_branch
          %903 = sbr.rel (%p901) target = $region100
        $region99: #{_lambda_.1} parent=11 // pred_region
          _
        $region100: #{_lambda_.1} parent=11 // pred_fallthru
          _
        // Predicated region
        $region101: #{_lambda_.1} parent=11 // pred_check
          %p904 = pneg %p587
        $region102: #{_lambda_.1} parent=11 // pred_check_branch
          %906 = sbr.rel (%p904) target = $region104
        $region103: #{_lambda_.1} parent=11 // pred_region
          _
        $region104: #{_lambda_.1} parent=11 // pred_fallthru
          _
        // Predicated region
        $region105: #{_lambda_.1} parent=11 // pred_check
          %p907 = pneg %p608
        $region106: #{_lambda_.1} parent=11 // pred_check_branch
          %909 = sbr.rel (%p907) target = $region108
        $region107: #{_lambda_.1} parent=11 // pred_region
          _
        $region108: #{_lambda_.1} parent=11 // pred_fallthru
          _
        // Predicated region
        $region109: #{_lambda_.1} parent=11 // pred_check
          %p910 = pneg %p629
        $region110: #{_lambda_.1} parent=11 // pred_check_branch
          %912 = sbr.rel (%p910) target = $region112
        $region111: #{_lambda_.1} parent=11 // pred_region
          _
        $region112: #{_lambda_.1} parent=11 // pred_fallthru
          _
        // Predicated region
        $region113: #{_lambda_.1} parent=11 // pred_check
          %p913 = pneg %p650
        $region114: #{_lambda_.1} parent=11 // pred_check_branch
          %915 = sbr.rel (%p913) target = $region116
        $region115: #{_lambda_.1} parent=11 // pred_region
          _
        $region116: #{_lambda_.1} parent=11 // pred_fallthru
          _
        // Predicated region
        $region117: #{_lambda_.1} parent=11 // pred_check
          %p916 = pneg %p671
        $region118: #{_lambda_.1} parent=11 // pred_check_branch
          %918 = sbr.rel (%p916) target = $region120
        $region119: #{_lambda_.1} parent=11 // pred_region
          _
        $region120: #{_lambda_.1} parent=11 // pred_fallthru
          _
        // Predicated region
        $region121: #{_lambda_.1} parent=11 // pred_check
          %p919 = pneg %p692
        $region122: #{_lambda_.1} parent=11 // pred_check_branch
          %921 = sbr.rel (%p919) target = $region124
        $region123: #{_lambda_.1} parent=11 // pred_region
          _
        $region124: #{_lambda_.1} parent=11 // pred_fallthru
          _
        // Predicated region
        $region125: #{_lambda_.1} parent=11 // pred_check
          %p922 = pneg %p713
        $region126: #{_lambda_.1} parent=11 // pred_check_branch
          %924 = sbr.rel (%p922) target = $region128
        $region127: #{_lambda_.1} parent=11 // pred_region
          _
        $region128: #{_lambda_.1} parent=11 // pred_fallthru
          _
        // Predicated region
        $region129: #{_lambda_.1} parent=11 // pred_check
          %p925 = pneg %p734
        $region130: #{_lambda_.1} parent=11 // pred_check_branch
          %927 = sbr.rel (%p925) target = $region132
        $region131: #{_lambda_.1} parent=11 // pred_region
          _
        $region132: #{_lambda_.1} parent=11 // pred_fallthru
          _
        // Predicated region
        $region133: #{_lambda_.1} parent=11 // pred_check
          %p928 = pneg %p755
        $region134: #{_lambda_.1} parent=11 // pred_check_branch
          %930 = sbr.rel (%p928) target = $region136
        $region135: #{_lambda_.1} parent=11 // pred_region
          _
        $region136: #{_lambda_.1} parent=11 // pred_fallthru
          _
        // Predicated region
        $region137: #{_lambda_.1} parent=11 // pred_check
          %p931 = pneg %p776
        $region138: #{_lambda_.1} parent=11 // pred_check_branch
          %933 = sbr.rel (%p931) target = $region140
        $region139: #{_lambda_.1} parent=11 // pred_region
          _
        $region140: #{_lambda_.1} parent=11 // pred_fallthru
          _
        // Predicated region
        $region141: #{_lambda_.1} parent=11 // pred_check
          %p934 = pneg %p797
        $region142: #{_lambda_.1} parent=11 // pred_check_branch
          %936 = sbr.rel (%p934) target = $region144
        $region143: #{_lambda_.1} parent=11 // pred_region
          _
        $region144: #{_lambda_.1} parent=11 // pred_fallthru
          _
      $region12: #{_lambda_.1} parent=5 // pred_fallthru
        _
      %p937 = scmp.lt.s32.totalorder %s78, 2
      // Predicated region
      $region145: #{_lambda_.1} parent=5 // pred_check
        %p938 = pneg %p937
      $region146: #{_lambda_.1} parent=5 // pred_check_branch
        %940 = sbr.rel (%p938) target = $region148
      $region147: #{_lambda_.1} parent=5 // pred_region
        // Predicated region
        $region149: #{_lambda_.1} parent=147 // pred_check
          %p941 = pneg %p98
        $region150: #{_lambda_.1} parent=147 // pred_check_branch
          %943 = sbr.rel (%p941) target = $region152
        $region151: #{_lambda_.1} parent=147 // pred_region
          %p944 = scmp.lt.s32.totalorder %s78, 1
          %s945 = scalar_select %p944, %s78, 1
          %s946 = smul.addr %s945, 32
          %s947 = smul.addr %s946, 8
          %s948 = scalar_lea.vmem %s1, %s947
        $region152: #{_lambda_.1} parent=147 // pred_fallthru
          _
      $region148: #{_lambda_.1} parent=5 // pred_fallthru
        _
      %p949 = scmp.le.s32.totalorder 1, %s78
      %p950 = scmp.lt.s32.totalorder %s78, 3
      %p951 = pnand %p949, %p950
      %p952 = pneg %p951
      // Predicated region
      $region153: #{_lambda_.1} parent=5 // pred_check
        _
      $region154: #{_lambda_.1} parent=5 // pred_check_branch
        %954 = sbr.rel (%p951) target = $region156
      $region155: #{_lambda_.1} parent=5 // pred_region
        %s955 = ssub.s32 %s78, 1
        %p956 = scmp.lt.s32.totalorder %s83, 1
        %s957 = scalar_select %p956, %s83, 1
        %s958 = smul.addr %s957, 32
        %s959 = smul.addr %s958, 8
        %s960 = scalar_lea.vmem %s1, %s959
        %p961 = pneg %p104
        %p962 = pneg %p101
        %p963 = pneg %p125
        %p964 = pneg %p122
        %p965 = pneg %p146
        %p966 = pneg %p143
        %p967 = pneg %p167
        %p968 = pneg %p164
        %p969 = pneg %p188
        %p970 = pneg %p185
        %p971 = pneg %p209
        %p972 = pneg %p206
        %p973 = pneg %p230
        %p974 = pneg %p227
        %p975 = pneg %p251
        %p976 = pneg %p248
        %p977 = pneg %p272
        %p978 = pneg %p269
        %p979 = pneg %p293
        %p980 = pneg %p290
        %p981 = pneg %p314
        %p982 = pneg %p311
        %p983 = pneg %p335
        %p984 = pneg %p332
        %p985 = pneg %p356
        %p986 = pneg %p353
        %p987 = pneg %p377
        %p988 = pneg %p374
        %p989 = pneg %p398
        %p990 = pneg %p395
        %p991 = pneg %p419
        %p992 = pneg %p416
        %p993 = pneg %p440
        %p994 = pneg %p437
        %p995 = pneg %p461
        %p996 = pneg %p458
        %p997 = pneg %p482
        %p998 = pneg %p479
        %p999 = pneg %p503
        %p1000 = pneg %p500
        %p1001 = pneg %p524
        %p1002 = pneg %p521
        %p1003 = pneg %p545
        %p1004 = pneg %p542
        %p1005 = pneg %p566
        %p1006 = pneg %p563
        %p1007 = pneg %p587
        %p1008 = pneg %p584
        %p1009 = pneg %p608
        %p1010 = pneg %p605
        %p1011 = pneg %p629
        %p1012 = pneg %p626
        %p1013 = pneg %p650
        %p1014 = pneg %p647
        %p1015 = pneg %p671
        %p1016 = pneg %p668
        %p1017 = pneg %p692
        %p1018 = pneg %p689
        %p1019 = pneg %p713
        %p1020 = pneg %p710
        %p1021 = pneg %p734
        %p1022 = pneg %p731
        %p1023 = pneg %p755
        %p1024 = pneg %p752
        %p1025 = pneg %p776
        %p1026 = pneg %p773
        %p1027 = pneg %p797
        %p1028 = pneg %p794
        %p1029 = pneg %p823
        %p1030 = pneg %p820
        %s1031 = sand.u32 %s810, 1
        %s1032 = scalar_lea.sflag [#allocation9], %s1031
        %s1033 = sand.u32 %s810, 1
        %s1034 = scalar_lea.vmem [#allocation8], %s1033
        %p1035 = scmp.lt.s32.totalorder %s83, 1
        %s1036 = scalar_select %p1035, %s83, 1
        %s1037 = smul.addr %s1036, 32
        %s1038 = smul.addr %s1037, 8
        %s1039 = scalar_lea.vmem %s1, %s1038
        %vm1041 = vcmask 261120
        %1042 = vst.msk [vmem:[#allocation3] sm:$0xff] %vm1041, 0.0
        %1043 = vst.msk [vmem:[#allocation3 + $0x8] sm:$0xff] %vm1041, 0.0
        %1044 = vst.msk [vmem:[#allocation3 + $0x10] sm:$0xff] %vm1041, 0.0
        %1045 = vst.msk [vmem:[#allocation3 + $0x18] sm:$0xff] %vm1041, 0.0
        %1046 = vst.msk [vmem:[#allocation3 + $0x20] sm:$0xff] %vm1041, 0.0
        %1047 = vst.msk [vmem:[#allocation3 + $0x28] sm:$0xff] %vm1041, 0.0
        %1048 = vst.msk [vmem:[#allocation3 + $0x30] sm:$0xff] %vm1041, 0.0
        %1049 = vst.msk [vmem:[#allocation3 + $0x38] sm:$0xff] %vm1041, 0.0
        %1050 = vst.msk [vmem:[#allocation3 + $0x40] sm:$0xff] %vm1041, 0.0
        %1051 = vst.msk [vmem:[#allocation3 + $0x48] sm:$0xff] %vm1041, 0.0
        %1052 = vst.msk [vmem:[#allocation3 + $0x50] sm:$0xff] %vm1041, 0.0
        %1053 = vst.msk [vmem:[#allocation3 + $0x58] sm:$0xff] %vm1041, 0.0
        %1054 = vst.msk [vmem:[#allocation3 + $0x60] sm:$0xff] %vm1041, 0.0
        %1055 = vst.msk [vmem:[#allocation3 + $0x68] sm:$0xff] %vm1041, 0.0
        %1056 = vst.msk [vmem:[#allocation3 + $0x70] sm:$0xff] %vm1041, 0.0
        %1057 = vst.msk [vmem:[#allocation3 + $0x78] sm:$0xff] %vm1041, 0.0
        %1058 = vst.msk [vmem:[#allocation3 + $0x80] sm:$0xff] %vm1041, 0.0
        %1059 = vst.msk [vmem:[#allocation3 + $0x88] sm:$0xff] %vm1041, 0.0
        %1060 = vst.msk [vmem:[#allocation3 + $0x90] sm:$0xff] %vm1041, 0.0
        %1061 = vst.msk [vmem:[#allocation3 + $0x98] sm:$0xff] %vm1041, 0.0
        %1062 = vst.msk [vmem:[#allocation3 + $0xa0] sm:$0xff] %vm1041, 0.0
        %1063 = vst.msk [vmem:[#allocation3 + $0xa8] sm:$0xff] %vm1041, 0.0
        %1064 = vst.msk [vmem:[#allocation3 + $0xb0] sm:$0xff] %vm1041, 0.0
        %1065 = vst.msk [vmem:[#allocation3 + $0xb8] sm:$0xff] %vm1041, 0.0
        %1066 = vst.msk [vmem:[#allocation3 + $0xc0] sm:$0xff] %vm1041, 0.0
        %1067 = vst.msk [vmem:[#allocation3 + $0xc8] sm:$0xff] %vm1041, 0.0
        %1068 = vst.msk [vmem:[#allocation3 + $0xd0] sm:$0xff] %vm1041, 0.0
        %1069 = vst.msk [vmem:[#allocation3 + $0xd8] sm:$0xff] %vm1041, 0.0
        %1070 = vst.msk [vmem:[#allocation3 + $0xe0] sm:$0xff] %vm1041, 0.0
        %1071 = vst.msk [vmem:[#allocation3 + $0xe8] sm:$0xff] %vm1041, 0.0
        %1072 = vst.msk [vmem:[#allocation3 + $0xf0] sm:$0xff] %vm1041, 0.0
        %1073 = vst.msk [vmem:[#allocation3 + $0xf8] sm:$0xff] %vm1041, 0.0
        %1074 = vst.msk [vmem:[#allocation3 + $0x100] sm:$0xff] %vm1041, 0.0
        %1075 = vst.msk [vmem:[#allocation3 + $0x108] sm:$0xff] %vm1041, 0.0
        %1076 = vst.msk [vmem:[#allocation3 + $0x110] sm:$0xff] %vm1041, 0.0
        %1077 = vst.msk [vmem:[#allocation3 + $0x118] sm:$0xff] %vm1041, 0.0
        %1078 = vst.msk [vmem:[#allocation3 + $0x120] sm:$0xff] %vm1041, 0.0
        %1079 = vst.msk [vmem:[#allocation3 + $0x128] sm:$0xff] %vm1041, 0.0
        %1080 = vst.msk [vmem:[#allocation3 + $0x130] sm:$0xff] %vm1041, 0.0
        %1081 = vst.msk [vmem:[#allocation3 + $0x138] sm:$0xff] %vm1041, 0.0
        %1082 = vst.msk [vmem:[#allocation3 + $0x140] sm:$0xff] %vm1041, 0.0
        %1083 = vst.msk [vmem:[#allocation3 + $0x148] sm:$0xff] %vm1041, 0.0
        %1084 = vst.msk [vmem:[#allocation3 + $0x150] sm:$0xff] %vm1041, 0.0
        %1085 = vst.msk [vmem:[#allocation3 + $0x158] sm:$0xff] %vm1041, 0.0
        %1086 = vst.msk [vmem:[#allocation3 + $0x160] sm:$0xff] %vm1041, 0.0
        %1087 = vst.msk [vmem:[#allocation3 + $0x168] sm:$0xff] %vm1041, 0.0
        %1088 = vst.msk [vmem:[#allocation3 + $0x170] sm:$0xff] %vm1041, 0.0
        %1089 = vst.msk [vmem:[#allocation3 + $0x178] sm:$0xff] %vm1041, 0.0
        %1090 = vst.msk [vmem:[#allocation3 + $0x180] sm:$0xff] %vm1041, 0.0
        %1091 = vst.msk [vmem:[#allocation3 + $0x188] sm:$0xff] %vm1041, 0.0
        %1092 = vst.msk [vmem:[#allocation3 + $0x190] sm:$0xff] %vm1041, 0.0
        %1093 = vst.msk [vmem:[#allocation3 + $0x198] sm:$0xff] %vm1041, 0.0
        %1094 = vst.msk [vmem:[#allocation3 + $0x1a0] sm:$0xff] %vm1041, 0.0
        %1095 = vst.msk [vmem:[#allocation3 + $0x1a8] sm:$0xff] %vm1041, 0.0
        %1096 = vst.msk [vmem:[#allocation3 + $0x1b0] sm:$0xff] %vm1041, 0.0
        %1097 = vst.msk [vmem:[#allocation3 + $0x1b8] sm:$0xff] %vm1041, 0.0
        %1098 = vst.msk [vmem:[#allocation3 + $0x1c0] sm:$0xff] %vm1041, 0.0
        %1099 = vst.msk [vmem:[#allocation3 + $0x1c8] sm:$0xff] %vm1041, 0.0
        %1100 = vst.msk [vmem:[#allocation3 + $0x1d0] sm:$0xff] %vm1041, 0.0
        %1101 = vst.msk [vmem:[#allocation3 + $0x1d8] sm:$0xff] %vm1041, 0.0
        %1102 = vst.msk [vmem:[#allocation3 + $0x1e0] sm:$0xff] %vm1041, 0.0
        %1103 = vst.msk [vmem:[#allocation3 + $0x1e8] sm:$0xff] %vm1041, 0.0
        %1104 = vst.msk [vmem:[#allocation3 + $0x1f0] sm:$0xff] %vm1041, 0.0
        %1105 = vst.msk [vmem:[#allocation3 + $0x1f8] sm:$0xff] %vm1041, 0.0
        %1106 = vst.msk [vmem:[#allocation3 + $0x200] sm:$0xff] %vm1041, 0.0
        %1107 = vst.msk [vmem:[#allocation3 + $0x208] sm:$0xff] %vm1041, 0.0
        %1108 = vst.msk [vmem:[#allocation3 + $0x210] sm:$0xff] %vm1041, 0.0
        %1109 = vst.msk [vmem:[#allocation3 + $0x218] sm:$0xff] %vm1041, 0.0
        %1110 = vst.msk [vmem:[#allocation3 + $0x220] sm:$0xff] %vm1041, 0.0
        %1111 = vst.msk [vmem:[#allocation3 + $0x228] sm:$0xff] %vm1041, 0.0
        %1112 = vst.msk [vmem:[#allocation3 + $0x230] sm:$0xff] %vm1041, 0.0
        %1113 = vst.msk [vmem:[#allocation3 + $0x238] sm:$0xff] %vm1041, 0.0
        %v1114 = vld [vmem:[%s1039] sm:$0xff]
        %v1115 = vld [vmem:[%s1039 + $0x8] sm:$0xff]
        %v1116 = vld [vmem:[%s1039 + $0x10] sm:$0xff]
        %v1117 = vld [vmem:[%s1039 + $0x18] sm:$0xff]
        %v1118 = vld [vmem:[%s1039 + $0x20] sm:$0xff]
        %v1119 = vld [vmem:[%s1039 + $0x28] sm:$0xff]
        %v1120 = vld [vmem:[%s1039 + $0x30] sm:$0xff]
        %v1121 = vld [vmem:[%s1039 + $0x38] sm:$0xff]
        %v1122 = vld [vmem:[%s1039 + $0x40] sm:$0xff]
        %v1123 = vld [vmem:[%s1039 + $0x48] sm:$0xff]
        %v1124 = vld [vmem:[%s1039 + $0x50] sm:$0xff]
        %v1125 = vld [vmem:[%s1039 + $0x58] sm:$0xff]
        %v1126 = vld [vmem:[%s1039 + $0x60] sm:$0xff]
        %v1127 = vld [vmem:[%s1039 + $0x68] sm:$0xff]
        %v1128 = vld [vmem:[%s1039 + $0x70] sm:$0xff]
        %v1129 = vld [vmem:[%s1039 + $0x78] sm:$0xff]
        %v1130 = vld [vmem:[%s1039 + $0x80] sm:$0xff]
        %v1131 = vld [vmem:[%s1039 + $0x88] sm:$0xff]
        %v1132 = vld [vmem:[%s1039 + $0x90] sm:$0xff]
        %v1133 = vld [vmem:[%s1039 + $0x98] sm:$0xff]
        %v1134 = vld [vmem:[%s1039 + $0xa0] sm:$0xff]
        %v1135 = vld [vmem:[%s1039 + $0xa8] sm:$0xff]
        %v1136 = vld [vmem:[%s1039 + $0xb0] sm:$0xff]
        %v1137 = vld [vmem:[%s1039 + $0xb8] sm:$0xff]
        %v1138 = vld [vmem:[%s1039 + $0xc0] sm:$0xff]
        %v1139 = vld [vmem:[%s1039 + $0xc8] sm:$0xff]
        %v1140 = vld [vmem:[%s1039 + $0xd0] sm:$0xff]
        %v1141 = vld [vmem:[%s1039 + $0xd8] sm:$0xff]
        %v1142 = vld [vmem:[%s1039 + $0xe0] sm:$0xff]
        %v1143 = vld [vmem:[%s1039 + $0xe8] sm:$0xff]
        %v1144 = vld [vmem:[%s1039 + $0xf0] sm:$0xff]
        %v1145 = vld [vmem:[%s1039 + $0xf8] sm:$0xff]
        %s1146 = scalar_lea.vmem [#allocation3], 32
        %1147 = vst.msk [vmem:[%s1146 + $0x8] sm:$0xff] %vm1041, %v1114
        %1148 = vst.msk [vmem:[%s1146 + $0x10] sm:$0xff] %vm1041, %v1115
        %1149 = vst.msk [vmem:[%s1146 + $0x28] sm:$0xff] %vm1041, %v1116
        %1150 = vst.msk [vmem:[%s1146 + $0x30] sm:$0xff] %vm1041, %v1117
        %1151 = vst.msk [vmem:[%s1146 + $0x48] sm:$0xff] %vm1041, %v1118
        %1152 = vst.msk [vmem:[%s1146 + $0x50] sm:$0xff] %vm1041, %v1119
        %1153 = vst.msk [vmem:[%s1146 + $0x68] sm:$0xff] %vm1041, %v1120
        %1154 = vst.msk [vmem:[%s1146 + $0x70] sm:$0xff] %vm1041, %v1121
        %1155 = vst.msk [vmem:[%s1146 + $0x88] sm:$0xff] %vm1041, %v1122
        %1156 = vst.msk [vmem:[%s1146 + $0x90] sm:$0xff] %vm1041, %v1123
        %1157 = vst.msk [vmem:[%s1146 + $0xa8] sm:$0xff] %vm1041, %v1124
        %1158 = vst.msk [vmem:[%s1146 + $0xb0] sm:$0xff] %vm1041, %v1125
        %1159 = vst.msk [vmem:[%s1146 + $0xc8] sm:$0xff] %vm1041, %v1126
        %1160 = vst.msk [vmem:[%s1146 + $0xd0] sm:$0xff] %vm1041, %v1127
        %1161 = vst.msk [vmem:[%s1146 + $0xe8] sm:$0xff] %vm1041, %v1128
        %1162 = vst.msk [vmem:[%s1146 + $0xf0] sm:$0xff] %vm1041, %v1129
        %1163 = vst.msk [vmem:[%s1146 + $0x108] sm:$0xff] %vm1041, %v1130
        %1164 = vst.msk [vmem:[%s1146 + $0x110] sm:$0xff] %vm1041, %v1131
        %1165 = vst.msk [vmem:[%s1146 + $0x128] sm:$0xff] %vm1041, %v1132
        %1166 = vst.msk [vmem:[%s1146 + $0x130] sm:$0xff] %vm1041, %v1133
        %1167 = vst.msk [vmem:[%s1146 + $0x148] sm:$0xff] %vm1041, %v1134
        %1168 = vst.msk [vmem:[%s1146 + $0x150] sm:$0xff] %vm1041, %v1135
        %1169 = vst.msk [vmem:[%s1146 + $0x168] sm:$0xff] %vm1041, %v1136
        %1170 = vst.msk [vmem:[%s1146 + $0x170] sm:$0xff] %vm1041, %v1137
        %1171 = vst.msk [vmem:[%s1146 + $0x188] sm:$0xff] %vm1041, %v1138
        %1172 = vst.msk [vmem:[%s1146 + $0x190] sm:$0xff] %vm1041, %v1139
        %1173 = vst.msk [vmem:[%s1146 + $0x1a8] sm:$0xff] %vm1041, %v1140
        %1174 = vst.msk [vmem:[%s1146 + $0x1b0] sm:$0xff] %vm1041, %v1141
        %1175 = vst.msk [vmem:[%s1146 + $0x1c8] sm:$0xff] %vm1041, %v1142
        %1176 = vst.msk [vmem:[%s1146 + $0x1d0] sm:$0xff] %vm1041, %v1143
        %1177 = vst.msk [vmem:[%s1146 + $0x1e8] sm:$0xff] %vm1041, %v1144
        %1178 = vst.msk [vmem:[%s1146 + $0x1f0] sm:$0xff] %vm1041, %v1145
        %v1179 = vld [vmem:[#allocation3 + $0x7] sm:$0xff]
        %v1180 = vld [vmem:[#allocation3 + $0xf] sm:$0xff]
        %v1181 = vld [vmem:[#allocation3 + $0x27] sm:$0xff]
        %v1182 = vld [vmem:[#allocation3 + $0x2f] sm:$0xff]
        %v1183 = vld [vmem:[#allocation3 + $0x47] sm:$0xff]
        %v1184 = vld [vmem:[#allocation3 + $0x4f] sm:$0xff]
        %v1185 = vld [vmem:[#allocation3 + $0x67] sm:$0xff]
        %v1186 = vld [vmem:[#allocation3 + $0x6f] sm:$0xff]
        %v1187 = vld [vmem:[#allocation3 + $0x87] sm:$0xff]
        %v1188 = vld [vmem:[#allocation3 + $0x8f] sm:$0xff]
        %v1189 = vld [vmem:[#allocation3 + $0xa7] sm:$0xff]
        %v1190 = vld [vmem:[#allocation3 + $0xaf] sm:$0xff]
        %v1191 = vld [vmem:[#allocation3 + $0xc7] sm:$0xff]
        %v1192 = vld [vmem:[#allocation3 + $0xcf] sm:$0xff]
        %v1193 = vld [vmem:[#allocation3 + $0xe7] sm:$0xff]
        %v1194 = vld [vmem:[#allocation3 + $0xef] sm:$0xff]
        %v1195 = vld [vmem:[#allocation3 + $0x107] sm:$0xff]
        %v1196 = vld [vmem:[#allocation3 + $0x10f] sm:$0xff]
        %v1197 = vld [vmem:[#allocation3 + $0x127] sm:$0xff]
        %v1198 = vld [vmem:[#allocation3 + $0x12f] sm:$0xff]
        %v1199 = vld [vmem:[#allocation3 + $0x147] sm:$0xff]
        %v1200 = vld [vmem:[#allocation3 + $0x14f] sm:$0xff]
        %v1201 = vld [vmem:[#allocation3 + $0x167] sm:$0xff]
        %v1202 = vld [vmem:[#allocation3 + $0x16f] sm:$0xff]
        %v1203 = vld [vmem:[#allocation3 + $0x187] sm:$0xff]
        %v1204 = vld [vmem:[#allocation3 + $0x18f] sm:$0xff]
        %v1205 = vld [vmem:[#allocation3 + $0x1a7] sm:$0xff]
        %v1206 = vld [vmem:[#allocation3 + $0x1af] sm:$0xff]
        %v1207 = vld [vmem:[#allocation3 + $0x1c7] sm:$0xff]
        %v1208 = vld [vmem:[#allocation3 + $0x1cf] sm:$0xff]
        %v1209 = vld [vmem:[#allocation3 + $0x1e7] sm:$0xff]
        %v1210 = vld [vmem:[#allocation3 + $0x1ef] sm:$0xff]
        %v1211 = vpack.c.bf16 %v1180, %v1179
        %v1212 = vpack.c.bf16 %v1182, %v1181
        %v1213 = vpack.c.bf16 %v1184, %v1183
        %v1214 = vpack.c.bf16 %v1186, %v1185
        %v1215 = vpack.c.bf16 %v1188, %v1187
        %v1216 = vpack.c.bf16 %v1190, %v1189
        %v1217 = vpack.c.bf16 %v1192, %v1191
        %v1218 = vpack.c.bf16 %v1194, %v1193
        %v1219 = vpack.c.bf16 %v1196, %v1195
        %v1220 = vpack.c.bf16 %v1198, %v1197
        %v1221 = vpack.c.bf16 %v1200, %v1199
        %v1222 = vpack.c.bf16 %v1202, %v1201
        %v1223 = vpack.c.bf16 %v1204, %v1203
        %v1224 = vpack.c.bf16 %v1206, %v1205
        %v1225 = vpack.c.bf16 %v1208, %v1207
        %v1226 = vpack.c.bf16 %v1210, %v1209
        %1227 = vst.msk [vmem:[#allocation4] sm:$0xff] %vm1041, %v1211
        %1228 = vst.msk [vmem:[#allocation4 + $0x18] sm:$0xff] %vm1041, %v1212
        %1229 = vst.msk [vmem:[#allocation4 + $0x30] sm:$0xff] %vm1041, %v1213
        %1230 = vst.msk [vmem:[#allocation4 + $0x48] sm:$0xff] %vm1041, %v1214
        %1231 = vst.msk [vmem:[#allocation4 + $0x60] sm:$0xff] %vm1041, %v1215
        %1232 = vst.msk [vmem:[#allocation4 + $0x78] sm:$0xff] %vm1041, %v1216
        %1233 = vst.msk [vmem:[#allocation4 + $0x90] sm:$0xff] %vm1041, %v1217
        %1234 = vst.msk [vmem:[#allocation4 + $0xa8] sm:$0xff] %vm1041, %v1218
        %1235 = vst.msk [vmem:[#allocation4 + $0xc0] sm:$0xff] %vm1041, %v1219
        %1236 = vst.msk [vmem:[#allocation4 + $0xd8] sm:$0xff] %vm1041, %v1220
        %1237 = vst.msk [vmem:[#allocation4 + $0xf0] sm:$0xff] %vm1041, %v1221
        %1238 = vst.msk [vmem:[#allocation4 + $0x108] sm:$0xff] %vm1041, %v1222
        %1239 = vst.msk [vmem:[#allocation4 + $0x120] sm:$0xff] %vm1041, %v1223
        %1240 = vst.msk [vmem:[#allocation4 + $0x138] sm:$0xff] %vm1041, %v1224
        %1241 = vst.msk [vmem:[#allocation4 + $0x150] sm:$0xff] %vm1041, %v1225
        %1242 = vst.msk [vmem:[#allocation4 + $0x168] sm:$0xff] %vm1041, %v1226
        %v1243 = vld [vmem:[#allocation3 + $0x8] sm:$0xff]
        %v1244 = vld [vmem:[#allocation3 + $0x10] sm:$0xff]
        %v1245 = vld [vmem:[#allocation3 + $0x28] sm:$0xff]
        %v1246 = vld [vmem:[#allocation3 + $0x30] sm:$0xff]
        %v1247 = vld [vmem:[#allocation3 + $0x48] sm:$0xff]
        %v1248 = vld [vmem:[#allocation3 + $0x50] sm:$0xff]
        %v1249 = vld [vmem:[#allocation3 + $0x68] sm:$0xff]
        %v1250 = vld [vmem:[#allocation3 + $0x70] sm:$0xff]
        %v1251 = vld [vmem:[#allocation3 + $0x88] sm:$0xff]
        %v1252 = vld [vmem:[#allocation3 + $0x90] sm:$0xff]
        %v1253 = vld [vmem:[#allocation3 + $0xa8] sm:$0xff]
        %v1254 = vld [vmem:[#allocation3 + $0xb0] sm:$0xff]
        %v1255 = vld [vmem:[#allocation3 + $0xc8] sm:$0xff]
        %v1256 = vld [vmem:[#allocation3 + $0xd0] sm:$0xff]
        %v1257 = vld [vmem:[#allocation3 + $0xe8] sm:$0xff]
        %v1258 = vld [vmem:[#allocation3 + $0xf0] sm:$0xff]
        %v1259 = vld [vmem:[#allocation3 + $0x108] sm:$0xff]
        %v1260 = vld [vmem:[#allocation3 + $0x110] sm:$0xff]
        %v1261 = vld [vmem:[#allocation3 + $0x128] sm:$0xff]
        %v1262 = vld [vmem:[#allocation3 + $0x130] sm:$0xff]
        %v1263 = vld [vmem:[#allocation3 + $0x148] sm:$0xff]
        %v1264 = vld [vmem:[#allocation3 + $0x150] sm:$0xff]
        %v1265 = vld [vmem:[#allocation3 + $0x168] sm:$0xff]
        %v1266 = vld [vmem:[#allocation3 + $0x170] sm:$0xff]
        %v1267 = vld [vmem:[#allocation3 + $0x188] sm:$0xff]
        %v1268 = vld [vmem:[#allocation3 + $0x190] sm:$0xff]
        %v1269 = vld [vmem:[#allocation3 + $0x1a8] sm:$0xff]
        %v1270 = vld [vmem:[#allocation3 + $0x1b0] sm:$0xff]
        %v1271 = vld [vmem:[#allocation3 + $0x1c8] sm:$0xff]
        %v1272 = vld [vmem:[#allocation3 + $0x1d0] sm:$0xff]
        %v1273 = vld [vmem:[#allocation3 + $0x1e8] sm:$0xff]
        %v1274 = vld [vmem:[#allocation3 + $0x1f0] sm:$0xff]
        %v1275 = vpack.c.bf16 %v1244, %v1243
        %v1276 = vpack.c.bf16 %v1246, %v1245
        %v1277 = vpack.c.bf16 %v1248, %v1247
        %v1278 = vpack.c.bf16 %v1250, %v1249
        %v1279 = vpack.c.bf16 %v1252, %v1251
        %v1280 = vpack.c.bf16 %v1254, %v1253
        %v1281 = vpack.c.bf16 %v1256, %v1255
        %v1282 = vpack.c.bf16 %v1258, %v1257
        %v1283 = vpack.c.bf16 %v1260, %v1259
        %v1284 = vpack.c.bf16 %v1262, %v1261
        %v1285 = vpack.c.bf16 %v1264, %v1263
        %v1286 = vpack.c.bf16 %v1266, %v1265
        %v1287 = vpack.c.bf16 %v1268, %v1267
        %v1288 = vpack.c.bf16 %v1270, %v1269
        %v1289 = vpack.c.bf16 %v1272, %v1271
        %v1290 = vpack.c.bf16 %v1274, %v1273
        %1307 = vrot.lane.b32.xlu0 %v1275, 32
        %v1308 = vpop.permute.xlu0 %1307
        %1309 = vrot.lane.b32.xlu0 %v1276, 32
        %v1310 = vpop.permute.xlu0 %1309
        %1311 = vrot.lane.b32.xlu0 %v1277, 32
        %v1312 = vpop.permute.xlu0 %1311
        %1313 = vrot.lane.b32.xlu0 %v1278, 32
        %v1314 = vpop.permute.xlu0 %1313
        %1315 = vrot.lane.b32.xlu0 %v1279, 32
        %v1316 = vpop.permute.xlu0 %1315
        %1317 = vrot.lane.b32.xlu0 %v1280, 32
        %v1318 = vpop.permute.xlu0 %1317
        %1319 = vrot.lane.b32.xlu0 %v1281, 32
        %v1320 = vpop.permute.xlu0 %1319
        %1321 = vrot.lane.b32.xlu0 %v1282, 32
        %v1322 = vpop.permute.xlu0 %1321
        %1323 = vrot.lane.b32.xlu0 %v1283, 32
        %v1324 = vpop.permute.xlu0 %1323
        %1325 = vrot.lane.b32.xlu0 %v1284, 32
        %v1326 = vpop.permute.xlu0 %1325
        %1327 = vrot.lane.b32.xlu0 %v1285, 32
        %v1328 = vpop.permute.xlu0 %1327
        %1329 = vrot.lane.b32.xlu0 %v1286, 32
        %v1330 = vpop.permute.xlu0 %1329
        %1331 = vrot.lane.b32.xlu0 %v1287, 32
        %v1332 = vpop.permute.xlu0 %1331
        %1333 = vrot.lane.b32.xlu0 %v1288, 32
        %v1334 = vpop.permute.xlu0 %1333
        %1335 = vrot.lane.b32.xlu0 %v1289, 32
        %v1336 = vpop.permute.xlu0 %1335
        %1337 = vrot.lane.b32.xlu0 %v1290, 32
        %v1338 = vpop.permute.xlu0 %1337
        %vm1355 = vcmask 523520
        %1356 = vst.msk [vmem:[#allocation4] sm:$0xff] %vm1355, %v1308
        %1357 = vst.msk [vmem:[#allocation4 + $0x18] sm:$0xff] %vm1355, %v1310
        %1358 = vst.msk [vmem:[#allocation4 + $0x30] sm:$0xff] %vm1355, %v1312
        %1359 = vst.msk [vmem:[#allocation4 + $0x48] sm:$0xff] %vm1355, %v1314
        %1360 = vst.msk [vmem:[#allocation4 + $0x60] sm:$0xff] %vm1355, %v1316
        %1361 = vst.msk [vmem:[#allocation4 + $0x78] sm:$0xff] %vm1355, %v1318
        %1362 = vst.msk [vmem:[#allocation4 + $0x90] sm:$0xff] %vm1355, %v1320
        %1363 = vst.msk [vmem:[#allocation4 + $0xa8] sm:$0xff] %vm1355, %v1322
        %1364 = vst.msk [vmem:[#allocation4 + $0xc0] sm:$0xff] %vm1355, %v1324
        %1365 = vst.msk [vmem:[#allocation4 + $0xd8] sm:$0xff] %vm1355, %v1326
        %1366 = vst.msk [vmem:[#allocation4 + $0xf0] sm:$0xff] %vm1355, %v1328
        %1367 = vst.msk [vmem:[#allocation4 + $0x108] sm:$0xff] %vm1355, %v1330
        %1368 = vst.msk [vmem:[#allocation4 + $0x120] sm:$0xff] %vm1355, %v1332
        %1369 = vst.msk [vmem:[#allocation4 + $0x138] sm:$0xff] %vm1355, %v1334
        %1370 = vst.msk [vmem:[#allocation4 + $0x150] sm:$0xff] %vm1355, %v1336
        %1371 = vst.msk [vmem:[#allocation4 + $0x168] sm:$0xff] %vm1355, %v1338
        %v1372 = vld [vmem:[#allocation3 + $0x9] sm:$0xff]
        %v1373 = vld [vmem:[#allocation3 + $0x11] sm:$0xff]
        %v1374 = vld [vmem:[#allocation3 + $0x29] sm:$0xff]
        %v1375 = vld [vmem:[#allocation3 + $0x31] sm:$0xff]
        %v1376 = vld [vmem:[#allocation3 + $0x49] sm:$0xff]
        %v1377 = vld [vmem:[#allocation3 + $0x51] sm:$0xff]
        %v1378 = vld [vmem:[#allocation3 + $0x69] sm:$0xff]
        %v1379 = vld [vmem:[#allocation3 + $0x71] sm:$0xff]
        %v1380 = vld [vmem:[#allocation3 + $0x89] sm:$0xff]
        %v1381 = vld [vmem:[#allocation3 + $0x91] sm:$0xff]
        %v1382 = vld [vmem:[#allocation3 + $0xa9] sm:$0xff]
        %v1383 = vld [vmem:[#allocation3 + $0xb1] sm:$0xff]
        %v1384 = vld [vmem:[#allocation3 + $0xc9] sm:$0xff]
        %v1385 = vld [vmem:[#allocation3 + $0xd1] sm:$0xff]
        %v1386 = vld [vmem:[#allocation3 + $0xe9] sm:$0xff]
        %v1387 = vld [vmem:[#allocation3 + $0xf1] sm:$0xff]
        %v1388 = vld [vmem:[#allocation3 + $0x109] sm:$0xff]
        %v1389 = vld [vmem:[#allocation3 + $0x111] sm:$0xff]
        %v1390 = vld [vmem:[#allocation3 + $0x129] sm:$0xff]
        %v1391 = vld [vmem:[#allocation3 + $0x131] sm:$0xff]
        %v1392 = vld [vmem:[#allocation3 + $0x149] sm:$0xff]
        %v1393 = vld [vmem:[#allocation3 + $0x151] sm:$0xff]
        %v1394 = vld [vmem:[#allocation3 + $0x169] sm:$0xff]
        %v1395 = vld [vmem:[#allocation3 + $0x171] sm:$0xff]
        %v1396 = vld [vmem:[#allocation3 + $0x189] sm:$0xff]
        %v1397 = vld [vmem:[#allocation3 + $0x191] sm:$0xff]
        %v1398 = vld [vmem:[#allocation3 + $0x1a9] sm:$0xff]
        %v1399 = vld [vmem:[#allocation3 + $0x1b1] sm:$0xff]
        %v1400 = vld [vmem:[#allocation3 + $0x1c9] sm:$0xff]
        %v1401 = vld [vmem:[#allocation3 + $0x1d1] sm:$0xff]
        %v1402 = vld [vmem:[#allocation3 + $0x1e9] sm:$0xff]
        %v1403 = vld [vmem:[#allocation3 + $0x1f1] sm:$0xff]
        %v1404 = vpack.c.bf16 %v1373, %v1372
        %v1405 = vpack.c.bf16 %v1375, %v1374
        %v1406 = vpack.c.bf16 %v1377, %v1376
        %v1407 = vpack.c.bf16 %v1379, %v1378
        %v1408 = vpack.c.bf16 %v1381, %v1380
        %v1409 = vpack.c.bf16 %v1383, %v1382
        %v1410 = vpack.c.bf16 %v1385, %v1384
        %v1411 = vpack.c.bf16 %v1387, %v1386
        %v1412 = vpack.c.bf16 %v1389, %v1388
        %v1413 = vpack.c.bf16 %v1391, %v1390
        %v1414 = vpack.c.bf16 %v1393, %v1392
        %v1415 = vpack.c.bf16 %v1395, %v1394
        %v1416 = vpack.c.bf16 %v1397, %v1396
        %v1417 = vpack.c.bf16 %v1399, %v1398
        %v1418 = vpack.c.bf16 %v1401, %v1400
        %v1419 = vpack.c.bf16 %v1403, %v1402
        %1436 = vrot.lane.b32.xlu0 %v1404, 64
        %v1437 = vpop.permute.xlu0 %1436
        %1438 = vrot.lane.b32.xlu0 %v1405, 64
        %v1439 = vpop.permute.xlu0 %1438
        %1440 = vrot.lane.b32.xlu0 %v1406, 64
        %v1441 = vpop.permute.xlu0 %1440
        %1442 = vrot.lane.b32.xlu0 %v1407, 64
        %v1443 = vpop.permute.xlu0 %1442
        %1444 = vrot.lane.b32.xlu0 %v1408, 64
        %v1445 = vpop.permute.xlu0 %1444
        %1446 = vrot.lane.b32.xlu0 %v1409, 64
        %v1447 = vpop.permute.xlu0 %1446
        %1448 = vrot.lane.b32.xlu0 %v1410, 64
        %v1449 = vpop.permute.xlu0 %1448
        %1450 = vrot.lane.b32.xlu0 %v1411, 64
        %v1451 = vpop.permute.xlu0 %1450
        %1452 = vrot.lane.b32.xlu0 %v1412, 64
        %v1453 = vpop.permute.xlu0 %1452
        %1454 = vrot.lane.b32.xlu0 %v1413, 64
        %v1455 = vpop.permute.xlu0 %1454
        %1456 = vrot.lane.b32.xlu0 %v1414, 64
        %v1457 = vpop.permute.xlu0 %1456
        %1458 = vrot.lane.b32.xlu0 %v1415, 64
        %v1459 = vpop.permute.xlu0 %1458
        %1460 = vrot.lane.b32.xlu0 %v1416, 64
        %v1461 = vpop.permute.xlu0 %1460
        %1462 = vrot.lane.b32.xlu0 %v1417, 64
        %v1463 = vpop.permute.xlu0 %1462
        %1464 = vrot.lane.b32.xlu0 %v1418, 64
        %v1465 = vpop.permute.xlu0 %1464
        %1466 = vrot.lane.b32.xlu0 %v1419, 64
        %v1467 = vpop.permute.xlu0 %1466
        %vm1484 = vcmask 785920
        %1485 = vst.msk [vmem:[#allocation4] sm:$0xff] %vm1484, %v1437
        %1486 = vst.msk [vmem:[#allocation4 + $0x18] sm:$0xff] %vm1484, %v1439
        %1487 = vst.msk [vmem:[#allocation4 + $0x30] sm:$0xff] %vm1484, %v1441
        %1488 = vst.msk [vmem:[#allocation4 + $0x48] sm:$0xff] %vm1484, %v1443
        %1489 = vst.msk [vmem:[#allocation4 + $0x60] sm:$0xff] %vm1484, %v1445
        %1490 = vst.msk [vmem:[#allocation4 + $0x78] sm:$0xff] %vm1484, %v1447
        %1491 = vst.msk [vmem:[#allocation4 + $0x90] sm:$0xff] %vm1484, %v1449
        %1492 = vst.msk [vmem:[#allocation4 + $0xa8] sm:$0xff] %vm1484, %v1451
        %1493 = vst.msk [vmem:[#allocation4 + $0xc0] sm:$0xff] %vm1484, %v1453
        %1494 = vst.msk [vmem:[#allocation4 + $0xd8] sm:$0xff] %vm1484, %v1455
        %1495 = vst.msk [vmem:[#allocation4 + $0xf0] sm:$0xff] %vm1484, %v1457
        %1496 = vst.msk [vmem:[#allocation4 + $0x108] sm:$0xff] %vm1484, %v1459
        %1497 = vst.msk [vmem:[#allocation4 + $0x120] sm:$0xff] %vm1484, %v1461
        %1498 = vst.msk [vmem:[#allocation4 + $0x138] sm:$0xff] %vm1484, %v1463
        %1499 = vst.msk [vmem:[#allocation4 + $0x150] sm:$0xff] %vm1484, %v1465
        %1500 = vst.msk [vmem:[#allocation4 + $0x168] sm:$0xff] %vm1484, %v1467
        %v1501 = vld [vmem:[%s1146 + $0x7] sm:$0xff]
        %v1502 = vld [vmem:[%s1146 + $0xf] sm:$0xff]
        %v1503 = vld [vmem:[%s1146 + $0x27] sm:$0xff]
        %v1504 = vld [vmem:[%s1146 + $0x2f] sm:$0xff]
        %v1505 = vld [vmem:[%s1146 + $0x47] sm:$0xff]
        %v1506 = vld [vmem:[%s1146 + $0x4f] sm:$0xff]
        %v1507 = vld [vmem:[%s1146 + $0x67] sm:$0xff]
        %v1508 = vld [vmem:[%s1146 + $0x6f] sm:$0xff]
        %v1509 = vld [vmem:[%s1146 + $0x87] sm:$0xff]
        %v1510 = vld [vmem:[%s1146 + $0x8f] sm:$0xff]
        %v1511 = vld [vmem:[%s1146 + $0xa7] sm:$0xff]
        %v1512 = vld [vmem:[%s1146 + $0xaf] sm:$0xff]
        %v1513 = vld [vmem:[%s1146 + $0xc7] sm:$0xff]
        %v1514 = vld [vmem:[%s1146 + $0xcf] sm:$0xff]
        %v1515 = vld [vmem:[%s1146 + $0xe7] sm:$0xff]
        %v1516 = vld [vmem:[%s1146 + $0xef] sm:$0xff]
        %v1517 = vld [vmem:[%s1146 + $0x107] sm:$0xff]
        %v1518 = vld [vmem:[%s1146 + $0x10f] sm:$0xff]
        %v1519 = vld [vmem:[%s1146 + $0x127] sm:$0xff]
        %v1520 = vld [vmem:[%s1146 + $0x12f] sm:$0xff]
        %v1521 = vld [vmem:[%s1146 + $0x147] sm:$0xff]
        %v1522 = vld [vmem:[%s1146 + $0x14f] sm:$0xff]
        %v1523 = vld [vmem:[%s1146 + $0x167] sm:$0xff]
        %v1524 = vld [vmem:[%s1146 + $0x16f] sm:$0xff]
        %v1525 = vld [vmem:[%s1146 + $0x187] sm:$0xff]
        %v1526 = vld [vmem:[%s1146 + $0x18f] sm:$0xff]
        %v1527 = vld [vmem:[%s1146 + $0x1a7] sm:$0xff]
        %v1528 = vld [vmem:[%s1146 + $0x1af] sm:$0xff]
        %v1529 = vld [vmem:[%s1146 + $0x1c7] sm:$0xff]
        %v1530 = vld [vmem:[%s1146 + $0x1cf] sm:$0xff]
        %v1531 = vld [vmem:[%s1146 + $0x1e7] sm:$0xff]
        %v1532 = vld [vmem:[%s1146 + $0x1ef] sm:$0xff]
        %v1533 = vpack.c.bf16 %v1502, %v1501
        %v1534 = vpack.c.bf16 %v1504, %v1503
        %v1535 = vpack.c.bf16 %v1506, %v1505
        %v1536 = vpack.c.bf16 %v1508, %v1507
        %v1537 = vpack.c.bf16 %v1510, %v1509
        %v1538 = vpack.c.bf16 %v1512, %v1511
        %v1539 = vpack.c.bf16 %v1514, %v1513
        %v1540 = vpack.c.bf16 %v1516, %v1515
        %v1541 = vpack.c.bf16 %v1518, %v1517
        %v1542 = vpack.c.bf16 %v1520, %v1519
        %v1543 = vpack.c.bf16 %v1522, %v1521
        %v1544 = vpack.c.bf16 %v1524, %v1523
        %v1545 = vpack.c.bf16 %v1526, %v1525
        %v1546 = vpack.c.bf16 %v1528, %v1527
        %v1547 = vpack.c.bf16 %v1530, %v1529
        %v1548 = vpack.c.bf16 %v1532, %v1531
        %1565 = vrot.lane.b32.xlu0 %v1533, 96
        %v1566 = vpop.permute.xlu0 %1565
        %1567 = vrot.lane.b32.xlu0 %v1534, 96
        %v1568 = vpop.permute.xlu0 %1567
        %1569 = vrot.lane.b32.xlu0 %v1535, 96
        %v1570 = vpop.permute.xlu0 %1569
        %1571 = vrot.lane.b32.xlu0 %v1536, 96
        %v1572 = vpop.permute.xlu0 %1571
        %1573 = vrot.lane.b32.xlu0 %v1537, 96
        %v1574 = vpop.permute.xlu0 %1573
        %1575 = vrot.lane.b32.xlu0 %v1538, 96
        %v1576 = vpop.permute.xlu0 %1575
        %1577 = vrot.lane.b32.xlu0 %v1539, 96
        %v1578 = vpop.permute.xlu0 %1577
        %1579 = vrot.lane.b32.xlu0 %v1540, 96
        %v1580 = vpop.permute.xlu0 %1579
        %1581 = vrot.lane.b32.xlu0 %v1541, 96
        %v1582 = vpop.permute.xlu0 %1581
        %1583 = vrot.lane.b32.xlu0 %v1542, 96
        %v1584 = vpop.permute.xlu0 %1583
        %1585 = vrot.lane.b32.xlu0 %v1543, 96
        %v1586 = vpop.permute.xlu0 %1585
        %1587 = vrot.lane.b32.xlu0 %v1544, 96
        %v1588 = vpop.permute.xlu0 %1587
        %1589 = vrot.lane.b32.xlu0 %v1545, 96
        %v1590 = vpop.permute.xlu0 %1589
        %1591 = vrot.lane.b32.xlu0 %v1546, 96
        %v1592 = vpop.permute.xlu0 %1591
        %1593 = vrot.lane.b32.xlu0 %v1547, 96
        %v1594 = vpop.permute.xlu0 %1593
        %1595 = vrot.lane.b32.xlu0 %v1548, 96
        %v1596 = vpop.permute.xlu0 %1595
        %vm1613 = vcmask 1048320
        %1614 = vst.msk [vmem:[#allocation4] sm:$0xff] %vm1613, %v1566
        %1615 = vst.msk [vmem:[#allocation4 + $0x18] sm:$0xff] %vm1613, %v1568
        %1616 = vst.msk [vmem:[#allocation4 + $0x30] sm:$0xff] %vm1613, %v1570
        %1617 = vst.msk [vmem:[#allocation4 + $0x48] sm:$0xff] %vm1613, %v1572
        %1618 = vst.msk [vmem:[#allocation4 + $0x60] sm:$0xff] %vm1613, %v1574
        %1619 = vst.msk [vmem:[#allocation4 + $0x78] sm:$0xff] %vm1613, %v1576
        %1620 = vst.msk [vmem:[#allocation4 + $0x90] sm:$0xff] %vm1613, %v1578
        %1621 = vst.msk [vmem:[#allocation4 + $0xa8] sm:$0xff] %vm1613, %v1580
        %1622 = vst.msk [vmem:[#allocation4 + $0xc0] sm:$0xff] %vm1613, %v1582
        %1623 = vst.msk [vmem:[#allocation4 + $0xd8] sm:$0xff] %vm1613, %v1584
        %1624 = vst.msk [vmem:[#allocation4 + $0xf0] sm:$0xff] %vm1613, %v1586
        %1625 = vst.msk [vmem:[#allocation4 + $0x108] sm:$0xff] %vm1613, %v1588
        %1626 = vst.msk [vmem:[#allocation4 + $0x120] sm:$0xff] %vm1613, %v1590
        %1627 = vst.msk [vmem:[#allocation4 + $0x138] sm:$0xff] %vm1613, %v1592
        %1628 = vst.msk [vmem:[#allocation4 + $0x150] sm:$0xff] %vm1613, %v1594
        %1629 = vst.msk [vmem:[#allocation4 + $0x168] sm:$0xff] %vm1613, %v1596
        %v1630 = vld [vmem:[%s1146 + $0x8] sm:$0xff]
        %v1631 = vld [vmem:[%s1146 + $0x10] sm:$0xff]
        %v1632 = vld [vmem:[%s1146 + $0x28] sm:$0xff]
        %v1633 = vld [vmem:[%s1146 + $0x30] sm:$0xff]
        %v1634 = vld [vmem:[%s1146 + $0x48] sm:$0xff]
        %v1635 = vld [vmem:[%s1146 + $0x50] sm:$0xff]
        %v1636 = vld [vmem:[%s1146 + $0x68] sm:$0xff]
        %v1637 = vld [vmem:[%s1146 + $0x70] sm:$0xff]
        %v1638 = vld [vmem:[%s1146 + $0x88] sm:$0xff]
        %v1639 = vld [vmem:[%s1146 + $0x90] sm:$0xff]
        %v1640 = vld [vmem:[%s1146 + $0xa8] sm:$0xff]
        %v1641 = vld [vmem:[%s1146 + $0xb0] sm:$0xff]
        %v1642 = vld [vmem:[%s1146 + $0xc8] sm:$0xff]
        %v1643 = vld [vmem:[%s1146 + $0xd0] sm:$0xff]
        %v1644 = vld [vmem:[%s1146 + $0xe8] sm:$0xff]
        %v1645 = vld [vmem:[%s1146 + $0xf0] sm:$0xff]
        %v1646 = vld [vmem:[%s1146 + $0x108] sm:$0xff]
        %v1647 = vld [vmem:[%s1146 + $0x110] sm:$0xff]
        %v1648 = vld [vmem:[%s1146 + $0x128] sm:$0xff]
        %v1649 = vld [vmem:[%s1146 + $0x130] sm:$0xff]
        %v1650 = vld [vmem:[%s1146 + $0x148] sm:$0xff]
        %v1651 = vld [vmem:[%s1146 + $0x150] sm:$0xff]
        %v1652 = vld [vmem:[%s1146 + $0x168] sm:$0xff]
        %v1653 = vld [vmem:[%s1146 + $0x170] sm:$0xff]
        %v1654 = vld [vmem:[%s1146 + $0x188] sm:$0xff]
        %v1655 = vld [vmem:[%s1146 + $0x190] sm:$0xff]
        %v1656 = vld [vmem:[%s1146 + $0x1a8] sm:$0xff]
        %v1657 = vld [vmem:[%s1146 + $0x1b0] sm:$0xff]
        %v1658 = vld [vmem:[%s1146 + $0x1c8] sm:$0xff]
        %v1659 = vld [vmem:[%s1146 + $0x1d0] sm:$0xff]
        %v1660 = vld [vmem:[%s1146 + $0x1e8] sm:$0xff]
        %v1661 = vld [vmem:[%s1146 + $0x1f0] sm:$0xff]
        %v1662 = vpack.c.bf16 %v1631, %v1630
        %v1663 = vpack.c.bf16 %v1633, %v1632
        %v1664 = vpack.c.bf16 %v1635, %v1634
        %v1665 = vpack.c.bf16 %v1637, %v1636
        %v1666 = vpack.c.bf16 %v1639, %v1638
        %v1667 = vpack.c.bf16 %v1641, %v1640
        %v1668 = vpack.c.bf16 %v1643, %v1642
        %v1669 = vpack.c.bf16 %v1645, %v1644
        %v1670 = vpack.c.bf16 %v1647, %v1646
        %v1671 = vpack.c.bf16 %v1649, %v1648
        %v1672 = vpack.c.bf16 %v1651, %v1650
        %v1673 = vpack.c.bf16 %v1653, %v1652
        %v1674 = vpack.c.bf16 %v1655, %v1654
        %v1675 = vpack.c.bf16 %v1657, %v1656
        %v1676 = vpack.c.bf16 %v1659, %v1658
        %v1677 = vpack.c.bf16 %v1661, %v1660
        %1678 = vst.msk [vmem:[#allocation4 + $0x8] sm:$0xff] %vm1041, %v1662
        %1679 = vst.msk [vmem:[#allocation4 + $0x20] sm:$0xff] %vm1041, %v1663
        %1680 = vst.msk [vmem:[#allocation4 + $0x38] sm:$0xff] %vm1041, %v1664
        %1681 = vst.msk [vmem:[#allocation4 + $0x50] sm:$0xff] %vm1041, %v1665
        %1682 = vst.msk [vmem:[#allocation4 + $0x68] sm:$0xff] %vm1041, %v1666
        %1683 = vst.msk [vmem:[#allocation4 + $0x80] sm:$0xff] %vm1041, %v1667
        %1684 = vst.msk [vmem:[#allocation4 + $0x98] sm:$0xff] %vm1041, %v1668
        %1685 = vst.msk [vmem:[#allocation4 + $0xb0] sm:$0xff] %vm1041, %v1669
        %1686 = vst.msk [vmem:[#allocation4 + $0xc8] sm:$0xff] %vm1041, %v1670
        %1687 = vst.msk [vmem:[#allocation4 + $0xe0] sm:$0xff] %vm1041, %v1671
        %1688 = vst.msk [vmem:[#allocation4 + $0xf8] sm:$0xff] %vm1041, %v1672
        %1689 = vst.msk [vmem:[#allocation4 + $0x110] sm:$0xff] %vm1041, %v1673
        %1690 = vst.msk [vmem:[#allocation4 + $0x128] sm:$0xff] %vm1041, %v1674
        %1691 = vst.msk [vmem:[#allocation4 + $0x140] sm:$0xff] %vm1041, %v1675
        %1692 = vst.msk [vmem:[#allocation4 + $0x158] sm:$0xff] %vm1041, %v1676
        %1693 = vst.msk [vmem:[#allocation4 + $0x170] sm:$0xff] %vm1041, %v1677
        %v1694 = vld [vmem:[%s1146 + $0x9] sm:$0xff]
        %v1695 = vld [vmem:[%s1146 + $0x11] sm:$0xff]
        %v1696 = vld [vmem:[%s1146 + $0x29] sm:$0xff]
        %v1697 = vld [vmem:[%s1146 + $0x31] sm:$0xff]
        %v1698 = vld [vmem:[%s1146 + $0x49] sm:$0xff]
        %v1699 = vld [vmem:[%s1146 + $0x51] sm:$0xff]
        %v1700 = vld [vmem:[%s1146 + $0x69] sm:$0xff]
        %v1701 = vld [vmem:[%s1146 + $0x71] sm:$0xff]
        %v1702 = vld [vmem:[%s1146 + $0x89] sm:$0xff]
        %v1703 = vld [vmem:[%s1146 + $0x91] sm:$0xff]
        %v1704 = vld [vmem:[%s1146 + $0xa9] sm:$0xff]
        %v1705 = vld [vmem:[%s1146 + $0xb1] sm:$0xff]
        %v1706 = vld [vmem:[%s1146 + $0xc9] sm:$0xff]
        %v1707 = vld [vmem:[%s1146 + $0xd1] sm:$0xff]
        %v1708 = vld [vmem:[%s1146 + $0xe9] sm:$0xff]
        %v1709 = vld [vmem:[%s1146 + $0xf1] sm:$0xff]
        %v1710 = vld [vmem:[%s1146 + $0x109] sm:$0xff]
        %v1711 = vld [vmem:[%s1146 + $0x111] sm:$0xff]
        %v1712 = vld [vmem:[%s1146 + $0x129] sm:$0xff]
        %v1713 = vld [vmem:[%s1146 + $0x131] sm:$0xff]
        %v1714 = vld [vmem:[%s1146 + $0x149] sm:$0xff]
        %v1715 = vld [vmem:[%s1146 + $0x151] sm:$0xff]
        %v1716 = vld [vmem:[%s1146 + $0x169] sm:$0xff]
        %v1717 = vld [vmem:[%s1146 + $0x171] sm:$0xff]
        %v1718 = vld [vmem:[%s1146 + $0x189] sm:$0xff]
        %v1719 = vld [vmem:[%s1146 + $0x191] sm:$0xff]
        %v1720 = vld [vmem:[%s1146 + $0x1a9] sm:$0xff]
        %v1721 = vld [vmem:[%s1146 + $0x1b1] sm:$0xff]
        %v1722 = vld [vmem:[%s1146 + $0x1c9] sm:$0xff]
        %v1723 = vld [vmem:[%s1146 + $0x1d1] sm:$0xff]
        %v1724 = vld [vmem:[%s1146 + $0x1e9] sm:$0xff]
        %v1725 = vld [vmem:[%s1146 + $0x1f1] sm:$0xff]
        %v1726 = vpack.c.bf16 %v1695, %v1694
        %v1727 = vpack.c.bf16 %v1697, %v1696
        %v1728 = vpack.c.bf16 %v1699, %v1698
        %v1729 = vpack.c.bf16 %v1701, %v1700
        %v1730 = vpack.c.bf16 %v1703, %v1702
        %v1731 = vpack.c.bf16 %v1705, %v1704
        %v1732 = vpack.c.bf16 %v1707, %v1706
        %v1733 = vpack.c.bf16 %v1709, %v1708
        %v1734 = vpack.c.bf16 %v1711, %v1710
        %v1735 = vpack.c.bf16 %v1713, %v1712
        %v1736 = vpack.c.bf16 %v1715, %v1714
        %v1737 = vpack.c.bf16 %v1717, %v1716
        %v1738 = vpack.c.bf16 %v1719, %v1718
        %v1739 = vpack.c.bf16 %v1721, %v1720
        %v1740 = vpack.c.bf16 %v1723, %v1722
        %v1741 = vpack.c.bf16 %v1725, %v1724
        %1758 = vrot.lane.b32.xlu0 %v1726, 32
        %v1759 = vpop.permute.xlu0 %1758
        %1760 = vrot.lane.b32.xlu0 %v1727, 32
        %v1761 = vpop.permute.xlu0 %1760
        %1762 = vrot.lane.b32.xlu0 %v1728, 32
        %v1763 = vpop.permute.xlu0 %1762
        %1764 = vrot.lane.b32.xlu0 %v1729, 32
        %v1765 = vpop.permute.xlu0 %1764
        %1766 = vrot.lane.b32.xlu0 %v1730, 32
        %v1767 = vpop.permute.xlu0 %1766
        %1768 = vrot.lane.b32.xlu0 %v1731, 32
        %v1769 = vpop.permute.xlu0 %1768
        %1770 = vrot.lane.b32.xlu0 %v1732, 32
        %v1771 = vpop.permute.xlu0 %1770
        %1772 = vrot.lane.b32.xlu0 %v1733, 32
        %v1773 = vpop.permute.xlu0 %1772
        %1774 = vrot.lane.b32.xlu0 %v1734, 32
        %v1775 = vpop.permute.xlu0 %1774
        %1776 = vrot.lane.b32.xlu0 %v1735, 32
        %v1777 = vpop.permute.xlu0 %1776
        %1778 = vrot.lane.b32.xlu0 %v1736, 32
        %v1779 = vpop.permute.xlu0 %1778
        %1780 = vrot.lane.b32.xlu0 %v1737, 32
        %v1781 = vpop.permute.xlu0 %1780
        %1782 = vrot.lane.b32.xlu0 %v1738, 32
        %v1783 = vpop.permute.xlu0 %1782
        %1784 = vrot.lane.b32.xlu0 %v1739, 32
        %v1785 = vpop.permute.xlu0 %1784
        %1786 = vrot.lane.b32.xlu0 %v1740, 32
        %v1787 = vpop.permute.xlu0 %1786
        %1788 = vrot.lane.b32.xlu0 %v1741, 32
        %v1789 = vpop.permute.xlu0 %1788
        %1806 = vst.msk [vmem:[#allocation4 + $0x8] sm:$0xff] %vm1355, %v1759
        %1807 = vst.msk [vmem:[#allocation4 + $0x20] sm:$0xff] %vm1355, %v1761
        %1808 = vst.msk [vmem:[#allocation4 + $0x38] sm:$0xff] %vm1355, %v1763
        %1809 = vst.msk [vmem:[#allocation4 + $0x50] sm:$0xff] %vm1355, %v1765
        %1810 = vst.msk [vmem:[#allocation4 + $0x68] sm:$0xff] %vm1355, %v1767
        %1811 = vst.msk [vmem:[#allocation4 + $0x80] sm:$0xff] %vm1355, %v1769
        %1812 = vst.msk [vmem:[#allocation4 + $0x98] sm:$0xff] %vm1355, %v1771
        %1813 = vst.msk [vmem:[#allocation4 + $0xb0] sm:$0xff] %vm1355, %v1773
        %1814 = vst.msk [vmem:[#allocation4 + $0xc8] sm:$0xff] %vm1355, %v1775
        %1815 = vst.msk [vmem:[#allocation4 + $0xe0] sm:$0xff] %vm1355, %v1777
        %1816 = vst.msk [vmem:[#allocation4 + $0xf8] sm:$0xff] %vm1355, %v1779
        %1817 = vst.msk [vmem:[#allocation4 + $0x110] sm:$0xff] %vm1355, %v1781
        %1818 = vst.msk [vmem:[#allocation4 + $0x128] sm:$0xff] %vm1355, %v1783
        %1819 = vst.msk [vmem:[#allocation4 + $0x140] sm:$0xff] %vm1355, %v1785
        %1820 = vst.msk [vmem:[#allocation4 + $0x158] sm:$0xff] %vm1355, %v1787
        %1821 = vst.msk [vmem:[#allocation4 + $0x170] sm:$0xff] %vm1355, %v1789
        %s1822 = scalar_lea.vmem [#allocation3], 64
        %v1823 = vld [vmem:[%s1822 + $0x7] sm:$0xff]
        %v1824 = vld [vmem:[%s1822 + $0xf] sm:$0xff]
        %v1825 = vld [vmem:[%s1822 + $0x27] sm:$0xff]
        %v1826 = vld [vmem:[%s1822 + $0x2f] sm:$0xff]
        %v1827 = vld [vmem:[%s1822 + $0x47] sm:$0xff]
        %v1828 = vld [vmem:[%s1822 + $0x4f] sm:$0xff]
        %v1829 = vld [vmem:[%s1822 + $0x67] sm:$0xff]
        %v1830 = vld [vmem:[%s1822 + $0x6f] sm:$0xff]
        %v1831 = vld [vmem:[%s1822 + $0x87] sm:$0xff]
        %v1832 = vld [vmem:[%s1822 + $0x8f] sm:$0xff]
        %v1833 = vld [vmem:[%s1822 + $0xa7] sm:$0xff]
        %v1834 = vld [vmem:[%s1822 + $0xaf] sm:$0xff]
        %v1835 = vld [vmem:[%s1822 + $0xc7] sm:$0xff]
        %v1836 = vld [vmem:[%s1822 + $0xcf] sm:$0xff]
        %v1837 = vld [vmem:[%s1822 + $0xe7] sm:$0xff]
        %v1838 = vld [vmem:[%s1822 + $0xef] sm:$0xff]
        %v1839 = vld [vmem:[%s1822 + $0x107] sm:$0xff]
        %v1840 = vld [vmem:[%s1822 + $0x10f] sm:$0xff]
        %v1841 = vld [vmem:[%s1822 + $0x127] sm:$0xff]
        %v1842 = vld [vmem:[%s1822 + $0x12f] sm:$0xff]
        %v1843 = vld [vmem:[%s1822 + $0x147] sm:$0xff]
        %v1844 = vld [vmem:[%s1822 + $0x14f] sm:$0xff]
        %v1845 = vld [vmem:[%s1822 + $0x167] sm:$0xff]
        %v1846 = vld [vmem:[%s1822 + $0x16f] sm:$0xff]
        %v1847 = vld [vmem:[%s1822 + $0x187] sm:$0xff]
        %v1848 = vld [vmem:[%s1822 + $0x18f] sm:$0xff]
        %v1849 = vld [vmem:[%s1822 + $0x1a7] sm:$0xff]
        %v1850 = vld [vmem:[%s1822 + $0x1af] sm:$0xff]
        %v1851 = vld [vmem:[%s1822 + $0x1c7] sm:$0xff]
        %v1852 = vld [vmem:[%s1822 + $0x1cf] sm:$0xff]
        %v1853 = vld [vmem:[%s1822 + $0x1e7] sm:$0xff]
        %v1854 = vld [vmem:[%s1822 + $0x1ef] sm:$0xff]
        %v1855 = vpack.c.bf16 %v1824, %v1823
        %v1856 = vpack.c.bf16 %v1826, %v1825
        %v1857 = vpack.c.bf16 %v1828, %v1827
        %v1858 = vpack.c.bf16 %v1830, %v1829
        %v1859 = vpack.c.bf16 %v1832, %v1831
        %v1860 = vpack.c.bf16 %v1834, %v1833
        %v1861 = vpack.c.bf16 %v1836, %v1835
        %v1862 = vpack.c.bf16 %v1838, %v1837
        %v1863 = vpack.c.bf16 %v1840, %v1839
        %v1864 = vpack.c.bf16 %v1842, %v1841
        %v1865 = vpack.c.bf16 %v1844, %v1843
        %v1866 = vpack.c.bf16 %v1846, %v1845
        %v1867 = vpack.c.bf16 %v1848, %v1847
        %v1868 = vpack.c.bf16 %v1850, %v1849
        %v1869 = vpack.c.bf16 %v1852, %v1851
        %v1870 = vpack.c.bf16 %v1854, %v1853
        %1887 = vrot.lane.b32.xlu0 %v1855, 64
        %v1888 = vpop.permute.xlu0 %1887
        %1889 = vrot.lane.b32.xlu0 %v1856, 64
        %v1890 = vpop.permute.xlu0 %1889
        %1891 = vrot.lane.b32.xlu0 %v1857, 64
        %v1892 = vpop.permute.xlu0 %1891
        %1893 = vrot.lane.b32.xlu0 %v1858, 64
        %v1894 = vpop.permute.xlu0 %1893
        %1895 = vrot.lane.b32.xlu0 %v1859, 64
        %v1896 = vpop.permute.xlu0 %1895
        %1897 = vrot.lane.b32.xlu0 %v1860, 64
        %v1898 = vpop.permute.xlu0 %1897
        %1899 = vrot.lane.b32.xlu0 %v1861, 64
        %v1900 = vpop.permute.xlu0 %1899
        %1901 = vrot.lane.b32.xlu0 %v1862, 64
        %v1902 = vpop.permute.xlu0 %1901
        %1903 = vrot.lane.b32.xlu0 %v1863, 64
        %v1904 = vpop.permute.xlu0 %1903
        %1905 = vrot.lane.b32.xlu0 %v1864, 64
        %v1906 = vpop.permute.xlu0 %1905
        %1907 = vrot.lane.b32.xlu0 %v1865, 64
        %v1908 = vpop.permute.xlu0 %1907
        %1909 = vrot.lane.b32.xlu0 %v1866, 64
        %v1910 = vpop.permute.xlu0 %1909
        %1911 = vrot.lane.b32.xlu0 %v1867, 64
        %v1912 = vpop.permute.xlu0 %1911
        %1913 = vrot.lane.b32.xlu0 %v1868, 64
        %v1914 = vpop.permute.xlu0 %1913
        %1915 = vrot.lane.b32.xlu0 %v1869, 64
        %v1916 = vpop.permute.xlu0 %1915
        %1917 = vrot.lane.b32.xlu0 %v1870, 64
        %v1918 = vpop.permute.xlu0 %1917
        %1935 = vst.msk [vmem:[#allocation4 + $0x8] sm:$0xff] %vm1484, %v1888
        %1936 = vst.msk [vmem:[#allocation4 + $0x20] sm:$0xff] %vm1484, %v1890
        %1937 = vst.msk [vmem:[#allocation4 + $0x38] sm:$0xff] %vm1484, %v1892
        %1938 = vst.msk [vmem:[#allocation4 + $0x50] sm:$0xff] %vm1484, %v1894
        %1939 = vst.msk [vmem:[#allocation4 + $0x68] sm:$0xff] %vm1484, %v1896
        %1940 = vst.msk [vmem:[#allocation4 + $0x80] sm:$0xff] %vm1484, %v1898
        %1941 = vst.msk [vmem:[#allocation4 + $0x98] sm:$0xff] %vm1484, %v1900
        %1942 = vst.msk [vmem:[#allocation4 + $0xb0] sm:$0xff] %vm1484, %v1902
        %1943 = vst.msk [vmem:[#allocation4 + $0xc8] sm:$0xff] %vm1484, %v1904
        %1944 = vst.msk [vmem:[#allocation4 + $0xe0] sm:$0xff] %vm1484, %v1906
        %1945 = vst.msk [vmem:[#allocation4 + $0xf8] sm:$0xff] %vm1484, %v1908
        %1946 = vst.msk [vmem:[#allocation4 + $0x110] sm:$0xff] %vm1484, %v1910
        %1947 = vst.msk [vmem:[#allocation4 + $0x128] sm:$0xff] %vm1484, %v1912
        %1948 = vst.msk [vmem:[#allocation4 + $0x140] sm:$0xff] %vm1484, %v1914
        %1949 = vst.msk [vmem:[#allocation4 + $0x158] sm:$0xff] %vm1484, %v1916
        %1950 = vst.msk [vmem:[#allocation4 + $0x170] sm:$0xff] %vm1484, %v1918
        %v1951 = vld [vmem:[%s1822 + $0x8] sm:$0xff]
        %v1952 = vld [vmem:[%s1822 + $0x10] sm:$0xff]
        %v1953 = vld [vmem:[%s1822 + $0x28] sm:$0xff]
        %v1954 = vld [vmem:[%s1822 + $0x30] sm:$0xff]
        %v1955 = vld [vmem:[%s1822 + $0x48] sm:$0xff]
        %v1956 = vld [vmem:[%s1822 + $0x50] sm:$0xff]
        %v1957 = vld [vmem:[%s1822 + $0x68] sm:$0xff]
        %v1958 = vld [vmem:[%s1822 + $0x70] sm:$0xff]
        %v1959 = vld [vmem:[%s1822 + $0x88] sm:$0xff]
        %v1960 = vld [vmem:[%s1822 + $0x90] sm:$0xff]
        %v1961 = vld [vmem:[%s1822 + $0xa8] sm:$0xff]
        %v1962 = vld [vmem:[%s1822 + $0xb0] sm:$0xff]
        %v1963 = vld [vmem:[%s1822 + $0xc8] sm:$0xff]
        %v1964 = vld [vmem:[%s1822 + $0xd0] sm:$0xff]
        %v1965 = vld [vmem:[%s1822 + $0xe8] sm:$0xff]
        %v1966 = vld [vmem:[%s1822 + $0xf0] sm:$0xff]
        %v1967 = vld [vmem:[%s1822 + $0x108] sm:$0xff]
        %v1968 = vld [vmem:[%s1822 + $0x110] sm:$0xff]
        %v1969 = vld [vmem:[%s1822 + $0x128] sm:$0xff]
        %v1970 = vld [vmem:[%s1822 + $0x130] sm:$0xff]
        %v1971 = vld [vmem:[%s1822 + $0x148] sm:$0xff]
        %v1972 = vld [vmem:[%s1822 + $0x150] sm:$0xff]
        %v1973 = vld [vmem:[%s1822 + $0x168] sm:$0xff]
        %v1974 = vld [vmem:[%s1822 + $0x170] sm:$0xff]
        %v1975 = vld [vmem:[%s1822 + $0x188] sm:$0xff]
        %v1976 = vld [vmem:[%s1822 + $0x190] sm:$0xff]
        %v1977 = vld [vmem:[%s1822 + $0x1a8] sm:$0xff]
        %v1978 = vld [vmem:[%s1822 + $0x1b0] sm:$0xff]
        %v1979 = vld [vmem:[%s1822 + $0x1c8] sm:$0xff]
        %v1980 = vld [vmem:[%s1822 + $0x1d0] sm:$0xff]
        %v1981 = vld [vmem:[%s1822 + $0x1e8] sm:$0xff]
        %v1982 = vld [vmem:[%s1822 + $0x1f0] sm:$0xff]
        %v1983 = vpack.c.bf16 %v1952, %v1951
        %v1984 = vpack.c.bf16 %v1954, %v1953
        %v1985 = vpack.c.bf16 %v1956, %v1955
        %v1986 = vpack.c.bf16 %v1958, %v1957
        %v1987 = vpack.c.bf16 %v1960, %v1959
        %v1988 = vpack.c.bf16 %v1962, %v1961
        %v1989 = vpack.c.bf16 %v1964, %v1963
        %v1990 = vpack.c.bf16 %v1966, %v1965
        %v1991 = vpack.c.bf16 %v1968, %v1967
        %v1992 = vpack.c.bf16 %v1970, %v1969
        %v1993 = vpack.c.bf16 %v1972, %v1971
        %v1994 = vpack.c.bf16 %v1974, %v1973
        %v1995 = vpack.c.bf16 %v1976, %v1975
        %v1996 = vpack.c.bf16 %v1978, %v1977
        %v1997 = vpack.c.bf16 %v1980, %v1979
        %v1998 = vpack.c.bf16 %v1982, %v1981
        %2015 = vrot.lane.b32.xlu0 %v1983, 96
        %v2016 = vpop.permute.xlu0 %2015
        %2017 = vrot.lane.b32.xlu0 %v1984, 96
        %v2018 = vpop.permute.xlu0 %2017
        %2019 = vrot.lane.b32.xlu0 %v1985, 96
        %v2020 = vpop.permute.xlu0 %2019
        %2021 = vrot.lane.b32.xlu0 %v1986, 96
        %v2022 = vpop.permute.xlu0 %2021
        %2023 = vrot.lane.b32.xlu0 %v1987, 96
        %v2024 = vpop.permute.xlu0 %2023
        %2025 = vrot.lane.b32.xlu0 %v1988, 96
        %v2026 = vpop.permute.xlu0 %2025
        %2027 = vrot.lane.b32.xlu0 %v1989, 96
        %v2028 = vpop.permute.xlu0 %2027
        %2029 = vrot.lane.b32.xlu0 %v1990, 96
        %v2030 = vpop.permute.xlu0 %2029
        %2031 = vrot.lane.b32.xlu0 %v1991, 96
        %v2032 = vpop.permute.xlu0 %2031
        %2033 = vrot.lane.b32.xlu0 %v1992, 96
        %v2034 = vpop.permute.xlu0 %2033
        %2035 = vrot.lane.b32.xlu0 %v1993, 96
        %v2036 = vpop.permute.xlu0 %2035
        %2037 = vrot.lane.b32.xlu0 %v1994, 96
        %v2038 = vpop.permute.xlu0 %2037
        %2039 = vrot.lane.b32.xlu0 %v1995, 96
        %v2040 = vpop.permute.xlu0 %2039
        %2041 = vrot.lane.b32.xlu0 %v1996, 96
        %v2042 = vpop.permute.xlu0 %2041
        %2043 = vrot.lane.b32.xlu0 %v1997, 96
        %v2044 = vpop.permute.xlu0 %2043
        %2045 = vrot.lane.b32.xlu0 %v1998, 96
        %v2046 = vpop.permute.xlu0 %2045
        %2063 = vst.msk [vmem:[#allocation4 + $0x8] sm:$0xff] %vm1613, %v2016
        %2064 = vst.msk [vmem:[#allocation4 + $0x20] sm:$0xff] %vm1613, %v2018
        %2065 = vst.msk [vmem:[#allocation4 + $0x38] sm:$0xff] %vm1613, %v2020
        %2066 = vst.msk [vmem:[#allocation4 + $0x50] sm:$0xff] %vm1613, %v2022
        %2067 = vst.msk [vmem:[#allocation4 + $0x68] sm:$0xff] %vm1613, %v2024
        %2068 = vst.msk [vmem:[#allocation4 + $0x80] sm:$0xff] %vm1613, %v2026
        %2069 = vst.msk [vmem:[#allocation4 + $0x98] sm:$0xff] %vm1613, %v2028
        %2070 = vst.msk [vmem:[#allocation4 + $0xb0] sm:$0xff] %vm1613, %v2030
        %2071 = vst.msk [vmem:[#allocation4 + $0xc8] sm:$0xff] %vm1613, %v2032
        %2072 = vst.msk [vmem:[#allocation4 + $0xe0] sm:$0xff] %vm1613, %v2034
        %2073 = vst.msk [vmem:[#allocation4 + $0xf8] sm:$0xff] %vm1613, %v2036
        %2074 = vst.msk [vmem:[#allocation4 + $0x110] sm:$0xff] %vm1613, %v2038
        %2075 = vst.msk [vmem:[#allocation4 + $0x128] sm:$0xff] %vm1613, %v2040
        %2076 = vst.msk [vmem:[#allocation4 + $0x140] sm:$0xff] %vm1613, %v2042
        %2077 = vst.msk [vmem:[#allocation4 + $0x158] sm:$0xff] %vm1613, %v2044
        %2078 = vst.msk [vmem:[#allocation4 + $0x170] sm:$0xff] %vm1613, %v2046
        %v2079 = vld [vmem:[%s1822 + $0x9] sm:$0xff]
        %v2080 = vld [vmem:[%s1822 + $0x11] sm:$0xff]
        %v2081 = vld [vmem:[%s1822 + $0x29] sm:$0xff]
        %v2082 = vld [vmem:[%s1822 + $0x31] sm:$0xff]
        %v2083 = vld [vmem:[%s1822 + $0x49] sm:$0xff]
        %v2084 = vld [vmem:[%s1822 + $0x51] sm:$0xff]
        %v2085 = vld [vmem:[%s1822 + $0x69] sm:$0xff]
        %v2086 = vld [vmem:[%s1822 + $0x71] sm:$0xff]
        %v2087 = vld [vmem:[%s1822 + $0x89] sm:$0xff]
        %v2088 = vld [vmem:[%s1822 + $0x91] sm:$0xff]
        %v2089 = vld [vmem:[%s1822 + $0xa9] sm:$0xff]
        %v2090 = vld [vmem:[%s1822 + $0xb1] sm:$0xff]
        %v2091 = vld [vmem:[%s1822 + $0xc9] sm:$0xff]
        %v2092 = vld [vmem:[%s1822 + $0xd1] sm:$0xff]
        %v2093 = vld [vmem:[%s1822 + $0xe9] sm:$0xff]
        %v2094 = vld [vmem:[%s1822 + $0xf1] sm:$0xff]
        %v2095 = vld [vmem:[%s1822 + $0x109] sm:$0xff]
        %v2096 = vld [vmem:[%s1822 + $0x111] sm:$0xff]
        %v2097 = vld [vmem:[%s1822 + $0x129] sm:$0xff]
        %v2098 = vld [vmem:[%s1822 + $0x131] sm:$0xff]
        %v2099 = vld [vmem:[%s1822 + $0x149] sm:$0xff]
        %v2100 = vld [vmem:[%s1822 + $0x151] sm:$0xff]
        %v2101 = vld [vmem:[%s1822 + $0x169] sm:$0xff]
        %v2102 = vld [vmem:[%s1822 + $0x171] sm:$0xff]
        %v2103 = vld [vmem:[%s1822 + $0x189] sm:$0xff]
        %v2104 = vld [vmem:[%s1822 + $0x191] sm:$0xff]
        %v2105 = vld [vmem:[%s1822 + $0x1a9] sm:$0xff]
        %v2106 = vld [vmem:[%s1822 + $0x1b1] sm:$0xff]
        %v2107 = vld [vmem:[%s1822 + $0x1c9] sm:$0xff]
        %v2108 = vld [vmem:[%s1822 + $0x1d1] sm:$0xff]
        %v2109 = vld [vmem:[%s1822 + $0x1e9] sm:$0xff]
        %v2110 = vld [vmem:[%s1822 + $0x1f1] sm:$0xff]
        %v2111 = vpack.c.bf16 %v2080, %v2079
        %v2112 = vpack.c.bf16 %v2082, %v2081
        %v2113 = vpack.c.bf16 %v2084, %v2083
        %v2114 = vpack.c.bf16 %v2086, %v2085
        %v2115 = vpack.c.bf16 %v2088, %v2087
        %v2116 = vpack.c.bf16 %v2090, %v2089
        %v2117 = vpack.c.bf16 %v2092, %v2091
        %v2118 = vpack.c.bf16 %v2094, %v2093
        %v2119 = vpack.c.bf16 %v2096, %v2095
        %v2120 = vpack.c.bf16 %v2098, %v2097
        %v2121 = vpack.c.bf16 %v2100, %v2099
        %v2122 = vpack.c.bf16 %v2102, %v2101
        %v2123 = vpack.c.bf16 %v2104, %v2103
        %v2124 = vpack.c.bf16 %v2106, %v2105
        %v2125 = vpack.c.bf16 %v2108, %v2107
        %v2126 = vpack.c.bf16 %v2110, %v2109
        %2127 = vst.msk [vmem:[#allocation4 + $0x10] sm:$0xff] %vm1041, %v2111
        %2128 = vst.msk [vmem:[#allocation4 + $0x28] sm:$0xff] %vm1041, %v2112
        %2129 = vst.msk [vmem:[#allocation4 + $0x40] sm:$0xff] %vm1041, %v2113
        %2130 = vst.msk [vmem:[#allocation4 + $0x58] sm:$0xff] %vm1041, %v2114
        %2131 = vst.msk [vmem:[#allocation4 + $0x70] sm:$0xff] %vm1041, %v2115
        %2132 = vst.msk [vmem:[#allocation4 + $0x88] sm:$0xff] %vm1041, %v2116
        %2133 = vst.msk [vmem:[#allocation4 + $0xa0] sm:$0xff] %vm1041, %v2117
        %2134 = vst.msk [vmem:[#allocation4 + $0xb8] sm:$0xff] %vm1041, %v2118
        %2135 = vst.msk [vmem:[#allocation4 + $0xd0] sm:$0xff] %vm1041, %v2119
        %2136 = vst.msk [vmem:[#allocation4 + $0xe8] sm:$0xff] %vm1041, %v2120
        %2137 = vst.msk [vmem:[#allocation4 + $0x100] sm:$0xff] %vm1041, %v2121
        %2138 = vst.msk [vmem:[#allocation4 + $0x118] sm:$0xff] %vm1041, %v2122
        %2139 = vst.msk [vmem:[#allocation4 + $0x130] sm:$0xff] %vm1041, %v2123
        %2140 = vst.msk [vmem:[#allocation4 + $0x148] sm:$0xff] %vm1041, %v2124
        %2141 = vst.msk [vmem:[#allocation4 + $0x160] sm:$0xff] %vm1041, %v2125
        %2142 = vst.msk [vmem:[#allocation4 + $0x178] sm:$0xff] %vm1041, %v2126
        %v2143 = vld [vmem:[#allocation4] sm:$0xff]
        %v2144 = vld [vmem:[#allocation4 + $0x8] sm:$0xff]
        %v2145 = vld [vmem:[#allocation4 + $0x10] sm:$0xff]
        %v2146 = vld [vmem:[#allocation4 + $0x18] sm:$0xff]
        %v2147 = vld [vmem:[#allocation4 + $0x20] sm:$0xff]
        %v2148 = vld [vmem:[#allocation4 + $0x28] sm:$0xff]
        %v2149 = vld [vmem:[#allocation4 + $0x30] sm:$0xff]
        %v2150 = vld [vmem:[#allocation4 + $0x38] sm:$0xff]
        %v2151 = vld [vmem:[#allocation4 + $0x40] sm:$0xff]
        %v2152 = vld [vmem:[#allocation4 + $0x48] sm:$0xff]
        %v2153 = vld [vmem:[#allocation4 + $0x50] sm:$0xff]
        %v2154 = vld [vmem:[#allocation4 + $0x58] sm:$0xff]
        %v2155 = vld [vmem:[#allocation4 + $0x60] sm:$0xff]
        %v2156 = vld [vmem:[#allocation4 + $0x68] sm:$0xff]
        %v2157 = vld [vmem:[#allocation4 + $0x70] sm:$0xff]
        %v2158 = vld [vmem:[#allocation4 + $0x78] sm:$0xff]
        %v2159 = vld [vmem:[#allocation4 + $0x80] sm:$0xff]
        %v2160 = vld [vmem:[#allocation4 + $0x88] sm:$0xff]
        %v2161 = vld [vmem:[#allocation4 + $0x90] sm:$0xff]
        %v2162 = vld [vmem:[#allocation4 + $0x98] sm:$0xff]
        %v2163 = vld [vmem:[#allocation4 + $0xa0] sm:$0xff]
        %v2164 = vld [vmem:[#allocation4 + $0xa8] sm:$0xff]
        %v2165 = vld [vmem:[#allocation4 + $0xb0] sm:$0xff]
        %v2166 = vld [vmem:[#allocation4 + $0xb8] sm:$0xff]
        %v2167 = vld [vmem:[#allocation4 + $0xc0] sm:$0xff]
        %v2168 = vld [vmem:[#allocation4 + $0xc8] sm:$0xff]
        %v2169 = vld [vmem:[#allocation4 + $0xd0] sm:$0xff]
        %v2170 = vld [vmem:[#allocation4 + $0xd8] sm:$0xff]
        %v2171 = vld [vmem:[#allocation4 + $0xe0] sm:$0xff]
        %v2172 = vld [vmem:[#allocation4 + $0xe8] sm:$0xff]
        %v2173 = vld [vmem:[#allocation4 + $0xf0] sm:$0xff]
        %v2174 = vld [vmem:[#allocation4 + $0xf8] sm:$0xff]
        %v2175 = vld [vmem:[#allocation4 + $0x100] sm:$0xff]
        %v2176 = vld [vmem:[#allocation4 + $0x108] sm:$0xff]
        %v2177 = vld [vmem:[#allocation4 + $0x110] sm:$0xff]
        %v2178 = vld [vmem:[#allocation4 + $0x118] sm:$0xff]
        %v2179 = vld [vmem:[#allocation4 + $0x120] sm:$0xff]
        %v2180 = vld [vmem:[#allocation4 + $0x128] sm:$0xff]
        %v2181 = vld [vmem:[#allocation4 + $0x130] sm:$0xff]
        %v2182 = vld [vmem:[#allocation4 + $0x138] sm:$0xff]
        %v2183 = vld [vmem:[#allocation4 + $0x140] sm:$0xff]
        %v2184 = vld [vmem:[#allocation4 + $0x148] sm:$0xff]
        %v2185 = vld [vmem:[#allocation4 + $0x150] sm:$0xff]
        %v2186 = vld [vmem:[#allocation4 + $0x158] sm:$0xff]
        %v2187 = vld [vmem:[#allocation4 + $0x160] sm:$0xff]
        %v2188 = vld [vmem:[#allocation4 + $0x168] sm:$0xff]
        %v2189 = vld [vmem:[#allocation4 + $0x170] sm:$0xff]
        %v2190 = vld [vmem:[#allocation4 + $0x178] sm:$0xff]
        %v2191 = vld [vmem:[%s3] sm:$0xf]
        %v2192 = vld [vmem:[%s3 + $0x4] sm:$0xf]
        %v2193 = vld [vmem:[%s3 + $0x8] sm:$0xf]
        %v2194 = vld [vmem:[%s3 + $0xc] sm:$0xf]
        %v2195 = vld [vmem:[%s3 + $0x10] sm:$0xf]
        %v2196 = vld [vmem:[%s3 + $0x14] sm:$0xf]
        %v2197 = vld [vmem:[%s3 + $0x18] sm:$0xf]
        %v2198 = vld [vmem:[%s3 + $0x1c] sm:$0xf]
        %v2199 = vld [vmem:[%s3 + $0x20] sm:$0xf]
        %v2200 = vld [vmem:[%s3 + $0x24] sm:$0xf]
        %v2201 = vld [vmem:[%s3 + $0x28] sm:$0xf]
        %v2202 = vld [vmem:[%s3 + $0x2c] sm:$0xf]
        %v2203 = vld [vmem:[%s3 + $0x30] sm:$0xf]
        %v2204 = vld [vmem:[%s3 + $0x34] sm:$0xf]
        %v2205 = vld [vmem:[%s3 + $0x38] sm:$0xf]
        %v2206 = vld [vmem:[%s3 + $0x3c] sm:$0xf]
        %v2207 = vld [vmem:[%s3 + $0x40] sm:$0xf]
        %v2208 = vld [vmem:[%s3 + $0x44] sm:$0xf]
        %v2209 = vld [vmem:[%s3 + $0x48] sm:$0xf]
        %v2210 = vld [vmem:[%s3 + $0x4c] sm:$0xf]
        %v2211 = vld [vmem:[%s3 + $0x50] sm:$0xf]
        %v2212 = vld [vmem:[%s3 + $0x54] sm:$0xf]
        %v2213 = vld [vmem:[%s3 + $0x58] sm:$0xf]
        %v2214 = vld [vmem:[%s3 + $0x5c] sm:$0xf]
        %v2215 = vld [vmem:[%s3 + $0x60] sm:$0xf]
        %v2216 = vld [vmem:[%s3 + $0x64] sm:$0xf]
        %v2217 = vld [vmem:[%s3 + $0x68] sm:$0xf]
        %v2218 = vld [vmem:[%s3 + $0x6c] sm:$0xf]
        %v2219 = vld [vmem:[%s3 + $0x70] sm:$0xf]
        %v2220 = vld [vmem:[%s3 + $0x74] sm:$0xf]
        %v2221 = vld [vmem:[%s3 + $0x78] sm:$0xf]
        %v2222 = vld [vmem:[%s3 + $0x7c] sm:$0xf]
        %v2223 = vld [vmem:[%s3 + $0x80] sm:$0xf]
        %v2224 = vld [vmem:[%s3 + $0x84] sm:$0xf]
        %v2225 = vld [vmem:[%s3 + $0x88] sm:$0xf]
        %v2226 = vld [vmem:[%s3 + $0x8c] sm:$0xf]
        %v2263 = vunpack.c.l.b16 %v2191
        %v2264 = vunpack.c.l.b16 %v2192
        %v2265 = vunpack.c.l.b16 %v2193
        %v2266 = vunpack.c.l.b16 %v2194
        %v2267 = vunpack.c.l.b16 %v2195
        %v2268 = vunpack.c.l.b16 %v2196
        %v2269 = vunpack.c.l.b16 %v2197
        %v2270 = vunpack.c.l.b16 %v2198
        %v2271 = vunpack.c.l.b16 %v2199
        %v2272 = vunpack.c.l.b16 %v2200
        %v2273 = vunpack.c.l.b16 %v2201
        %v2274 = vunpack.c.l.b16 %v2202
        %v2275 = vunpack.c.l.b16 %v2203
        %v2276 = vunpack.c.l.b16 %v2204
        %v2277 = vunpack.c.l.b16 %v2205
        %v2278 = vunpack.c.l.b16 %v2206
        %v2279 = vunpack.c.l.b16 %v2207
        %v2280 = vunpack.c.l.b16 %v2208
        %v2281 = vunpack.c.l.b16 %v2209
        %v2282 = vunpack.c.l.b16 %v2210
        %v2283 = vunpack.c.l.b16 %v2211
        %v2284 = vunpack.c.l.b16 %v2212
        %v2285 = vunpack.c.l.b16 %v2213
        %v2286 = vunpack.c.l.b16 %v2214
        %v2287 = vunpack.c.l.b16 %v2215
        %v2288 = vunpack.c.l.b16 %v2216
        %v2289 = vunpack.c.l.b16 %v2217
        %v2290 = vunpack.c.l.b16 %v2218
        %v2291 = vunpack.c.l.b16 %v2219
        %v2292 = vunpack.c.l.b16 %v2220
        %v2293 = vunpack.c.l.b16 %v2221
        %v2294 = vunpack.c.l.b16 %v2222
        %v2295 = vunpack.c.l.b16 %v2223
        %v2296 = vunpack.c.l.b16 %v2224
        %v2297 = vunpack.c.l.b16 %v2225
        %v2298 = vunpack.c.l.b16 %v2226
        %v2299 = vpack.c.b16 %v2264, %v2263
        %v2300 = vpack.c.b16 %v2266, %v2265
        %v2301 = vpack.c.b16 %v2268, %v2267
        %v2302 = vpack.c.b16 %v2270, %v2269
        %v2303 = vpack.c.b16 %v2272, %v2271
        %v2304 = vpack.c.b16 %v2274, %v2273
        %v2305 = vpack.c.b16 %v2276, %v2275
        %v2306 = vpack.c.b16 %v2278, %v2277
        %v2307 = vpack.c.b16 %v2280, %v2279
        %v2308 = vpack.c.b16 %v2282, %v2281
        %v2309 = vpack.c.b16 %v2284, %v2283
        %v2310 = vpack.c.b16 %v2286, %v2285
        %v2311 = vpack.c.b16 %v2288, %v2287
        %v2312 = vpack.c.b16 %v2290, %v2289
        %v2313 = vpack.c.b16 %v2292, %v2291
        %v2314 = vpack.c.b16 %v2294, %v2293
        %v2315 = vpack.c.b16 %v2296, %v2295
        %v2316 = vpack.c.b16 %v2298, %v2297
        %v2336 = vsel %vm1041, %v2145, 0
        %v2339 = vsel %vm1041, %v2148, 0
        %v2342 = vsel %vm1041, %v2151, 0
        %v2345 = vsel %vm1041, %v2154, 0
        %v2348 = vsel %vm1041, %v2157, 0
        %v2351 = vsel %vm1041, %v2160, 0
        %v2354 = vsel %vm1041, %v2163, 0
        %v2357 = vsel %vm1041, %v2166, 0
        %v2360 = vsel %vm1041, %v2169, 0
        %v2363 = vsel %vm1041, %v2172, 0
        %v2366 = vsel %vm1041, %v2175, 0
        %v2369 = vsel %vm1041, %v2178, 0
        %v2372 = vsel %vm1041, %v2181, 0
        %v2375 = vsel %vm1041, %v2184, 0
        %v2378 = vsel %vm1041, %v2187, 0
        %v2381 = vsel %vm1041, %v2190, 0
        %2383 = vmatprep.subr.bf16.mxu0 0
        %2384 = vmatpush1.bf16.msra.mxu0 %v2299
        %2385 = vmatprep.subr.bf16.mxu0 0
        %2386 = vmatpush1.bf16.msra.mxu0 %v2300
        %2387 = vmatprep.subr.bf16.mxu0 0
        %2388 = vmatpush1.bf16.msra.mxu0 %v2301
        %2389 = vmatprep.subr.bf16.mxu0 0
        %2390 = vmatpush1.bf16.msra.mxu0 %v2302
        %2391 = vmatprep.subr.bf16.mxu0 0
        %2392 = vmatpush1.bf16.msra.mxu0 %v2303
        %2393 = vmatprep.subr.bf16.mxu0 0
        %2394 = vmatpush1.bf16.msra.mxu0 %v2304
        %2395 = vmatprep.subr.bf16.mxu0 0
        %2396 = vmatpush1.bf16.msra.mxu0 %v2305
        %2397 = vmatprep.subr.bf16.mxu0 0
        %2398 = vmatpush1.bf16.msra.mxu0 %v2306
        %2399 = vmatprep.subr.bf16.mxu0 0
        %2400 = vmatpush1.bf16.msra.mxu0 %v2307
        %2401 = vmatprep.subr.bf16.mxu0 0
        %2402 = vmatpush1.bf16.msra.mxu0 %v2308
        %2403 = vmatprep.subr.bf16.mxu0 0
        %2404 = vmatpush1.bf16.msra.mxu0 %v2309
        %2405 = vmatprep.subr.bf16.mxu0 0
        %2406 = vmatpush1.bf16.msra.mxu0 %v2310
        %2407 = vmatprep.subr.bf16.mxu0 0
        %2408 = vmatpush1.bf16.msra.mxu0 %v2311
        %2409 = vmatprep.subr.bf16.mxu0 0
        %2410 = vmatpush1.bf16.msra.mxu0 %v2312
        %2411 = vmatprep.subr.bf16.mxu0 0
        %2412 = vmatpush1.bf16.msra.mxu0 %v2313
        %2413 = vmatprep.subr.bf16.mxu0 0
        %2414 = vmatpush1.bf16.msra.mxu0 %v2314
        %2415 = vmatprep.mubr.bf16.mxu0 %v2144
        %2416 = vmatmul.mubr.bf16.gmra.mrb[0].mxu0 %v2143
        %v2417 = vpop.f32.mrb[0].mxu0
        %v2418 = vadd.f32 0.0, %v2417
        %v2419 = vpop.f32.mrb[0].mxu0
        %v2420 = vpop.f32.mrb[0].mxu0
        %v2421 = vadd.f32 0.0, %v2420
        %v2422 = vpop.f32.mrb[0].mxu0
        %2423 = vmatprep.mubr.bf16.mxu0 %v2147
        %2424 = vmatmul.mubr.bf16.gmra.mrb[0].mxu0 %v2146
        %v2425 = vpop.f32.mrb[0].mxu0
        %v2426 = vadd.f32 0.0, %v2425
        %v2427 = vpop.f32.mrb[0].mxu0
        %v2428 = vpop.f32.mrb[0].mxu0
        %v2429 = vadd.f32 0.0, %v2428
        %v2430 = vpop.f32.mrb[0].mxu0
        %2431 = vmatprep.mubr.bf16.mxu0 %v2150
        %2432 = vmatmul.mubr.bf16.gmra.mrb[0].mxu0 %v2149
        %v2433 = vpop.f32.mrb[0].mxu0
        %v2434 = vadd.f32 0.0, %v2433
        %v2435 = vpop.f32.mrb[0].mxu0
        %v2436 = vpop.f32.mrb[0].mxu0
        %v2437 = vadd.f32 0.0, %v2436
        %v2438 = vpop.f32.mrb[0].mxu0
        %2439 = vmatprep.mubr.bf16.mxu0 %v2153
        %2440 = vmatmul.mubr.bf16.gmra.mrb[0].mxu0 %v2152
        %v2441 = vpop.f32.mrb[0].mxu0
        %v2442 = vadd.f32 0.0, %v2441
        %v2443 = vpop.f32.mrb[0].mxu0
        %v2444 = vpop.f32.mrb[0].mxu0
        %v2445 = vadd.f32 0.0, %v2444
        %v2446 = vpop.f32.mrb[0].mxu0
        %2447 = vmatprep.mubr.bf16.mxu0 %v2156
        %2448 = vmatmul.mubr.bf16.gmra.mrb[0].mxu0 %v2155
        %v2449 = vpop.f32.mrb[0].mxu0
        %v2450 = vadd.f32 0.0, %v2449
        %v2451 = vpop.f32.mrb[0].mxu0
        %v2452 = vpop.f32.mrb[0].mxu0
        %v2453 = vadd.f32 0.0, %v2452
        %v2454 = vpop.f32.mrb[0].mxu0
        %2455 = vmatprep.mubr.bf16.mxu0 %v2159
        %2456 = vmatmul.mubr.bf16.gmra.mrb[0].mxu0 %v2158
        %v2457 = vpop.f32.mrb[0].mxu0
        %v2458 = vadd.f32 0.0, %v2457
        %v2459 = vpop.f32.mrb[0].mxu0
        %v2460 = vpop.f32.mrb[0].mxu0
        %v2461 = vadd.f32 0.0, %v2460
        %v2462 = vpop.f32.mrb[0].mxu0
        %2463 = vmatprep.mubr.bf16.mxu0 %v2162
        %2464 = vmatmul.mubr.bf16.gmra.mrb[0].mxu0 %v2161
        %v2465 = vpop.f32.mrb[0].mxu0
        %v2466 = vadd.f32 0.0, %v2465
        %v2467 = vpop.f32.mrb[0].mxu0
        %v2468 = vpop.f32.mrb[0].mxu0
        %v2469 = vadd.f32 0.0, %v2468
        %v2470 = vpop.f32.mrb[0].mxu0
        %2471 = vmatprep.mubr.bf16.mxu0 %v2165
        %2472 = vmatmul.mubr.bf16.gmra.mrb[0].mxu0 %v2164
        %v2473 = vpop.f32.mrb[0].mxu0
        %v2474 = vadd.f32 0.0, %v2473
        %v2475 = vpop.f32.mrb[0].mxu0
        %v2476 = vpop.f32.mrb[0].mxu0
        %v2477 = vadd.f32 0.0, %v2476
        %v2478 = vpop.f32.mrb[0].mxu0
        %2479 = vmatprep.mubr.bf16.mxu0 %v2168
        %2480 = vmatmul.mubr.bf16.gmra.mrb[0].mxu0 %v2167
        %v2481 = vpop.f32.mrb[0].mxu0
        %v2482 = vadd.f32 0.0, %v2481
        %v2483 = vpop.f32.mrb[0].mxu0
        %v2484 = vpop.f32.mrb[0].mxu0
        %v2485 = vadd.f32 0.0, %v2484
        %v2486 = vpop.f32.mrb[0].mxu0
        %2487 = vmatprep.mubr.bf16.mxu0 %v2171
        %2488 = vmatmul.mubr.bf16.gmra.mrb[0].mxu0 %v2170
        %v2489 = vpop.f32.mrb[0].mxu0
        %v2490 = vadd.f32 0.0, %v2489
        %v2491 = vpop.f32.mrb[0].mxu0
        %v2492 = vpop.f32.mrb[0].mxu0
        %v2493 = vadd.f32 0.0, %v2492
        %v2494 = vpop.f32.mrb[0].mxu0
        %2495 = vmatprep.mubr.bf16.mxu0 %v2174
        %2496 = vmatmul.mubr.bf16.gmra.mrb[0].mxu0 %v2173
        %v2497 = vpop.f32.mrb[0].mxu0
        %v2498 = vadd.f32 0.0, %v2497
        %v2499 = vpop.f32.mrb[0].mxu0
        %v2500 = vpop.f32.mrb[0].mxu0
        %v2501 = vadd.f32 0.0, %v2500
        %v2502 = vpop.f32.mrb[0].mxu0
        %2503 = vmatprep.mubr.bf16.mxu0 %v2177
        %2504 = vmatmul.mubr.bf16.gmra.mrb[0].mxu0 %v2176
        %v2505 = vpop.f32.mrb[0].mxu0
        %v2506 = vadd.f32 0.0, %v2505
        %v2507 = vpop.f32.mrb[0].mxu0
        %v2508 = vpop.f32.mrb[0].mxu0
        %v2509 = vadd.f32 0.0, %v2508
        %v2510 = vpop.f32.mrb[0].mxu0
        %2511 = vmatprep.mubr.bf16.mxu0 %v2180
        %2512 = vmatmul.mubr.bf16.gmra.mrb[0].mxu0 %v2179
        %v2513 = vpop.f32.mrb[0].mxu0
        %v2514 = vadd.f32 0.0, %v2513
        %v2515 = vpop.f32.mrb[0].mxu0
        %v2516 = vpop.f32.mrb[0].mxu0
        %v2517 = vadd.f32 0.0, %v2516
        %v2518 = vpop.f32.mrb[0].mxu0
        %2519 = vmatprep.mubr.bf16.mxu0 %v2183
        %2520 = vmatmul.mubr.bf16.gmra.mrb[0].mxu0 %v2182
        %v2521 = vpop.f32.mrb[0].mxu0
        %v2522 = vadd.f32 0.0, %v2521
        %v2523 = vpop.f32.mrb[0].mxu0
        %v2524 = vpop.f32.mrb[0].mxu0
        %v2525 = vadd.f32 0.0, %v2524
        %v2526 = vpop.f32.mrb[0].mxu0
        %2527 = vmatprep.mubr.bf16.mxu0 %v2186
        %2528 = vmatmul.mubr.bf16.gmra.mrb[0].mxu0 %v2185
        %v2529 = vpop.f32.mrb[0].mxu0
        %v2530 = vadd.f32 0.0, %v2529
        %v2531 = vpop.f32.mrb[0].mxu0
        %v2532 = vpop.f32.mrb[0].mxu0
        %v2533 = vadd.f32 0.0, %v2532
        %v2534 = vpop.f32.mrb[0].mxu0
        %2535 = vmatprep.mubr.bf16.mxu0 %v2189
        %2536 = vmatmul.mubr.bf16.gmra.mrb[0].mxu0 %v2188
        %v2537 = vpop.f32.mrb[0].mxu0
        %v2538 = vadd.f32 0.0, %v2537
        %v2539 = vpop.f32.mrb[0].mxu0
        %v2540 = vpop.f32.mrb[0].mxu0
        %v2541 = vadd.f32 0.0, %v2540
        %v2542 = vpop.f32.mrb[0].mxu0
        %2543 = vdwg.mxu0
        %2544 = vmatprep.subr.bf16.mxu0 0
        %2545 = vmatpush1.bf16.msra.mxu0 %v2315
        %2546 = vmatprep.subr.bf16.mxu0 0
        %2547 = vmatpush1.bf16.msra.mxu0 %v2316
        %2548 = vmatprep.subr.bf16.mxu0 0
        %2549 = vmatpush1.bf16.msra.mxu0 0
        %2550 = vmatprep.subr.bf16.mxu0 0
        %2551 = vmatpush1.bf16.msra.mxu0 0
        %2552 = vmatprep.subr.bf16.mxu0 0
        %2553 = vmatpush1.bf16.msra.mxu0 0
        %2554 = vmatprep.subr.bf16.mxu0 0
        %2555 = vmatpush1.bf16.msra.mxu0 0
        %2556 = vmatprep.subr.bf16.mxu0 0
        %2557 = vmatpush1.bf16.msra.mxu0 0
        %2558 = vmatprep.subr.bf16.mxu0 0
        %2559 = vmatpush1.bf16.msra.mxu0 0
        %2560 = vmatprep.subr.bf16.mxu0 0
        %2561 = vmatpush1.bf16.msra.mxu0 0
        %2562 = vmatprep.subr.bf16.mxu0 0
        %2563 = vmatpush1.bf16.msra.mxu0 0
        %2564 = vmatprep.subr.bf16.mxu0 0
        %2565 = vmatpush1.bf16.msra.mxu0 0
        %2566 = vmatprep.subr.bf16.mxu0 0
        %2567 = vmatpush1.bf16.msra.mxu0 0
        %2568 = vmatprep.subr.bf16.mxu0 0
        %2569 = vmatpush1.bf16.msra.mxu0 0
        %2570 = vmatprep.subr.bf16.mxu0 0
        %2571 = vmatpush1.bf16.msra.mxu0 0
        %2572 = vmatprep.subr.bf16.mxu0 0
        %2573 = vmatpush1.bf16.msra.mxu0 0
        %2574 = vmatprep.subr.bf16.mxu0 0
        %2575 = vmatpush1.bf16.msra.mxu0 0
        %2576 = vmatprep.mubr.bf16.mxu0 0
        %2577 = vmatmul.mubr.bf16.gmra.mrb[0].mxu0 %v2336
        %v2578 = vpop.f32.mrb[0].mxu0
        %v2579 = vadd.f32 %v2418, %v2578
        %v2580 = vpop.f32.mrb[0].mxu0
        %v2581 = vpop.f32.mrb[0].mxu0
        %v2582 = vadd.f32 %v2421, %v2581
        %v2583 = vpop.f32.mrb[0].mxu0
        %2584 = vmatprep.mubr.bf16.mxu0 0
        %2585 = vmatmul.mubr.bf16.gmra.mrb[0].mxu0 %v2339
        %v2586 = vpop.f32.mrb[0].mxu0
        %v2587 = vadd.f32 %v2426, %v2586
        %v2588 = vpop.f32.mrb[0].mxu0
        %v2589 = vpop.f32.mrb[0].mxu0
        %v2590 = vadd.f32 %v2429, %v2589
        %v2591 = vpop.f32.mrb[0].mxu0
        %2592 = vmatprep.mubr.bf16.mxu0 0
        %2593 = vmatmul.mubr.bf16.gmra.mrb[0].mxu0 %v2342
        %v2594 = vpop.f32.mrb[0].mxu0
        %v2595 = vadd.f32 %v2434, %v2594
        %v2596 = vpop.f32.mrb[0].mxu0
        %v2597 = vpop.f32.mrb[0].mxu0
        %v2598 = vadd.f32 %v2437, %v2597
        %v2599 = vpop.f32.mrb[0].mxu0
        %2600 = vmatprep.mubr.bf16.mxu0 0
        %2601 = vmatmul.mubr.bf16.gmra.mrb[0].mxu0 %v2345
        %v2602 = vpop.f32.mrb[0].mxu0
        %v2603 = vadd.f32 %v2442, %v2602
        %v2604 = vpop.f32.mrb[0].mxu0
        %v2605 = vpop.f32.mrb[0].mxu0
        %v2606 = vadd.f32 %v2445, %v2605
        %v2607 = vpop.f32.mrb[0].mxu0
        %2608 = vmatprep.mubr.bf16.mxu0 0
        %2609 = vmatmul.mubr.bf16.gmra.mrb[0].mxu0 %v2348
        %v2610 = vpop.f32.mrb[0].mxu0
        %v2611 = vadd.f32 %v2450, %v2610
        %v2612 = vpop.f32.mrb[0].mxu0
        %v2613 = vpop.f32.mrb[0].mxu0
        %v2614 = vadd.f32 %v2453, %v2613
        %v2615 = vpop.f32.mrb[0].mxu0
        %2616 = vmatprep.mubr.bf16.mxu0 0
        %2617 = vmatmul.mubr.bf16.gmra.mrb[0].mxu0 %v2351
        %v2618 = vpop.f32.mrb[0].mxu0
        %v2619 = vadd.f32 %v2458, %v2618
        %v2620 = vpop.f32.mrb[0].mxu0
        %v2621 = vpop.f32.mrb[0].mxu0
        %v2622 = vadd.f32 %v2461, %v2621
        %v2623 = vpop.f32.mrb[0].mxu0
        %2624 = vmatprep.mubr.bf16.mxu0 0
        %2625 = vmatmul.mubr.bf16.gmra.mrb[0].mxu0 %v2354
        %v2626 = vpop.f32.mrb[0].mxu0
        %v2627 = vadd.f32 %v2466, %v2626
        %v2628 = vpop.f32.mrb[0].mxu0
        %v2629 = vpop.f32.mrb[0].mxu0
        %v2630 = vadd.f32 %v2469, %v2629
        %v2631 = vpop.f32.mrb[0].mxu0
        %2632 = vmatprep.mubr.bf16.mxu0 0
        %2633 = vmatmul.mubr.bf16.gmra.mrb[0].mxu0 %v2357
        %v2634 = vpop.f32.mrb[0].mxu0
        %v2635 = vadd.f32 %v2474, %v2634
        %v2636 = vpop.f32.mrb[0].mxu0
        %v2637 = vpop.f32.mrb[0].mxu0
        %v2638 = vadd.f32 %v2477, %v2637
        %v2639 = vpop.f32.mrb[0].mxu0
        %2640 = vmatprep.mubr.bf16.mxu0 0
        %2641 = vmatmul.mubr.bf16.gmra.mrb[0].mxu0 %v2360
        %v2642 = vpop.f32.mrb[0].mxu0
        %v2643 = vadd.f32 %v2482, %v2642
        %v2644 = vpop.f32.mrb[0].mxu0
        %v2645 = vpop.f32.mrb[0].mxu0
        %v2646 = vadd.f32 %v2485, %v2645
        %v2647 = vpop.f32.mrb[0].mxu0
        %2648 = vmatprep.mubr.bf16.mxu0 0
        %2649 = vmatmul.mubr.bf16.gmra.mrb[0].mxu0 %v2363
        %v2650 = vpop.f32.mrb[0].mxu0
        %v2651 = vadd.f32 %v2490, %v2650
        %v2652 = vpop.f32.mrb[0].mxu0
        %v2653 = vpop.f32.mrb[0].mxu0
        %v2654 = vadd.f32 %v2493, %v2653
        %v2655 = vpop.f32.mrb[0].mxu0
        %2656 = vmatprep.mubr.bf16.mxu0 0
        %2657 = vmatmul.mubr.bf16.gmra.mrb[0].mxu0 %v2366
        %v2658 = vpop.f32.mrb[0].mxu0
        %v2659 = vadd.f32 %v2498, %v2658
        %v2660 = vpop.f32.mrb[0].mxu0
        %v2661 = vpop.f32.mrb[0].mxu0
        %v2662 = vadd.f32 %v2501, %v2661
        %v2663 = vpop.f32.mrb[0].mxu0
        %2664 = vmatprep.mubr.bf16.mxu0 0
        %2665 = vmatmul.mubr.bf16.gmra.mrb[0].mxu0 %v2369
        %v2666 = vpop.f32.mrb[0].mxu0
        %v2667 = vadd.f32 %v2506, %v2666
        %v2668 = vpop.f32.mrb[0].mxu0
        %v2669 = vpop.f32.mrb[0].mxu0
        %v2670 = vadd.f32 %v2509, %v2669
        %v2671 = vpop.f32.mrb[0].mxu0
        %2672 = vmatprep.mubr.bf16.mxu0 0
        %2673 = vmatmul.mubr.bf16.gmra.mrb[0].mxu0 %v2372
        %v2674 = vpop.f32.mrb[0].mxu0
        %v2675 = vadd.f32 %v2514, %v2674
        %v2676 = vpop.f32.mrb[0].mxu0
        %v2677 = vpop.f32.mrb[0].mxu0
        %v2678 = vadd.f32 %v2517, %v2677
        %v2679 = vpop.f32.mrb[0].mxu0
        %2680 = vmatprep.mubr.bf16.mxu0 0
        %2681 = vmatmul.mubr.bf16.gmra.mrb[0].mxu0 %v2375
        %v2682 = vpop.f32.mrb[0].mxu0
        %v2683 = vadd.f32 %v2522, %v2682
        %v2684 = vpop.f32.mrb[0].mxu0
        %v2685 = vpop.f32.mrb[0].mxu0
        %v2686 = vadd.f32 %v2525, %v2685
        %v2687 = vpop.f32.mrb[0].mxu0
        %2688 = vmatprep.mubr.bf16.mxu0 0
        %2689 = vmatmul.mubr.bf16.gmra.mrb[0].mxu0 %v2378
        %v2690 = vpop.f32.mrb[0].mxu0
        %v2691 = vadd.f32 %v2530, %v2690
        %v2692 = vpop.f32.mrb[0].mxu0
        %v2693 = vpop.f32.mrb[0].mxu0
        %v2694 = vadd.f32 %v2533, %v2693
        %v2695 = vpop.f32.mrb[0].mxu0
        %2696 = vmatprep.mubr.bf16.mxu0 0
        %2697 = vmatmul.mubr.bf16.gmra.mrb[0].mxu0 %v2381
        %v2698 = vpop.f32.mrb[0].mxu0
        %v2699 = vadd.f32 %v2538, %v2698
        %v2700 = vpop.f32.mrb[0].mxu0
        %v2701 = vpop.f32.mrb[0].mxu0
        %v2702 = vadd.f32 %v2541, %v2701
        %v2703 = vpop.f32.mrb[0].mxu0
        %2704 = vdwg.mxu0
        %vm2705 = vcmask 130048
        %2706 = vst.msk [vmem:[#allocation2] sm:$0xff] %vm2705, %v2579
        %2707 = vst.msk [vmem:[#allocation2 + $0x8] sm:$0xff] %vm2705, %v2582
        %2708 = vst.msk [vmem:[#allocation2 + $0x10] sm:$0xff] %vm2705, %v2587
        %2709 = vst.msk [vmem:[#allocation2 + $0x18] sm:$0xff] %vm2705, %v2590
        %2710 = vst.msk [vmem:[#allocation2 + $0x20] sm:$0xff] %vm2705, %v2595
        %2711 = vst.msk [vmem:[#allocation2 + $0x28] sm:$0xff] %vm2705, %v2598
        %2712 = vst.msk [vmem:[#allocation2 + $0x30] sm:$0xff] %vm2705, %v2603
        %2713 = vst.msk [vmem:[#allocation2 + $0x38] sm:$0xff] %vm2705, %v2606
        %2714 = vst.msk [vmem:[#allocation2 + $0x40] sm:$0xff] %vm2705, %v2611
        %2715 = vst.msk [vmem:[#allocation2 + $0x48] sm:$0xff] %vm2705, %v2614
        %2716 = vst.msk [vmem:[#allocation2 + $0x50] sm:$0xff] %vm2705, %v2619
        %2717 = vst.msk [vmem:[#allocation2 + $0x58] sm:$0xff] %vm2705, %v2622
        %2718 = vst.msk [vmem:[#allocation2 + $0x60] sm:$0xff] %vm2705, %v2627
        %2719 = vst.msk [vmem:[#allocation2 + $0x68] sm:$0xff] %vm2705, %v2630
        %2720 = vst.msk [vmem:[#allocation2 + $0x70] sm:$0xff] %vm2705, %v2635
        %2721 = vst.msk [vmem:[#allocation2 + $0x78] sm:$0xff] %vm2705, %v2638
        %2722 = vst.msk [vmem:[#allocation2 + $0x80] sm:$0xff] %vm2705, %v2643
        %2723 = vst.msk [vmem:[#allocation2 + $0x88] sm:$0xff] %vm2705, %v2646
        %2724 = vst.msk [vmem:[#allocation2 + $0x90] sm:$0xff] %vm2705, %v2651
        %2725 = vst.msk [vmem:[#allocation2 + $0x98] sm:$0xff] %vm2705, %v2654
        %2726 = vst.msk [vmem:[#allocation2 + $0xa0] sm:$0xff] %vm2705, %v2659
        %2727 = vst.msk [vmem:[#allocation2 + $0xa8] sm:$0xff] %vm2705, %v2662
        %2728 = vst.msk [vmem:[#allocation2 + $0xb0] sm:$0xff] %vm2705, %v2667
        %2729 = vst.msk [vmem:[#allocation2 + $0xb8] sm:$0xff] %vm2705, %v2670
        %2730 = vst.msk [vmem:[#allocation2 + $0xc0] sm:$0xff] %vm2705, %v2675
        %2731 = vst.msk [vmem:[#allocation2 + $0xc8] sm:$0xff] %vm2705, %v2678
        %2732 = vst.msk [vmem:[#allocation2 + $0xd0] sm:$0xff] %vm2705, %v2683
        %2733 = vst.msk [vmem:[#allocation2 + $0xd8] sm:$0xff] %vm2705, %v2686
        %2734 = vst.msk [vmem:[#allocation2 + $0xe0] sm:$0xff] %vm2705, %v2691
        %2735 = vst.msk [vmem:[#allocation2 + $0xe8] sm:$0xff] %vm2705, %v2694
        %2736 = vst.msk [vmem:[#allocation2 + $0xf0] sm:$0xff] %vm2705, %v2699
        %2737 = vst.msk [vmem:[#allocation2 + $0xf8] sm:$0xff] %vm2705, %v2702
        %v2738 = vld [vmem:[#allocation2] sm:$0xff]
        %v2739 = vld [vmem:[#allocation2 + $0x8] sm:$0xff]
        %v2740 = vld [vmem:[#allocation2 + $0x10] sm:$0xff]
        %v2741 = vld [vmem:[#allocation2 + $0x18] sm:$0xff]
        %v2742 = vld [vmem:[#allocation2 + $0x20] sm:$0xff]
        %v2743 = vld [vmem:[#allocation2 + $0x28] sm:$0xff]
        %v2744 = vld [vmem:[#allocation2 + $0x30] sm:$0xff]
        %v2745 = vld [vmem:[#allocation2 + $0x38] sm:$0xff]
        %v2746 = vld [vmem:[#allocation2 + $0x40] sm:$0xff]
        %v2747 = vld [vmem:[#allocation2 + $0x48] sm:$0xff]
        %v2748 = vld [vmem:[#allocation2 + $0x50] sm:$0xff]
        %v2749 = vld [vmem:[#allocation2 + $0x58] sm:$0xff]
        %v2750 = vld [vmem:[#allocation2 + $0x60] sm:$0xff]
        %v2751 = vld [vmem:[#allocation2 + $0x68] sm:$0xff]
        %v2752 = vld [vmem:[#allocation2 + $0x70] sm:$0xff]
        %v2753 = vld [vmem:[#allocation2 + $0x78] sm:$0xff]
        %v2754 = vld [vmem:[#allocation2 + $0x80] sm:$0xff]
        %v2755 = vld [vmem:[#allocation2 + $0x88] sm:$0xff]
        %v2756 = vld [vmem:[#allocation2 + $0x90] sm:$0xff]
        %v2757 = vld [vmem:[#allocation2 + $0x98] sm:$0xff]
        %v2758 = vld [vmem:[#allocation2 + $0xa0] sm:$0xff]
        %v2759 = vld [vmem:[#allocation2 + $0xa8] sm:$0xff]
        %v2760 = vld [vmem:[#allocation2 + $0xb0] sm:$0xff]
        %v2761 = vld [vmem:[#allocation2 + $0xb8] sm:$0xff]
        %v2762 = vld [vmem:[#allocation2 + $0xc0] sm:$0xff]
        %v2763 = vld [vmem:[#allocation2 + $0xc8] sm:$0xff]
        %v2764 = vld [vmem:[#allocation2 + $0xd0] sm:$0xff]
        %v2765 = vld [vmem:[#allocation2 + $0xd8] sm:$0xff]
        %v2766 = vld [vmem:[#allocation2 + $0xe0] sm:$0xff]
        %v2767 = vld [vmem:[#allocation2 + $0xe8] sm:$0xff]
        %v2768 = vld [vmem:[#allocation2 + $0xf0] sm:$0xff]
        %v2769 = vld [vmem:[#allocation2 + $0xf8] sm:$0xff]
        %v2770 = vld [vmem:[%s5] sm:$0x1]
        %v2772 = vlaneseq
        %v2773 = vshrl.u32 %v2772, 7
        %v2774 = vsub.s32 0, %v2773
        %v2775 = vrot.slane %v2770, %v2774
        %v2777 = vmul.f32 %v2738, %v2775
        %v2778 = vmul.f32 %v2739, %v2775
        %v2779 = vmul.f32 %v2740, %v2775
        %v2780 = vmul.f32 %v2741, %v2775
        %v2781 = vmul.f32 %v2742, %v2775
        %v2782 = vmul.f32 %v2743, %v2775
        %v2783 = vmul.f32 %v2744, %v2775
        %v2784 = vmul.f32 %v2745, %v2775
        %v2785 = vmul.f32 %v2746, %v2775
        %v2786 = vmul.f32 %v2747, %v2775
        %v2787 = vmul.f32 %v2748, %v2775
        %v2788 = vmul.f32 %v2749, %v2775
        %v2789 = vmul.f32 %v2750, %v2775
        %v2790 = vmul.f32 %v2751, %v2775
        %v2791 = vmul.f32 %v2752, %v2775
        %v2792 = vmul.f32 %v2753, %v2775
        %v2793 = vmul.f32 %v2754, %v2775
        %v2794 = vmul.f32 %v2755, %v2775
        %v2795 = vmul.f32 %v2756, %v2775
        %v2796 = vmul.f32 %v2757, %v2775
        %v2797 = vmul.f32 %v2758, %v2775
        %v2798 = vmul.f32 %v2759, %v2775
        %v2799 = vmul.f32 %v2760, %v2775
        %v2800 = vmul.f32 %v2761, %v2775
        %v2801 = vmul.f32 %v2762, %v2775
        %v2802 = vmul.f32 %v2763, %v2775
        %v2803 = vmul.f32 %v2764, %v2775
        %v2804 = vmul.f32 %v2765, %v2775
        %v2805 = vmul.f32 %v2766, %v2775
        %v2806 = vmul.f32 %v2767, %v2775
        %v2807 = vmul.f32 %v2768, %v2775
        %v2808 = vmul.f32 %v2769, %v2775
        %v2809 = vld [vmem:[%s7] sm:$0x1]
        %v2811 = vlaneseq
        %v2812 = vshrl.u32 %v2811, 7
        %v2813 = vsub.s32 0, %v2812
        %v2814 = vrot.slane %v2809, %v2813
        %v2816 = vadd.f32 %v2777, %v2814
        %v2817 = vadd.f32 %v2778, %v2814
        %v2818 = vadd.f32 %v2779, %v2814
        %v2819 = vadd.f32 %v2780, %v2814
        %v2820 = vadd.f32 %v2781, %v2814
        %v2821 = vadd.f32 %v2782, %v2814
        %v2822 = vadd.f32 %v2783, %v2814
        %v2823 = vadd.f32 %v2784, %v2814
        %v2824 = vadd.f32 %v2785, %v2814
        %v2825 = vadd.f32 %v2786, %v2814
        %v2826 = vadd.f32 %v2787, %v2814
        %v2827 = vadd.f32 %v2788, %v2814
        %v2828 = vadd.f32 %v2789, %v2814
        %v2829 = vadd.f32 %v2790, %v2814
        %v2830 = vadd.f32 %v2791, %v2814
        %v2831 = vadd.f32 %v2792, %v2814
        %v2832 = vadd.f32 %v2793, %v2814
        %v2833 = vadd.f32 %v2794, %v2814
        %v2834 = vadd.f32 %v2795, %v2814
        %v2835 = vadd.f32 %v2796, %v2814
        %v2836 = vadd.f32 %v2797, %v2814
        %v2837 = vadd.f32 %v2798, %v2814
        %v2838 = vadd.f32 %v2799, %v2814
        %v2839 = vadd.f32 %v2800, %v2814
        %v2840 = vadd.f32 %v2801, %v2814
        %v2841 = vadd.f32 %v2802, %v2814
        %v2842 = vadd.f32 %v2803, %v2814
        %v2843 = vadd.f32 %v2804, %v2814
        %v2844 = vadd.f32 %v2805, %v2814
        %v2845 = vadd.f32 %v2806, %v2814
        %v2846 = vadd.f32 %v2807, %v2814
        %v2847 = vadd.f32 %v2808, %v2814
        %v2848 = vmax.f32 %v2816, 0.0
        %v2849 = vmax.f32 %v2817, 0.0
        %v2850 = vmax.f32 %v2818, 0.0
        %v2851 = vmax.f32 %v2819, 0.0
        %v2852 = vmax.f32 %v2820, 0.0
        %v2853 = vmax.f32 %v2821, 0.0
        %v2854 = vmax.f32 %v2822, 0.0
        %v2855 = vmax.f32 %v2823, 0.0
        %v2856 = vmax.f32 %v2824, 0.0
        %v2857 = vmax.f32 %v2825, 0.0
        %v2858 = vmax.f32 %v2826, 0.0
        %v2859 = vmax.f32 %v2827, 0.0
        %v2860 = vmax.f32 %v2828, 0.0
        %v2861 = vmax.f32 %v2829, 0.0
        %v2862 = vmax.f32 %v2830, 0.0
        %v2863 = vmax.f32 %v2831, 0.0
        %v2864 = vmax.f32 %v2832, 0.0
        %v2865 = vmax.f32 %v2833, 0.0
        %v2866 = vmax.f32 %v2834, 0.0
        %v2867 = vmax.f32 %v2835, 0.0
        %v2868 = vmax.f32 %v2836, 0.0
        %v2869 = vmax.f32 %v2837, 0.0
        %v2870 = vmax.f32 %v2838, 0.0
        %v2871 = vmax.f32 %v2839, 0.0
        %v2872 = vmax.f32 %v2840, 0.0
        %v2873 = vmax.f32 %v2841, 0.0
        %v2874 = vmax.f32 %v2842, 0.0
        %v2875 = vmax.f32 %v2843, 0.0
        %v2876 = vmax.f32 %v2844, 0.0
        %v2877 = vmax.f32 %v2845, 0.0
        %v2878 = vmax.f32 %v2846, 0.0
        %v2879 = vmax.f32 %v2847, 0.0
        %v2880 = vpack.c.bf16 %v2849, %v2848
        %v2881 = vpack.c.bf16 %v2851, %v2850
        %v2882 = vpack.c.bf16 %v2853, %v2852
        %v2883 = vpack.c.bf16 %v2855, %v2854
        %v2884 = vpack.c.bf16 %v2857, %v2856
        %v2885 = vpack.c.bf16 %v2859, %v2858
        %v2886 = vpack.c.bf16 %v2861, %v2860
        %v2887 = vpack.c.bf16 %v2863, %v2862
        %v2888 = vpack.c.bf16 %v2865, %v2864
        %v2889 = vpack.c.bf16 %v2867, %v2866
        %v2890 = vpack.c.bf16 %v2869, %v2868
        %v2891 = vpack.c.bf16 %v2871, %v2870
        %v2892 = vpack.c.bf16 %v2873, %v2872
        %v2893 = vpack.c.bf16 %v2875, %v2874
        %v2894 = vpack.c.bf16 %v2877, %v2876
        %v2895 = vpack.c.bf16 %v2879, %v2878
        %v2896 = vld [vmem:[%s9] sm:$0xf]
        %v2897 = vld [vmem:[%s9 + $0x4] sm:$0xf]
        %v2900 = vunpack.c.l.b16 %v2896
        %v2901 = vunpack.c.l.b16 %v2897
        %v2902 = vpack.c.b16 %v2901, %v2900
        %v2905 = vsel %vm2705, %v2880, 0
        %v2908 = vsel %vm2705, %v2881, 0
        %v2911 = vsel %vm2705, %v2882, 0
        %v2914 = vsel %vm2705, %v2883, 0
        %v2917 = vsel %vm2705, %v2884, 0
        %v2920 = vsel %vm2705, %v2885, 0
        %v2923 = vsel %vm2705, %v2886, 0
        %v2926 = vsel %vm2705, %v2887, 0
        %v2929 = vsel %vm2705, %v2888, 0
        %v2932 = vsel %vm2705, %v2889, 0
        %v2935 = vsel %vm2705, %v2890, 0
        %v2938 = vsel %vm2705, %v2891, 0
        %v2941 = vsel %vm2705, %v2892, 0
        %v2944 = vsel %vm2705, %v2893, 0
        %v2947 = vsel %vm2705, %v2894, 0
        %v2950 = vsel %vm2705, %v2895, 0
        %2952 = vmatprep.subr.bf16.mxu0 0
        %2953 = vmatpush1.bf16.msra.mxu0 %v2902
        %2954 = vmatprep.subr.bf16.mxu0 0
        %2955 = vmatpush1.bf16.msra.mxu0 0
        %2956 = vmatprep.subr.bf16.mxu0 0
        %2957 = vmatpush1.bf16.msra.mxu0 0
        %2958 = vmatprep.subr.bf16.mxu0 0
        %2959 = vmatpush1.bf16.msra.mxu0 0
        %2960 = vmatprep.subr.bf16.mxu0 0
        %2961 = vmatpush1.bf16.msra.mxu0 0
        %2962 = vmatprep.subr.bf16.mxu0 0
        %2963 = vmatpush1.bf16.msra.mxu0 0
        %2964 = vmatprep.subr.bf16.mxu0 0
        %2965 = vmatpush1.bf16.msra.mxu0 0
        %2966 = vmatprep.subr.bf16.mxu0 0
        %2967 = vmatpush1.bf16.msra.mxu0 0
        %2968 = vmatprep.subr.bf16.mxu0 0
        %2969 = vmatpush1.bf16.msra.mxu0 0
        %2970 = vmatprep.subr.bf16.mxu0 0
        %2971 = vmatpush1.bf16.msra.mxu0 0
        %2972 = vmatprep.subr.bf16.mxu0 0
        %2973 = vmatpush1.bf16.msra.mxu0 0
        %2974 = vmatprep.subr.bf16.mxu0 0
        %2975 = vmatpush1.bf16.msra.mxu0 0
        %2976 = vmatprep.subr.bf16.mxu0 0
        %2977 = vmatpush1.bf16.msra.mxu0 0
        %2978 = vmatprep.subr.bf16.mxu0 0
        %2979 = vmatpush1.bf16.msra.mxu0 0
        %2980 = vmatprep.subr.bf16.mxu0 0
        %2981 = vmatpush1.bf16.msra.mxu0 0
        %2982 = vmatprep.subr.bf16.mxu0 0
        %2983 = vmatpush1.bf16.msra.mxu0 0
        %2984 = vmatprep.mubr.bf16.mxu0 0
        %2985 = vmatmul.mubr.bf16.gmra.mrb[0].mxu0 %v2905
        %v2986 = vpop.f32.mrb[0].mxu0
        %v2987 = vadd.f32 0.0, %v2986
        %v2988 = vpop.f32.mrb[0].mxu0
        %v2989 = vpop.f32.mrb[0].mxu0
        %v2990 = vadd.f32 0.0, %v2989
        %v2991 = vpop.f32.mrb[0].mxu0
        %2992 = vmatprep.mubr.bf16.mxu0 0
        %2993 = vmatmul.mubr.bf16.gmra.mrb[0].mxu0 %v2908
        %v2994 = vpop.f32.mrb[0].mxu0
        %v2995 = vadd.f32 0.0, %v2994
        %v2996 = vpop.f32.mrb[0].mxu0
        %v2997 = vpop.f32.mrb[0].mxu0
        %v2998 = vadd.f32 0.0, %v2997
        %v2999 = vpop.f32.mrb[0].mxu0
        %3000 = vmatprep.mubr.bf16.mxu0 0
        %3001 = vmatmul.mubr.bf16.gmra.mrb[0].mxu0 %v2911
        %v3002 = vpop.f32.mrb[0].mxu0
        %v3003 = vadd.f32 0.0, %v3002
        %v3004 = vpop.f32.mrb[0].mxu0
        %v3005 = vpop.f32.mrb[0].mxu0
        %v3006 = vadd.f32 0.0, %v3005
        %v3007 = vpop.f32.mrb[0].mxu0
        %3008 = vmatprep.mubr.bf16.mxu0 0
        %3009 = vmatmul.mubr.bf16.gmra.mrb[0].mxu0 %v2914
        %v3010 = vpop.f32.mrb[0].mxu0
        %v3011 = vadd.f32 0.0, %v3010
        %v3012 = vpop.f32.mrb[0].mxu0
        %v3013 = vpop.f32.mrb[0].mxu0
        %v3014 = vadd.f32 0.0, %v3013
        %v3015 = vpop.f32.mrb[0].mxu0
        %3016 = vmatprep.mubr.bf16.mxu0 0
        %3017 = vmatmul.mubr.bf16.gmra.mrb[0].mxu0 %v2917
        %v3018 = vpop.f32.mrb[0].mxu0
        %v3019 = vadd.f32 0.0, %v3018
        %v3020 = vpop.f32.mrb[0].mxu0
        %v3021 = vpop.f32.mrb[0].mxu0
        %v3022 = vadd.f32 0.0, %v3021
        %v3023 = vpop.f32.mrb[0].mxu0
        %3024 = vmatprep.mubr.bf16.mxu0 0
        %3025 = vmatmul.mubr.bf16.gmra.mrb[0].mxu0 %v2920
        %v3026 = vpop.f32.mrb[0].mxu0
        %v3027 = vadd.f32 0.0, %v3026
        %v3028 = vpop.f32.mrb[0].mxu0
        %v3029 = vpop.f32.mrb[0].mxu0
        %v3030 = vadd.f32 0.0, %v3029
        %v3031 = vpop.f32.mrb[0].mxu0
        %3032 = vmatprep.mubr.bf16.mxu0 0
        %3033 = vmatmul.mubr.bf16.gmra.mrb[0].mxu0 %v2923
        %v3034 = vpop.f32.mrb[0].mxu0
        %v3035 = vadd.f32 0.0, %v3034
        %v3036 = vpop.f32.mrb[0].mxu0
        %v3037 = vpop.f32.mrb[0].mxu0
        %v3038 = vadd.f32 0.0, %v3037
        %v3039 = vpop.f32.mrb[0].mxu0
        %3040 = vmatprep.mubr.bf16.mxu0 0
        %3041 = vmatmul.mubr.bf16.gmra.mrb[0].mxu0 %v2926
        %v3042 = vpop.f32.mrb[0].mxu0
        %v3043 = vadd.f32 0.0, %v3042
        %v3044 = vpop.f32.mrb[0].mxu0
        %v3045 = vpop.f32.mrb[0].mxu0
        %v3046 = vadd.f32 0.0, %v3045
        %v3047 = vpop.f32.mrb[0].mxu0
        %3048 = vmatprep.mubr.bf16.mxu0 0
        %3049 = vmatmul.mubr.bf16.gmra.mrb[0].mxu0 %v2929
        %v3050 = vpop.f32.mrb[0].mxu0
        %v3051 = vadd.f32 0.0, %v3050
        %v3052 = vpop.f32.mrb[0].mxu0
        %v3053 = vpop.f32.mrb[0].mxu0
        %v3054 = vadd.f32 0.0, %v3053
        %v3055 = vpop.f32.mrb[0].mxu0
        %3056 = vmatprep.mubr.bf16.mxu0 0
        %3057 = vmatmul.mubr.bf16.gmra.mrb[0].mxu0 %v2932
        %v3058 = vpop.f32.mrb[0].mxu0
        %v3059 = vadd.f32 0.0, %v3058
        %v3060 = vpop.f32.mrb[0].mxu0
        %v3061 = vpop.f32.mrb[0].mxu0
        %v3062 = vadd.f32 0.0, %v3061
        %v3063 = vpop.f32.mrb[0].mxu0
        %3064 = vmatprep.mubr.bf16.mxu0 0
        %3065 = vmatmul.mubr.bf16.gmra.mrb[0].mxu0 %v2935
        %v3066 = vpop.f32.mrb[0].mxu0
        %v3067 = vadd.f32 0.0, %v3066
        %v3068 = vpop.f32.mrb[0].mxu0
        %v3069 = vpop.f32.mrb[0].mxu0
        %v3070 = vadd.f32 0.0, %v3069
        %v3071 = vpop.f32.mrb[0].mxu0
        %3072 = vmatprep.mubr.bf16.mxu0 0
        %3073 = vmatmul.mubr.bf16.gmra.mrb[0].mxu0 %v2938
        %v3074 = vpop.f32.mrb[0].mxu0
        %v3075 = vadd.f32 0.0, %v3074
        %v3076 = vpop.f32.mrb[0].mxu0
        %v3077 = vpop.f32.mrb[0].mxu0
        %v3078 = vadd.f32 0.0, %v3077
        %v3079 = vpop.f32.mrb[0].mxu0
        %3080 = vmatprep.mubr.bf16.mxu0 0
        %3081 = vmatmul.mubr.bf16.gmra.mrb[0].mxu0 %v2941
        %v3082 = vpop.f32.mrb[0].mxu0
        %v3083 = vadd.f32 0.0, %v3082
        %v3084 = vpop.f32.mrb[0].mxu0
        %v3085 = vpop.f32.mrb[0].mxu0
        %v3086 = vadd.f32 0.0, %v3085
        %v3087 = vpop.f32.mrb[0].mxu0
        %3088 = vmatprep.mubr.bf16.mxu0 0
        %3089 = vmatmul.mubr.bf16.gmra.mrb[0].mxu0 %v2944
        %v3090 = vpop.f32.mrb[0].mxu0
        %v3091 = vadd.f32 0.0, %v3090
        %v3092 = vpop.f32.mrb[0].mxu0
        %v3093 = vpop.f32.mrb[0].mxu0
        %v3094 = vadd.f32 0.0, %v3093
        %v3095 = vpop.f32.mrb[0].mxu0
        %3096 = vmatprep.mubr.bf16.mxu0 0
        %3097 = vmatmul.mubr.bf16.gmra.mrb[0].mxu0 %v2947
        %v3098 = vpop.f32.mrb[0].mxu0
        %v3099 = vadd.f32 0.0, %v3098
        %v3100 = vpop.f32.mrb[0].mxu0
        %v3101 = vpop.f32.mrb[0].mxu0
        %v3102 = vadd.f32 0.0, %v3101
        %v3103 = vpop.f32.mrb[0].mxu0
        %3104 = vmatprep.mubr.bf16.mxu0 0
        %3105 = vmatmul.mubr.bf16.gmra.mrb[0].mxu0 %v2950
        %v3106 = vpop.f32.mrb[0].mxu0
        %v3107 = vadd.f32 0.0, %v3106
        %v3108 = vpop.f32.mrb[0].mxu0
        %v3109 = vpop.f32.mrb[0].mxu0
        %v3110 = vadd.f32 0.0, %v3109
        %v3111 = vpop.f32.mrb[0].mxu0
        %3112 = vdwg.mxu0
        %v3113 = vld [vmem:[%s11] sm:$0x1]
        %v3115 = vlaneseq
        %v3116 = vshrl.u32 %v3115, 7
        %v3117 = vsub.s32 0, %v3116
        %v3118 = vrot.slane %v3113, %v3117
        %v3120 = vmul.f32 %v2987, %v3118
        %v3121 = vmul.f32 %v2990, %v3118
        %v3122 = vmul.f32 %v2995, %v3118
        %v3123 = vmul.f32 %v2998, %v3118
        %v3124 = vmul.f32 %v3003, %v3118
        %v3125 = vmul.f32 %v3006, %v3118
        %v3126 = vmul.f32 %v3011, %v3118
        %v3127 = vmul.f32 %v3014, %v3118
        %v3128 = vmul.f32 %v3019, %v3118
        %v3129 = vmul.f32 %v3022, %v3118
        %v3130 = vmul.f32 %v3027, %v3118
        %v3131 = vmul.f32 %v3030, %v3118
        %v3132 = vmul.f32 %v3035, %v3118
        %v3133 = vmul.f32 %v3038, %v3118
        %v3134 = vmul.f32 %v3043, %v3118
        %v3135 = vmul.f32 %v3046, %v3118
        %v3136 = vmul.f32 %v3051, %v3118
        %v3137 = vmul.f32 %v3054, %v3118
        %v3138 = vmul.f32 %v3059, %v3118
        %v3139 = vmul.f32 %v3062, %v3118
        %v3140 = vmul.f32 %v3067, %v3118
        %v3141 = vmul.f32 %v3070, %v3118
        %v3142 = vmul.f32 %v3075, %v3118
        %v3143 = vmul.f32 %v3078, %v3118
        %v3144 = vmul.f32 %v3083, %v3118
        %v3145 = vmul.f32 %v3086, %v3118
        %v3146 = vmul.f32 %v3091, %v3118
        %v3147 = vmul.f32 %v3094, %v3118
        %v3148 = vmul.f32 %v3099, %v3118
        %v3149 = vmul.f32 %v3102, %v3118
        %v3150 = vmul.f32 %v3107, %v3118
        %v3151 = vmul.f32 %v3110, %v3118
        %v3152 = vld [vmem:[%s13] sm:$0x1]
        %v3154 = vlaneseq
        %v3155 = vshrl.u32 %v3154, 7
        %v3156 = vsub.s32 0, %v3155
        %v3157 = vrot.slane %v3152, %v3156
        %v3159 = vadd.f32 %v3120, %v3157
        %v3160 = vadd.f32 %v3121, %v3157
        %v3161 = vadd.f32 %v3122, %v3157
        %v3162 = vadd.f32 %v3123, %v3157
        %v3163 = vadd.f32 %v3124, %v3157
        %v3164 = vadd.f32 %v3125, %v3157
        %v3165 = vadd.f32 %v3126, %v3157
        %v3166 = vadd.f32 %v3127, %v3157
        %v3167 = vadd.f32 %v3128, %v3157
        %v3168 = vadd.f32 %v3129, %v3157
        %v3169 = vadd.f32 %v3130, %v3157
        %v3170 = vadd.f32 %v3131, %v3157
        %v3171 = vadd.f32 %v3132, %v3157
        %v3172 = vadd.f32 %v3133, %v3157
        %v3173 = vadd.f32 %v3134, %v3157
        %v3174 = vadd.f32 %v3135, %v3157
        %v3175 = vadd.f32 %v3136, %v3157
        %v3176 = vadd.f32 %v3137, %v3157
        %v3177 = vadd.f32 %v3138, %v3157
        %v3178 = vadd.f32 %v3139, %v3157
        %v3179 = vadd.f32 %v3140, %v3157
        %v3180 = vadd.f32 %v3141, %v3157
        %v3181 = vadd.f32 %v3142, %v3157
        %v3182 = vadd.f32 %v3143, %v3157
        %v3183 = vadd.f32 %v3144, %v3157
        %v3184 = vadd.f32 %v3145, %v3157
        %v3185 = vadd.f32 %v3146, %v3157
        %v3186 = vadd.f32 %v3147, %v3157
        %v3187 = vadd.f32 %v3148, %v3157
        %v3188 = vadd.f32 %v3149, %v3157
        %v3189 = vadd.f32 %v3150, %v3157
        %v3190 = vadd.f32 %v3151, %v3157
        %v3191 = vmax.f32 %v3159, 0.0
        %v3192 = vmax.f32 %v3160, 0.0
        %v3193 = vmax.f32 %v3161, 0.0
        %v3194 = vmax.f32 %v3162, 0.0
        %v3195 = vmax.f32 %v3163, 0.0
        %v3196 = vmax.f32 %v3164, 0.0
        %v3197 = vmax.f32 %v3165, 0.0
        %v3198 = vmax.f32 %v3166, 0.0
        %v3199 = vmax.f32 %v3167, 0.0
        %v3200 = vmax.f32 %v3168, 0.0
        %v3201 = vmax.f32 %v3169, 0.0
        %v3202 = vmax.f32 %v3170, 0.0
        %v3203 = vmax.f32 %v3171, 0.0
        %v3204 = vmax.f32 %v3172, 0.0
        %v3205 = vmax.f32 %v3173, 0.0
        %v3206 = vmax.f32 %v3174, 0.0
        %v3207 = vmax.f32 %v3175, 0.0
        %v3208 = vmax.f32 %v3176, 0.0
        %v3209 = vmax.f32 %v3177, 0.0
        %v3210 = vmax.f32 %v3178, 0.0
        %v3211 = vmax.f32 %v3179, 0.0
        %v3212 = vmax.f32 %v3180, 0.0
        %v3213 = vmax.f32 %v3181, 0.0
        %v3214 = vmax.f32 %v3182, 0.0
        %v3215 = vmax.f32 %v3183, 0.0
        %v3216 = vmax.f32 %v3184, 0.0
        %v3217 = vmax.f32 %v3185, 0.0
        %v3218 = vmax.f32 %v3186, 0.0
        %v3219 = vmax.f32 %v3187, 0.0
        %v3220 = vmax.f32 %v3188, 0.0
        %v3221 = vmax.f32 %v3189, 0.0
        %v3222 = vmax.f32 %v3190, 0.0
        %3223 = vst.msk [vmem:[%s1146 + $0x8] sm:$0xff] %vm1041, %v3191
        %3224 = vst.msk [vmem:[%s1146 + $0x10] sm:$0xff] %vm1041, %v3192
        %3225 = vst.msk [vmem:[%s1146 + $0x28] sm:$0xff] %vm1041, %v3193
        %3226 = vst.msk [vmem:[%s1146 + $0x30] sm:$0xff] %vm1041, %v3194
        %3227 = vst.msk [vmem:[%s1146 + $0x48] sm:$0xff] %vm1041, %v3195
        %3228 = vst.msk [vmem:[%s1146 + $0x50] sm:$0xff] %vm1041, %v3196
        %3229 = vst.msk [vmem:[%s1146 + $0x68] sm:$0xff] %vm1041, %v3197
        %3230 = vst.msk [vmem:[%s1146 + $0x70] sm:$0xff] %vm1041, %v3198
        %3231 = vst.msk [vmem:[%s1146 + $0x88] sm:$0xff] %vm1041, %v3199
        %3232 = vst.msk [vmem:[%s1146 + $0x90] sm:$0xff] %vm1041, %v3200
        %3233 = vst.msk [vmem:[%s1146 + $0xa8] sm:$0xff] %vm1041, %v3201
        %3234 = vst.msk [vmem:[%s1146 + $0xb0] sm:$0xff] %vm1041, %v3202
        %3235 = vst.msk [vmem:[%s1146 + $0xc8] sm:$0xff] %vm1041, %v3203
        %3236 = vst.msk [vmem:[%s1146 + $0xd0] sm:$0xff] %vm1041, %v3204
        %3237 = vst.msk [vmem:[%s1146 + $0xe8] sm:$0xff] %vm1041, %v3205
        %3238 = vst.msk [vmem:[%s1146 + $0xf0] sm:$0xff] %vm1041, %v3206
        %3239 = vst.msk [vmem:[%s1146 + $0x108] sm:$0xff] %vm1041, %v3207
        %3240 = vst.msk [vmem:[%s1146 + $0x110] sm:$0xff] %vm1041, %v3208
        %3241 = vst.msk [vmem:[%s1146 + $0x128] sm:$0xff] %vm1041, %v3209
        %3242 = vst.msk [vmem:[%s1146 + $0x130] sm:$0xff] %vm1041, %v3210
        %3243 = vst.msk [vmem:[%s1146 + $0x148] sm:$0xff] %vm1041, %v3211
        %3244 = vst.msk [vmem:[%s1146 + $0x150] sm:$0xff] %vm1041, %v3212
        %3245 = vst.msk [vmem:[%s1146 + $0x168] sm:$0xff] %vm1041, %v3213
        %3246 = vst.msk [vmem:[%s1146 + $0x170] sm:$0xff] %vm1041, %v3214
        %3247 = vst.msk [vmem:[%s1146 + $0x188] sm:$0xff] %vm1041, %v3215
        %3248 = vst.msk [vmem:[%s1146 + $0x190] sm:$0xff] %vm1041, %v3216
        %3249 = vst.msk [vmem:[%s1146 + $0x1a8] sm:$0xff] %vm1041, %v3217
        %3250 = vst.msk [vmem:[%s1146 + $0x1b0] sm:$0xff] %vm1041, %v3218
        %3251 = vst.msk [vmem:[%s1146 + $0x1c8] sm:$0xff] %vm1041, %v3219
        %3252 = vst.msk [vmem:[%s1146 + $0x1d0] sm:$0xff] %vm1041, %v3220
        %3253 = vst.msk [vmem:[%s1146 + $0x1e8] sm:$0xff] %vm1041, %v3221
        %3254 = vst.msk [vmem:[%s1146 + $0x1f0] sm:$0xff] %vm1041, %v3222
        %v3255 = vld [vmem:[#allocation3 + $0x7] sm:$0xff]
        %v3256 = vld [vmem:[#allocation3 + $0xf] sm:$0xff]
        %v3257 = vld [vmem:[#allocation3 + $0x27] sm:$0xff]
        %v3258 = vld [vmem:[#allocation3 + $0x2f] sm:$0xff]
        %v3259 = vld [vmem:[#allocation3 + $0x47] sm:$0xff]
        %v3260 = vld [vmem:[#allocation3 + $0x4f] sm:$0xff]
        %v3261 = vld [vmem:[#allocation3 + $0x67] sm:$0xff]
        %v3262 = vld [vmem:[#allocation3 + $0x6f] sm:$0xff]
        %v3263 = vld [vmem:[#allocation3 + $0x87] sm:$0xff]
        %v3264 = vld [vmem:[#allocation3 + $0x8f] sm:$0xff]
        %v3265 = vld [vmem:[#allocation3 + $0xa7] sm:$0xff]
        %v3266 = vld [vmem:[#allocation3 + $0xaf] sm:$0xff]
        %v3267 = vld [vmem:[#allocation3 + $0xc7] sm:$0xff]
        %v3268 = vld [vmem:[#allocation3 + $0xcf] sm:$0xff]
        %v3269 = vld [vmem:[#allocation3 + $0xe7] sm:$0xff]
        %v3270 = vld [vmem:[#allocation3 + $0xef] sm:$0xff]
        %v3271 = vld [vmem:[#allocation3 + $0x107] sm:$0xff]
        %v3272 = vld [vmem:[#allocation3 + $0x10f] sm:$0xff]
        %v3273 = vld [vmem:[#allocation3 + $0x127] sm:$0xff]
        %v3274 = vld [vmem:[#allocation3 + $0x12f] sm:$0xff]
        %v3275 = vld [vmem:[#allocation3 + $0x147] sm:$0xff]
        %v3276 = vld [vmem:[#allocation3 + $0x14f] sm:$0xff]
        %v3277 = vld [vmem:[#allocation3 + $0x167] sm:$0xff]
        %v3278 = vld [vmem:[#allocation3 + $0x16f] sm:$0xff]
        %v3279 = vld [vmem:[#allocation3 + $0x187] sm:$0xff]
        %v3280 = vld [vmem:[#allocation3 + $0x18f] sm:$0xff]
        %v3281 = vld [vmem:[#allocation3 + $0x1a7] sm:$0xff]
        %v3282 = vld [vmem:[#allocation3 + $0x1af] sm:$0xff]
        %v3283 = vld [vmem:[#allocation3 + $0x1c7] sm:$0xff]
        %v3284 = vld [vmem:[#allocation3 + $0x1cf] sm:$0xff]
        %v3285 = vld [vmem:[#allocation3 + $0x1e7] sm:$0xff]
        %v3286 = vld [vmem:[#allocation3 + $0x1ef] sm:$0xff]
        %v3287 = vpack.c.bf16 %v3256, %v3255
        %v3288 = vpack.c.bf16 %v3258, %v3257
        %v3289 = vpack.c.bf16 %v3260, %v3259
        %v3290 = vpack.c.bf16 %v3262, %v3261
        %v3291 = vpack.c.bf16 %v3264, %v3263
        %v3292 = vpack.c.bf16 %v3266, %v3265
        %v3293 = vpack.c.bf16 %v3268, %v3267
        %v3294 = vpack.c.bf16 %v3270, %v3269
        %v3295 = vpack.c.bf16 %v3272, %v3271
        %v3296 = vpack.c.bf16 %v3274, %v3273
        %v3297 = vpack.c.bf16 %v3276, %v3275
        %v3298 = vpack.c.bf16 %v3278, %v3277
        %v3299 = vpack.c.bf16 %v3280, %v3279
        %v3300 = vpack.c.bf16 %v3282, %v3281
        %v3301 = vpack.c.bf16 %v3284, %v3283
        %v3302 = vpack.c.bf16 %v3286, %v3285
        %3303 = vst.msk [vmem:[#allocation4] sm:$0xff] %vm1041, %v3287
        %3304 = vst.msk [vmem:[#allocation4 + $0x18] sm:$0xff] %vm1041, %v3288
        %3305 = vst.msk [vmem:[#allocation4 + $0x30] sm:$0xff] %vm1041, %v3289
        %3306 = vst.msk [vmem:[#allocation4 + $0x48] sm:$0xff] %vm1041, %v3290
        %3307 = vst.msk [vmem:[#allocation4 + $0x60] sm:$0xff] %vm1041, %v3291
        %3308 = vst.msk [vmem:[#allocation4 + $0x78] sm:$0xff] %vm1041, %v3292
        %3309 = vst.msk [vmem:[#allocation4 + $0x90] sm:$0xff] %vm1041, %v3293
        %3310 = vst.msk [vmem:[#allocation4 + $0xa8] sm:$0xff] %vm1041, %v3294
        %3311 = vst.msk [vmem:[#allocation4 + $0xc0] sm:$0xff] %vm1041, %v3295
        %3312 = vst.msk [vmem:[#allocation4 + $0xd8] sm:$0xff] %vm1041, %v3296
        %3313 = vst.msk [vmem:[#allocation4 + $0xf0] sm:$0xff] %vm1041, %v3297
        %3314 = vst.msk [vmem:[#allocation4 + $0x108] sm:$0xff] %vm1041, %v3298
        %3315 = vst.msk [vmem:[#allocation4 + $0x120] sm:$0xff] %vm1041, %v3299
        %3316 = vst.msk [vmem:[#allocation4 + $0x138] sm:$0xff] %vm1041, %v3300
        %3317 = vst.msk [vmem:[#allocation4 + $0x150] sm:$0xff] %vm1041, %v3301
        %3318 = vst.msk [vmem:[#allocation4 + $0x168] sm:$0xff] %vm1041, %v3302
        %v3319 = vld [vmem:[#allocation3 + $0x8] sm:$0xff]
        %v3320 = vld [vmem:[#allocation3 + $0x10] sm:$0xff]
        %v3321 = vld [vmem:[#allocation3 + $0x28] sm:$0xff]
        %v3322 = vld [vmem:[#allocation3 + $0x30] sm:$0xff]
        %v3323 = vld [vmem:[#allocation3 + $0x48] sm:$0xff]
        %v3324 = vld [vmem:[#allocation3 + $0x50] sm:$0xff]
        %v3325 = vld [vmem:[#allocation3 + $0x68] sm:$0xff]
        %v3326 = vld [vmem:[#allocation3 + $0x70] sm:$0xff]
        %v3327 = vld [vmem:[#allocation3 + $0x88] sm:$0xff]
        %v3328 = vld [vmem:[#allocation3 + $0x90] sm:$0xff]
        %v3329 = vld [vmem:[#allocation3 + $0xa8] sm:$0xff]
        %v3330 = vld [vmem:[#allocation3 + $0xb0] sm:$0xff]
        %v3331 = vld [vmem:[#allocation3 + $0xc8] sm:$0xff]
        %v3332 = vld [vmem:[#allocation3 + $0xd0] sm:$0xff]
        %v3333 = vld [vmem:[#allocation3 + $0xe8] sm:$0xff]
        %v3334 = vld [vmem:[#allocation3 + $0xf0] sm:$0xff]
        %v3335 = vld [vmem:[#allocation3 + $0x108] sm:$0xff]
        %v3336 = vld [vmem:[#allocation3 + $0x110] sm:$0xff]
        %v3337 = vld [vmem:[#allocation3 + $0x128] sm:$0xff]
        %v3338 = vld [vmem:[#allocation3 + $0x130] sm:$0xff]
        %v3339 = vld [vmem:[#allocation3 + $0x148] sm:$0xff]
        %v3340 = vld [vmem:[#allocation3 + $0x150] sm:$0xff]
        %v3341 = vld [vmem:[#allocation3 + $0x168] sm:$0xff]
        %v3342 = vld [vmem:[#allocation3 + $0x170] sm:$0xff]
        %v3343 = vld [vmem:[#allocation3 + $0x188] sm:$0xff]
        %v3344 = vld [vmem:[#allocation3 + $0x190] sm:$0xff]
        %v3345 = vld [vmem:[#allocation3 + $0x1a8] sm:$0xff]
        %v3346 = vld [vmem:[#allocation3 + $0x1b0] sm:$0xff]
        %v3347 = vld [vmem:[#allocation3 + $0x1c8] sm:$0xff]
        %v3348 = vld [vmem:[#allocation3 + $0x1d0] sm:$0xff]
        %v3349 = vld [vmem:[#allocation3 + $0x1e8] sm:$0xff]
        %v3350 = vld [vmem:[#allocation3 + $0x1f0] sm:$0xff]
        %v3351 = vpack.c.bf16 %v3320, %v3319
        %v3352 = vpack.c.bf16 %v3322, %v3321
        %v3353 = vpack.c.bf16 %v3324, %v3323
        %v3354 = vpack.c.bf16 %v3326, %v3325
        %v3355 = vpack.c.bf16 %v3328, %v3327
        %v3356 = vpack.c.bf16 %v3330, %v3329
        %v3357 = vpack.c.bf16 %v3332, %v3331
        %v3358 = vpack.c.bf16 %v3334, %v3333
        %v3359 = vpack.c.bf16 %v3336, %v3335
        %v3360 = vpack.c.bf16 %v3338, %v3337
        %v3361 = vpack.c.bf16 %v3340, %v3339
        %v3362 = vpack.c.bf16 %v3342, %v3341
        %v3363 = vpack.c.bf16 %v3344, %v3343
        %v3364 = vpack.c.bf16 %v3346, %v3345
        %v3365 = vpack.c.bf16 %v3348, %v3347
        %v3366 = vpack.c.bf16 %v3350, %v3349
        %3383 = vrot.lane.b32.xlu0 %v3351, 32
        %v3384 = vpop.permute.xlu0 %3383
        %3385 = vrot.lane.b32.xlu0 %v3352, 32
        %v3386 = vpop.permute.xlu0 %3385
        %3387 = vrot.lane.b32.xlu0 %v3353, 32
        %v3388 = vpop.permute.xlu0 %3387
        %3389 = vrot.lane.b32.xlu0 %v3354, 32
        %v3390 = vpop.permute.xlu0 %3389
        %3391 = vrot.lane.b32.xlu0 %v3355, 32
        %v3392 = vpop.permute.xlu0 %3391
        %3393 = vrot.lane.b32.xlu0 %v3356, 32
        %v3394 = vpop.permute.xlu0 %3393
        %3395 = vrot.lane.b32.xlu0 %v3357, 32
        %v3396 = vpop.permute.xlu0 %3395
        %3397 = vrot.lane.b32.xlu0 %v3358, 32
        %v3398 = vpop.permute.xlu0 %3397
        %3399 = vrot.lane.b32.xlu0 %v3359, 32
        %v3400 = vpop.permute.xlu0 %3399
        %3401 = vrot.lane.b32.xlu0 %v3360, 32
        %v3402 = vpop.permute.xlu0 %3401
        %3403 = vrot.lane.b32.xlu0 %v3361, 32
        %v3404 = vpop.permute.xlu0 %3403
        %3405 = vrot.lane.b32.xlu0 %v3362, 32
        %v3406 = vpop.permute.xlu0 %3405
        %3407 = vrot.lane.b32.xlu0 %v3363, 32
        %v3408 = vpop.permute.xlu0 %3407
        %3409 = vrot.lane.b32.xlu0 %v3364, 32
        %v3410 = vpop.permute.xlu0 %3409
        %3411 = vrot.lane.b32.xlu0 %v3365, 32
        %v3412 = vpop.permute.xlu0 %3411
        %3413 = vrot.lane.b32.xlu0 %v3366, 32
        %v3414 = vpop.permute.xlu0 %3413
        %3431 = vst.msk [vmem:[#allocation4] sm:$0xff] %vm1355, %v3384
        %3432 = vst.msk [vmem:[#allocation4 + $0x18] sm:$0xff] %vm1355, %v3386
        %3433 = vst.msk [vmem:[#allocation4 + $0x30] sm:$0xff] %vm1355, %v3388
        %3434 = vst.msk [vmem:[#allocation4 + $0x48] sm:$0xff] %vm1355, %v3390
        %3435 = vst.msk [vmem:[#allocation4 + $0x60] sm:$0xff] %vm1355, %v3392
        %3436 = vst.msk [vmem:[#allocation4 + $0x78] sm:$0xff] %vm1355, %v3394
        %3437 = vst.msk [vmem:[#allocation4 + $0x90] sm:$0xff] %vm1355, %v3396
        %3438 = vst.msk [vmem:[#allocation4 + $0xa8] sm:$0xff] %vm1355, %v3398
        %3439 = vst.msk [vmem:[#allocation4 + $0xc0] sm:$0xff] %vm1355, %v3400
        %3440 = vst.msk [vmem:[#allocation4 + $0xd8] sm:$0xff] %vm1355, %v3402
        %3441 = vst.msk [vmem:[#allocation4 + $0xf0] sm:$0xff] %vm1355, %v3404
        %3442 = vst.msk [vmem:[#allocation4 + $0x108] sm:$0xff] %vm1355, %v3406
        %3443 = vst.msk [vmem:[#allocation4 + $0x120] sm:$0xff] %vm1355, %v3408
        %3444 = vst.msk [vmem:[#allocation4 + $0x138] sm:$0xff] %vm1355, %v3410
        %3445 = vst.msk [vmem:[#allocation4 + $0x150] sm:$0xff] %vm1355, %v3412
        %3446 = vst.msk [vmem:[#allocation4 + $0x168] sm:$0xff] %vm1355, %v3414
        %v3447 = vld [vmem:[#allocation3 + $0x9] sm:$0xff]
        %v3448 = vld [vmem:[#allocation3 + $0x11] sm:$0xff]
        %v3449 = vld [vmem:[#allocation3 + $0x29] sm:$0xff]
        %v3450 = vld [vmem:[#allocation3 + $0x31] sm:$0xff]
        %v3451 = vld [vmem:[#allocation3 + $0x49] sm:$0xff]
        %v3452 = vld [vmem:[#allocation3 + $0x51] sm:$0xff]
        %v3453 = vld [vmem:[#allocation3 + $0x69] sm:$0xff]
        %v3454 = vld [vmem:[#allocation3 + $0x71] sm:$0xff]
        %v3455 = vld [vmem:[#allocation3 + $0x89] sm:$0xff]
        %v3456 = vld [vmem:[#allocation3 + $0x91] sm:$0xff]
        %v3457 = vld [vmem:[#allocation3 + $0xa9] sm:$0xff]
        %v3458 = vld [vmem:[#allocation3 + $0xb1] sm:$0xff]
        %v3459 = vld [vmem:[#allocation3 + $0xc9] sm:$0xff]
        %v3460 = vld [vmem:[#allocation3 + $0xd1] sm:$0xff]
        %v3461 = vld [vmem:[#allocation3 + $0xe9] sm:$0xff]
        %v3462 = vld [vmem:[#allocation3 + $0xf1] sm:$0xff]
        %v3463 = vld [vmem:[#allocation3 + $0x109] sm:$0xff]
        %v3464 = vld [vmem:[#allocation3 + $0x111] sm:$0xff]
        %v3465 = vld [vmem:[#allocation3 + $0x129] sm:$0xff]
        %v3466 = vld [vmem:[#allocation3 + $0x131] sm:$0xff]
        %v3467 = vld [vmem:[#allocation3 + $0x149] sm:$0xff]
        %v3468 = vld [vmem:[#allocation3 + $0x151] sm:$0xff]
        %v3469 = vld [vmem:[#allocation3 + $0x169] sm:$0xff]
        %v3470 = vld [vmem:[#allocation3 + $0x171] sm:$0xff]
        %v3471 = vld [vmem:[#allocation3 + $0x189] sm:$0xff]
        %v3472 = vld [vmem:[#allocation3 + $0x191] sm:$0xff]
        %v3473 = vld [vmem:[#allocation3 + $0x1a9] sm:$0xff]
        %v3474 = vld [vmem:[#allocation3 + $0x1b1] sm:$0xff]
        %v3475 = vld [vmem:[#allocation3 + $0x1c9] sm:$0xff]
        %v3476 = vld [vmem:[#allocation3 + $0x1d1] sm:$0xff]
        %v3477 = vld [vmem:[#allocation3 + $0x1e9] sm:$0xff]
        %v3478 = vld [vmem:[#allocation3 + $0x1f1] sm:$0xff]
        %v3479 = vpack.c.bf16 %v3448, %v3447
        %v3480 = vpack.c.bf16 %v3450, %v3449
        %v3481 = vpack.c.bf16 %v3452, %v3451
        %v3482 = vpack.c.bf16 %v3454, %v3453
        %v3483 = vpack.c.bf16 %v3456, %v3455
        %v3484 = vpack.c.bf16 %v3458, %v3457
        %v3485 = vpack.c.bf16 %v3460, %v3459
        %v3486 = vpack.c.bf16 %v3462, %v3461
        %v3487 = vpack.c.bf16 %v3464, %v3463
        %v3488 = vpack.c.bf16 %v3466, %v3465
        %v3489 = vpack.c.bf16 %v3468, %v3467
        %v3490 = vpack.c.bf16 %v3470, %v3469
        %v3491 = vpack.c.bf16 %v3472, %v3471
        %v3492 = vpack.c.bf16 %v3474, %v3473
        %v3493 = vpack.c.bf16 %v3476, %v3475
        %v3494 = vpack.c.bf16 %v3478, %v3477
        %3511 = vrot.lane.b32.xlu0 %v3479, 64
        %v3512 = vpop.permute.xlu0 %3511
        %3513 = vrot.lane.b32.xlu0 %v3480, 64
        %v3514 = vpop.permute.xlu0 %3513
        %3515 = vrot.lane.b32.xlu0 %v3481, 64
        %v3516 = vpop.permute.xlu0 %3515
        %3517 = vrot.lane.b32.xlu0 %v3482, 64
        %v3518 = vpop.permute.xlu0 %3517
        %3519 = vrot.lane.b32.xlu0 %v3483, 64
        %v3520 = vpop.permute.xlu0 %3519
        %3521 = vrot.lane.b32.xlu0 %v3484, 64
        %v3522 = vpop.permute.xlu0 %3521
        %3523 = vrot.lane.b32.xlu0 %v3485, 64
        %v3524 = vpop.permute.xlu0 %3523
        %3525 = vrot.lane.b32.xlu0 %v3486, 64
        %v3526 = vpop.permute.xlu0 %3525
        %3527 = vrot.lane.b32.xlu0 %v3487, 64
        %v3528 = vpop.permute.xlu0 %3527
        %3529 = vrot.lane.b32.xlu0 %v3488, 64
        %v3530 = vpop.permute.xlu0 %3529
        %3531 = vrot.lane.b32.xlu0 %v3489, 64
        %v3532 = vpop.permute.xlu0 %3531
        %3533 = vrot.lane.b32.xlu0 %v3490, 64
        %v3534 = vpop.permute.xlu0 %3533
        %3535 = vrot.lane.b32.xlu0 %v3491, 64
        %v3536 = vpop.permute.xlu0 %3535
        %3537 = vrot.lane.b32.xlu0 %v3492, 64
        %v3538 = vpop.permute.xlu0 %3537
        %3539 = vrot.lane.b32.xlu0 %v3493, 64
        %v3540 = vpop.permute.xlu0 %3539
        %3541 = vrot.lane.b32.xlu0 %v3494, 64
        %v3542 = vpop.permute.xlu0 %3541
        %3559 = vst.msk [vmem:[#allocation4] sm:$0xff] %vm1484, %v3512
        %3560 = vst.msk [vmem:[#allocation4 + $0x18] sm:$0xff] %vm1484, %v3514
        %3561 = vst.msk [vmem:[#allocation4 + $0x30] sm:$0xff] %vm1484, %v3516
        %3562 = vst.msk [vmem:[#allocation4 + $0x48] sm:$0xff] %vm1484, %v3518
        %3563 = vst.msk [vmem:[#allocation4 + $0x60] sm:$0xff] %vm1484, %v3520
        %3564 = vst.msk [vmem:[#allocation4 + $0x78] sm:$0xff] %vm1484, %v3522
        %3565 = vst.msk [vmem:[#allocation4 + $0x90] sm:$0xff] %vm1484, %v3524
        %3566 = vst.msk [vmem:[#allocation4 + $0xa8] sm:$0xff] %vm1484, %v3526
        %3567 = vst.msk [vmem:[#allocation4 + $0xc0] sm:$0xff] %vm1484, %v3528
        %3568 = vst.msk [vmem:[#allocation4 + $0xd8] sm:$0xff] %vm1484, %v3530
        %3569 = vst.msk [vmem:[#allocation4 + $0xf0] sm:$0xff] %vm1484, %v3532
        %3570 = vst.msk [vmem:[#allocation4 + $0x108] sm:$0xff] %vm1484, %v3534
        %3571 = vst.msk [vmem:[#allocation4 + $0x120] sm:$0xff] %vm1484, %v3536
        %3572 = vst.msk [vmem:[#allocation4 + $0x138] sm:$0xff] %vm1484, %v3538
        %3573 = vst.msk [vmem:[#allocation4 + $0x150] sm:$0xff] %vm1484, %v3540
        %3574 = vst.msk [vmem:[#allocation4 + $0x168] sm:$0xff] %vm1484, %v3542
        %v3575 = vld [vmem:[%s1146 + $0x7] sm:$0xff]
        %v3576 = vld [vmem:[%s1146 + $0xf] sm:$0xff]
        %v3577 = vld [vmem:[%s1146 + $0x27] sm:$0xff]
        %v3578 = vld [vmem:[%s1146 + $0x2f] sm:$0xff]
        %v3579 = vld [vmem:[%s1146 + $0x47] sm:$0xff]
        %v3580 = vld [vmem:[%s1146 + $0x4f] sm:$0xff]
        %v3581 = vld [vmem:[%s1146 + $0x67] sm:$0xff]
        %v3582 = vld [vmem:[%s1146 + $0x6f] sm:$0xff]
        %v3583 = vld [vmem:[%s1146 + $0x87] sm:$0xff]
        %v3584 = vld [vmem:[%s1146 + $0x8f] sm:$0xff]
        %v3585 = vld [vmem:[%s1146 + $0xa7] sm:$0xff]
        %v3586 = vld [vmem:[%s1146 + $0xaf] sm:$0xff]
        %v3587 = vld [vmem:[%s1146 + $0xc7] sm:$0xff]
        %v3588 = vld [vmem:[%s1146 + $0xcf] sm:$0xff]
        %v3589 = vld [vmem:[%s1146 + $0xe7] sm:$0xff]
        %v3590 = vld [vmem:[%s1146 + $0xef] sm:$0xff]
        %v3591 = vld [vmem:[%s1146 + $0x107] sm:$0xff]
        %v3592 = vld [vmem:[%s1146 + $0x10f] sm:$0xff]
        %v3593 = vld [vmem:[%s1146 + $0x127] sm:$0xff]
        %v3594 = vld [vmem:[%s1146 + $0x12f] sm:$0xff]
        %v3595 = vld [vmem:[%s1146 + $0x147] sm:$0xff]
        %v3596 = vld [vmem:[%s1146 + $0x14f] sm:$0xff]
        %v3597 = vld [vmem:[%s1146 + $0x167] sm:$0xff]
        %v3598 = vld [vmem:[%s1146 + $0x16f] sm:$0xff]
        %v3599 = vld [vmem:[%s1146 + $0x187] sm:$0xff]
        %v3600 = vld [vmem:[%s1146 + $0x18f] sm:$0xff]
        %v3601 = vld [vmem:[%s1146 + $0x1a7] sm:$0xff]
        %v3602 = vld [vmem:[%s1146 + $0x1af] sm:$0xff]
        %v3603 = vld [vmem:[%s1146 + $0x1c7] sm:$0xff]
        %v3604 = vld [vmem:[%s1146 + $0x1cf] sm:$0xff]
        %v3605 = vld [vmem:[%s1146 + $0x1e7] sm:$0xff]
        %v3606 = vld [vmem:[%s1146 + $0x1ef] sm:$0xff]
        %v3607 = vpack.c.bf16 %v3576, %v3575
        %v3608 = vpack.c.bf16 %v3578, %v3577
        %v3609 = vpack.c.bf16 %v3580, %v3579
        %v3610 = vpack.c.bf16 %v3582, %v3581
        %v3611 = vpack.c.bf16 %v3584, %v3583
        %v3612 = vpack.c.bf16 %v3586, %v3585
        %v3613 = vpack.c.bf16 %v3588, %v3587
        %v3614 = vpack.c.bf16 %v3590, %v3589
        %v3615 = vpack.c.bf16 %v3592, %v3591
        %v3616 = vpack.c.bf16 %v3594, %v3593
        %v3617 = vpack.c.bf16 %v3596, %v3595
        %v3618 = vpack.c.bf16 %v3598, %v3597
        %v3619 = vpack.c.bf16 %v3600, %v3599
        %v3620 = vpack.c.bf16 %v3602, %v3601
        %v3621 = vpack.c.bf16 %v3604, %v3603
        %v3622 = vpack.c.bf16 %v3606, %v3605
        %3639 = vrot.lane.b32.xlu0 %v3607, 96
        %v3640 = vpop.permute.xlu0 %3639
        %3641 = vrot.lane.b32.xlu0 %v3608, 96
        %v3642 = vpop.permute.xlu0 %3641
        %3643 = vrot.lane.b32.xlu0 %v3609, 96
        %v3644 = vpop.permute.xlu0 %3643
        %3645 = vrot.lane.b32.xlu0 %v3610, 96
        %v3646 = vpop.permute.xlu0 %3645
        %3647 = vrot.lane.b32.xlu0 %v3611, 96
        %v3648 = vpop.permute.xlu0 %3647
        %3649 = vrot.lane.b32.xlu0 %v3612, 96
        %v3650 = vpop.permute.xlu0 %3649
        %3651 = vrot.lane.b32.xlu0 %v3613, 96
        %v3652 = vpop.permute.xlu0 %3651
        %3653 = vrot.lane.b32.xlu0 %v3614, 96
        %v3654 = vpop.permute.xlu0 %3653
        %3655 = vrot.lane.b32.xlu0 %v3615, 96
        %v3656 = vpop.permute.xlu0 %3655
        %3657 = vrot.lane.b32.xlu0 %v3616, 96
        %v3658 = vpop.permute.xlu0 %3657
        %3659 = vrot.lane.b32.xlu0 %v3617, 96
        %v3660 = vpop.permute.xlu0 %3659
        %3661 = vrot.lane.b32.xlu0 %v3618, 96
        %v3662 = vpop.permute.xlu0 %3661
        %3663 = vrot.lane.b32.xlu0 %v3619, 96
        %v3664 = vpop.permute.xlu0 %3663
        %3665 = vrot.lane.b32.xlu0 %v3620, 96
        %v3666 = vpop.permute.xlu0 %3665
        %3667 = vrot.lane.b32.xlu0 %v3621, 96
        %v3668 = vpop.permute.xlu0 %3667
        %3669 = vrot.lane.b32.xlu0 %v3622, 96
        %v3670 = vpop.permute.xlu0 %3669
        %3687 = vst.msk [vmem:[#allocation4] sm:$0xff] %vm1613, %v3640
        %3688 = vst.msk [vmem:[#allocation4 + $0x18] sm:$0xff] %vm1613, %v3642
        %3689 = vst.msk [vmem:[#allocation4 + $0x30] sm:$0xff] %vm1613, %v3644
        %3690 = vst.msk [vmem:[#allocation4 + $0x48] sm:$0xff] %vm1613, %v3646
        %3691 = vst.msk [vmem:[#allocation4 + $0x60] sm:$0xff] %vm1613, %v3648
        %3692 = vst.msk [vmem:[#allocation4 + $0x78] sm:$0xff] %vm1613, %v3650
        %3693 = vst.msk [vmem:[#allocation4 + $0x90] sm:$0xff] %vm1613, %v3652
        %3694 = vst.msk [vmem:[#allocation4 + $0xa8] sm:$0xff] %vm1613, %v3654
        %3695 = vst.msk [vmem:[#allocation4 + $0xc0] sm:$0xff] %vm1613, %v3656
        %3696 = vst.msk [vmem:[#allocation4 + $0xd8] sm:$0xff] %vm1613, %v3658
        %3697 = vst.msk [vmem:[#allocation4 + $0xf0] sm:$0xff] %vm1613, %v3660
        %3698 = vst.msk [vmem:[#allocation4 + $0x108] sm:$0xff] %vm1613, %v3662
        %3699 = vst.msk [vmem:[#allocation4 + $0x120] sm:$0xff] %vm1613, %v3664
        %3700 = vst.msk [vmem:[#allocation4 + $0x138] sm:$0xff] %vm1613, %v3666
        %3701 = vst.msk [vmem:[#allocation4 + $0x150] sm:$0xff] %vm1613, %v3668
        %3702 = vst.msk [vmem:[#allocation4 + $0x168] sm:$0xff] %vm1613, %v3670
        %v3703 = vld [vmem:[%s1146 + $0x8] sm:$0xff]
        %v3704 = vld [vmem:[%s1146 + $0x10] sm:$0xff]
        %v3705 = vld [vmem:[%s1146 + $0x28] sm:$0xff]
        %v3706 = vld [vmem:[%s1146 + $0x30] sm:$0xff]
        %v3707 = vld [vmem:[%s1146 + $0x48] sm:$0xff]
        %v3708 = vld [vmem:[%s1146 + $0x50] sm:$0xff]
        %v3709 = vld [vmem:[%s1146 + $0x68] sm:$0xff]
        %v3710 = vld [vmem:[%s1146 + $0x70] sm:$0xff]
        %v3711 = vld [vmem:[%s1146 + $0x88] sm:$0xff]
        %v3712 = vld [vmem:[%s1146 + $0x90] sm:$0xff]
        %v3713 = vld [vmem:[%s1146 + $0xa8] sm:$0xff]
        %v3714 = vld [vmem:[%s1146 + $0xb0] sm:$0xff]
        %v3715 = vld [vmem:[%s1146 + $0xc8] sm:$0xff]
        %v3716 = vld [vmem:[%s1146 + $0xd0] sm:$0xff]
        %v3717 = vld [vmem:[%s1146 + $0xe8] sm:$0xff]
        %v3718 = vld [vmem:[%s1146 + $0xf0] sm:$0xff]
        %v3719 = vld [vmem:[%s1146 + $0x108] sm:$0xff]
        %v3720 = vld [vmem:[%s1146 + $0x110] sm:$0xff]
        %v3721 = vld [vmem:[%s1146 + $0x128] sm:$0xff]
        %v3722 = vld [vmem:[%s1146 + $0x130] sm:$0xff]
        %v3723 = vld [vmem:[%s1146 + $0x148] sm:$0xff]
        %v3724 = vld [vmem:[%s1146 + $0x150] sm:$0xff]
        %v3725 = vld [vmem:[%s1146 + $0x168] sm:$0xff]
        %v3726 = vld [vmem:[%s1146 + $0x170] sm:$0xff]
        %v3727 = vld [vmem:[%s1146 + $0x188] sm:$0xff]
        %v3728 = vld [vmem:[%s1146 + $0x190] sm:$0xff]
        %v3729 = vld [vmem:[%s1146 + $0x1a8] sm:$0xff]
        %v3730 = vld [vmem:[%s1146 + $0x1b0] sm:$0xff]
        %v3731 = vld [vmem:[%s1146 + $0x1c8] sm:$0xff]
        %v3732 = vld [vmem:[%s1146 + $0x1d0] sm:$0xff]
        %v3733 = vld [vmem:[%s1146 + $0x1e8] sm:$0xff]
        %v3734 = vld [vmem:[%s1146 + $0x1f0] sm:$0xff]
        %v3735 = vpack.c.bf16 %v3704, %v3703
        %v3736 = vpack.c.bf16 %v3706, %v3705
        %v3737 = vpack.c.bf16 %v3708, %v3707
        %v3738 = vpack.c.bf16 %v3710, %v3709
        %v3739 = vpack.c.bf16 %v3712, %v3711
        %v3740 = vpack.c.bf16 %v3714, %v3713
        %v3741 = vpack.c.bf16 %v3716, %v3715
        %v3742 = vpack.c.bf16 %v3718, %v3717
        %v3743 = vpack.c.bf16 %v3720, %v3719
        %v3744 = vpack.c.bf16 %v3722, %v3721
        %v3745 = vpack.c.bf16 %v3724, %v3723
        %v3746 = vpack.c.bf16 %v3726, %v3725
        %v3747 = vpack.c.bf16 %v3728, %v3727
        %v3748 = vpack.c.bf16 %v3730, %v3729
        %v3749 = vpack.c.bf16 %v3732, %v3731
        %v3750 = vpack.c.bf16 %v3734, %v3733
        %3751 = vst.msk [vmem:[#allocation4 + $0x8] sm:$0xff] %vm1041, %v3735
        %3752 = vst.msk [vmem:[#allocation4 + $0x20] sm:$0xff] %vm1041, %v3736
        %3753 = vst.msk [vmem:[#allocation4 + $0x38] sm:$0xff] %vm1041, %v3737
        %3754 = vst.msk [vmem:[#allocation4 + $0x50] sm:$0xff] %vm1041, %v3738
        %3755 = vst.msk [vmem:[#allocation4 + $0x68] sm:$0xff] %vm1041, %v3739
        %3756 = vst.msk [vmem:[#allocation4 + $0x80] sm:$0xff] %vm1041, %v3740
        %3757 = vst.msk [vmem:[#allocation4 + $0x98] sm:$0xff] %vm1041, %v3741
        %3758 = vst.msk [vmem:[#allocation4 + $0xb0] sm:$0xff] %vm1041, %v3742
        %3759 = vst.msk [vmem:[#allocation4 + $0xc8] sm:$0xff] %vm1041, %v3743
        %3760 = vst.msk [vmem:[#allocation4 + $0xe0] sm:$0xff] %vm1041, %v3744
        %3761 = vst.msk [vmem:[#allocation4 + $0xf8] sm:$0xff] %vm1041, %v3745
        %3762 = vst.msk [vmem:[#allocation4 + $0x110] sm:$0xff] %vm1041, %v3746
        %3763 = vst.msk [vmem:[#allocation4 + $0x128] sm:$0xff] %vm1041, %v3747
        %3764 = vst.msk [vmem:[#allocation4 + $0x140] sm:$0xff] %vm1041, %v3748
        %3765 = vst.msk [vmem:[#allocation4 + $0x158] sm:$0xff] %vm1041, %v3749
        %3766 = vst.msk [vmem:[#allocation4 + $0x170] sm:$0xff] %vm1041, %v3750
        %v3767 = vld [vmem:[%s1146 + $0x9] sm:$0xff]
        %v3768 = vld [vmem:[%s1146 + $0x11] sm:$0xff]
        %v3769 = vld [vmem:[%s1146 + $0x29] sm:$0xff]
        %v3770 = vld [vmem:[%s1146 + $0x31] sm:$0xff]
        %v3771 = vld [vmem:[%s1146 + $0x49] sm:$0xff]
        %v3772 = vld [vmem:[%s1146 + $0x51] sm:$0xff]
        %v3773 = vld [vmem:[%s1146 + $0x69] sm:$0xff]
        %v3774 = vld [vmem:[%s1146 + $0x71] sm:$0xff]
        %v3775 = vld [vmem:[%s1146 + $0x89] sm:$0xff]
        %v3776 = vld [vmem:[%s1146 + $0x91] sm:$0xff]
        %v3777 = vld [vmem:[%s1146 + $0xa9] sm:$0xff]
        %v3778 = vld [vmem:[%s1146 + $0xb1] sm:$0xff]
        %v3779 = vld [vmem:[%s1146 + $0xc9] sm:$0xff]
        %v3780 = vld [vmem:[%s1146 + $0xd1] sm:$0xff]
        %v3781 = vld [vmem:[%s1146 + $0xe9] sm:$0xff]
        %v3782 = vld [vmem:[%s1146 + $0xf1] sm:$0xff]
        %v3783 = vld [vmem:[%s1146 + $0x109] sm:$0xff]
        %v3784 = vld [vmem:[%s1146 + $0x111] sm:$0xff]
        %v3785 = vld [vmem:[%s1146 + $0x129] sm:$0xff]
        %v3786 = vld [vmem:[%s1146 + $0x131] sm:$0xff]
        %v3787 = vld [vmem:[%s1146 + $0x149] sm:$0xff]
        %v3788 = vld [vmem:[%s1146 + $0x151] sm:$0xff]
        %v3789 = vld [vmem:[%s1146 + $0x169] sm:$0xff]
        %v3790 = vld [vmem:[%s1146 + $0x171] sm:$0xff]
        %v3791 = vld [vmem:[%s1146 + $0x189] sm:$0xff]
        %v3792 = vld [vmem:[%s1146 + $0x191] sm:$0xff]
        %v3793 = vld [vmem:[%s1146 + $0x1a9] sm:$0xff]
        %v3794 = vld [vmem:[%s1146 + $0x1b1] sm:$0xff]
        %v3795 = vld [vmem:[%s1146 + $0x1c9] sm:$0xff]
        %v3796 = vld [vmem:[%s1146 + $0x1d1] sm:$0xff]
        %v3797 = vld [vmem:[%s1146 + $0x1e9] sm:$0xff]
        %v3798 = vld [vmem:[%s1146 + $0x1f1] sm:$0xff]
        %v3799 = vpack.c.bf16 %v3768, %v3767
        %v3800 = vpack.c.bf16 %v3770, %v3769
        %v3801 = vpack.c.bf16 %v3772, %v3771
        %v3802 = vpack.c.bf16 %v3774, %v3773
        %v3803 = vpack.c.bf16 %v3776, %v3775
        %v3804 = vpack.c.bf16 %v3778, %v3777
        %v3805 = vpack.c.bf16 %v3780, %v3779
        %v3806 = vpack.c.bf16 %v3782, %v3781
        %v3807 = vpack.c.bf16 %v3784, %v3783
        %v3808 = vpack.c.bf16 %v3786, %v3785
        %v3809 = vpack.c.bf16 %v3788, %v3787
        %v3810 = vpack.c.bf16 %v3790, %v3789
        %v3811 = vpack.c.bf16 %v3792, %v3791
        %v3812 = vpack.c.bf16 %v3794, %v3793
        %v3813 = vpack.c.bf16 %v3796, %v3795
        %v3814 = vpack.c.bf16 %v3798, %v3797
        %3831 = vrot.lane.b32.xlu0 %v3799, 32
        %v3832 = vpop.permute.xlu0 %3831
        %3833 = vrot.lane.b32.xlu0 %v3800, 32
        %v3834 = vpop.permute.xlu0 %3833
        %3835 = vrot.lane.b32.xlu0 %v3801, 32
        %v3836 = vpop.permute.xlu0 %3835
        %3837 = vrot.lane.b32.xlu0 %v3802, 32
        %v3838 = vpop.permute.xlu0 %3837
        %3839 = vrot.lane.b32.xlu0 %v3803, 32
        %v3840 = vpop.permute.xlu0 %3839
        %3841 = vrot.lane.b32.xlu0 %v3804, 32
        %v3842 = vpop.permute.xlu0 %3841
        %3843 = vrot.lane.b32.xlu0 %v3805, 32
        %v3844 = vpop.permute.xlu0 %3843
        %3845 = vrot.lane.b32.xlu0 %v3806, 32
        %v3846 = vpop.permute.xlu0 %3845
        %3847 = vrot.lane.b32.xlu0 %v3807, 32
        %v3848 = vpop.permute.xlu0 %3847
        %3849 = vrot.lane.b32.xlu0 %v3808, 32
        %v3850 = vpop.permute.xlu0 %3849
        %3851 = vrot.lane.b32.xlu0 %v3809, 32
        %v3852 = vpop.permute.xlu0 %3851
        %3853 = vrot.lane.b32.xlu0 %v3810, 32
        %v3854 = vpop.permute.xlu0 %3853
        %3855 = vrot.lane.b32.xlu0 %v3811, 32
        %v3856 = vpop.permute.xlu0 %3855
        %3857 = vrot.lane.b32.xlu0 %v3812, 32
        %v3858 = vpop.permute.xlu0 %3857
        %3859 = vrot.lane.b32.xlu0 %v3813, 32
        %v3860 = vpop.permute.xlu0 %3859
        %3861 = vrot.lane.b32.xlu0 %v3814, 32
        %v3862 = vpop.permute.xlu0 %3861
        %3879 = vst.msk [vmem:[#allocation4 + $0x8] sm:$0xff] %vm1355, %v3832
        %3880 = vst.msk [vmem:[#allocation4 + $0x20] sm:$0xff] %vm1355, %v3834
        %3881 = vst.msk [vmem:[#allocation4 + $0x38] sm:$0xff] %vm1355, %v3836
        %3882 = vst.msk [vmem:[#allocation4 + $0x50] sm:$0xff] %vm1355, %v3838
        %3883 = vst.msk [vmem:[#allocation4 + $0x68] sm:$0xff] %vm1355, %v3840
        %3884 = vst.msk [vmem:[#allocation4 + $0x80] sm:$0xff] %vm1355, %v3842
        %3885 = vst.msk [vmem:[#allocation4 + $0x98] sm:$0xff] %vm1355, %v3844
        %3886 = vst.msk [vmem:[#allocation4 + $0xb0] sm:$0xff] %vm1355, %v3846
        %3887 = vst.msk [vmem:[#allocation4 + $0xc8] sm:$0xff] %vm1355, %v3848
        %3888 = vst.msk [vmem:[#allocation4 + $0xe0] sm:$0xff] %vm1355, %v3850
        %3889 = vst.msk [vmem:[#allocation4 + $0xf8] sm:$0xff] %vm1355, %v3852
        %3890 = vst.msk [vmem:[#allocation4 + $0x110] sm:$0xff] %vm1355, %v3854
        %3891 = vst.msk [vmem:[#allocation4 + $0x128] sm:$0xff] %vm1355, %v3856
        %3892 = vst.msk [vmem:[#allocation4 + $0x140] sm:$0xff] %vm1355, %v3858
        %3893 = vst.msk [vmem:[#allocation4 + $0x158] sm:$0xff] %vm1355, %v3860
        %3894 = vst.msk [vmem:[#allocation4 + $0x170] sm:$0xff] %vm1355, %v3862
        %v3895 = vld [vmem:[%s1822 + $0x7] sm:$0xff]
        %v3896 = vld [vmem:[%s1822 + $0xf] sm:$0xff]
        %v3897 = vld [vmem:[%s1822 + $0x27] sm:$0xff]
        %v3898 = vld [vmem:[%s1822 + $0x2f] sm:$0xff]
        %v3899 = vld [vmem:[%s1822 + $0x47] sm:$0xff]
        %v3900 = vld [vmem:[%s1822 + $0x4f] sm:$0xff]
        %v3901 = vld [vmem:[%s1822 + $0x67] sm:$0xff]
        %v3902 = vld [vmem:[%s1822 + $0x6f] sm:$0xff]
        %v3903 = vld [vmem:[%s1822 + $0x87] sm:$0xff]
        %v3904 = vld [vmem:[%s1822 + $0x8f] sm:$0xff]
        %v3905 = vld [vmem:[%s1822 + $0xa7] sm:$0xff]
        %v3906 = vld [vmem:[%s1822 + $0xaf] sm:$0xff]
        %v3907 = vld [vmem:[%s1822 + $0xc7] sm:$0xff]
        %v3908 = vld [vmem:[%s1822 + $0xcf] sm:$0xff]
        %v3909 = vld [vmem:[%s1822 + $0xe7] sm:$0xff]
        %v3910 = vld [vmem:[%s1822 + $0xef] sm:$0xff]
        %v3911 = vld [vmem:[%s1822 + $0x107] sm:$0xff]
        %v3912 = vld [vmem:[%s1822 + $0x10f] sm:$0xff]
        %v3913 = vld [vmem:[%s1822 + $0x127] sm:$0xff]
        %v3914 = vld [vmem:[%s1822 + $0x12f] sm:$0xff]
        %v3915 = vld [vmem:[%s1822 + $0x147] sm:$0xff]
        %v3916 = vld [vmem:[%s1822 + $0x14f] sm:$0xff]
        %v3917 = vld [vmem:[%s1822 + $0x167] sm:$0xff]
        %v3918 = vld [vmem:[%s1822 + $0x16f] sm:$0xff]
        %v3919 = vld [vmem:[%s1822 + $0x187] sm:$0xff]
        %v3920 = vld [vmem:[%s1822 + $0x18f] sm:$0xff]
        %v3921 = vld [vmem:[%s1822 + $0x1a7] sm:$0xff]
        %v3922 = vld [vmem:[%s1822 + $0x1af] sm:$0xff]
        %v3923 = vld [vmem:[%s1822 + $0x1c7] sm:$0xff]
        %v3924 = vld [vmem:[%s1822 + $0x1cf] sm:$0xff]
        %v3925 = vld [vmem:[%s1822 + $0x1e7] sm:$0xff]
        %v3926 = vld [vmem:[%s1822 + $0x1ef] sm:$0xff]
        %v3927 = vpack.c.bf16 %v3896, %v3895
        %v3928 = vpack.c.bf16 %v3898, %v3897
        %v3929 = vpack.c.bf16 %v3900, %v3899
        %v3930 = vpack.c.bf16 %v3902, %v3901
        %v3931 = vpack.c.bf16 %v3904, %v3903
        %v3932 = vpack.c.bf16 %v3906, %v3905
        %v3933 = vpack.c.bf16 %v3908, %v3907
        %v3934 = vpack.c.bf16 %v3910, %v3909
        %v3935 = vpack.c.bf16 %v3912, %v3911
        %v3936 = vpack.c.bf16 %v3914, %v3913
        %v3937 = vpack.c.bf16 %v3916, %v3915
        %v3938 = vpack.c.bf16 %v3918, %v3917
        %v3939 = vpack.c.bf16 %v3920, %v3919
        %v3940 = vpack.c.bf16 %v3922, %v3921
        %v3941 = vpack.c.bf16 %v3924, %v3923
        %v3942 = vpack.c.bf16 %v3926, %v3925
        %3959 = vrot.lane.b32.xlu0 %v3927, 64
        %v3960 = vpop.permute.xlu0 %3959
        %3961 = vrot.lane.b32.xlu0 %v3928, 64
        %v3962 = vpop.permute.xlu0 %3961
        %3963 = vrot.lane.b32.xlu0 %v3929, 64
        %v3964 = vpop.permute.xlu0 %3963
        %3965 = vrot.lane.b32.xlu0 %v3930, 64
        %v3966 = vpop.permute.xlu0 %3965
        %3967 = vrot.lane.b32.xlu0 %v3931, 64
        %v3968 = vpop.permute.xlu0 %3967
        %3969 = vrot.lane.b32.xlu0 %v3932, 64
        %v3970 = vpop.permute.xlu0 %3969
        %3971 = vrot.lane.b32.xlu0 %v3933, 64
        %v3972 = vpop.permute.xlu0 %3971
        %3973 = vrot.lane.b32.xlu0 %v3934, 64
        %v3974 = vpop.permute.xlu0 %3973
        %3975 = vrot.lane.b32.xlu0 %v3935, 64
        %v3976 = vpop.permute.xlu0 %3975
        %3977 = vrot.lane.b32.xlu0 %v3936, 64
        %v3978 = vpop.permute.xlu0 %3977
        %3979 = vrot.lane.b32.xlu0 %v3937, 64
        %v3980 = vpop.permute.xlu0 %3979
        %3981 = vrot.lane.b32.xlu0 %v3938, 64
        %v3982 = vpop.permute.xlu0 %3981
        %3983 = vrot.lane.b32.xlu0 %v3939, 64
        %v3984 = vpop.permute.xlu0 %3983
        %3985 = vrot.lane.b32.xlu0 %v3940, 64
        %v3986 = vpop.permute.xlu0 %3985
        %3987 = vrot.lane.b32.xlu0 %v3941, 64
        %v3988 = vpop.permute.xlu0 %3987
        %3989 = vrot.lane.b32.xlu0 %v3942, 64
        %v3990 = vpop.permute.xlu0 %3989
        %4007 = vst.msk [vmem:[#allocation4 + $0x8] sm:$0xff] %vm1484, %v3960
        %4008 = vst.msk [vmem:[#allocation4 + $0x20] sm:$0xff] %vm1484, %v3962
        %4009 = vst.msk [vmem:[#allocation4 + $0x38] sm:$0xff] %vm1484, %v3964
        %4010 = vst.msk [vmem:[#allocation4 + $0x50] sm:$0xff] %vm1484, %v3966
        %4011 = vst.msk [vmem:[#allocation4 + $0x68] sm:$0xff] %vm1484, %v3968
        %4012 = vst.msk [vmem:[#allocation4 + $0x80] sm:$0xff] %vm1484, %v3970
        %4013 = vst.msk [vmem:[#allocation4 + $0x98] sm:$0xff] %vm1484, %v3972
        %4014 = vst.msk [vmem:[#allocation4 + $0xb0] sm:$0xff] %vm1484, %v3974
        %4015 = vst.msk [vmem:[#allocation4 + $0xc8] sm:$0xff] %vm1484, %v3976
        %4016 = vst.msk [vmem:[#allocation4 + $0xe0] sm:$0xff] %vm1484, %v3978
        %4017 = vst.msk [vmem:[#allocation4 + $0xf8] sm:$0xff] %vm1484, %v3980
        %4018 = vst.msk [vmem:[#allocation4 + $0x110] sm:$0xff] %vm1484, %v3982
        %4019 = vst.msk [vmem:[#allocation4 + $0x128] sm:$0xff] %vm1484, %v3984
        %4020 = vst.msk [vmem:[#allocation4 + $0x140] sm:$0xff] %vm1484, %v3986
        %4021 = vst.msk [vmem:[#allocation4 + $0x158] sm:$0xff] %vm1484, %v3988
        %4022 = vst.msk [vmem:[#allocation4 + $0x170] sm:$0xff] %vm1484, %v3990
        %v4023 = vld [vmem:[%s1822 + $0x8] sm:$0xff]
        %v4024 = vld [vmem:[%s1822 + $0x10] sm:$0xff]
        %v4025 = vld [vmem:[%s1822 + $0x28] sm:$0xff]
        %v4026 = vld [vmem:[%s1822 + $0x30] sm:$0xff]
        %v4027 = vld [vmem:[%s1822 + $0x48] sm:$0xff]
        %v4028 = vld [vmem:[%s1822 + $0x50] sm:$0xff]
        %v4029 = vld [vmem:[%s1822 + $0x68] sm:$0xff]
        %v4030 = vld [vmem:[%s1822 + $0x70] sm:$0xff]
        %v4031 = vld [vmem:[%s1822 + $0x88] sm:$0xff]
        %v4032 = vld [vmem:[%s1822 + $0x90] sm:$0xff]
        %v4033 = vld [vmem:[%s1822 + $0xa8] sm:$0xff]
        %v4034 = vld [vmem:[%s1822 + $0xb0] sm:$0xff]
        %v4035 = vld [vmem:[%s1822 + $0xc8] sm:$0xff]
        %v4036 = vld [vmem:[%s1822 + $0xd0] sm:$0xff]
        %v4037 = vld [vmem:[%s1822 + $0xe8] sm:$0xff]
        %v4038 = vld [vmem:[%s1822 + $0xf0] sm:$0xff]
        %v4039 = vld [vmem:[%s1822 + $0x108] sm:$0xff]
        %v4040 = vld [vmem:[%s1822 + $0x110] sm:$0xff]
        %v4041 = vld [vmem:[%s1822 + $0x128] sm:$0xff]
        %v4042 = vld [vmem:[%s1822 + $0x130] sm:$0xff]
        %v4043 = vld [vmem:[%s1822 + $0x148] sm:$0xff]
        %v4044 = vld [vmem:[%s1822 + $0x150] sm:$0xff]
        %v4045 = vld [vmem:[%s1822 + $0x168] sm:$0xff]
        %v4046 = vld [vmem:[%s1822 + $0x170] sm:$0xff]
        %v4047 = vld [vmem:[%s1822 + $0x188] sm:$0xff]
        %v4048 = vld [vmem:[%s1822 + $0x190] sm:$0xff]
        %v4049 = vld [vmem:[%s1822 + $0x1a8] sm:$0xff]
        %v4050 = vld [vmem:[%s1822 + $0x1b0] sm:$0xff]
        %v4051 = vld [vmem:[%s1822 + $0x1c8] sm:$0xff]
        %v4052 = vld [vmem:[%s1822 + $0x1d0] sm:$0xff]
        %v4053 = vld [vmem:[%s1822 + $0x1e8] sm:$0xff]
        %v4054 = vld [vmem:[%s1822 + $0x1f0] sm:$0xff]
        %v4055 = vpack.c.bf16 %v4024, %v4023
        %v4056 = vpack.c.bf16 %v4026, %v4025
        %v4057 = vpack.c.bf16 %v4028, %v4027
        %v4058 = vpack.c.bf16 %v4030, %v4029
        %v4059 = vpack.c.bf16 %v4032, %v4031
        %v4060 = vpack.c.bf16 %v4034, %v4033
        %v4061 = vpack.c.bf16 %v4036, %v4035
        %v4062 = vpack.c.bf16 %v4038, %v4037
        %v4063 = vpack.c.bf16 %v4040, %v4039
        %v4064 = vpack.c.bf16 %v4042, %v4041
        %v4065 = vpack.c.bf16 %v4044, %v4043
        %v4066 = vpack.c.bf16 %v4046, %v4045
        %v4067 = vpack.c.bf16 %v4048, %v4047
        %v4068 = vpack.c.bf16 %v4050, %v4049
        %v4069 = vpack.c.bf16 %v4052, %v4051
        %v4070 = vpack.c.bf16 %v4054, %v4053
        %4087 = vrot.lane.b32.xlu0 %v4055, 96
        %v4088 = vpop.permute.xlu0 %4087
        %4089 = vrot.lane.b32.xlu0 %v4056, 96
        %v4090 = vpop.permute.xlu0 %4089
        %4091 = vrot.lane.b32.xlu0 %v4057, 96
        %v4092 = vpop.permute.xlu0 %4091
        %4093 = vrot.lane.b32.xlu0 %v4058, 96
        %v4094 = vpop.permute.xlu0 %4093
        %4095 = vrot.lane.b32.xlu0 %v4059, 96
        %v4096 = vpop.permute.xlu0 %4095
        %4097 = vrot.lane.b32.xlu0 %v4060, 96
        %v4098 = vpop.permute.xlu0 %4097
        %4099 = vrot.lane.b32.xlu0 %v4061, 96
        %v4100 = vpop.permute.xlu0 %4099
        %4101 = vrot.lane.b32.xlu0 %v4062, 96
        %v4102 = vpop.permute.xlu0 %4101
        %4103 = vrot.lane.b32.xlu0 %v4063, 96
        %v4104 = vpop.permute.xlu0 %4103
        %4105 = vrot.lane.b32.xlu0 %v4064, 96
        %v4106 = vpop.permute.xlu0 %4105
        %4107 = vrot.lane.b32.xlu0 %v4065, 96
        %v4108 = vpop.permute.xlu0 %4107
        %4109 = vrot.lane.b32.xlu0 %v4066, 96
        %v4110 = vpop.permute.xlu0 %4109
        %4111 = vrot.lane.b32.xlu0 %v4067, 96
        %v4112 = vpop.permute.xlu0 %4111
        %4113 = vrot.lane.b32.xlu0 %v4068, 96
        %v4114 = vpop.permute.xlu0 %4113
        %4115 = vrot.lane.b32.xlu0 %v4069, 96
        %v4116 = vpop.permute.xlu0 %4115
        %4117 = vrot.lane.b32.xlu0 %v4070, 96
        %v4118 = vpop.permute.xlu0 %4117
        %4135 = vst.msk [vmem:[#allocation4 + $0x8] sm:$0xff] %vm1613, %v4088
        %4136 = vst.msk [vmem:[#allocation4 + $0x20] sm:$0xff] %vm1613, %v4090
        %4137 = vst.msk [vmem:[#allocation4 + $0x38] sm:$0xff] %vm1613, %v4092
        %4138 = vst.msk [vmem:[#allocation4 + $0x50] sm:$0xff] %vm1613, %v4094
        %4139 = vst.msk [vmem:[#allocation4 + $0x68] sm:$0xff] %vm1613, %v4096
        %4140 = vst.msk [vmem:[#allocation4 + $0x80] sm:$0xff] %vm1613, %v4098
        %4141 = vst.msk [vmem:[#allocation4 + $0x98] sm:$0xff] %vm1613, %v4100
        %4142 = vst.msk [vmem:[#allocation4 + $0xb0] sm:$0xff] %vm1613, %v4102
        %4143 = vst.msk [vmem:[#allocation4 + $0xc8] sm:$0xff] %vm1613, %v4104
        %4144 = vst.msk [vmem:[#allocation4 + $0xe0] sm:$0xff] %vm1613, %v4106
        %4145 = vst.msk [vmem:[#allocation4 + $0xf8] sm:$0xff] %vm1613, %v4108
        %4146 = vst.msk [vmem:[#allocation4 + $0x110] sm:$0xff] %vm1613, %v4110
        %4147 = vst.msk [vmem:[#allocation4 + $0x128] sm:$0xff] %vm1613, %v4112
        %4148 = vst.msk [vmem:[#allocation4 + $0x140] sm:$0xff] %vm1613, %v4114
        %4149 = vst.msk [vmem:[#allocation4 + $0x158] sm:$0xff] %vm1613, %v4116
        %4150 = vst.msk [vmem:[#allocation4 + $0x170] sm:$0xff] %vm1613, %v4118
        %v4151 = vld [vmem:[%s1822 + $0x9] sm:$0xff]
        %v4152 = vld [vmem:[%s1822 + $0x11] sm:$0xff]
        %v4153 = vld [vmem:[%s1822 + $0x29] sm:$0xff]
        %v4154 = vld [vmem:[%s1822 + $0x31] sm:$0xff]
        %v4155 = vld [vmem:[%s1822 + $0x49] sm:$0xff]
        %v4156 = vld [vmem:[%s1822 + $0x51] sm:$0xff]
        %v4157 = vld [vmem:[%s1822 + $0x69] sm:$0xff]
        %v4158 = vld [vmem:[%s1822 + $0x71] sm:$0xff]
        %v4159 = vld [vmem:[%s1822 + $0x89] sm:$0xff]
        %v4160 = vld [vmem:[%s1822 + $0x91] sm:$0xff]
        %v4161 = vld [vmem:[%s1822 + $0xa9] sm:$0xff]
        %v4162 = vld [vmem:[%s1822 + $0xb1] sm:$0xff]
        %v4163 = vld [vmem:[%s1822 + $0xc9] sm:$0xff]
        %v4164 = vld [vmem:[%s1822 + $0xd1] sm:$0xff]
        %v4165 = vld [vmem:[%s1822 + $0xe9] sm:$0xff]
        %v4166 = vld [vmem:[%s1822 + $0xf1] sm:$0xff]
        %v4167 = vld [vmem:[%s1822 + $0x109] sm:$0xff]
        %v4168 = vld [vmem:[%s1822 + $0x111] sm:$0xff]
        %v4169 = vld [vmem:[%s1822 + $0x129] sm:$0xff]
        %v4170 = vld [vmem:[%s1822 + $0x131] sm:$0xff]
        %v4171 = vld [vmem:[%s1822 + $0x149] sm:$0xff]
        %v4172 = vld [vmem:[%s1822 + $0x151] sm:$0xff]
        %v4173 = vld [vmem:[%s1822 + $0x169] sm:$0xff]
        %v4174 = vld [vmem:[%s1822 + $0x171] sm:$0xff]
        %v4175 = vld [vmem:[%s1822 + $0x189] sm:$0xff]
        %v4176 = vld [vmem:[%s1822 + $0x191] sm:$0xff]
        %v4177 = vld [vmem:[%s1822 + $0x1a9] sm:$0xff]
        %v4178 = vld [vmem:[%s1822 + $0x1b1] sm:$0xff]
        %v4179 = vld [vmem:[%s1822 + $0x1c9] sm:$0xff]
        %v4180 = vld [vmem:[%s1822 + $0x1d1] sm:$0xff]
        %v4181 = vld [vmem:[%s1822 + $0x1e9] sm:$0xff]
        %v4182 = vld [vmem:[%s1822 + $0x1f1] sm:$0xff]
        %v4183 = vpack.c.bf16 %v4152, %v4151
        %v4184 = vpack.c.bf16 %v4154, %v4153
        %v4185 = vpack.c.bf16 %v4156, %v4155
        %v4186 = vpack.c.bf16 %v4158, %v4157
        %v4187 = vpack.c.bf16 %v4160, %v4159
        %v4188 = vpack.c.bf16 %v4162, %v4161
        %v4189 = vpack.c.bf16 %v4164, %v4163
        %v4190 = vpack.c.bf16 %v4166, %v4165
        %v4191 = vpack.c.bf16 %v4168, %v4167
        %v4192 = vpack.c.bf16 %v4170, %v4169
        %v4193 = vpack.c.bf16 %v4172, %v4171
        %v4194 = vpack.c.bf16 %v4174, %v4173
        %v4195 = vpack.c.bf16 %v4176, %v4175
        %v4196 = vpack.c.bf16 %v4178, %v4177
        %v4197 = vpack.c.bf16 %v4180, %v4179
        %v4198 = vpack.c.bf16 %v4182, %v4181
        %4199 = vst.msk [vmem:[#allocation4 + $0x10] sm:$0xff] %vm1041, %v4183
        %4200 = vst.msk [vmem:[#allocation4 + $0x28] sm:$0xff] %vm1041, %v4184
        %4201 = vst.msk [vmem:[#allocation4 + $0x40] sm:$0xff] %vm1041, %v4185
        %4202 = vst.msk [vmem:[#allocation4 + $0x58] sm:$0xff] %vm1041, %v4186
        %4203 = vst.msk [vmem:[#allocation4 + $0x70] sm:$0xff] %vm1041, %v4187
        %4204 = vst.msk [vmem:[#allocation4 + $0x88] sm:$0xff] %vm1041, %v4188
        %4205 = vst.msk [vmem:[#allocation4 + $0xa0] sm:$0xff] %vm1041, %v4189
        %4206 = vst.msk [vmem:[#allocation4 + $0xb8] sm:$0xff] %vm1041, %v4190
        %4207 = vst.msk [vmem:[#allocation4 + $0xd0] sm:$0xff] %vm1041, %v4191
        %4208 = vst.msk [vmem:[#allocation4 + $0xe8] sm:$0xff] %vm1041, %v4192
        %4209 = vst.msk [vmem:[#allocation4 + $0x100] sm:$0xff] %vm1041, %v4193
        %4210 = vst.msk [vmem:[#allocation4 + $0x118] sm:$0xff] %vm1041, %v4194
        %4211 = vst.msk [vmem:[#allocation4 + $0x130] sm:$0xff] %vm1041, %v4195
        %4212 = vst.msk [vmem:[#allocation4 + $0x148] sm:$0xff] %vm1041, %v4196
        %4213 = vst.msk [vmem:[#allocation4 + $0x160] sm:$0xff] %vm1041, %v4197
        %4214 = vst.msk [vmem:[#allocation4 + $0x178] sm:$0xff] %vm1041, %v4198
        %v4215 = vld [vmem:[#allocation4] sm:$0xff]
        %v4216 = vld [vmem:[#allocation4 + $0x8] sm:$0xff]
        %v4217 = vld [vmem:[#allocation4 + $0x10] sm:$0xff]
        %v4218 = vld [vmem:[#allocation4 + $0x18] sm:$0xff]
        %v4219 = vld [vmem:[#allocation4 + $0x20] sm:$0xff]
        %v4220 = vld [vmem:[#allocation4 + $0x28] sm:$0xff]
        %v4221 = vld [vmem:[#allocation4 + $0x30] sm:$0xff]
        %v4222 = vld [vmem:[#allocation4 + $0x38] sm:$0xff]
        %v4223 = vld [vmem:[#allocation4 + $0x40] sm:$0xff]
        %v4224 = vld [vmem:[#allocation4 + $0x48] sm:$0xff]
        %v4225 = vld [vmem:[#allocation4 + $0x50] sm:$0xff]
        %v4226 = vld [vmem:[#allocation4 + $0x58] sm:$0xff]
        %v4227 = vld [vmem:[#allocation4 + $0x60] sm:$0xff]
        %v4228 = vld [vmem:[#allocation4 + $0x68] sm:$0xff]
        %v4229 = vld [vmem:[#allocation4 + $0x70] sm:$0xff]
        %v4230 = vld [vmem:[#allocation4 + $0x78] sm:$0xff]
        %v4231 = vld [vmem:[#allocation4 + $0x80] sm:$0xff]
        %v4232 = vld [vmem:[#allocation4 + $0x88] sm:$0xff]
        %v4233 = vld [vmem:[#allocation4 + $0x90] sm:$0xff]
        %v4234 = vld [vmem:[#allocation4 + $0x98] sm:$0xff]
        %v4235 = vld [vmem:[#allocation4 + $0xa0] sm:$0xff]
        %v4236 = vld [vmem:[#allocation4 + $0xa8] sm:$0xff]
        %v4237 = vld [vmem:[#allocation4 + $0xb0] sm:$0xff]
        %v4238 = vld [vmem:[#allocation4 + $0xb8] sm:$0xff]
        %v4239 = vld [vmem:[#allocation4 + $0xc0] sm:$0xff]
        %v4240 = vld [vmem:[#allocation4 + $0xc8] sm:$0xff]
        %v4241 = vld [vmem:[#allocation4 + $0xd0] sm:$0xff]
        %v4242 = vld [vmem:[#allocation4 + $0xd8] sm:$0xff]
        %v4243 = vld [vmem:[#allocation4 + $0xe0] sm:$0xff]
        %v4244 = vld [vmem:[#allocation4 + $0xe8] sm:$0xff]
        %v4245 = vld [vmem:[#allocation4 + $0xf0] sm:$0xff]
        %v4246 = vld [vmem:[#allocation4 + $0xf8] sm:$0xff]
        %v4247 = vld [vmem:[#allocation4 + $0x100] sm:$0xff]
        %v4248 = vld [vmem:[#allocation4 + $0x108] sm:$0xff]
        %v4249 = vld [vmem:[#allocation4 + $0x110] sm:$0xff]
        %v4250 = vld [vmem:[#allocation4 + $0x118] sm:$0xff]
        %v4251 = vld [vmem:[#allocation4 + $0x120] sm:$0xff]
        %v4252 = vld [vmem:[#allocation4 + $0x128] sm:$0xff]
        %v4253 = vld [vmem:[#allocation4 + $0x130] sm:$0xff]
        %v4254 = vld [vmem:[#allocation4 + $0x138] sm:$0xff]
        %v4255 = vld [vmem:[#allocation4 + $0x140] sm:$0xff]
        %v4256 = vld [vmem:[#allocation4 + $0x148] sm:$0xff]
        %v4257 = vld [vmem:[#allocation4 + $0x150] sm:$0xff]
        %v4258 = vld [vmem:[#allocation4 + $0x158] sm:$0xff]
        %v4259 = vld [vmem:[#allocation4 + $0x160] sm:$0xff]
        %v4260 = vld [vmem:[#allocation4 + $0x168] sm:$0xff]
        %v4261 = vld [vmem:[#allocation4 + $0x170] sm:$0xff]
        %v4262 = vld [vmem:[#allocation4 + $0x178] sm:$0xff]
        %v4263 = vld [vmem:[%s15] sm:$0xf]
        %v4264 = vld [vmem:[%s15 + $0x4] sm:$0xf]
        %v4265 = vld [vmem:[%s15 + $0x8] sm:$0xf]
        %v4266 = vld [vmem:[%s15 + $0xc] sm:$0xf]
        %v4267 = vld [vmem:[%s15 + $0x10] sm:$0xf]
        %v4268 = vld [vmem:[%s15 + $0x14] sm:$0xf]
        %v4269 = vld [vmem:[%s15 + $0x18] sm:$0xf]
        %v4270 = vld [vmem:[%s15 + $0x1c] sm:$0xf]
        %v4271 = vld [vmem:[%s15 + $0x20] sm:$0xf]
        %v4272 = vld [vmem:[%s15 + $0x24] sm:$0xf]
        %v4273 = vld [vmem:[%s15 + $0x28] sm:$0xf]
        %v4274 = vld [vmem:[%s15 + $0x2c] sm:$0xf]
        %v4275 = vld [vmem:[%s15 + $0x30] sm:$0xf]
        %v4276 = vld [vmem:[%s15 + $0x34] sm:$0xf]
        %v4277 = vld [vmem:[%s15 + $0x38] sm:$0xf]
        %v4278 = vld [vmem:[%s15 + $0x3c] sm:$0xf]
        %v4279 = vld [vmem:[%s15 + $0x40] sm:$0xf]
        %v4280 = vld [vmem:[%s15 + $0x44] sm:$0xf]
        %v4281 = vld [vmem:[%s15 + $0x48] sm:$0xf]
        %v4282 = vld [vmem:[%s15 + $0x4c] sm:$0xf]
        %v4283 = vld [vmem:[%s15 + $0x50] sm:$0xf]
        %v4284 = vld [vmem:[%s15 + $0x54] sm:$0xf]
        %v4285 = vld [vmem:[%s15 + $0x58] sm:$0xf]
        %v4286 = vld [vmem:[%s15 + $0x5c] sm:$0xf]
        %v4287 = vld [vmem:[%s15 + $0x60] sm:$0xf]
        %v4288 = vld [vmem:[%s15 + $0x64] sm:$0xf]
        %v4289 = vld [vmem:[%s15 + $0x68] sm:$0xf]
        %v4290 = vld [vmem:[%s15 + $0x6c] sm:$0xf]
        %v4291 = vld [vmem:[%s15 + $0x70] sm:$0xf]
        %v4292 = vld [vmem:[%s15 + $0x74] sm:$0xf]
        %v4293 = vld [vmem:[%s15 + $0x78] sm:$0xf]
        %v4294 = vld [vmem:[%s15 + $0x7c] sm:$0xf]
        %v4295 = vld [vmem:[%s15 + $0x80] sm:$0xf]
        %v4296 = vld [vmem:[%s15 + $0x84] sm:$0xf]
        %v4297 = vld [vmem:[%s15 + $0x88] sm:$0xf]
        %v4298 = vld [vmem:[%s15 + $0x8c] sm:$0xf]
        %v4335 = vunpack.c.l.b16 %v4263
        %v4336 = vunpack.c.l.b16 %v4264
        %v4337 = vunpack.c.l.b16 %v4265
        %v4338 = vunpack.c.l.b16 %v4266
        %v4339 = vunpack.c.l.b16 %v4267
        %v4340 = vunpack.c.l.b16 %v4268
        %v4341 = vunpack.c.l.b16 %v4269
        %v4342 = vunpack.c.l.b16 %v4270
        %v4343 = vunpack.c.l.b16 %v4271
        %v4344 = vunpack.c.l.b16 %v4272
        %v4345 = vunpack.c.l.b16 %v4273
        %v4346 = vunpack.c.l.b16 %v4274
        %v4347 = vunpack.c.l.b16 %v4275
        %v4348 = vunpack.c.l.b16 %v4276
        %v4349 = vunpack.c.l.b16 %v4277
        %v4350 = vunpack.c.l.b16 %v4278
        %v4351 = vunpack.c.l.b16 %v4279
        %v4352 = vunpack.c.l.b16 %v4280
        %v4353 = vunpack.c.l.b16 %v4281
        %v4354 = vunpack.c.l.b16 %v4282
        %v4355 = vunpack.c.l.b16 %v4283
        %v4356 = vunpack.c.l.b16 %v4284
        %v4357 = vunpack.c.l.b16 %v4285
        %v4358 = vunpack.c.l.b16 %v4286
        %v4359 = vunpack.c.l.b16 %v4287
        %v4360 = vunpack.c.l.b16 %v4288
        %v4361 = vunpack.c.l.b16 %v4289
        %v4362 = vunpack.c.l.b16 %v4290
        %v4363 = vunpack.c.l.b16 %v4291
        %v4364 = vunpack.c.l.b16 %v4292
        %v4365 = vunpack.c.l.b16 %v4293
        %v4366 = vunpack.c.l.b16 %v4294
        %v4367 = vunpack.c.l.b16 %v4295
        %v4368 = vunpack.c.l.b16 %v4296
        %v4369 = vunpack.c.l.b16 %v4297
        %v4370 = vunpack.c.l.b16 %v4298
        %v4371 = vpack.c.b16 %v4336, %v4335
        %v4372 = vpack.c.b16 %v4338, %v4337
        %v4373 = vpack.c.b16 %v4340, %v4339
        %v4374 = vpack.c.b16 %v4342, %v4341
        %v4375 = vpack.c.b16 %v4344, %v4343
        %v4376 = vpack.c.b16 %v4346, %v4345
        %v4377 = vpack.c.b16 %v4348, %v4347
        %v4378 = vpack.c.b16 %v4350, %v4349
        %v4379 = vpack.c.b16 %v4352, %v4351
        %v4380 = vpack.c.b16 %v4354, %v4353
        %v4381 = vpack.c.b16 %v4356, %v4355
        %v4382 = vpack.c.b16 %v4358, %v4357
        %v4383 = vpack.c.b16 %v4360, %v4359
        %v4384 = vpack.c.b16 %v4362, %v4361
        %v4385 = vpack.c.b16 %v4364, %v4363
        %v4386 = vpack.c.b16 %v4366, %v4365
        %v4387 = vpack.c.b16 %v4368, %v4367
        %v4388 = vpack.c.b16 %v4370, %v4369
        %v4408 = vsel %vm1041, %v4217, 0
        %v4411 = vsel %vm1041, %v4220, 0
        %v4414 = vsel %vm1041, %v4223, 0
        %v4417 = vsel %vm1041, %v4226, 0
        %v4420 = vsel %vm1041, %v4229, 0
        %v4423 = vsel %vm1041, %v4232, 0
        %v4426 = vsel %vm1041, %v4235, 0
        %v4429 = vsel %vm1041, %v4238, 0
        %v4432 = vsel %vm1041, %v4241, 0
        %v4435 = vsel %vm1041, %v4244, 0
        %v4438 = vsel %vm1041, %v4247, 0
        %v4441 = vsel %vm1041, %v4250, 0
        %v4444 = vsel %vm1041, %v4253, 0
        %v4447 = vsel %vm1041, %v4256, 0
        %v4450 = vsel %vm1041, %v4259, 0
        %v4453 = vsel %vm1041, %v4262, 0
        %4455 = vmatprep.subr.bf16.mxu0 0
        %4456 = vmatpush1.bf16.msra.mxu0 %v4371
        %4457 = vmatprep.subr.bf16.mxu0 0
        %4458 = vmatpush1.bf16.msra.mxu0 %v4372
        %4459 = vmatprep.subr.bf16.mxu0 0
        %4460 = vmatpush1.bf16.msra.mxu0 %v4373
        %4461 = vmatprep.subr.bf16.mxu0 0
        %4462 = vmatpush1.bf16.msra.mxu0 %v4374
        %4463 = vmatprep.subr.bf16.mxu0 0
        %4464 = vmatpush1.bf16.msra.mxu0 %v4375
        %4465 = vmatprep.subr.bf16.mxu0 0
        %4466 = vmatpush1.bf16.msra.mxu0 %v4376
        %4467 = vmatprep.subr.bf16.mxu0 0
        %4468 = vmatpush1.bf16.msra.mxu0 %v4377
        %4469 = vmatprep.subr.bf16.mxu0 0
        %4470 = vmatpush1.bf16.msra.mxu0 %v4378
        %4471 = vmatprep.subr.bf16.mxu0 0
        %4472 = vmatpush1.bf16.msra.mxu0 %v4379
        %4473 = vmatprep.subr.bf16.mxu0 0
        %4474 = vmatpush1.bf16.msra.mxu0 %v4380
        %4475 = vmatprep.subr.bf16.mxu0 0
        %4476 = vmatpush1.bf16.msra.mxu0 %v4381
        %4477 = vmatprep.subr.bf16.mxu0 0
        %4478 = vmatpush1.bf16.msra.mxu0 %v4382
        %4479 = vmatprep.subr.bf16.mxu0 0
        %4480 = vmatpush1.bf16.msra.mxu0 %v4383
        %4481 = vmatprep.subr.bf16.mxu0 0
        %4482 = vmatpush1.bf16.msra.mxu0 %v4384
        %4483 = vmatprep.subr.bf16.mxu0 0
        %4484 = vmatpush1.bf16.msra.mxu0 %v4385
        %4485 = vmatprep.subr.bf16.mxu0 0
        %4486 = vmatpush1.bf16.msra.mxu0 %v4386
        %4487 = vmatprep.mubr.bf16.mxu0 %v4216
        %4488 = vmatmul.mubr.bf16.gmra.mrb[0].mxu0 %v4215
        %v4489 = vpop.f32.mrb[0].mxu0
        %v4490 = vadd.f32 0.0, %v4489
        %v4491 = vpop.f32.mrb[0].mxu0
        %v4492 = vpop.f32.mrb[0].mxu0
        %v4493 = vadd.f32 0.0, %v4492
        %v4494 = vpop.f32.mrb[0].mxu0
        %4495 = vmatprep.mubr.bf16.mxu0 %v4219
        %4496 = vmatmul.mubr.bf16.gmra.mrb[0].mxu0 %v4218
        %v4497 = vpop.f32.mrb[0].mxu0
        %v4498 = vadd.f32 0.0, %v4497
        %v4499 = vpop.f32.mrb[0].mxu0
        %v4500 = vpop.f32.mrb[0].mxu0
        %v4501 = vadd.f32 0.0, %v4500
        %v4502 = vpop.f32.mrb[0].mxu0
        %4503 = vmatprep.mubr.bf16.mxu0 %v4222
        %4504 = vmatmul.mubr.bf16.gmra.mrb[0].mxu0 %v4221
        %v4505 = vpop.f32.mrb[0].mxu0
        %v4506 = vadd.f32 0.0, %v4505
        %v4507 = vpop.f32.mrb[0].mxu0
        %v4508 = vpop.f32.mrb[0].mxu0
        %v4509 = vadd.f32 0.0, %v4508
        %v4510 = vpop.f32.mrb[0].mxu0
        %4511 = vmatprep.mubr.bf16.mxu0 %v4225
        %4512 = vmatmul.mubr.bf16.gmra.mrb[0].mxu0 %v4224
        %v4513 = vpop.f32.mrb[0].mxu0
        %v4514 = vadd.f32 0.0, %v4513
        %v4515 = vpop.f32.mrb[0].mxu0
        %v4516 = vpop.f32.mrb[0].mxu0
        %v4517 = vadd.f32 0.0, %v4516
        %v4518 = vpop.f32.mrb[0].mxu0
        %4519 = vmatprep.mubr.bf16.mxu0 %v4228
        %4520 = vmatmul.mubr.bf16.gmra.mrb[0].mxu0 %v4227
        %v4521 = vpop.f32.mrb[0].mxu0
        %v4522 = vadd.f32 0.0, %v4521
        %v4523 = vpop.f32.mrb[0].mxu0
        %v4524 = vpop.f32.mrb[0].mxu0
        %v4525 = vadd.f32 0.0, %v4524
        %v4526 = vpop.f32.mrb[0].mxu0
        %4527 = vmatprep.mubr.bf16.mxu0 %v4231
        %4528 = vmatmul.mubr.bf16.gmra.mrb[0].mxu0 %v4230
        %v4529 = vpop.f32.mrb[0].mxu0
        %v4530 = vadd.f32 0.0, %v4529
        %v4531 = vpop.f32.mrb[0].mxu0
        %v4532 = vpop.f32.mrb[0].mxu0
        %v4533 = vadd.f32 0.0, %v4532
        %v4534 = vpop.f32.mrb[0].mxu0
        %4535 = vmatprep.mubr.bf16.mxu0 %v4234
        %4536 = vmatmul.mubr.bf16.gmra.mrb[0].mxu0 %v4233
        %v4537 = vpop.f32.mrb[0].mxu0
        %v4538 = vadd.f32 0.0, %v4537
        %v4539 = vpop.f32.mrb[0].mxu0
        %v4540 = vpop.f32.mrb[0].mxu0
        %v4541 = vadd.f32 0.0, %v4540
        %v4542 = vpop.f32.mrb[0].mxu0
        %4543 = vmatprep.mubr.bf16.mxu0 %v4237
        %4544 = vmatmul.mubr.bf16.gmra.mrb[0].mxu0 %v4236
        %v4545 = vpop.f32.mrb[0].mxu0
        %v4546 = vadd.f32 0.0, %v4545
        %v4547 = vpop.f32.mrb[0].mxu0
        %v4548 = vpop.f32.mrb[0].mxu0
        %v4549 = vadd.f32 0.0, %v4548
        %v4550 = vpop.f32.mrb[0].mxu0
        %4551 = vmatprep.mubr.bf16.mxu0 %v4240
        %4552 = vmatmul.mubr.bf16.gmra.mrb[0].mxu0 %v4239
        %v4553 = vpop.f32.mrb[0].mxu0
        %v4554 = vadd.f32 0.0, %v4553
        %v4555 = vpop.f32.mrb[0].mxu0
        %v4556 = vpop.f32.mrb[0].mxu0
        %v4557 = vadd.f32 0.0, %v4556
        %v4558 = vpop.f32.mrb[0].mxu0
        %4559 = vmatprep.mubr.bf16.mxu0 %v4243
        %4560 = vmatmul.mubr.bf16.gmra.mrb[0].mxu0 %v4242
        %v4561 = vpop.f32.mrb[0].mxu0
        %v4562 = vadd.f32 0.0, %v4561
        %v4563 = vpop.f32.mrb[0].mxu0
        %v4564 = vpop.f32.mrb[0].mxu0
        %v4565 = vadd.f32 0.0, %v4564
        %v4566 = vpop.f32.mrb[0].mxu0
        %4567 = vmatprep.mubr.bf16.mxu0 %v4246
        %4568 = vmatmul.mubr.bf16.gmra.mrb[0].mxu0 %v4245
        %v4569 = vpop.f32.mrb[0].mxu0
        %v4570 = vadd.f32 0.0, %v4569
        %v4571 = vpop.f32.mrb[0].mxu0
        %v4572 = vpop.f32.mrb[0].mxu0
        %v4573 = vadd.f32 0.0, %v4572
        %v4574 = vpop.f32.mrb[0].mxu0
        %4575 = vmatprep.mubr.bf16.mxu0 %v4249
        %4576 = vmatmul.mubr.bf16.gmra.mrb[0].mxu0 %v4248
        %v4577 = vpop.f32.mrb[0].mxu0
        %v4578 = vadd.f32 0.0, %v4577
        %v4579 = vpop.f32.mrb[0].mxu0
        %v4580 = vpop.f32.mrb[0].mxu0
        %v4581 = vadd.f32 0.0, %v4580
        %v4582 = vpop.f32.mrb[0].mxu0
        %4583 = vmatprep.mubr.bf16.mxu0 %v4252
        %4584 = vmatmul.mubr.bf16.gmra.mrb[0].mxu0 %v4251
        %v4585 = vpop.f32.mrb[0].mxu0
        %v4586 = vadd.f32 0.0, %v4585
        %v4587 = vpop.f32.mrb[0].mxu0
        %v4588 = vpop.f32.mrb[0].mxu0
        %v4589 = vadd.f32 0.0, %v4588
        %v4590 = vpop.f32.mrb[0].mxu0
        %4591 = vmatprep.mubr.bf16.mxu0 %v4255
        %4592 = vmatmul.mubr.bf16.gmra.mrb[0].mxu0 %v4254
        %v4593 = vpop.f32.mrb[0].mxu0
        %v4594 = vadd.f32 0.0, %v4593
        %v4595 = vpop.f32.mrb[0].mxu0
        %v4596 = vpop.f32.mrb[0].mxu0
        %v4597 = vadd.f32 0.0, %v4596
        %v4598 = vpop.f32.mrb[0].mxu0
        %4599 = vmatprep.mubr.bf16.mxu0 %v4258
        %4600 = vmatmul.mubr.bf16.gmra.mrb[0].mxu0 %v4257
        %v4601 = vpop.f32.mrb[0].mxu0
        %v4602 = vadd.f32 0.0, %v4601
        %v4603 = vpop.f32.mrb[0].mxu0
        %v4604 = vpop.f32.mrb[0].mxu0
        %v4605 = vadd.f32 0.0, %v4604
        %v4606 = vpop.f32.mrb[0].mxu0
        %4607 = vmatprep.mubr.bf16.mxu0 %v4261
        %4608 = vmatmul.mubr.bf16.gmra.mrb[0].mxu0 %v4260
        %v4609 = vpop.f32.mrb[0].mxu0
        %v4610 = vadd.f32 0.0, %v4609
        %v4611 = vpop.f32.mrb[0].mxu0
        %v4612 = vpop.f32.mrb[0].mxu0
        %v4613 = vadd.f32 0.0, %v4612
        %v4614 = vpop.f32.mrb[0].mxu0
        %4615 = vdwg.mxu0
        %4616 = vmatprep.subr.bf16.mxu0 0
        %4617 = vmatpush1.bf16.msra.mxu0 %v4387
        %4618 = vmatprep.subr.bf16.mxu0 0
        %4619 = vmatpush1.bf16.msra.mxu0 %v4388
        %4620 = vmatprep.subr.bf16.mxu0 0
        %4621 = vmatpush1.bf16.msra.mxu0 0
        %4622 = vmatprep.subr.bf16.mxu0 0
        %4623 = vmatpush1.bf16.msra.mxu0 0
        %4624 = vmatprep.subr.bf16.mxu0 0
        %4625 = vmatpush1.bf16.msra.mxu0 0
        %4626 = vmatprep.subr.bf16.mxu0 0
        %4627 = vmatpush1.bf16.msra.mxu0 0
        %4628 = vmatprep.subr.bf16.mxu0 0
        %4629 = vmatpush1.bf16.msra.mxu0 0
        %4630 = vmatprep.subr.bf16.mxu0 0
        %4631 = vmatpush1.bf16.msra.mxu0 0
        %4632 = vmatprep.subr.bf16.mxu0 0
        %4633 = vmatpush1.bf16.msra.mxu0 0
        %4634 = vmatprep.subr.bf16.mxu0 0
        %4635 = vmatpush1.bf16.msra.mxu0 0
        %4636 = vmatprep.subr.bf16.mxu0 0
        %4637 = vmatpush1.bf16.msra.mxu0 0
        %4638 = vmatprep.subr.bf16.mxu0 0
        %4639 = vmatpush1.bf16.msra.mxu0 0
        %4640 = vmatprep.subr.bf16.mxu0 0
        %4641 = vmatpush1.bf16.msra.mxu0 0
        %4642 = vmatprep.subr.bf16.mxu0 0
        %4643 = vmatpush1.bf16.msra.mxu0 0
        %4644 = vmatprep.subr.bf16.mxu0 0
        %4645 = vmatpush1.bf16.msra.mxu0 0
        %4646 = vmatprep.subr.bf16.mxu0 0
        %4647 = vmatpush1.bf16.msra.mxu0 0
        %4648 = vmatprep.mubr.bf16.mxu0 0
        %4649 = vmatmul.mubr.bf16.gmra.mrb[0].mxu0 %v4408
        %v4650 = vpop.f32.mrb[0].mxu0
        %v4651 = vadd.f32 %v4490, %v4650
        %v4652 = vpop.f32.mrb[0].mxu0
        %v4653 = vpop.f32.mrb[0].mxu0
        %v4654 = vadd.f32 %v4493, %v4653
        %v4655 = vpop.f32.mrb[0].mxu0
        %4656 = vmatprep.mubr.bf16.mxu0 0
        %4657 = vmatmul.mubr.bf16.gmra.mrb[0].mxu0 %v4411
        %v4658 = vpop.f32.mrb[0].mxu0
        %v4659 = vadd.f32 %v4498, %v4658
        %v4660 = vpop.f32.mrb[0].mxu0
        %v4661 = vpop.f32.mrb[0].mxu0
        %v4662 = vadd.f32 %v4501, %v4661
        %v4663 = vpop.f32.mrb[0].mxu0
        %4664 = vmatprep.mubr.bf16.mxu0 0
        %4665 = vmatmul.mubr.bf16.gmra.mrb[0].mxu0 %v4414
        %v4666 = vpop.f32.mrb[0].mxu0
        %v4667 = vadd.f32 %v4506, %v4666
        %v4668 = vpop.f32.mrb[0].mxu0
        %v4669 = vpop.f32.mrb[0].mxu0
        %v4670 = vadd.f32 %v4509, %v4669
        %v4671 = vpop.f32.mrb[0].mxu0
        %4672 = vmatprep.mubr.bf16.mxu0 0
        %4673 = vmatmul.mubr.bf16.gmra.mrb[0].mxu0 %v4417
        %v4674 = vpop.f32.mrb[0].mxu0
        %v4675 = vadd.f32 %v4514, %v4674
        %v4676 = vpop.f32.mrb[0].mxu0
        %v4677 = vpop.f32.mrb[0].mxu0
        %v4678 = vadd.f32 %v4517, %v4677
        %v4679 = vpop.f32.mrb[0].mxu0
        %4680 = vmatprep.mubr.bf16.mxu0 0
        %4681 = vmatmul.mubr.bf16.gmra.mrb[0].mxu0 %v4420
        %v4682 = vpop.f32.mrb[0].mxu0
        %v4683 = vadd.f32 %v4522, %v4682
        %v4684 = vpop.f32.mrb[0].mxu0
        %v4685 = vpop.f32.mrb[0].mxu0
        %v4686 = vadd.f32 %v4525, %v4685
        %v4687 = vpop.f32.mrb[0].mxu0
        %4688 = vmatprep.mubr.bf16.mxu0 0
        %4689 = vmatmul.mubr.bf16.gmra.mrb[0].mxu0 %v4423
        %v4690 = vpop.f32.mrb[0].mxu0
        %v4691 = vadd.f32 %v4530, %v4690
        %v4692 = vpop.f32.mrb[0].mxu0
        %v4693 = vpop.f32.mrb[0].mxu0
        %v4694 = vadd.f32 %v4533, %v4693
        %v4695 = vpop.f32.mrb[0].mxu0
        %4696 = vmatprep.mubr.bf16.mxu0 0
        %4697 = vmatmul.mubr.bf16.gmra.mrb[0].mxu0 %v4426
        %v4698 = vpop.f32.mrb[0].mxu0
        %v4699 = vadd.f32 %v4538, %v4698
        %v4700 = vpop.f32.mrb[0].mxu0
        %v4701 = vpop.f32.mrb[0].mxu0
        %v4702 = vadd.f32 %v4541, %v4701
        %v4703 = vpop.f32.mrb[0].mxu0
        %4704 = vmatprep.mubr.bf16.mxu0 0
        %4705 = vmatmul.mubr.bf16.gmra.mrb[0].mxu0 %v4429
        %v4706 = vpop.f32.mrb[0].mxu0
        %v4707 = vadd.f32 %v4546, %v4706
        %v4708 = vpop.f32.mrb[0].mxu0
        %v4709 = vpop.f32.mrb[0].mxu0
        %v4710 = vadd.f32 %v4549, %v4709
        %v4711 = vpop.f32.mrb[0].mxu0
        %4712 = vmatprep.mubr.bf16.mxu0 0
        %4713 = vmatmul.mubr.bf16.gmra.mrb[0].mxu0 %v4432
        %v4714 = vpop.f32.mrb[0].mxu0
        %v4715 = vadd.f32 %v4554, %v4714
        %v4716 = vpop.f32.mrb[0].mxu0
        %v4717 = vpop.f32.mrb[0].mxu0
        %v4718 = vadd.f32 %v4557, %v4717
        %v4719 = vpop.f32.mrb[0].mxu0
        %4720 = vmatprep.mubr.bf16.mxu0 0
        %4721 = vmatmul.mubr.bf16.gmra.mrb[0].mxu0 %v4435
        %v4722 = vpop.f32.mrb[0].mxu0
        %v4723 = vadd.f32 %v4562, %v4722
        %v4724 = vpop.f32.mrb[0].mxu0
        %v4725 = vpop.f32.mrb[0].mxu0
        %v4726 = vadd.f32 %v4565, %v4725
        %v4727 = vpop.f32.mrb[0].mxu0
        %4728 = vmatprep.mubr.bf16.mxu0 0
        %4729 = vmatmul.mubr.bf16.gmra.mrb[0].mxu0 %v4438
        %v4730 = vpop.f32.mrb[0].mxu0
        %v4731 = vadd.f32 %v4570, %v4730
        %v4732 = vpop.f32.mrb[0].mxu0
        %v4733 = vpop.f32.mrb[0].mxu0
        %v4734 = vadd.f32 %v4573, %v4733
        %v4735 = vpop.f32.mrb[0].mxu0
        %4736 = vmatprep.mubr.bf16.mxu0 0
        %4737 = vmatmul.mubr.bf16.gmra.mrb[0].mxu0 %v4441
        %v4738 = vpop.f32.mrb[0].mxu0
        %v4739 = vadd.f32 %v4578, %v4738
        %v4740 = vpop.f32.mrb[0].mxu0
        %v4741 = vpop.f32.mrb[0].mxu0
        %v4742 = vadd.f32 %v4581, %v4741
        %v4743 = vpop.f32.mrb[0].mxu0
        %4744 = vmatprep.mubr.bf16.mxu0 0
        %4745 = vmatmul.mubr.bf16.gmra.mrb[0].mxu0 %v4444
        %v4746 = vpop.f32.mrb[0].mxu0
        %v4747 = vadd.f32 %v4586, %v4746
        %v4748 = vpop.f32.mrb[0].mxu0
        %v4749 = vpop.f32.mrb[0].mxu0
        %v4750 = vadd.f32 %v4589, %v4749
        %v4751 = vpop.f32.mrb[0].mxu0
        %4752 = vmatprep.mubr.bf16.mxu0 0
        %4753 = vmatmul.mubr.bf16.gmra.mrb[0].mxu0 %v4447
        %v4754 = vpop.f32.mrb[0].mxu0
        %v4755 = vadd.f32 %v4594, %v4754
        %v4756 = vpop.f32.mrb[0].mxu0
        %v4757 = vpop.f32.mrb[0].mxu0
        %v4758 = vadd.f32 %v4597, %v4757
        %v4759 = vpop.f32.mrb[0].mxu0
        %4760 = vmatprep.mubr.bf16.mxu0 0
        %4761 = vmatmul.mubr.bf16.gmra.mrb[0].mxu0 %v4450
        %v4762 = vpop.f32.mrb[0].mxu0
        %v4763 = vadd.f32 %v4602, %v4762
        %v4764 = vpop.f32.mrb[0].mxu0
        %v4765 = vpop.f32.mrb[0].mxu0
        %v4766 = vadd.f32 %v4605, %v4765
        %v4767 = vpop.f32.mrb[0].mxu0
        %4768 = vmatprep.mubr.bf16.mxu0 0
        %4769 = vmatmul.mubr.bf16.gmra.mrb[0].mxu0 %v4453
        %v4770 = vpop.f32.mrb[0].mxu0
        %v4771 = vadd.f32 %v4610, %v4770
        %v4772 = vpop.f32.mrb[0].mxu0
        %v4773 = vpop.f32.mrb[0].mxu0
        %v4774 = vadd.f32 %v4613, %v4773
        %v4775 = vpop.f32.mrb[0].mxu0
        %4776 = vdwg.mxu0
        %4809 = vrot.lane.b32.xlu0 %v4651, 16
        %v4810 = vpop.permute.xlu0 %4809
        %4811 = vrot.lane.b32.xlu0 %v4654, 16
        %v4812 = vpop.permute.xlu0 %4811
        %4813 = vrot.lane.b32.xlu0 %v4659, 16
        %v4814 = vpop.permute.xlu0 %4813
        %4815 = vrot.lane.b32.xlu0 %v4662, 16
        %v4816 = vpop.permute.xlu0 %4815
        %4817 = vrot.lane.b32.xlu0 %v4667, 16
        %v4818 = vpop.permute.xlu0 %4817
        %4819 = vrot.lane.b32.xlu0 %v4670, 16
        %v4820 = vpop.permute.xlu0 %4819
        %4821 = vrot.lane.b32.xlu0 %v4675, 16
        %v4822 = vpop.permute.xlu0 %4821
        %4823 = vrot.lane.b32.xlu0 %v4678, 16
        %v4824 = vpop.permute.xlu0 %4823
        %4825 = vrot.lane.b32.xlu0 %v4683, 16
        %v4826 = vpop.permute.xlu0 %4825
        %4827 = vrot.lane.b32.xlu0 %v4686, 16
        %v4828 = vpop.permute.xlu0 %4827
        %4829 = vrot.lane.b32.xlu0 %v4691, 16
        %v4830 = vpop.permute.xlu0 %4829
        %4831 = vrot.lane.b32.xlu0 %v4694, 16
        %v4832 = vpop.permute.xlu0 %4831
        %4833 = vrot.lane.b32.xlu0 %v4699, 16
        %v4834 = vpop.permute.xlu0 %4833
        %4835 = vrot.lane.b32.xlu0 %v4702, 16
        %v4836 = vpop.permute.xlu0 %4835
        %4837 = vrot.lane.b32.xlu0 %v4707, 16
        %v4838 = vpop.permute.xlu0 %4837
        %4839 = vrot.lane.b32.xlu0 %v4710, 16
        %v4840 = vpop.permute.xlu0 %4839
        %4841 = vrot.lane.b32.xlu0 %v4715, 16
        %v4842 = vpop.permute.xlu0 %4841
        %4843 = vrot.lane.b32.xlu0 %v4718, 16
        %v4844 = vpop.permute.xlu0 %4843
        %4845 = vrot.lane.b32.xlu0 %v4723, 16
        %v4846 = vpop.permute.xlu0 %4845
        %4847 = vrot.lane.b32.xlu0 %v4726, 16
        %v4848 = vpop.permute.xlu0 %4847
        %4849 = vrot.lane.b32.xlu0 %v4731, 16
        %v4850 = vpop.permute.xlu0 %4849
        %4851 = vrot.lane.b32.xlu0 %v4734, 16
        %v4852 = vpop.permute.xlu0 %4851
        %4853 = vrot.lane.b32.xlu0 %v4739, 16
        %v4854 = vpop.permute.xlu0 %4853
        %4855 = vrot.lane.b32.xlu0 %v4742, 16
        %v4856 = vpop.permute.xlu0 %4855
        %4857 = vrot.lane.b32.xlu0 %v4747, 16
        %v4858 = vpop.permute.xlu0 %4857
        %4859 = vrot.lane.b32.xlu0 %v4750, 16
        %v4860 = vpop.permute.xlu0 %4859
        %4861 = vrot.lane.b32.xlu0 %v4755, 16
        %v4862 = vpop.permute.xlu0 %4861
        %4863 = vrot.lane.b32.xlu0 %v4758, 16
        %v4864 = vpop.permute.xlu0 %4863
        %4865 = vrot.lane.b32.xlu0 %v4763, 16
        %v4866 = vpop.permute.xlu0 %4865
        %4867 = vrot.lane.b32.xlu0 %v4766, 16
        %v4868 = vpop.permute.xlu0 %4867
        %4869 = vrot.lane.b32.xlu0 %v4771, 16
        %v4870 = vpop.permute.xlu0 %4869
        %4871 = vrot.lane.b32.xlu0 %v4774, 16
        %v4872 = vpop.permute.xlu0 %4871
        %vm4905 = vcmask 195712
        %4906 = vst.msk [vmem:[#allocation2] sm:$0xff] %vm4905, %v4810
        %4907 = vst.msk [vmem:[#allocation2 + $0x8] sm:$0xff] %vm4905, %v4812
        %4908 = vst.msk [vmem:[#allocation2 + $0x10] sm:$0xff] %vm4905, %v4814
        %4909 = vst.msk [vmem:[#allocation2 + $0x18] sm:$0xff] %vm4905, %v4816
        %4910 = vst.msk [vmem:[#allocation2 + $0x20] sm:$0xff] %vm4905, %v4818
        %4911 = vst.msk [vmem:[#allocation2 + $0x28] sm:$0xff] %vm4905, %v4820
        %4912 = vst.msk [vmem:[#allocation2 + $0x30] sm:$0xff] %vm4905, %v4822
        %4913 = vst.msk [vmem:[#allocation2 + $0x38] sm:$0xff] %vm4905, %v4824
        %4914 = vst.msk [vmem:[#allocation2 + $0x40] sm:$0xff] %vm4905, %v4826
        %4915 = vst.msk [vmem:[#allocation2 + $0x48] sm:$0xff] %vm4905, %v4828
        %4916 = vst.msk [vmem:[#allocation2 + $0x50] sm:$0xff] %vm4905, %v4830
        %4917 = vst.msk [vmem:[#allocation2 + $0x58] sm:$0xff] %vm4905, %v4832
        %4918 = vst.msk [vmem:[#allocation2 + $0x60] sm:$0xff] %vm4905, %v4834
        %4919 = vst.msk [vmem:[#allocation2 + $0x68] sm:$0xff] %vm4905, %v4836
        %4920 = vst.msk [vmem:[#allocation2 + $0x70] sm:$0xff] %vm4905, %v4838
        %4921 = vst.msk [vmem:[#allocation2 + $0x78] sm:$0xff] %vm4905, %v4840
        %4922 = vst.msk [vmem:[#allocation2 + $0x80] sm:$0xff] %vm4905, %v4842
        %4923 = vst.msk [vmem:[#allocation2 + $0x88] sm:$0xff] %vm4905, %v4844
        %4924 = vst.msk [vmem:[#allocation2 + $0x90] sm:$0xff] %vm4905, %v4846
        %4925 = vst.msk [vmem:[#allocation2 + $0x98] sm:$0xff] %vm4905, %v4848
        %4926 = vst.msk [vmem:[#allocation2 + $0xa0] sm:$0xff] %vm4905, %v4850
        %4927 = vst.msk [vmem:[#allocation2 + $0xa8] sm:$0xff] %vm4905, %v4852
        %4928 = vst.msk [vmem:[#allocation2 + $0xb0] sm:$0xff] %vm4905, %v4854
        %4929 = vst.msk [vmem:[#allocation2 + $0xb8] sm:$0xff] %vm4905, %v4856
        %4930 = vst.msk [vmem:[#allocation2 + $0xc0] sm:$0xff] %vm4905, %v4858
        %4931 = vst.msk [vmem:[#allocation2 + $0xc8] sm:$0xff] %vm4905, %v4860
        %4932 = vst.msk [vmem:[#allocation2 + $0xd0] sm:$0xff] %vm4905, %v4862
        %4933 = vst.msk [vmem:[#allocation2 + $0xd8] sm:$0xff] %vm4905, %v4864
        %4934 = vst.msk [vmem:[#allocation2 + $0xe0] sm:$0xff] %vm4905, %v4866
        %4935 = vst.msk [vmem:[#allocation2 + $0xe8] sm:$0xff] %vm4905, %v4868
        %4936 = vst.msk [vmem:[#allocation2 + $0xf0] sm:$0xff] %vm4905, %v4870
        %4937 = vst.msk [vmem:[#allocation2 + $0xf8] sm:$0xff] %vm4905, %v4872
        %v4938 = vld [vmem:[#allocation2] sm:$0xff]
        %v4939 = vld [vmem:[#allocation2 + $0x8] sm:$0xff]
        %v4940 = vld [vmem:[#allocation2 + $0x10] sm:$0xff]
        %v4941 = vld [vmem:[#allocation2 + $0x18] sm:$0xff]
        %v4942 = vld [vmem:[#allocation2 + $0x20] sm:$0xff]
        %v4943 = vld [vmem:[#allocation2 + $0x28] sm:$0xff]
        %v4944 = vld [vmem:[#allocation2 + $0x30] sm:$0xff]
        %v4945 = vld [vmem:[#allocation2 + $0x38] sm:$0xff]
        %v4946 = vld [vmem:[#allocation2 + $0x40] sm:$0xff]
        %v4947 = vld [vmem:[#allocation2 + $0x48] sm:$0xff]
        %v4948 = vld [vmem:[#allocation2 + $0x50] sm:$0xff]
        %v4949 = vld [vmem:[#allocation2 + $0x58] sm:$0xff]
        %v4950 = vld [vmem:[#allocation2 + $0x60] sm:$0xff]
        %v4951 = vld [vmem:[#allocation2 + $0x68] sm:$0xff]
        %v4952 = vld [vmem:[#allocation2 + $0x70] sm:$0xff]
        %v4953 = vld [vmem:[#allocation2 + $0x78] sm:$0xff]
        %v4954 = vld [vmem:[#allocation2 + $0x80] sm:$0xff]
        %v4955 = vld [vmem:[#allocation2 + $0x88] sm:$0xff]
        %v4956 = vld [vmem:[#allocation2 + $0x90] sm:$0xff]
        %v4957 = vld [vmem:[#allocation2 + $0x98] sm:$0xff]
        %v4958 = vld [vmem:[#allocation2 + $0xa0] sm:$0xff]
        %v4959 = vld [vmem:[#allocation2 + $0xa8] sm:$0xff]
        %v4960 = vld [vmem:[#allocation2 + $0xb0] sm:$0xff]
        %v4961 = vld [vmem:[#allocation2 + $0xb8] sm:$0xff]
        %v4962 = vld [vmem:[#allocation2 + $0xc0] sm:$0xff]
        %v4963 = vld [vmem:[#allocation2 + $0xc8] sm:$0xff]
        %v4964 = vld [vmem:[#allocation2 + $0xd0] sm:$0xff]
        %v4965 = vld [vmem:[#allocation2 + $0xd8] sm:$0xff]
        %v4966 = vld [vmem:[#allocation2 + $0xe0] sm:$0xff]
        %v4967 = vld [vmem:[#allocation2 + $0xe8] sm:$0xff]
        %v4968 = vld [vmem:[#allocation2 + $0xf0] sm:$0xff]
        %v4969 = vld [vmem:[#allocation2 + $0xf8] sm:$0xff]
        %v4970 = vld [vmem:[%s17] sm:$0x1]
        %v4972 = vlaneseq
        %v4973 = vshrl.u32 %v4972, 7
        %v4974 = vsub.s32 0, %v4973
        %v4975 = vrot.slane %v4970, %v4974
        %v4977 = vmul.f32 %v4938, %v4975
        %v4978 = vmul.f32 %v4939, %v4975
        %v4979 = vmul.f32 %v4940, %v4975
        %v4980 = vmul.f32 %v4941, %v4975
        %v4981 = vmul.f32 %v4942, %v4975
        %v4982 = vmul.f32 %v4943, %v4975
        %v4983 = vmul.f32 %v4944, %v4975
        %v4984 = vmul.f32 %v4945, %v4975
        %v4985 = vmul.f32 %v4946, %v4975
        %v4986 = vmul.f32 %v4947, %v4975
        %v4987 = vmul.f32 %v4948, %v4975
        %v4988 = vmul.f32 %v4949, %v4975
        %v4989 = vmul.f32 %v4950, %v4975
        %v4990 = vmul.f32 %v4951, %v4975
        %v4991 = vmul.f32 %v4952, %v4975
        %v4992 = vmul.f32 %v4953, %v4975
        %v4993 = vmul.f32 %v4954, %v4975
        %v4994 = vmul.f32 %v4955, %v4975
        %v4995 = vmul.f32 %v4956, %v4975
        %v4996 = vmul.f32 %v4957, %v4975
        %v4997 = vmul.f32 %v4958, %v4975
        %v4998 = vmul.f32 %v4959, %v4975
        %v4999 = vmul.f32 %v4960, %v4975
        %v5000 = vmul.f32 %v4961, %v4975
        %v5001 = vmul.f32 %v4962, %v4975
        %v5002 = vmul.f32 %v4963, %v4975
        %v5003 = vmul.f32 %v4964, %v4975
        %v5004 = vmul.f32 %v4965, %v4975
        %v5005 = vmul.f32 %v4966, %v4975
        %v5006 = vmul.f32 %v4967, %v4975
        %v5007 = vmul.f32 %v4968, %v4975
        %v5008 = vmul.f32 %v4969, %v4975
        %v5009 = vld [vmem:[%s19] sm:$0x1]
        %v5011 = vlaneseq
        %v5012 = vshrl.u32 %v5011, 7
        %v5013 = vsub.s32 0, %v5012
        %v5014 = vrot.slane %v5009, %v5013
        %v5016 = vadd.f32 %v4977, %v5014
        %v5017 = vadd.f32 %v4978, %v5014
        %v5018 = vadd.f32 %v4979, %v5014
        %v5019 = vadd.f32 %v4980, %v5014
        %v5020 = vadd.f32 %v4981, %v5014
        %v5021 = vadd.f32 %v4982, %v5014
        %v5022 = vadd.f32 %v4983, %v5014
        %v5023 = vadd.f32 %v4984, %v5014
        %v5024 = vadd.f32 %v4985, %v5014
        %v5025 = vadd.f32 %v4986, %v5014
        %v5026 = vadd.f32 %v4987, %v5014
        %v5027 = vadd.f32 %v4988, %v5014
        %v5028 = vadd.f32 %v4989, %v5014
        %v5029 = vadd.f32 %v4990, %v5014
        %v5030 = vadd.f32 %v4991, %v5014
        %v5031 = vadd.f32 %v4992, %v5014
        %v5032 = vadd.f32 %v4993, %v5014
        %v5033 = vadd.f32 %v4994, %v5014
        %v5034 = vadd.f32 %v4995, %v5014
        %v5035 = vadd.f32 %v4996, %v5014
        %v5036 = vadd.f32 %v4997, %v5014
        %v5037 = vadd.f32 %v4998, %v5014
        %v5038 = vadd.f32 %v4999, %v5014
        %v5039 = vadd.f32 %v5000, %v5014
        %v5040 = vadd.f32 %v5001, %v5014
        %v5041 = vadd.f32 %v5002, %v5014
        %v5042 = vadd.f32 %v5003, %v5014
        %v5043 = vadd.f32 %v5004, %v5014
        %v5044 = vadd.f32 %v5005, %v5014
        %v5045 = vadd.f32 %v5006, %v5014
        %v5046 = vadd.f32 %v5007, %v5014
        %v5047 = vadd.f32 %v5008, %v5014
        %v5048 = vmax.f32 %v5016, 0.0
        %v5049 = vmax.f32 %v5017, 0.0
        %v5050 = vmax.f32 %v5018, 0.0
        %v5051 = vmax.f32 %v5019, 0.0
        %v5052 = vmax.f32 %v5020, 0.0
        %v5053 = vmax.f32 %v5021, 0.0
        %v5054 = vmax.f32 %v5022, 0.0
        %v5055 = vmax.f32 %v5023, 0.0
        %v5056 = vmax.f32 %v5024, 0.0
        %v5057 = vmax.f32 %v5025, 0.0
        %v5058 = vmax.f32 %v5026, 0.0
        %v5059 = vmax.f32 %v5027, 0.0
        %v5060 = vmax.f32 %v5028, 0.0
        %v5061 = vmax.f32 %v5029, 0.0
        %v5062 = vmax.f32 %v5030, 0.0
        %v5063 = vmax.f32 %v5031, 0.0
        %v5064 = vmax.f32 %v5032, 0.0
        %v5065 = vmax.f32 %v5033, 0.0
        %v5066 = vmax.f32 %v5034, 0.0
        %v5067 = vmax.f32 %v5035, 0.0
        %v5068 = vmax.f32 %v5036, 0.0
        %v5069 = vmax.f32 %v5037, 0.0
        %v5070 = vmax.f32 %v5038, 0.0
        %v5071 = vmax.f32 %v5039, 0.0
        %v5072 = vmax.f32 %v5040, 0.0
        %v5073 = vmax.f32 %v5041, 0.0
        %v5074 = vmax.f32 %v5042, 0.0
        %v5075 = vmax.f32 %v5043, 0.0
        %v5076 = vmax.f32 %v5044, 0.0
        %v5077 = vmax.f32 %v5045, 0.0
        %v5078 = vmax.f32 %v5046, 0.0
        %v5079 = vmax.f32 %v5047, 0.0
        %v5080 = vpack.c.bf16 %v5049, %v5048
        %v5081 = vpack.c.bf16 %v5051, %v5050
        %v5082 = vpack.c.bf16 %v5053, %v5052
        %v5083 = vpack.c.bf16 %v5055, %v5054
        %v5084 = vpack.c.bf16 %v5057, %v5056
        %v5085 = vpack.c.bf16 %v5059, %v5058
        %v5086 = vpack.c.bf16 %v5061, %v5060
        %v5087 = vpack.c.bf16 %v5063, %v5062
        %v5088 = vpack.c.bf16 %v5065, %v5064
        %v5089 = vpack.c.bf16 %v5067, %v5066
        %v5090 = vpack.c.bf16 %v5069, %v5068
        %v5091 = vpack.c.bf16 %v5071, %v5070
        %v5092 = vpack.c.bf16 %v5073, %v5072
        %v5093 = vpack.c.bf16 %v5075, %v5074
        %v5094 = vpack.c.bf16 %v5077, %v5076
        %v5095 = vpack.c.bf16 %v5079, %v5078
        %v5096 = vld [vmem:[%s21] sm:$0xf]
        %v5097 = vld [vmem:[%s21 + $0x4] sm:$0xf]
        %v5098 = vld [vmem:[%s21 + $0x8] sm:$0xf]
        %v5102 = vunpack.c.l.b16 %v5096
        %v5103 = vunpack.c.l.b16 %v5097
        %v5104 = vunpack.c.l.b16 %v5098
        %v5105 = vpack.c.b16 %v5103, %v5102
        %v5106 = vpack.c.b16 %v5104, %v5104
        %vm5108 = vcmask 195584
        %v5110 = vsel %vm5108, %v5080, 0
        %v5113 = vsel %vm5108, %v5081, 0
        %v5116 = vsel %vm5108, %v5082, 0
        %v5119 = vsel %vm5108, %v5083, 0
        %v5122 = vsel %vm5108, %v5084, 0
        %v5125 = vsel %vm5108, %v5085, 0
        %v5128 = vsel %vm5108, %v5086, 0
        %v5131 = vsel %vm5108, %v5087, 0
        %v5134 = vsel %vm5108, %v5088, 0
        %v5137 = vsel %vm5108, %v5089, 0
        %v5140 = vsel %vm5108, %v5090, 0
        %v5143 = vsel %vm5108, %v5091, 0
        %v5146 = vsel %vm5108, %v5092, 0
        %v5149 = vsel %vm5108, %v5093, 0
        %v5152 = vsel %vm5108, %v5094, 0
        %v5155 = vsel %vm5108, %v5095, 0
        %vm5157 = vcmask 1043456
        %v5159 = vsel %vm5157, %v5106, 0
        %5161 = vmatprep.subr.bf16.mxu0 0
        %5162 = vmatpush1.bf16.msra.mxu0 %v5105
        %5163 = vmatprep.subr.bf16.mxu0 0
        %5164 = vmatpush1.bf16.msra.mxu0 %v5159
        %5165 = vmatprep.subr.bf16.mxu0 0
        %5166 = vmatpush1.bf16.msra.mxu0 0
        %5167 = vmatprep.subr.bf16.mxu0 0
        %5168 = vmatpush1.bf16.msra.mxu0 0
        %5169 = vmatprep.subr.bf16.mxu0 0
        %5170 = vmatpush1.bf16.msra.mxu0 0
        %5171 = vmatprep.subr.bf16.mxu0 0
        %5172 = vmatpush1.bf16.msra.mxu0 0
        %5173 = vmatprep.subr.bf16.mxu0 0
        %5174 = vmatpush1.bf16.msra.mxu0 0
        %5175 = vmatprep.subr.bf16.mxu0 0
        %5176 = vmatpush1.bf16.msra.mxu0 0
        %5177 = vmatprep.subr.bf16.mxu0 0
        %5178 = vmatpush1.bf16.msra.mxu0 0
        %5179 = vmatprep.subr.bf16.mxu0 0
        %5180 = vmatpush1.bf16.msra.mxu0 0
        %5181 = vmatprep.subr.bf16.mxu0 0
        %5182 = vmatpush1.bf16.msra.mxu0 0
        %5183 = vmatprep.subr.bf16.mxu0 0
        %5184 = vmatpush1.bf16.msra.mxu0 0
        %5185 = vmatprep.subr.bf16.mxu0 0
        %5186 = vmatpush1.bf16.msra.mxu0 0
        %5187 = vmatprep.subr.bf16.mxu0 0
        %5188 = vmatpush1.bf16.msra.mxu0 0
        %5189 = vmatprep.subr.bf16.mxu0 0
        %5190 = vmatpush1.bf16.msra.mxu0 0
        %5191 = vmatprep.subr.bf16.mxu0 0
        %5192 = vmatpush1.bf16.msra.mxu0 0
        %5193 = vmatprep.mubr.bf16.mxu0 0
        %5194 = vmatmul.mubr.bf16.gmra.mrb[0].mxu0 %v5110
        %v5195 = vpop.f32.mrb[0].mxu0
        %v5196 = vadd.f32 0.0, %v5195
        %v5197 = vpop.f32.mrb[0].mxu0
        %v5198 = vpop.f32.mrb[0].mxu0
        %v5199 = vadd.f32 0.0, %v5198
        %v5200 = vpop.f32.mrb[0].mxu0
        %5201 = vmatprep.mubr.bf16.mxu0 0
        %5202 = vmatmul.mubr.bf16.gmra.mrb[0].mxu0 %v5113
        %v5203 = vpop.f32.mrb[0].mxu0
        %v5204 = vadd.f32 0.0, %v5203
        %v5205 = vpop.f32.mrb[0].mxu0
        %v5206 = vpop.f32.mrb[0].mxu0
        %v5207 = vadd.f32 0.0, %v5206
        %v5208 = vpop.f32.mrb[0].mxu0
        %5209 = vmatprep.mubr.bf16.mxu0 0
        %5210 = vmatmul.mubr.bf16.gmra.mrb[0].mxu0 %v5116
        %v5211 = vpop.f32.mrb[0].mxu0
        %v5212 = vadd.f32 0.0, %v5211
        %v5213 = vpop.f32.mrb[0].mxu0
        %v5214 = vpop.f32.mrb[0].mxu0
        %v5215 = vadd.f32 0.0, %v5214
        %v5216 = vpop.f32.mrb[0].mxu0
        %5217 = vmatprep.mubr.bf16.mxu0 0
        %5218 = vmatmul.mubr.bf16.gmra.mrb[0].mxu0 %v5119
        %v5219 = vpop.f32.mrb[0].mxu0
        %v5220 = vadd.f32 0.0, %v5219
        %v5221 = vpop.f32.mrb[0].mxu0
        %v5222 = vpop.f32.mrb[0].mxu0
        %v5223 = vadd.f32 0.0, %v5222
        %v5224 = vpop.f32.mrb[0].mxu0
        %5225 = vmatprep.mubr.bf16.mxu0 0
        %5226 = vmatmul.mubr.bf16.gmra.mrb[0].mxu0 %v5122
        %v5227 = vpop.f32.mrb[0].mxu0
        %v5228 = vadd.f32 0.0, %v5227
        %v5229 = vpop.f32.mrb[0].mxu0
        %v5230 = vpop.f32.mrb[0].mxu0
        %v5231 = vadd.f32 0.0, %v5230
        %v5232 = vpop.f32.mrb[0].mxu0
        %5233 = vmatprep.mubr.bf16.mxu0 0
        %5234 = vmatmul.mubr.bf16.gmra.mrb[0].mxu0 %v5125
        %v5235 = vpop.f32.mrb[0].mxu0
        %v5236 = vadd.f32 0.0, %v5235
        %v5237 = vpop.f32.mrb[0].mxu0
        %v5238 = vpop.f32.mrb[0].mxu0
        %v5239 = vadd.f32 0.0, %v5238
        %v5240 = vpop.f32.mrb[0].mxu0
        %5241 = vmatprep.mubr.bf16.mxu0 0
        %5242 = vmatmul.mubr.bf16.gmra.mrb[0].mxu0 %v5128
        %v5243 = vpop.f32.mrb[0].mxu0
        %v5244 = vadd.f32 0.0, %v5243
        %v5245 = vpop.f32.mrb[0].mxu0
        %v5246 = vpop.f32.mrb[0].mxu0
        %v5247 = vadd.f32 0.0, %v5246
        %v5248 = vpop.f32.mrb[0].mxu0
        %5249 = vmatprep.mubr.bf16.mxu0 0
        %5250 = vmatmul.mubr.bf16.gmra.mrb[0].mxu0 %v5131
        %v5251 = vpop.f32.mrb[0].mxu0
        %v5252 = vadd.f32 0.0, %v5251
        %v5253 = vpop.f32.mrb[0].mxu0
        %v5254 = vpop.f32.mrb[0].mxu0
        %v5255 = vadd.f32 0.0, %v5254
        %v5256 = vpop.f32.mrb[0].mxu0
        %5257 = vmatprep.mubr.bf16.mxu0 0
        %5258 = vmatmul.mubr.bf16.gmra.mrb[0].mxu0 %v5134
        %v5259 = vpop.f32.mrb[0].mxu0
        %v5260 = vadd.f32 0.0, %v5259
        %v5261 = vpop.f32.mrb[0].mxu0
        %v5262 = vpop.f32.mrb[0].mxu0
        %v5263 = vadd.f32 0.0, %v5262
        %v5264 = vpop.f32.mrb[0].mxu0
        %5265 = vmatprep.mubr.bf16.mxu0 0
        %5266 = vmatmul.mubr.bf16.gmra.mrb[0].mxu0 %v5137
        %v5267 = vpop.f32.mrb[0].mxu0
        %v5268 = vadd.f32 0.0, %v5267
        %v5269 = vpop.f32.mrb[0].mxu0
        %v5270 = vpop.f32.mrb[0].mxu0
        %v5271 = vadd.f32 0.0, %v5270
        %v5272 = vpop.f32.mrb[0].mxu0
        %5273 = vmatprep.mubr.bf16.mxu0 0
        %5274 = vmatmul.mubr.bf16.gmra.mrb[0].mxu0 %v5140
        %v5275 = vpop.f32.mrb[0].mxu0
        %v5276 = vadd.f32 0.0, %v5275
        %v5277 = vpop.f32.mrb[0].mxu0
        %v5278 = vpop.f32.mrb[0].mxu0
        %v5279 = vadd.f32 0.0, %v5278
        %v5280 = vpop.f32.mrb[0].mxu0
        %5281 = vmatprep.mubr.bf16.mxu0 0
        %5282 = vmatmul.mubr.bf16.gmra.mrb[0].mxu0 %v5143
        %v5283 = vpop.f32.mrb[0].mxu0
        %v5284 = vadd.f32 0.0, %v5283
        %v5285 = vpop.f32.mrb[0].mxu0
        %v5286 = vpop.f32.mrb[0].mxu0
        %v5287 = vadd.f32 0.0, %v5286
        %v5288 = vpop.f32.mrb[0].mxu0
        %5289 = vmatprep.mubr.bf16.mxu0 0
        %5290 = vmatmul.mubr.bf16.gmra.mrb[0].mxu0 %v5146
        %v5291 = vpop.f32.mrb[0].mxu0
        %v5292 = vadd.f32 0.0, %v5291
        %v5293 = vpop.f32.mrb[0].mxu0
        %v5294 = vpop.f32.mrb[0].mxu0
        %v5295 = vadd.f32 0.0, %v5294
        %v5296 = vpop.f32.mrb[0].mxu0
        %5297 = vmatprep.mubr.bf16.mxu0 0
        %5298 = vmatmul.mubr.bf16.gmra.mrb[0].mxu0 %v5149
        %v5299 = vpop.f32.mrb[0].mxu0
        %v5300 = vadd.f32 0.0, %v5299
        %v5301 = vpop.f32.mrb[0].mxu0
        %v5302 = vpop.f32.mrb[0].mxu0
        %v5303 = vadd.f32 0.0, %v5302
        %v5304 = vpop.f32.mrb[0].mxu0
        %5305 = vmatprep.mubr.bf16.mxu0 0
        %5306 = vmatmul.mubr.bf16.gmra.mrb[0].mxu0 %v5152
        %v5307 = vpop.f32.mrb[0].mxu0
        %v5308 = vadd.f32 0.0, %v5307
        %v5309 = vpop.f32.mrb[0].mxu0
        %v5310 = vpop.f32.mrb[0].mxu0
        %v5311 = vadd.f32 0.0, %v5310
        %v5312 = vpop.f32.mrb[0].mxu0
        %5313 = vmatprep.mubr.bf16.mxu0 0
        %5314 = vmatmul.mubr.bf16.gmra.mrb[0].mxu0 %v5155
        %v5315 = vpop.f32.mrb[0].mxu0
        %v5316 = vadd.f32 0.0, %v5315
        %v5317 = vpop.f32.mrb[0].mxu0
        %v5318 = vpop.f32.mrb[0].mxu0
        %v5319 = vadd.f32 0.0, %v5318
        %v5320 = vpop.f32.mrb[0].mxu0
        %5321 = vdwg.mxu0
        %v5322 = vld [vmem:[%s23] sm:$0x1]
        %v5324 = vlaneseq
        %v5325 = vshrl.u32 %v5324, 7
        %v5326 = vsub.s32 0, %v5325
        %v5327 = vrot.slane %v5322, %v5326
        %v5329 = vmul.f32 %v5196, %v5327
        %v5330 = vmul.f32 %v5199, %v5327
        %v5331 = vmul.f32 %v5204, %v5327
        %v5332 = vmul.f32 %v5207, %v5327
        %v5333 = vmul.f32 %v5212, %v5327
        %v5334 = vmul.f32 %v5215, %v5327
        %v5335 = vmul.f32 %v5220, %v5327
        %v5336 = vmul.f32 %v5223, %v5327
        %v5337 = vmul.f32 %v5228, %v5327
        %v5338 = vmul.f32 %v5231, %v5327
        %v5339 = vmul.f32 %v5236, %v5327
        %v5340 = vmul.f32 %v5239, %v5327
        %v5341 = vmul.f32 %v5244, %v5327
        %v5342 = vmul.f32 %v5247, %v5327
        %v5343 = vmul.f32 %v5252, %v5327
        %v5344 = vmul.f32 %v5255, %v5327
        %v5345 = vmul.f32 %v5260, %v5327
        %v5346 = vmul.f32 %v5263, %v5327
        %v5347 = vmul.f32 %v5268, %v5327
        %v5348 = vmul.f32 %v5271, %v5327
        %v5349 = vmul.f32 %v5276, %v5327
        %v5350 = vmul.f32 %v5279, %v5327
        %v5351 = vmul.f32 %v5284, %v5327
        %v5352 = vmul.f32 %v5287, %v5327
        %v5353 = vmul.f32 %v5292, %v5327
        %v5354 = vmul.f32 %v5295, %v5327
        %v5355 = vmul.f32 %v5300, %v5327
        %v5356 = vmul.f32 %v5303, %v5327
        %v5357 = vmul.f32 %v5308, %v5327
        %v5358 = vmul.f32 %v5311, %v5327
        %v5359 = vmul.f32 %v5316, %v5327
        %v5360 = vmul.f32 %v5319, %v5327
        %v5361 = vld [vmem:[%s25] sm:$0x1]
        %v5363 = vlaneseq
        %v5364 = vshrl.u32 %v5363, 7
        %v5365 = vsub.s32 0, %v5364
        %v5366 = vrot.slane %v5361, %v5365
        %v5368 = vadd.f32 %v5329, %v5366
        %v5369 = vadd.f32 %v5330, %v5366
        %v5370 = vadd.f32 %v5331, %v5366
        %v5371 = vadd.f32 %v5332, %v5366
        %v5372 = vadd.f32 %v5333, %v5366
        %v5373 = vadd.f32 %v5334, %v5366
        %v5374 = vadd.f32 %v5335, %v5366
        %v5375 = vadd.f32 %v5336, %v5366
        %v5376 = vadd.f32 %v5337, %v5366
        %v5377 = vadd.f32 %v5338, %v5366
        %v5378 = vadd.f32 %v5339, %v5366
        %v5379 = vadd.f32 %v5340, %v5366
        %v5380 = vadd.f32 %v5341, %v5366
        %v5381 = vadd.f32 %v5342, %v5366
        %v5382 = vadd.f32 %v5343, %v5366
        %v5383 = vadd.f32 %v5344, %v5366
        %v5384 = vadd.f32 %v5345, %v5366
        %v5385 = vadd.f32 %v5346, %v5366
        %v5386 = vadd.f32 %v5347, %v5366
        %v5387 = vadd.f32 %v5348, %v5366
        %v5388 = vadd.f32 %v5349, %v5366
        %v5389 = vadd.f32 %v5350, %v5366
        %v5390 = vadd.f32 %v5351, %v5366
        %v5391 = vadd.f32 %v5352, %v5366
        %v5392 = vadd.f32 %v5353, %v5366
        %v5393 = vadd.f32 %v5354, %v5366
        %v5394 = vadd.f32 %v5355, %v5366
        %v5395 = vadd.f32 %v5356, %v5366
        %v5396 = vadd.f32 %v5357, %v5366
        %v5397 = vadd.f32 %v5358, %v5366
        %v5398 = vadd.f32 %v5359, %v5366
        %v5399 = vadd.f32 %v5360, %v5366
        %v5400 = vmax.f32 %v5368, 0.0
        %v5401 = vmax.f32 %v5369, 0.0
        %v5402 = vmax.f32 %v5370, 0.0
        %v5403 = vmax.f32 %v5371, 0.0
        %v5404 = vmax.f32 %v5372, 0.0
        %v5405 = vmax.f32 %v5373, 0.0
        %v5406 = vmax.f32 %v5374, 0.0
        %v5407 = vmax.f32 %v5375, 0.0
        %v5408 = vmax.f32 %v5376, 0.0
        %v5409 = vmax.f32 %v5377, 0.0
        %v5410 = vmax.f32 %v5378, 0.0
        %v5411 = vmax.f32 %v5379, 0.0
        %v5412 = vmax.f32 %v5380, 0.0
        %v5413 = vmax.f32 %v5381, 0.0
        %v5414 = vmax.f32 %v5382, 0.0
        %v5415 = vmax.f32 %v5383, 0.0
        %v5416 = vmax.f32 %v5384, 0.0
        %v5417 = vmax.f32 %v5385, 0.0
        %v5418 = vmax.f32 %v5386, 0.0
        %v5419 = vmax.f32 %v5387, 0.0
        %v5420 = vmax.f32 %v5388, 0.0
        %v5421 = vmax.f32 %v5389, 0.0
        %v5422 = vmax.f32 %v5390, 0.0
        %v5423 = vmax.f32 %v5391, 0.0
        %v5424 = vmax.f32 %v5392, 0.0
        %v5425 = vmax.f32 %v5393, 0.0
        %v5426 = vmax.f32 %v5394, 0.0
        %v5427 = vmax.f32 %v5395, 0.0
        %v5428 = vmax.f32 %v5396, 0.0
        %v5429 = vmax.f32 %v5397, 0.0
        %v5430 = vmax.f32 %v5398, 0.0
        %v5431 = vmax.f32 %v5399, 0.0
        %5432 = vst.msk [vmem:[%s1146 + $0x8] sm:$0xff] %vm1041, %v5400
        %5433 = vst.msk [vmem:[%s1146 + $0x10] sm:$0xff] %vm1041, %v5401
        %5434 = vst.msk [vmem:[%s1146 + $0x28] sm:$0xff] %vm1041, %v5402
        %5435 = vst.msk [vmem:[%s1146 + $0x30] sm:$0xff] %vm1041, %v5403
        %5436 = vst.msk [vmem:[%s1146 + $0x48] sm:$0xff] %vm1041, %v5404
        %5437 = vst.msk [vmem:[%s1146 + $0x50] sm:$0xff] %vm1041, %v5405
        %5438 = vst.msk [vmem:[%s1146 + $0x68] sm:$0xff] %vm1041, %v5406
        %5439 = vst.msk [vmem:[%s1146 + $0x70] sm:$0xff] %vm1041, %v5407
        %5440 = vst.msk [vmem:[%s1146 + $0x88] sm:$0xff] %vm1041, %v5408
        %5441 = vst.msk [vmem:[%s1146 + $0x90] sm:$0xff] %vm1041, %v5409
        %5442 = vst.msk [vmem:[%s1146 + $0xa8] sm:$0xff] %vm1041, %v5410
        %5443 = vst.msk [vmem:[%s1146 + $0xb0] sm:$0xff] %vm1041, %v5411
        %5444 = vst.msk [vmem:[%s1146 + $0xc8] sm:$0xff] %vm1041, %v5412
        %5445 = vst.msk [vmem:[%s1146 + $0xd0] sm:$0xff] %vm1041, %v5413
        %5446 = vst.msk [vmem:[%s1146 + $0xe8] sm:$0xff] %vm1041, %v5414
        %5447 = vst.msk [vmem:[%s1146 + $0xf0] sm:$0xff] %vm1041, %v5415
        %5448 = vst.msk [vmem:[%s1146 + $0x108] sm:$0xff] %vm1041, %v5416
        %5449 = vst.msk [vmem:[%s1146 + $0x110] sm:$0xff] %vm1041, %v5417
        %5450 = vst.msk [vmem:[%s1146 + $0x128] sm:$0xff] %vm1041, %v5418
        %5451 = vst.msk [vmem:[%s1146 + $0x130] sm:$0xff] %vm1041, %v5419
        %5452 = vst.msk [vmem:[%s1146 + $0x148] sm:$0xff] %vm1041, %v5420
        %5453 = vst.msk [vmem:[%s1146 + $0x150] sm:$0xff] %vm1041, %v5421
        %5454 = vst.msk [vmem:[%s1146 + $0x168] sm:$0xff] %vm1041, %v5422
        %5455 = vst.msk [vmem:[%s1146 + $0x170] sm:$0xff] %vm1041, %v5423
        %5456 = vst.msk [vmem:[%s1146 + $0x188] sm:$0xff] %vm1041, %v5424
        %5457 = vst.msk [vmem:[%s1146 + $0x190] sm:$0xff] %vm1041, %v5425
        %5458 = vst.msk [vmem:[%s1146 + $0x1a8] sm:$0xff] %vm1041, %v5426
        %5459 = vst.msk [vmem:[%s1146 + $0x1b0] sm:$0xff] %vm1041, %v5427
        %5460 = vst.msk [vmem:[%s1146 + $0x1c8] sm:$0xff] %vm1041, %v5428
        %5461 = vst.msk [vmem:[%s1146 + $0x1d0] sm:$0xff] %vm1041, %v5429
        %5462 = vst.msk [vmem:[%s1146 + $0x1e8] sm:$0xff] %vm1041, %v5430
        %5463 = vst.msk [vmem:[%s1146 + $0x1f0] sm:$0xff] %vm1041, %v5431
        %v5464 = vld [vmem:[#allocation3 + $0x7] sm:$0xff]
        %v5465 = vld [vmem:[#allocation3 + $0xf] sm:$0xff]
        %v5466 = vld [vmem:[#allocation3 + $0x27] sm:$0xff]
        %v5467 = vld [vmem:[#allocation3 + $0x2f] sm:$0xff]
        %v5468 = vld [vmem:[#allocation3 + $0x47] sm:$0xff]
        %v5469 = vld [vmem:[#allocation3 + $0x4f] sm:$0xff]
        %v5470 = vld [vmem:[#allocation3 + $0x67] sm:$0xff]
        %v5471 = vld [vmem:[#allocation3 + $0x6f] sm:$0xff]
        %v5472 = vld [vmem:[#allocation3 + $0x87] sm:$0xff]
        %v5473 = vld [vmem:[#allocation3 + $0x8f] sm:$0xff]
        %v5474 = vld [vmem:[#allocation3 + $0xa7] sm:$0xff]
        %v5475 = vld [vmem:[#allocation3 + $0xaf] sm:$0xff]
        %v5476 = vld [vmem:[#allocation3 + $0xc7] sm:$0xff]
        %v5477 = vld [vmem:[#allocation3 + $0xcf] sm:$0xff]
        %v5478 = vld [vmem:[#allocation3 + $0xe7] sm:$0xff]
        %v5479 = vld [vmem:[#allocation3 + $0xef] sm:$0xff]
        %v5480 = vld [vmem:[#allocation3 + $0x107] sm:$0xff]
        %v5481 = vld [vmem:[#allocation3 + $0x10f] sm:$0xff]
        %v5482 = vld [vmem:[#allocation3 + $0x127] sm:$0xff]
        %v5483 = vld [vmem:[#allocation3 + $0x12f] sm:$0xff]
        %v5484 = vld [vmem:[#allocation3 + $0x147] sm:$0xff]
        %v5485 = vld [vmem:[#allocation3 + $0x14f] sm:$0xff]
        %v5486 = vld [vmem:[#allocation3 + $0x167] sm:$0xff]
        %v5487 = vld [vmem:[#allocation3 + $0x16f] sm:$0xff]
        %v5488 = vld [vmem:[#allocation3 + $0x187] sm:$0xff]
        %v5489 = vld [vmem:[#allocation3 + $0x18f] sm:$0xff]
        %v5490 = vld [vmem:[#allocation3 + $0x1a7] sm:$0xff]
        %v5491 = vld [vmem:[#allocation3 + $0x1af] sm:$0xff]
        %v5492 = vld [vmem:[#allocation3 + $0x1c7] sm:$0xff]
        %v5493 = vld [vmem:[#allocation3 + $0x1cf] sm:$0xff]
        %v5494 = vld [vmem:[#allocation3 + $0x1e7] sm:$0xff]
        %v5495 = vld [vmem:[#allocation3 + $0x1ef] sm:$0xff]
        %v5496 = vpack.c.bf16 %v5465, %v5464
        %v5497 = vpack.c.bf16 %v5467, %v5466
        %v5498 = vpack.c.bf16 %v5469, %v5468
        %v5499 = vpack.c.bf16 %v5471, %v5470
        %v5500 = vpack.c.bf16 %v5473, %v5472
        %v5501 = vpack.c.bf16 %v5475, %v5474
        %v5502 = vpack.c.bf16 %v5477, %v5476
        %v5503 = vpack.c.bf16 %v5479, %v5478
        %v5504 = vpack.c.bf16 %v5481, %v5480
        %v5505 = vpack.c.bf16 %v5483, %v5482
        %v5506 = vpack.c.bf16 %v5485, %v5484
        %v5507 = vpack.c.bf16 %v5487, %v5486
        %v5508 = vpack.c.bf16 %v5489, %v5488
        %v5509 = vpack.c.bf16 %v5491, %v5490
        %v5510 = vpack.c.bf16 %v5493, %v5492
        %v5511 = vpack.c.bf16 %v5495, %v5494
        %5512 = vst.msk [vmem:[#allocation4] sm:$0xff] %vm1041, %v5496
        %5513 = vst.msk [vmem:[#allocation4 + $0x18] sm:$0xff] %vm1041, %v5497
        %5514 = vst.msk [vmem:[#allocation4 + $0x30] sm:$0xff] %vm1041, %v5498
        %5515 = vst.msk [vmem:[#allocation4 + $0x48] sm:$0xff] %vm1041, %v5499
        %5516 = vst.msk [vmem:[#allocation4 + $0x60] sm:$0xff] %vm1041, %v5500
        %5517 = vst.msk [vmem:[#allocation4 + $0x78] sm:$0xff] %vm1041, %v5501
        %5518 = vst.msk [vmem:[#allocation4 + $0x90] sm:$0xff] %vm1041, %v5502
        %5519 = vst.msk [vmem:[#allocation4 + $0xa8] sm:$0xff] %vm1041, %v5503
        %5520 = vst.msk [vmem:[#allocation4 + $0xc0] sm:$0xff] %vm1041, %v5504
        %5521 = vst.msk [vmem:[#allocation4 + $0xd8] sm:$0xff] %vm1041, %v5505
        %5522 = vst.msk [vmem:[#allocation4 + $0xf0] sm:$0xff] %vm1041, %v5506
        %5523 = vst.msk [vmem:[#allocation4 + $0x108] sm:$0xff] %vm1041, %v5507
        %5524 = vst.msk [vmem:[#allocation4 + $0x120] sm:$0xff] %vm1041, %v5508
        %5525 = vst.msk [vmem:[#allocation4 + $0x138] sm:$0xff] %vm1041, %v5509
        %5526 = vst.msk [vmem:[#allocation4 + $0x150] sm:$0xff] %vm1041, %v5510
        %5527 = vst.msk [vmem:[#allocation4 + $0x168] sm:$0xff] %vm1041, %v5511
        %v5528 = vld [vmem:[#allocation3 + $0x8] sm:$0xff]
        %v5529 = vld [vmem:[#allocation3 + $0x10] sm:$0xff]
        %v5530 = vld [vmem:[#allocation3 + $0x28] sm:$0xff]
        %v5531 = vld [vmem:[#allocation3 + $0x30] sm:$0xff]
        %v5532 = vld [vmem:[#allocation3 + $0x48] sm:$0xff]
        %v5533 = vld [vmem:[#allocation3 + $0x50] sm:$0xff]
        %v5534 = vld [vmem:[#allocation3 + $0x68] sm:$0xff]
        %v5535 = vld [vmem:[#allocation3 + $0x70] sm:$0xff]
        %v5536 = vld [vmem:[#allocation3 + $0x88] sm:$0xff]
        %v5537 = vld [vmem:[#allocation3 + $0x90] sm:$0xff]
        %v5538 = vld [vmem:[#allocation3 + $0xa8] sm:$0xff]
        %v5539 = vld [vmem:[#allocation3 + $0xb0] sm:$0xff]
        %v5540 = vld [vmem:[#allocation3 + $0xc8] sm:$0xff]
        %v5541 = vld [vmem:[#allocation3 + $0xd0] sm:$0xff]
        %v5542 = vld [vmem:[#allocation3 + $0xe8] sm:$0xff]
        %v5543 = vld [vmem:[#allocation3 + $0xf0] sm:$0xff]
        %v5544 = vld [vmem:[#allocation3 + $0x108] sm:$0xff]
        %v5545 = vld [vmem:[#allocation3 + $0x110] sm:$0xff]
        %v5546 = vld [vmem:[#allocation3 + $0x128] sm:$0xff]
        %v5547 = vld [vmem:[#allocation3 + $0x130] sm:$0xff]
        %v5548 = vld [vmem:[#allocation3 + $0x148] sm:$0xff]
        %v5549 = vld [vmem:[#allocation3 + $0x150] sm:$0xff]
        %v5550 = vld [vmem:[#allocation3 + $0x168] sm:$0xff]
        %v5551 = vld [vmem:[#allocation3 + $0x170] sm:$0xff]
        %v5552 = vld [vmem:[#allocation3 + $0x188] sm:$0xff]
        %v5553 = vld [vmem:[#allocation3 + $0x190] sm:$0xff]
        %v5554 = vld [vmem:[#allocation3 + $0x1a8] sm:$0xff]
        %v5555 = vld [vmem:[#allocation3 + $0x1b0] sm:$0xff]
        %v5556 = vld [vmem:[#allocation3 + $0x1c8] sm:$0xff]
        %v5557 = vld [vmem:[#allocation3 + $0x1d0] sm:$0xff]
        %v5558 = vld [vmem:[#allocation3 + $0x1e8] sm:$0xff]
        %v5559 = vld [vmem:[#allocation3 + $0x1f0] sm:$0xff]
        %v5560 = vpack.c.bf16 %v5529, %v5528
        %v5561 = vpack.c.bf16 %v5531, %v5530
        %v5562 = vpack.c.bf16 %v5533, %v5532
        %v5563 = vpack.c.bf16 %v5535, %v5534
        %v5564 = vpack.c.bf16 %v5537, %v5536
        %v5565 = vpack.c.bf16 %v5539, %v5538
        %v5566 = vpack.c.bf16 %v5541, %v5540
        %v5567 = vpack.c.bf16 %v5543, %v5542
        %v5568 = vpack.c.bf16 %v5545, %v5544
        %v5569 = vpack.c.bf16 %v5547, %v5546
        %v5570 = vpack.c.bf16 %v5549, %v5548
        %v5571 = vpack.c.bf16 %v5551, %v5550
        %v5572 = vpack.c.bf16 %v5553, %v5552
        %v5573 = vpack.c.bf16 %v5555, %v5554
        %v5574 = vpack.c.bf16 %v5557, %v5556
        %v5575 = vpack.c.bf16 %v5559, %v5558
        %5592 = vrot.lane.b32.xlu0 %v5560, 32
        %v5593 = vpop.permute.xlu0 %5592
        %5594 = vrot.lane.b32.xlu0 %v5561, 32
        %v5595 = vpop.permute.xlu0 %5594
        %5596 = vrot.lane.b32.xlu0 %v5562, 32
        %v5597 = vpop.permute.xlu0 %5596
        %5598 = vrot.lane.b32.xlu0 %v5563, 32
        %v5599 = vpop.permute.xlu0 %5598
        %5600 = vrot.lane.b32.xlu0 %v5564, 32
        %v5601 = vpop.permute.xlu0 %5600
        %5602 = vrot.lane.b32.xlu0 %v5565, 32
        %v5603 = vpop.permute.xlu0 %5602
        %5604 = vrot.lane.b32.xlu0 %v5566, 32
        %v5605 = vpop.permute.xlu0 %5604
        %5606 = vrot.lane.b32.xlu0 %v5567, 32
        %v5607 = vpop.permute.xlu0 %5606
        %5608 = vrot.lane.b32.xlu0 %v5568, 32
        %v5609 = vpop.permute.xlu0 %5608
        %5610 = vrot.lane.b32.xlu0 %v5569, 32
        %v5611 = vpop.permute.xlu0 %5610
        %5612 = vrot.lane.b32.xlu0 %v5570, 32
        %v5613 = vpop.permute.xlu0 %5612
        %5614 = vrot.lane.b32.xlu0 %v5571, 32
        %v5615 = vpop.permute.xlu0 %5614
        %5616 = vrot.lane.b32.xlu0 %v5572, 32
        %v5617 = vpop.permute.xlu0 %5616
        %5618 = vrot.lane.b32.xlu0 %v5573, 32
        %v5619 = vpop.permute.xlu0 %5618
        %5620 = vrot.lane.b32.xlu0 %v5574, 32
        %v5621 = vpop.permute.xlu0 %5620
        %5622 = vrot.lane.b32.xlu0 %v5575, 32
        %v5623 = vpop.permute.xlu0 %5622
        %5640 = vst.msk [vmem:[#allocation4] sm:$0xff] %vm1355, %v5593
        %5641 = vst.msk [vmem:[#allocation4 + $0x18] sm:$0xff] %vm1355, %v5595
        %5642 = vst.msk [vmem:[#allocation4 + $0x30] sm:$0xff] %vm1355, %v5597
        %5643 = vst.msk [vmem:[#allocation4 + $0x48] sm:$0xff] %vm1355, %v5599
        %5644 = vst.msk [vmem:[#allocation4 + $0x60] sm:$0xff] %vm1355, %v5601
        %5645 = vst.msk [vmem:[#allocation4 + $0x78] sm:$0xff] %vm1355, %v5603
        %5646 = vst.msk [vmem:[#allocation4 + $0x90] sm:$0xff] %vm1355, %v5605
        %5647 = vst.msk [vmem:[#allocation4 + $0xa8] sm:$0xff] %vm1355, %v5607
        %5648 = vst.msk [vmem:[#allocation4 + $0xc0] sm:$0xff] %vm1355, %v5609
        %5649 = vst.msk [vmem:[#allocation4 + $0xd8] sm:$0xff] %vm1355, %v5611
        %5650 = vst.msk [vmem:[#allocation4 + $0xf0] sm:$0xff] %vm1355, %v5613
        %5651 = vst.msk [vmem:[#allocation4 + $0x108] sm:$0xff] %vm1355, %v5615
        %5652 = vst.msk [vmem:[#allocation4 + $0x120] sm:$0xff] %vm1355, %v5617
        %5653 = vst.msk [vmem:[#allocation4 + $0x138] sm:$0xff] %vm1355, %v5619
        %5654 = vst.msk [vmem:[#allocation4 + $0x150] sm:$0xff] %vm1355, %v5621
        %5655 = vst.msk [vmem:[#allocation4 + $0x168] sm:$0xff] %vm1355, %v5623
        %v5656 = vld [vmem:[#allocation3 + $0x9] sm:$0xff]
        %v5657 = vld [vmem:[#allocation3 + $0x11] sm:$0xff]
        %v5658 = vld [vmem:[#allocation3 + $0x29] sm:$0xff]
        %v5659 = vld [vmem:[#allocation3 + $0x31] sm:$0xff]
        %v5660 = vld [vmem:[#allocation3 + $0x49] sm:$0xff]
        %v5661 = vld [vmem:[#allocation3 + $0x51] sm:$0xff]
        %v5662 = vld [vmem:[#allocation3 + $0x69] sm:$0xff]
        %v5663 = vld [vmem:[#allocation3 + $0x71] sm:$0xff]
        %v5664 = vld [vmem:[#allocation3 + $0x89] sm:$0xff]
        %v5665 = vld [vmem:[#allocation3 + $0x91] sm:$0xff]
        %v5666 = vld [vmem:[#allocation3 + $0xa9] sm:$0xff]
        %v5667 = vld [vmem:[#allocation3 + $0xb1] sm:$0xff]
        %v5668 = vld [vmem:[#allocation3 + $0xc9] sm:$0xff]
        %v5669 = vld [vmem:[#allocation3 + $0xd1] sm:$0xff]
        %v5670 = vld [vmem:[#allocation3 + $0xe9] sm:$0xff]
        %v5671 = vld [vmem:[#allocation3 + $0xf1] sm:$0xff]
        %v5672 = vld [vmem:[#allocation3 + $0x109] sm:$0xff]
        %v5673 = vld [vmem:[#allocation3 + $0x111] sm:$0xff]
        %v5674 = vld [vmem:[#allocation3 + $0x129] sm:$0xff]
        %v5675 = vld [vmem:[#allocation3 + $0x131] sm:$0xff]
        %v5676 = vld [vmem:[#allocation3 + $0x149] sm:$0xff]
        %v5677 = vld [vmem:[#allocation3 + $0x151] sm:$0xff]
        %v5678 = vld [vmem:[#allocation3 + $0x169] sm:$0xff]
        %v5679 = vld [vmem:[#allocation3 + $0x171] sm:$0xff]
        %v5680 = vld [vmem:[#allocation3 + $0x189] sm:$0xff]
        %v5681 = vld [vmem:[#allocation3 + $0x191] sm:$0xff]
        %v5682 = vld [vmem:[#allocation3 + $0x1a9] sm:$0xff]
        %v5683 = vld [vmem:[#allocation3 + $0x1b1] sm:$0xff]
        %v5684 = vld [vmem:[#allocation3 + $0x1c9] sm:$0xff]
        %v5685 = vld [vmem:[#allocation3 + $0x1d1] sm:$0xff]
        %v5686 = vld [vmem:[#allocation3 + $0x1e9] sm:$0xff]
        %v5687 = vld [vmem:[#allocation3 + $0x1f1] sm:$0xff]
        %v5688 = vpack.c.bf16 %v5657, %v5656
        %v5689 = vpack.c.bf16 %v5659, %v5658
        %v5690 = vpack.c.bf16 %v5661, %v5660
        %v5691 = vpack.c.bf16 %v5663, %v5662
        %v5692 = vpack.c.bf16 %v5665, %v5664
        %v5693 = vpack.c.bf16 %v5667, %v5666
        %v5694 = vpack.c.bf16 %v5669, %v5668
        %v5695 = vpack.c.bf16 %v5671, %v5670
        %v5696 = vpack.c.bf16 %v5673, %v5672
        %v5697 = vpack.c.bf16 %v5675, %v5674
        %v5698 = vpack.c.bf16 %v5677, %v5676
        %v5699 = vpack.c.bf16 %v5679, %v5678
        %v5700 = vpack.c.bf16 %v5681, %v5680
        %v5701 = vpack.c.bf16 %v5683, %v5682
        %v5702 = vpack.c.bf16 %v5685, %v5684
        %v5703 = vpack.c.bf16 %v5687, %v5686
        %5720 = vrot.lane.b32.xlu0 %v5688, 64
        %v5721 = vpop.permute.xlu0 %5720
        %5722 = vrot.lane.b32.xlu0 %v5689, 64
        %v5723 = vpop.permute.xlu0 %5722
        %5724 = vrot.lane.b32.xlu0 %v5690, 64
        %v5725 = vpop.permute.xlu0 %5724
        %5726 = vrot.lane.b32.xlu0 %v5691, 64
        %v5727 = vpop.permute.xlu0 %5726
        %5728 = vrot.lane.b32.xlu0 %v5692, 64
        %v5729 = vpop.permute.xlu0 %5728
        %5730 = vrot.lane.b32.xlu0 %v5693, 64
        %v5731 = vpop.permute.xlu0 %5730
        %5732 = vrot.lane.b32.xlu0 %v5694, 64
        %v5733 = vpop.permute.xlu0 %5732
        %5734 = vrot.lane.b32.xlu0 %v5695, 64
        %v5735 = vpop.permute.xlu0 %5734
        %5736 = vrot.lane.b32.xlu0 %v5696, 64
        %v5737 = vpop.permute.xlu0 %5736
        %5738 = vrot.lane.b32.xlu0 %v5697, 64
        %v5739 = vpop.permute.xlu0 %5738
        %5740 = vrot.lane.b32.xlu0 %v5698, 64
        %v5741 = vpop.permute.xlu0 %5740
        %5742 = vrot.lane.b32.xlu0 %v5699, 64
        %v5743 = vpop.permute.xlu0 %5742
        %5744 = vrot.lane.b32.xlu0 %v5700, 64
        %v5745 = vpop.permute.xlu0 %5744
        %5746 = vrot.lane.b32.xlu0 %v5701, 64
        %v5747 = vpop.permute.xlu0 %5746
        %5748 = vrot.lane.b32.xlu0 %v5702, 64
        %v5749 = vpop.permute.xlu0 %5748
        %5750 = vrot.lane.b32.xlu0 %v5703, 64
        %v5751 = vpop.permute.xlu0 %5750
        %5768 = vst.msk [vmem:[#allocation4] sm:$0xff] %vm1484, %v5721
        %5769 = vst.msk [vmem:[#allocation4 + $0x18] sm:$0xff] %vm1484, %v5723
        %5770 = vst.msk [vmem:[#allocation4 + $0x30] sm:$0xff] %vm1484, %v5725
        %5771 = vst.msk [vmem:[#allocation4 + $0x48] sm:$0xff] %vm1484, %v5727
        %5772 = vst.msk [vmem:[#allocation4 + $0x60] sm:$0xff] %vm1484, %v5729
        %5773 = vst.msk [vmem:[#allocation4 + $0x78] sm:$0xff] %vm1484, %v5731
        %5774 = vst.msk [vmem:[#allocation4 + $0x90] sm:$0xff] %vm1484, %v5733
        %5775 = vst.msk [vmem:[#allocation4 + $0xa8] sm:$0xff] %vm1484, %v5735
        %5776 = vst.msk [vmem:[#allocation4 + $0xc0] sm:$0xff] %vm1484, %v5737
        %5777 = vst.msk [vmem:[#allocation4 + $0xd8] sm:$0xff] %vm1484, %v5739
        %5778 = vst.msk [vmem:[#allocation4 + $0xf0] sm:$0xff] %vm1484, %v5741
        %5779 = vst.msk [vmem:[#allocation4 + $0x108] sm:$0xff] %vm1484, %v5743
        %5780 = vst.msk [vmem:[#allocation4 + $0x120] sm:$0xff] %vm1484, %v5745
        %5781 = vst.msk [vmem:[#allocation4 + $0x138] sm:$0xff] %vm1484, %v5747
        %5782 = vst.msk [vmem:[#allocation4 + $0x150] sm:$0xff] %vm1484, %v5749
        %5783 = vst.msk [vmem:[#allocation4 + $0x168] sm:$0xff] %vm1484, %v5751
        %v5784 = vld [vmem:[%s1146 + $0x7] sm:$0xff]
        %v5785 = vld [vmem:[%s1146 + $0xf] sm:$0xff]
        %v5786 = vld [vmem:[%s1146 + $0x27] sm:$0xff]
        %v5787 = vld [vmem:[%s1146 + $0x2f] sm:$0xff]
        %v5788 = vld [vmem:[%s1146 + $0x47] sm:$0xff]
        %v5789 = vld [vmem:[%s1146 + $0x4f] sm:$0xff]
        %v5790 = vld [vmem:[%s1146 + $0x67] sm:$0xff]
        %v5791 = vld [vmem:[%s1146 + $0x6f] sm:$0xff]
        %v5792 = vld [vmem:[%s1146 + $0x87] sm:$0xff]
        %v5793 = vld [vmem:[%s1146 + $0x8f] sm:$0xff]
        %v5794 = vld [vmem:[%s1146 + $0xa7] sm:$0xff]
        %v5795 = vld [vmem:[%s1146 + $0xaf] sm:$0xff]
        %v5796 = vld [vmem:[%s1146 + $0xc7] sm:$0xff]
        %v5797 = vld [vmem:[%s1146 + $0xcf] sm:$0xff]
        %v5798 = vld [vmem:[%s1146 + $0xe7] sm:$0xff]
        %v5799 = vld [vmem:[%s1146 + $0xef] sm:$0xff]
        %v5800 = vld [vmem:[%s1146 + $0x107] sm:$0xff]
        %v5801 = vld [vmem:[%s1146 + $0x10f] sm:$0xff]
        %v5802 = vld [vmem:[%s1146 + $0x127] sm:$0xff]
        %v5803 = vld [vmem:[%s1146 + $0x12f] sm:$0xff]
        %v5804 = vld [vmem:[%s1146 + $0x147] sm:$0xff]
        %v5805 = vld [vmem:[%s1146 + $0x14f] sm:$0xff]
        %v5806 = vld [vmem:[%s1146 + $0x167] sm:$0xff]
        %v5807 = vld [vmem:[%s1146 + $0x16f] sm:$0xff]
        %v5808 = vld [vmem:[%s1146 + $0x187] sm:$0xff]
        %v5809 = vld [vmem:[%s1146 + $0x18f] sm:$0xff]
        %v5810 = vld [vmem:[%s1146 + $0x1a7] sm:$0xff]
        %v5811 = vld [vmem:[%s1146 + $0x1af] sm:$0xff]
        %v5812 = vld [vmem:[%s1146 + $0x1c7] sm:$0xff]
        %v5813 = vld [vmem:[%s1146 + $0x1cf] sm:$0xff]
        %v5814 = vld [vmem:[%s1146 + $0x1e7] sm:$0xff]
        %v5815 = vld [vmem:[%s1146 + $0x1ef] sm:$0xff]
        %v5816 = vpack.c.bf16 %v5785, %v5784
        %v5817 = vpack.c.bf16 %v5787, %v5786
        %v5818 = vpack.c.bf16 %v5789, %v5788
        %v5819 = vpack.c.bf16 %v5791, %v5790
        %v5820 = vpack.c.bf16 %v5793, %v5792
        %v5821 = vpack.c.bf16 %v5795, %v5794
        %v5822 = vpack.c.bf16 %v5797, %v5796
        %v5823 = vpack.c.bf16 %v5799, %v5798
        %v5824 = vpack.c.bf16 %v5801, %v5800
        %v5825 = vpack.c.bf16 %v5803, %v5802
        %v5826 = vpack.c.bf16 %v5805, %v5804
        %v5827 = vpack.c.bf16 %v5807, %v5806
        %v5828 = vpack.c.bf16 %v5809, %v5808
        %v5829 = vpack.c.bf16 %v5811, %v5810
        %v5830 = vpack.c.bf16 %v5813, %v5812
        %v5831 = vpack.c.bf16 %v5815, %v5814
        %5848 = vrot.lane.b32.xlu0 %v5816, 96
        %v5849 = vpop.permute.xlu0 %5848
        %5850 = vrot.lane.b32.xlu0 %v5817, 96
        %v5851 = vpop.permute.xlu0 %5850
        %5852 = vrot.lane.b32.xlu0 %v5818, 96
        %v5853 = vpop.permute.xlu0 %5852
        %5854 = vrot.lane.b32.xlu0 %v5819, 96
        %v5855 = vpop.permute.xlu0 %5854
        %5856 = vrot.lane.b32.xlu0 %v5820, 96
        %v5857 = vpop.permute.xlu0 %5856
        %5858 = vrot.lane.b32.xlu0 %v5821, 96
        %v5859 = vpop.permute.xlu0 %5858
        %5860 = vrot.lane.b32.xlu0 %v5822, 96
        %v5861 = vpop.permute.xlu0 %5860
        %5862 = vrot.lane.b32.xlu0 %v5823, 96
        %v5863 = vpop.permute.xlu0 %5862
        %5864 = vrot.lane.b32.xlu0 %v5824, 96
        %v5865 = vpop.permute.xlu0 %5864
        %5866 = vrot.lane.b32.xlu0 %v5825, 96
        %v5867 = vpop.permute.xlu0 %5866
        %5868 = vrot.lane.b32.xlu0 %v5826, 96
        %v5869 = vpop.permute.xlu0 %5868
        %5870 = vrot.lane.b32.xlu0 %v5827, 96
        %v5871 = vpop.permute.xlu0 %5870
        %5872 = vrot.lane.b32.xlu0 %v5828, 96
        %v5873 = vpop.permute.xlu0 %5872
        %5874 = vrot.lane.b32.xlu0 %v5829, 96
        %v5875 = vpop.permute.xlu0 %5874
        %5876 = vrot.lane.b32.xlu0 %v5830, 96
        %v5877 = vpop.permute.xlu0 %5876
        %5878 = vrot.lane.b32.xlu0 %v5831, 96
        %v5879 = vpop.permute.xlu0 %5878
        %5896 = vst.msk [vmem:[#allocation4] sm:$0xff] %vm1613, %v5849
        %5897 = vst.msk [vmem:[#allocation4 + $0x18] sm:$0xff] %vm1613, %v5851
        %5898 = vst.msk [vmem:[#allocation4 + $0x30] sm:$0xff] %vm1613, %v5853
        %5899 = vst.msk [vmem:[#allocation4 + $0x48] sm:$0xff] %vm1613, %v5855
        %5900 = vst.msk [vmem:[#allocation4 + $0x60] sm:$0xff] %vm1613, %v5857
        %5901 = vst.msk [vmem:[#allocation4 + $0x78] sm:$0xff] %vm1613, %v5859
        %5902 = vst.msk [vmem:[#allocation4 + $0x90] sm:$0xff] %vm1613, %v5861
        %5903 = vst.msk [vmem:[#allocation4 + $0xa8] sm:$0xff] %vm1613, %v5863
        %5904 = vst.msk [vmem:[#allocation4 + $0xc0] sm:$0xff] %vm1613, %v5865
        %5905 = vst.msk [vmem:[#allocation4 + $0xd8] sm:$0xff] %vm1613, %v5867
        %5906 = vst.msk [vmem:[#allocation4 + $0xf0] sm:$0xff] %vm1613, %v5869
        %5907 = vst.msk [vmem:[#allocation4 + $0x108] sm:$0xff] %vm1613, %v5871
        %5908 = vst.msk [vmem:[#allocation4 + $0x120] sm:$0xff] %vm1613, %v5873
        %5909 = vst.msk [vmem:[#allocation4 + $0x138] sm:$0xff] %vm1613, %v5875
        %5910 = vst.msk [vmem:[#allocation4 + $0x150] sm:$0xff] %vm1613, %v5877
        %5911 = vst.msk [vmem:[#allocation4 + $0x168] sm:$0xff] %vm1613, %v5879
        %v5912 = vld [vmem:[%s1146 + $0x8] sm:$0xff]
        %v5913 = vld [vmem:[%s1146 + $0x10] sm:$0xff]
        %v5914 = vld [vmem:[%s1146 + $0x28] sm:$0xff]
        %v5915 = vld [vmem:[%s1146 + $0x30] sm:$0xff]
        %v5916 = vld [vmem:[%s1146 + $0x48] sm:$0xff]
        %v5917 = vld [vmem:[%s1146 + $0x50] sm:$0xff]
        %v5918 = vld [vmem:[%s1146 + $0x68] sm:$0xff]
        %v5919 = vld [vmem:[%s1146 + $0x70] sm:$0xff]
        %v5920 = vld [vmem:[%s1146 + $0x88] sm:$0xff]
        %v5921 = vld [vmem:[%s1146 + $0x90] sm:$0xff]
        %v5922 = vld [vmem:[%s1146 + $0xa8] sm:$0xff]
        %v5923 = vld [vmem:[%s1146 + $0xb0] sm:$0xff]
        %v5924 = vld [vmem:[%s1146 + $0xc8] sm:$0xff]
        %v5925 = vld [vmem:[%s1146 + $0xd0] sm:$0xff]
        %v5926 = vld [vmem:[%s1146 + $0xe8] sm:$0xff]
        %v5927 = vld [vmem:[%s1146 + $0xf0] sm:$0xff]
        %v5928 = vld [vmem:[%s1146 + $0x108] sm:$0xff]
        %v5929 = vld [vmem:[%s1146 + $0x110] sm:$0xff]
        %v5930 = vld [vmem:[%s1146 + $0x128] sm:$0xff]
        %v5931 = vld [vmem:[%s1146 + $0x130] sm:$0xff]
        %v5932 = vld [vmem:[%s1146 + $0x148] sm:$0xff]
        %v5933 = vld [vmem:[%s1146 + $0x150] sm:$0xff]
        %v5934 = vld [vmem:[%s1146 + $0x168] sm:$0xff]
        %v5935 = vld [vmem:[%s1146 + $0x170] sm:$0xff]
        %v5936 = vld [vmem:[%s1146 + $0x188] sm:$0xff]
        %v5937 = vld [vmem:[%s1146 + $0x190] sm:$0xff]
        %v5938 = vld [vmem:[%s1146 + $0x1a8] sm:$0xff]
        %v5939 = vld [vmem:[%s1146 + $0x1b0] sm:$0xff]
        %v5940 = vld [vmem:[%s1146 + $0x1c8] sm:$0xff]
        %v5941 = vld [vmem:[%s1146 + $0x1d0] sm:$0xff]
        %v5942 = vld [vmem:[%s1146 + $0x1e8] sm:$0xff]
        %v5943 = vld [vmem:[%s1146 + $0x1f0] sm:$0xff]
        %v5944 = vpack.c.bf16 %v5913, %v5912
        %v5945 = vpack.c.bf16 %v5915, %v5914
        %v5946 = vpack.c.bf16 %v5917, %v5916
        %v5947 = vpack.c.bf16 %v5919, %v5918
        %v5948 = vpack.c.bf16 %v5921, %v5920
        %v5949 = vpack.c.bf16 %v5923, %v5922
        %v5950 = vpack.c.bf16 %v5925, %v5924
        %v5951 = vpack.c.bf16 %v5927, %v5926
        %v5952 = vpack.c.bf16 %v5929, %v5928
        %v5953 = vpack.c.bf16 %v5931, %v5930
        %v5954 = vpack.c.bf16 %v5933, %v5932
        %v5955 = vpack.c.bf16 %v5935, %v5934
        %v5956 = vpack.c.bf16 %v5937, %v5936
        %v5957 = vpack.c.bf16 %v5939, %v5938
        %v5958 = vpack.c.bf16 %v5941, %v5940
        %v5959 = vpack.c.bf16 %v5943, %v5942
        %5960 = vst.msk [vmem:[#allocation4 + $0x8] sm:$0xff] %vm1041, %v5944
        %5961 = vst.msk [vmem:[#allocation4 + $0x20] sm:$0xff] %vm1041, %v5945
        %5962 = vst.msk [vmem:[#allocation4 + $0x38] sm:$0xff] %vm1041, %v5946
        %5963 = vst.msk [vmem:[#allocation4 + $0x50] sm:$0xff] %vm1041, %v5947
        %5964 = vst.msk [vmem:[#allocation4 + $0x68] sm:$0xff] %vm1041, %v5948
        %5965 = vst.msk [vmem:[#allocation4 + $0x80] sm:$0xff] %vm1041, %v5949
        %5966 = vst.msk [vmem:[#allocation4 + $0x98] sm:$0xff] %vm1041, %v5950
        %5967 = vst.msk [vmem:[#allocation4 + $0xb0] sm:$0xff] %vm1041, %v5951
        %5968 = vst.msk [vmem:[#allocation4 + $0xc8] sm:$0xff] %vm1041, %v5952
        %5969 = vst.msk [vmem:[#allocation4 + $0xe0] sm:$0xff] %vm1041, %v5953
        %5970 = vst.msk [vmem:[#allocation4 + $0xf8] sm:$0xff] %vm1041, %v5954
        %5971 = vst.msk [vmem:[#allocation4 + $0x110] sm:$0xff] %vm1041, %v5955
        %5972 = vst.msk [vmem:[#allocation4 + $0x128] sm:$0xff] %vm1041, %v5956
        %5973 = vst.msk [vmem:[#allocation4 + $0x140] sm:$0xff] %vm1041, %v5957
        %5974 = vst.msk [vmem:[#allocation4 + $0x158] sm:$0xff] %vm1041, %v5958
        %5975 = vst.msk [vmem:[#allocation4 + $0x170] sm:$0xff] %vm1041, %v5959
        %v5976 = vld [vmem:[%s1146 + $0x9] sm:$0xff]
        %v5977 = vld [vmem:[%s1146 + $0x11] sm:$0xff]
        %v5978 = vld [vmem:[%s1146 + $0x29] sm:$0xff]
        %v5979 = vld [vmem:[%s1146 + $0x31] sm:$0xff]
        %v5980 = vld [vmem:[%s1146 + $0x49] sm:$0xff]
        %v5981 = vld [vmem:[%s1146 + $0x51] sm:$0xff]
        %v5982 = vld [vmem:[%s1146 + $0x69] sm:$0xff]
        %v5983 = vld [vmem:[%s1146 + $0x71] sm:$0xff]
        %v5984 = vld [vmem:[%s1146 + $0x89] sm:$0xff]
        %v5985 = vld [vmem:[%s1146 + $0x91] sm:$0xff]
        %v5986 = vld [vmem:[%s1146 + $0xa9] sm:$0xff]
        %v5987 = vld [vmem:[%s1146 + $0xb1] sm:$0xff]
        %v5988 = vld [vmem:[%s1146 + $0xc9] sm:$0xff]
        %v5989 = vld [vmem:[%s1146 + $0xd1] sm:$0xff]
        %v5990 = vld [vmem:[%s1146 + $0xe9] sm:$0xff]
        %v5991 = vld [vmem:[%s1146 + $0xf1] sm:$0xff]
        %v5992 = vld [vmem:[%s1146 + $0x109] sm:$0xff]
        %v5993 = vld [vmem:[%s1146 + $0x111] sm:$0xff]
        %v5994 = vld [vmem:[%s1146 + $0x129] sm:$0xff]
        %v5995 = vld [vmem:[%s1146 + $0x131] sm:$0xff]
        %v5996 = vld [vmem:[%s1146 + $0x149] sm:$0xff]
        %v5997 = vld [vmem:[%s1146 + $0x151] sm:$0xff]
        %v5998 = vld [vmem:[%s1146 + $0x169] sm:$0xff]
        %v5999 = vld [vmem:[%s1146 + $0x171] sm:$0xff]
        %v6000 = vld [vmem:[%s1146 + $0x189] sm:$0xff]
        %v6001 = vld [vmem:[%s1146 + $0x191] sm:$0xff]
        %v6002 = vld [vmem:[%s1146 + $0x1a9] sm:$0xff]
        %v6003 = vld [vmem:[%s1146 + $0x1b1] sm:$0xff]
        %v6004 = vld [vmem:[%s1146 + $0x1c9] sm:$0xff]
        %v6005 = vld [vmem:[%s1146 + $0x1d1] sm:$0xff]
        %v6006 = vld [vmem:[%s1146 + $0x1e9] sm:$0xff]
        %v6007 = vld [vmem:[%s1146 + $0x1f1] sm:$0xff]
        %v6008 = vpack.c.bf16 %v5977, %v5976
        %v6009 = vpack.c.bf16 %v5979, %v5978
        %v6010 = vpack.c.bf16 %v5981, %v5980
        %v6011 = vpack.c.bf16 %v5983, %v5982
        %v6012 = vpack.c.bf16 %v5985, %v5984
        %v6013 = vpack.c.bf16 %v5987, %v5986
        %v6014 = vpack.c.bf16 %v5989, %v5988
        %v6015 = vpack.c.bf16 %v5991, %v5990
        %v6016 = vpack.c.bf16 %v5993, %v5992
        %v6017 = vpack.c.bf16 %v5995, %v5994
        %v6018 = vpack.c.bf16 %v5997, %v5996
        %v6019 = vpack.c.bf16 %v5999, %v5998
        %v6020 = vpack.c.bf16 %v6001, %v6000
        %v6021 = vpack.c.bf16 %v6003, %v6002
        %v6022 = vpack.c.bf16 %v6005, %v6004
        %v6023 = vpack.c.bf16 %v6007, %v6006
        %6040 = vrot.lane.b32.xlu0 %v6008, 32
        %v6041 = vpop.permute.xlu0 %6040
        %6042 = vrot.lane.b32.xlu0 %v6009, 32
        %v6043 = vpop.permute.xlu0 %6042
        %6044 = vrot.lane.b32.xlu0 %v6010, 32
        %v6045 = vpop.permute.xlu0 %6044
        %6046 = vrot.lane.b32.xlu0 %v6011, 32
        %v6047 = vpop.permute.xlu0 %6046
        %6048 = vrot.lane.b32.xlu0 %v6012, 32
        %v6049 = vpop.permute.xlu0 %6048
        %6050 = vrot.lane.b32.xlu0 %v6013, 32
        %v6051 = vpop.permute.xlu0 %6050
        %6052 = vrot.lane.b32.xlu0 %v6014, 32
        %v6053 = vpop.permute.xlu0 %6052
        %6054 = vrot.lane.b32.xlu0 %v6015, 32
        %v6055 = vpop.permute.xlu0 %6054
        %6056 = vrot.lane.b32.xlu0 %v6016, 32
        %v6057 = vpop.permute.xlu0 %6056
        %6058 = vrot.lane.b32.xlu0 %v6017, 32
        %v6059 = vpop.permute.xlu0 %6058
        %6060 = vrot.lane.b32.xlu0 %v6018, 32
        %v6061 = vpop.permute.xlu0 %6060
        %6062 = vrot.lane.b32.xlu0 %v6019, 32
        %v6063 = vpop.permute.xlu0 %6062
        %6064 = vrot.lane.b32.xlu0 %v6020, 32
        %v6065 = vpop.permute.xlu0 %6064
        %6066 = vrot.lane.b32.xlu0 %v6021, 32
        %v6067 = vpop.permute.xlu0 %6066
        %6068 = vrot.lane.b32.xlu0 %v6022, 32
        %v6069 = vpop.permute.xlu0 %6068
        %6070 = vrot.lane.b32.xlu0 %v6023, 32
        %v6071 = vpop.permute.xlu0 %6070
        %6088 = vst.msk [vmem:[#allocation4 + $0x8] sm:$0xff] %vm1355, %v6041
        %6089 = vst.msk [vmem:[#allocation4 + $0x20] sm:$0xff] %vm1355, %v6043
        %6090 = vst.msk [vmem:[#allocation4 + $0x38] sm:$0xff] %vm1355, %v6045
        %6091 = vst.msk [vmem:[#allocation4 + $0x50] sm:$0xff] %vm1355, %v6047
        %6092 = vst.msk [vmem:[#allocation4 + $0x68] sm:$0xff] %vm1355, %v6049
        %6093 = vst.msk [vmem:[#allocation4 + $0x80] sm:$0xff] %vm1355, %v6051
        %6094 = vst.msk [vmem:[#allocation4 + $0x98] sm:$0xff] %vm1355, %v6053
        %6095 = vst.msk [vmem:[#allocation4 + $0xb0] sm:$0xff] %vm1355, %v6055
        %6096 = vst.msk [vmem:[#allocation4 + $0xc8] sm:$0xff] %vm1355, %v6057
        %6097 = vst.msk [vmem:[#allocation4 + $0xe0] sm:$0xff] %vm1355, %v6059
        %6098 = vst.msk [vmem:[#allocation4 + $0xf8] sm:$0xff] %vm1355, %v6061
        %6099 = vst.msk [vmem:[#allocation4 + $0x110] sm:$0xff] %vm1355, %v6063
        %6100 = vst.msk [vmem:[#allocation4 + $0x128] sm:$0xff] %vm1355, %v6065
        %6101 = vst.msk [vmem:[#allocation4 + $0x140] sm:$0xff] %vm1355, %v6067
        %6102 = vst.msk [vmem:[#allocation4 + $0x158] sm:$0xff] %vm1355, %v6069
        %6103 = vst.msk [vmem:[#allocation4 + $0x170] sm:$0xff] %vm1355, %v6071
        %v6104 = vld [vmem:[%s1822 + $0x7] sm:$0xff]
        %v6105 = vld [vmem:[%s1822 + $0xf] sm:$0xff]
        %v6106 = vld [vmem:[%s1822 + $0x27] sm:$0xff]
        %v6107 = vld [vmem:[%s1822 + $0x2f] sm:$0xff]
        %v6108 = vld [vmem:[%s1822 + $0x47] sm:$0xff]
        %v6109 = vld [vmem:[%s1822 + $0x4f] sm:$0xff]
        %v6110 = vld [vmem:[%s1822 + $0x67] sm:$0xff]
        %v6111 = vld [vmem:[%s1822 + $0x6f] sm:$0xff]
        %v6112 = vld [vmem:[%s1822 + $0x87] sm:$0xff]
        %v6113 = vld [vmem:[%s1822 + $0x8f] sm:$0xff]
        %v6114 = vld [vmem:[%s1822 + $0xa7] sm:$0xff]
        %v6115 = vld [vmem:[%s1822 + $0xaf] sm:$0xff]
        %v6116 = vld [vmem:[%s1822 + $0xc7] sm:$0xff]
        %v6117 = vld [vmem:[%s1822 + $0xcf] sm:$0xff]
        %v6118 = vld [vmem:[%s1822 + $0xe7] sm:$0xff]
        %v6119 = vld [vmem:[%s1822 + $0xef] sm:$0xff]
        %v6120 = vld [vmem:[%s1822 + $0x107] sm:$0xff]
        %v6121 = vld [vmem:[%s1822 + $0x10f] sm:$0xff]
        %v6122 = vld [vmem:[%s1822 + $0x127] sm:$0xff]
        %v6123 = vld [vmem:[%s1822 + $0x12f] sm:$0xff]
        %v6124 = vld [vmem:[%s1822 + $0x147] sm:$0xff]
        %v6125 = vld [vmem:[%s1822 + $0x14f] sm:$0xff]
        %v6126 = vld [vmem:[%s1822 + $0x167] sm:$0xff]
        %v6127 = vld [vmem:[%s1822 + $0x16f] sm:$0xff]
        %v6128 = vld [vmem:[%s1822 + $0x187] sm:$0xff]
        %v6129 = vld [vmem:[%s1822 + $0x18f] sm:$0xff]
        %v6130 = vld [vmem:[%s1822 + $0x1a7] sm:$0xff]
        %v6131 = vld [vmem:[%s1822 + $0x1af] sm:$0xff]
        %v6132 = vld [vmem:[%s1822 + $0x1c7] sm:$0xff]
        %v6133 = vld [vmem:[%s1822 + $0x1cf] sm:$0xff]
        %v6134 = vld [vmem:[%s1822 + $0x1e7] sm:$0xff]
        %v6135 = vld [vmem:[%s1822 + $0x1ef] sm:$0xff]
        %v6136 = vpack.c.bf16 %v6105, %v6104
        %v6137 = vpack.c.bf16 %v6107, %v6106
        %v6138 = vpack.c.bf16 %v6109, %v6108
        %v6139 = vpack.c.bf16 %v6111, %v6110
        %v6140 = vpack.c.bf16 %v6113, %v6112
        %v6141 = vpack.c.bf16 %v6115, %v6114
        %v6142 = vpack.c.bf16 %v6117, %v6116
        %v6143 = vpack.c.bf16 %v6119, %v6118
        %v6144 = vpack.c.bf16 %v6121, %v6120
        %v6145 = vpack.c.bf16 %v6123, %v6122
        %v6146 = vpack.c.bf16 %v6125, %v6124
        %v6147 = vpack.c.bf16 %v6127, %v6126
        %v6148 = vpack.c.bf16 %v6129, %v6128
        %v6149 = vpack.c.bf16 %v6131, %v6130
        %v6150 = vpack.c.bf16 %v6133, %v6132
        %v6151 = vpack.c.bf16 %v6135, %v6134
        %6168 = vrot.lane.b32.xlu0 %v6136, 64
        %v6169 = vpop.permute.xlu0 %6168
        %6170 = vrot.lane.b32.xlu0 %v6137, 64
        %v6171 = vpop.permute.xlu0 %6170
        %6172 = vrot.lane.b32.xlu0 %v6138, 64
        %v6173 = vpop.permute.xlu0 %6172
        %6174 = vrot.lane.b32.xlu0 %v6139, 64
        %v6175 = vpop.permute.xlu0 %6174
        %6176 = vrot.lane.b32.xlu0 %v6140, 64
        %v6177 = vpop.permute.xlu0 %6176
        %6178 = vrot.lane.b32.xlu0 %v6141, 64
        %v6179 = vpop.permute.xlu0 %6178
        %6180 = vrot.lane.b32.xlu0 %v6142, 64
        %v6181 = vpop.permute.xlu0 %6180
        %6182 = vrot.lane.b32.xlu0 %v6143, 64
        %v6183 = vpop.permute.xlu0 %6182
        %6184 = vrot.lane.b32.xlu0 %v6144, 64
        %v6185 = vpop.permute.xlu0 %6184
        %6186 = vrot.lane.b32.xlu0 %v6145, 64
        %v6187 = vpop.permute.xlu0 %6186
        %6188 = vrot.lane.b32.xlu0 %v6146, 64
        %v6189 = vpop.permute.xlu0 %6188
        %6190 = vrot.lane.b32.xlu0 %v6147, 64
        %v6191 = vpop.permute.xlu0 %6190
        %6192 = vrot.lane.b32.xlu0 %v6148, 64
        %v6193 = vpop.permute.xlu0 %6192
        %6194 = vrot.lane.b32.xlu0 %v6149, 64
        %v6195 = vpop.permute.xlu0 %6194
        %6196 = vrot.lane.b32.xlu0 %v6150, 64
        %v6197 = vpop.permute.xlu0 %6196
        %6198 = vrot.lane.b32.xlu0 %v6151, 64
        %v6199 = vpop.permute.xlu0 %6198
        %6216 = vst.msk [vmem:[#allocation4 + $0x8] sm:$0xff] %vm1484, %v6169
        %6217 = vst.msk [vmem:[#allocation4 + $0x20] sm:$0xff] %vm1484, %v6171
        %6218 = vst.msk [vmem:[#allocation4 + $0x38] sm:$0xff] %vm1484, %v6173
        %6219 = vst.msk [vmem:[#allocation4 + $0x50] sm:$0xff] %vm1484, %v6175
        %6220 = vst.msk [vmem:[#allocation4 + $0x68] sm:$0xff] %vm1484, %v6177
        %6221 = vst.msk [vmem:[#allocation4 + $0x80] sm:$0xff] %vm1484, %v6179
        %6222 = vst.msk [vmem:[#allocation4 + $0x98] sm:$0xff] %vm1484, %v6181
        %6223 = vst.msk [vmem:[#allocation4 + $0xb0] sm:$0xff] %vm1484, %v6183
        %6224 = vst.msk [vmem:[#allocation4 + $0xc8] sm:$0xff] %vm1484, %v6185
        %6225 = vst.msk [vmem:[#allocation4 + $0xe0] sm:$0xff] %vm1484, %v6187
        %6226 = vst.msk [vmem:[#allocation4 + $0xf8] sm:$0xff] %vm1484, %v6189
        %6227 = vst.msk [vmem:[#allocation4 + $0x110] sm:$0xff] %vm1484, %v6191
        %6228 = vst.msk [vmem:[#allocation4 + $0x128] sm:$0xff] %vm1484, %v6193
        %6229 = vst.msk [vmem:[#allocation4 + $0x140] sm:$0xff] %vm1484, %v6195
        %6230 = vst.msk [vmem:[#allocation4 + $0x158] sm:$0xff] %vm1484, %v6197
        %6231 = vst.msk [vmem:[#allocation4 + $0x170] sm:$0xff] %vm1484, %v6199
        %v6232 = vld [vmem:[%s1822 + $0x8] sm:$0xff]
        %v6233 = vld [vmem:[%s1822 + $0x10] sm:$0xff]
        %v6234 = vld [vmem:[%s1822 + $0x28] sm:$0xff]
        %v6235 = vld [vmem:[%s1822 + $0x30] sm:$0xff]
        %v6236 = vld [vmem:[%s1822 + $0x48] sm:$0xff]
        %v6237 = vld [vmem:[%s1822 + $0x50] sm:$0xff]
        %v6238 = vld [vmem:[%s1822 + $0x68] sm:$0xff]
        %v6239 = vld [vmem:[%s1822 + $0x70] sm:$0xff]
        %v6240 = vld [vmem:[%s1822 + $0x88] sm:$0xff]
        %v6241 = vld [vmem:[%s1822 + $0x90] sm:$0xff]
        %v6242 = vld [vmem:[%s1822 + $0xa8] sm:$0xff]
        %v6243 = vld [vmem:[%s1822 + $0xb0] sm:$0xff]
        %v6244 = vld [vmem:[%s1822 + $0xc8] sm:$0xff]
        %v6245 = vld [vmem:[%s1822 + $0xd0] sm:$0xff]
        %v6246 = vld [vmem:[%s1822 + $0xe8] sm:$0xff]
        %v6247 = vld [vmem:[%s1822 + $0xf0] sm:$0xff]
        %v6248 = vld [vmem:[%s1822 + $0x108] sm:$0xff]
        %v6249 = vld [vmem:[%s1822 + $0x110] sm:$0xff]
        %v6250 = vld [vmem:[%s1822 + $0x128] sm:$0xff]
        %v6251 = vld [vmem:[%s1822 + $0x130] sm:$0xff]
        %v6252 = vld [vmem:[%s1822 + $0x148] sm:$0xff]
        %v6253 = vld [vmem:[%s1822 + $0x150] sm:$0xff]
        %v6254 = vld [vmem:[%s1822 + $0x168] sm:$0xff]
        %v6255 = vld [vmem:[%s1822 + $0x170] sm:$0xff]
        %v6256 = vld [vmem:[%s1822 + $0x188] sm:$0xff]
        %v6257 = vld [vmem:[%s1822 + $0x190] sm:$0xff]
        %v6258 = vld [vmem:[%s1822 + $0x1a8] sm:$0xff]
        %v6259 = vld [vmem:[%s1822 + $0x1b0] sm:$0xff]
        %v6260 = vld [vmem:[%s1822 + $0x1c8] sm:$0xff]
        %v6261 = vld [vmem:[%s1822 + $0x1d0] sm:$0xff]
        %v6262 = vld [vmem:[%s1822 + $0x1e8] sm:$0xff]
        %v6263 = vld [vmem:[%s1822 + $0x1f0] sm:$0xff]
        %v6264 = vpack.c.bf16 %v6233, %v6232
        %v6265 = vpack.c.bf16 %v6235, %v6234
        %v6266 = vpack.c.bf16 %v6237, %v6236
        %v6267 = vpack.c.bf16 %v6239, %v6238
        %v6268 = vpack.c.bf16 %v6241, %v6240
        %v6269 = vpack.c.bf16 %v6243, %v6242
        %v6270 = vpack.c.bf16 %v6245, %v6244
        %v6271 = vpack.c.bf16 %v6247, %v6246
        %v6272 = vpack.c.bf16 %v6249, %v6248
        %v6273 = vpack.c.bf16 %v6251, %v6250
        %v6274 = vpack.c.bf16 %v6253, %v6252
        %v6275 = vpack.c.bf16 %v6255, %v6254
        %v6276 = vpack.c.bf16 %v6257, %v6256
        %v6277 = vpack.c.bf16 %v6259, %v6258
        %v6278 = vpack.c.bf16 %v6261, %v6260
        %v6279 = vpack.c.bf16 %v6263, %v6262
        %6296 = vrot.lane.b32.xlu0 %v6264, 96
        %v6297 = vpop.permute.xlu0 %6296
        %6298 = vrot.lane.b32.xlu0 %v6265, 96
        %v6299 = vpop.permute.xlu0 %6298
        %6300 = vrot.lane.b32.xlu0 %v6266, 96
        %v6301 = vpop.permute.xlu0 %6300
        %6302 = vrot.lane.b32.xlu0 %v6267, 96
        %v6303 = vpop.permute.xlu0 %6302
        %6304 = vrot.lane.b32.xlu0 %v6268, 96
        %v6305 = vpop.permute.xlu0 %6304
        %6306 = vrot.lane.b32.xlu0 %v6269, 96
        %v6307 = vpop.permute.xlu0 %6306
        %6308 = vrot.lane.b32.xlu0 %v6270, 96
        %v6309 = vpop.permute.xlu0 %6308
        %6310 = vrot.lane.b32.xlu0 %v6271, 96
        %v6311 = vpop.permute.xlu0 %6310
        %6312 = vrot.lane.b32.xlu0 %v6272, 96
        %v6313 = vpop.permute.xlu0 %6312
        %6314 = vrot.lane.b32.xlu0 %v6273, 96
        %v6315 = vpop.permute.xlu0 %6314
        %6316 = vrot.lane.b32.xlu0 %v6274, 96
        %v6317 = vpop.permute.xlu0 %6316
        %6318 = vrot.lane.b32.xlu0 %v6275, 96
        %v6319 = vpop.permute.xlu0 %6318
        %6320 = vrot.lane.b32.xlu0 %v6276, 96
        %v6321 = vpop.permute.xlu0 %6320
        %6322 = vrot.lane.b32.xlu0 %v6277, 96
        %v6323 = vpop.permute.xlu0 %6322
        %6324 = vrot.lane.b32.xlu0 %v6278, 96
        %v6325 = vpop.permute.xlu0 %6324
        %6326 = vrot.lane.b32.xlu0 %v6279, 96
        %v6327 = vpop.permute.xlu0 %6326
        %6344 = vst.msk [vmem:[#allocation4 + $0x8] sm:$0xff] %vm1613, %v6297
        %6345 = vst.msk [vmem:[#allocation4 + $0x20] sm:$0xff] %vm1613, %v6299
        %6346 = vst.msk [vmem:[#allocation4 + $0x38] sm:$0xff] %vm1613, %v6301
        %6347 = vst.msk [vmem:[#allocation4 + $0x50] sm:$0xff] %vm1613, %v6303
        %6348 = vst.msk [vmem:[#allocation4 + $0x68] sm:$0xff] %vm1613, %v6305
        %6349 = vst.msk [vmem:[#allocation4 + $0x80] sm:$0xff] %vm1613, %v6307
        %6350 = vst.msk [vmem:[#allocation4 + $0x98] sm:$0xff] %vm1613, %v6309
        %6351 = vst.msk [vmem:[#allocation4 + $0xb0] sm:$0xff] %vm1613, %v6311
        %6352 = vst.msk [vmem:[#allocation4 + $0xc8] sm:$0xff] %vm1613, %v6313
        %6353 = vst.msk [vmem:[#allocation4 + $0xe0] sm:$0xff] %vm1613, %v6315
        %6354 = vst.msk [vmem:[#allocation4 + $0xf8] sm:$0xff] %vm1613, %v6317
        %6355 = vst.msk [vmem:[#allocation4 + $0x110] sm:$0xff] %vm1613, %v6319
        %6356 = vst.msk [vmem:[#allocation4 + $0x128] sm:$0xff] %vm1613, %v6321
        %6357 = vst.msk [vmem:[#allocation4 + $0x140] sm:$0xff] %vm1613, %v6323
        %6358 = vst.msk [vmem:[#allocation4 + $0x158] sm:$0xff] %vm1613, %v6325
        %6359 = vst.msk [vmem:[#allocation4 + $0x170] sm:$0xff] %vm1613, %v6327
        %v6360 = vld [vmem:[%s1822 + $0x9] sm:$0xff]
        %v6361 = vld [vmem:[%s1822 + $0x11] sm:$0xff]
        %v6362 = vld [vmem:[%s1822 + $0x29] sm:$0xff]
        %v6363 = vld [vmem:[%s1822 + $0x31] sm:$0xff]
        %v6364 = vld [vmem:[%s1822 + $0x49] sm:$0xff]
        %v6365 = vld [vmem:[%s1822 + $0x51] sm:$0xff]
        %v6366 = vld [vmem:[%s1822 + $0x69] sm:$0xff]
        %v6367 = vld [vmem:[%s1822 + $0x71] sm:$0xff]
        %v6368 = vld [vmem:[%s1822 + $0x89] sm:$0xff]
        %v6369 = vld [vmem:[%s1822 + $0x91] sm:$0xff]
        %v6370 = vld [vmem:[%s1822 + $0xa9] sm:$0xff]
        %v6371 = vld [vmem:[%s1822 + $0xb1] sm:$0xff]
        %v6372 = vld [vmem:[%s1822 + $0xc9] sm:$0xff]
        %v6373 = vld [vmem:[%s1822 + $0xd1] sm:$0xff]
        %v6374 = vld [vmem:[%s1822 + $0xe9] sm:$0xff]
        %v6375 = vld [vmem:[%s1822 + $0xf1] sm:$0xff]
        %v6376 = vld [vmem:[%s1822 + $0x109] sm:$0xff]
        %v6377 = vld [vmem:[%s1822 + $0x111] sm:$0xff]
        %v6378 = vld [vmem:[%s1822 + $0x129] sm:$0xff]
        %v6379 = vld [vmem:[%s1822 + $0x131] sm:$0xff]
        %v6380 = vld [vmem:[%s1822 + $0x149] sm:$0xff]
        %v6381 = vld [vmem:[%s1822 + $0x151] sm:$0xff]
        %v6382 = vld [vmem:[%s1822 + $0x169] sm:$0xff]
        %v6383 = vld [vmem:[%s1822 + $0x171] sm:$0xff]
        %v6384 = vld [vmem:[%s1822 + $0x189] sm:$0xff]
        %v6385 = vld [vmem:[%s1822 + $0x191] sm:$0xff]
        %v6386 = vld [vmem:[%s1822 + $0x1a9] sm:$0xff]
        %v6387 = vld [vmem:[%s1822 + $0x1b1] sm:$0xff]
        %v6388 = vld [vmem:[%s1822 + $0x1c9] sm:$0xff]
        %v6389 = vld [vmem:[%s1822 + $0x1d1] sm:$0xff]
        %v6390 = vld [vmem:[%s1822 + $0x1e9] sm:$0xff]
        %v6391 = vld [vmem:[%s1822 + $0x1f1] sm:$0xff]
        %v6392 = vpack.c.bf16 %v6361, %v6360
        %v6393 = vpack.c.bf16 %v6363, %v6362
        %v6394 = vpack.c.bf16 %v6365, %v6364
        %v6395 = vpack.c.bf16 %v6367, %v6366
        %v6396 = vpack.c.bf16 %v6369, %v6368
        %v6397 = vpack.c.bf16 %v6371, %v6370
        %v6398 = vpack.c.bf16 %v6373, %v6372
        %v6399 = vpack.c.bf16 %v6375, %v6374
        %v6400 = vpack.c.bf16 %v6377, %v6376
        %v6401 = vpack.c.bf16 %v6379, %v6378
        %v6402 = vpack.c.bf16 %v6381, %v6380
        %v6403 = vpack.c.bf16 %v6383, %v6382
        %v6404 = vpack.c.bf16 %v6385, %v6384
        %v6405 = vpack.c.bf16 %v6387, %v6386
        %v6406 = vpack.c.bf16 %v6389, %v6388
        %v6407 = vpack.c.bf16 %v6391, %v6390
        %6408 = vst.msk [vmem:[#allocation4 + $0x10] sm:$0xff] %vm1041, %v6392
        %6409 = vst.msk [vmem:[#allocation4 + $0x28] sm:$0xff] %vm1041, %v6393
        %6410 = vst.msk [vmem:[#allocation4 + $0x40] sm:$0xff] %vm1041, %v6394
        %6411 = vst.msk [vmem:[#allocation4 + $0x58] sm:$0xff] %vm1041, %v6395
        %6412 = vst.msk [vmem:[#allocation4 + $0x70] sm:$0xff] %vm1041, %v6396
        %6413 = vst.msk [vmem:[#allocation4 + $0x88] sm:$0xff] %vm1041, %v6397
        %6414 = vst.msk [vmem:[#allocation4 + $0xa0] sm:$0xff] %vm1041, %v6398
        %6415 = vst.msk [vmem:[#allocation4 + $0xb8] sm:$0xff] %vm1041, %v6399
        %6416 = vst.msk [vmem:[#allocation4 + $0xd0] sm:$0xff] %vm1041, %v6400
        %6417 = vst.msk [vmem:[#allocation4 + $0xe8] sm:$0xff] %vm1041, %v6401
        %6418 = vst.msk [vmem:[#allocation4 + $0x100] sm:$0xff] %vm1041, %v6402
        %6419 = vst.msk [vmem:[#allocation4 + $0x118] sm:$0xff] %vm1041, %v6403
        %6420 = vst.msk [vmem:[#allocation4 + $0x130] sm:$0xff] %vm1041, %v6404
        %6421 = vst.msk [vmem:[#allocation4 + $0x148] sm:$0xff] %vm1041, %v6405
        %6422 = vst.msk [vmem:[#allocation4 + $0x160] sm:$0xff] %vm1041, %v6406
        %6423 = vst.msk [vmem:[#allocation4 + $0x178] sm:$0xff] %vm1041, %v6407
        %v6424 = vld [vmem:[#allocation4] sm:$0xff]
        %v6425 = vld [vmem:[#allocation4 + $0x8] sm:$0xff]
        %v6426 = vld [vmem:[#allocation4 + $0x10] sm:$0xff]
        %v6427 = vld [vmem:[#allocation4 + $0x18] sm:$0xff]
        %v6428 = vld [vmem:[#allocation4 + $0x20] sm:$0xff]
        %v6429 = vld [vmem:[#allocation4 + $0x28] sm:$0xff]
        %v6430 = vld [vmem:[#allocation4 + $0x30] sm:$0xff]
        %v6431 = vld [vmem:[#allocation4 + $0x38] sm:$0xff]
        %v6432 = vld [vmem:[#allocation4 + $0x40] sm:$0xff]
        %v6433 = vld [vmem:[#allocation4 + $0x48] sm:$0xff]
        %v6434 = vld [vmem:[#allocation4 + $0x50] sm:$0xff]
        %v6435 = vld [vmem:[#allocation4 + $0x58] sm:$0xff]
        %v6436 = vld [vmem:[#allocation4 + $0x60] sm:$0xff]
        %v6437 = vld [vmem:[#allocation4 + $0x68] sm:$0xff]
        %v6438 = vld [vmem:[#allocation4 + $0x70] sm:$0xff]
        %v6439 = vld [vmem:[#allocation4 + $0x78] sm:$0xff]
        %v6440 = vld [vmem:[#allocation4 + $0x80] sm:$0xff]
        %v6441 = vld [vmem:[#allocation4 + $0x88] sm:$0xff]
        %v6442 = vld [vmem:[#allocation4 + $0x90] sm:$0xff]
        %v6443 = vld [vmem:[#allocation4 + $0x98] sm:$0xff]
        %v6444 = vld [vmem:[#allocation4 + $0xa0] sm:$0xff]
        %v6445 = vld [vmem:[#allocation4 + $0xa8] sm:$0xff]
        %v6446 = vld [vmem:[#allocation4 + $0xb0] sm:$0xff]
        %v6447 = vld [vmem:[#allocation4 + $0xb8] sm:$0xff]
        %v6448 = vld [vmem:[#allocation4 + $0xc0] sm:$0xff]
        %v6449 = vld [vmem:[#allocation4 + $0xc8] sm:$0xff]
        %v6450 = vld [vmem:[#allocation4 + $0xd0] sm:$0xff]
        %v6451 = vld [vmem:[#allocation4 + $0xd8] sm:$0xff]
        %v6452 = vld [vmem:[#allocation4 + $0xe0] sm:$0xff]
        %v6453 = vld [vmem:[#allocation4 + $0xe8] sm:$0xff]
        %v6454 = vld [vmem:[#allocation4 + $0xf0] sm:$0xff]
        %v6455 = vld [vmem:[#allocation4 + $0xf8] sm:$0xff]
        %v6456 = vld [vmem:[#allocation4 + $0x100] sm:$0xff]
        %v6457 = vld [vmem:[#allocation4 + $0x108] sm:$0xff]
        %v6458 = vld [vmem:[#allocation4 + $0x110] sm:$0xff]
        %v6459 = vld [vmem:[#allocation4 + $0x118] sm:$0xff]
        %v6460 = vld [vmem:[#allocation4 + $0x120] sm:$0xff]
        %v6461 = vld [vmem:[#allocation4 + $0x128] sm:$0xff]
        %v6462 = vld [vmem:[#allocation4 + $0x130] sm:$0xff]
        %v6463 = vld [vmem:[#allocation4 + $0x138] sm:$0xff]
        %v6464 = vld [vmem:[#allocation4 + $0x140] sm:$0xff]
        %v6465 = vld [vmem:[#allocation4 + $0x148] sm:$0xff]
        %v6466 = vld [vmem:[#allocation4 + $0x150] sm:$0xff]
        %v6467 = vld [vmem:[#allocation4 + $0x158] sm:$0xff]
        %v6468 = vld [vmem:[#allocation4 + $0x160] sm:$0xff]
        %v6469 = vld [vmem:[#allocation4 + $0x168] sm:$0xff]
        %v6470 = vld [vmem:[#allocation4 + $0x170] sm:$0xff]
        %v6471 = vld [vmem:[#allocation4 + $0x178] sm:$0xff]
        %v6472 = vld [vmem:[%s27] sm:$0xf]
        %v6473 = vld [vmem:[%s27 + $0x4] sm:$0xf]
        %v6474 = vld [vmem:[%s27 + $0x8] sm:$0xf]
        %v6475 = vld [vmem:[%s27 + $0xc] sm:$0xf]
        %v6476 = vld [vmem:[%s27 + $0x10] sm:$0xf]
        %v6477 = vld [vmem:[%s27 + $0x14] sm:$0xf]
        %v6478 = vld [vmem:[%s27 + $0x18] sm:$0xf]
        %v6479 = vld [vmem:[%s27 + $0x1c] sm:$0xf]
        %v6480 = vld [vmem:[%s27 + $0x20] sm:$0xf]
        %v6481 = vld [vmem:[%s27 + $0x24] sm:$0xf]
        %v6482 = vld [vmem:[%s27 + $0x28] sm:$0xf]
        %v6483 = vld [vmem:[%s27 + $0x2c] sm:$0xf]
        %v6484 = vld [vmem:[%s27 + $0x30] sm:$0xf]
        %v6485 = vld [vmem:[%s27 + $0x34] sm:$0xf]
        %v6486 = vld [vmem:[%s27 + $0x38] sm:$0xf]
        %v6487 = vld [vmem:[%s27 + $0x3c] sm:$0xf]
        %v6488 = vld [vmem:[%s27 + $0x40] sm:$0xf]
        %v6489 = vld [vmem:[%s27 + $0x44] sm:$0xf]
        %v6490 = vld [vmem:[%s27 + $0x48] sm:$0xf]
        %v6491 = vld [vmem:[%s27 + $0x4c] sm:$0xf]
        %v6492 = vld [vmem:[%s27 + $0x50] sm:$0xf]
        %v6493 = vld [vmem:[%s27 + $0x54] sm:$0xf]
        %v6494 = vld [vmem:[%s27 + $0x58] sm:$0xf]
        %v6495 = vld [vmem:[%s27 + $0x5c] sm:$0xf]
        %v6496 = vld [vmem:[%s27 + $0x60] sm:$0xf]
        %v6497 = vld [vmem:[%s27 + $0x64] sm:$0xf]
        %v6498 = vld [vmem:[%s27 + $0x68] sm:$0xf]
        %v6499 = vld [vmem:[%s27 + $0x6c] sm:$0xf]
        %v6500 = vld [vmem:[%s27 + $0x70] sm:$0xf]
        %v6501 = vld [vmem:[%s27 + $0x74] sm:$0xf]
        %v6502 = vld [vmem:[%s27 + $0x78] sm:$0xf]
        %v6503 = vld [vmem:[%s27 + $0x7c] sm:$0xf]
        %v6504 = vld [vmem:[%s27 + $0x80] sm:$0xf]
        %v6505 = vld [vmem:[%s27 + $0x84] sm:$0xf]
        %v6506 = vld [vmem:[%s27 + $0x88] sm:$0xf]
        %v6507 = vld [vmem:[%s27 + $0x8c] sm:$0xf]
        %v6544 = vunpack.c.l.b16 %v6472
        %v6545 = vunpack.c.l.b16 %v6473
        %v6546 = vunpack.c.l.b16 %v6474
        %v6547 = vunpack.c.l.b16 %v6475
        %v6548 = vunpack.c.l.b16 %v6476
        %v6549 = vunpack.c.l.b16 %v6477
        %v6550 = vunpack.c.l.b16 %v6478
        %v6551 = vunpack.c.l.b16 %v6479
        %v6552 = vunpack.c.l.b16 %v6480
        %v6553 = vunpack.c.l.b16 %v6481
        %v6554 = vunpack.c.l.b16 %v6482
        %v6555 = vunpack.c.l.b16 %v6483
        %v6556 = vunpack.c.l.b16 %v6484
        %v6557 = vunpack.c.l.b16 %v6485
        %v6558 = vunpack.c.l.b16 %v6486
        %v6559 = vunpack.c.l.b16 %v6487
        %v6560 = vunpack.c.l.b16 %v6488
        %v6561 = vunpack.c.l.b16 %v6489
        %v6562 = vunpack.c.l.b16 %v6490
        %v6563 = vunpack.c.l.b16 %v6491
        %v6564 = vunpack.c.l.b16 %v6492
        %v6565 = vunpack.c.l.b16 %v6493
        %v6566 = vunpack.c.l.b16 %v6494
        %v6567 = vunpack.c.l.b16 %v6495
        %v6568 = vunpack.c.l.b16 %v6496
        %v6569 = vunpack.c.l.b16 %v6497
        %v6570 = vunpack.c.l.b16 %v6498
        %v6571 = vunpack.c.l.b16 %v6499
        %v6572 = vunpack.c.l.b16 %v6500
        %v6573 = vunpack.c.l.b16 %v6501
        %v6574 = vunpack.c.l.b16 %v6502
        %v6575 = vunpack.c.l.b16 %v6503
        %v6576 = vunpack.c.l.b16 %v6504
        %v6577 = vunpack.c.l.b16 %v6505
        %v6578 = vunpack.c.l.b16 %v6506
        %v6579 = vunpack.c.l.b16 %v6507
        %v6580 = vpack.c.b16 %v6545, %v6544
        %v6581 = vpack.c.b16 %v6547, %v6546
        %v6582 = vpack.c.b16 %v6549, %v6548
        %v6583 = vpack.c.b16 %v6551, %v6550
        %v6584 = vpack.c.b16 %v6553, %v6552
        %v6585 = vpack.c.b16 %v6555, %v6554
        %v6586 = vpack.c.b16 %v6557, %v6556
        %v6587 = vpack.c.b16 %v6559, %v6558
        %v6588 = vpack.c.b16 %v6561, %v6560
        %v6589 = vpack.c.b16 %v6563, %v6562
        %v6590 = vpack.c.b16 %v6565, %v6564
        %v6591 = vpack.c.b16 %v6567, %v6566
        %v6592 = vpack.c.b16 %v6569, %v6568
        %v6593 = vpack.c.b16 %v6571, %v6570
        %v6594 = vpack.c.b16 %v6573, %v6572
        %v6595 = vpack.c.b16 %v6575, %v6574
        %v6596 = vpack.c.b16 %v6577, %v6576
        %v6597 = vpack.c.b16 %v6579, %v6578
        %v6617 = vsel %vm1041, %v6426, 0
        %v6620 = vsel %vm1041, %v6429, 0
        %v6623 = vsel %vm1041, %v6432, 0
        %v6626 = vsel %vm1041, %v6435, 0
        %v6629 = vsel %vm1041, %v6438, 0
        %v6632 = vsel %vm1041, %v6441, 0
        %v6635 = vsel %vm1041, %v6444, 0
        %v6638 = vsel %vm1041, %v6447, 0
        %v6641 = vsel %vm1041, %v6450, 0
        %v6644 = vsel %vm1041, %v6453, 0
        %v6647 = vsel %vm1041, %v6456, 0
        %v6650 = vsel %vm1041, %v6459, 0
        %v6653 = vsel %vm1041, %v6462, 0
        %v6656 = vsel %vm1041, %v6465, 0
        %v6659 = vsel %vm1041, %v6468, 0
        %v6662 = vsel %vm1041, %v6471, 0
        %6664 = vmatprep.subr.bf16.mxu0 0
        %6665 = vmatpush1.bf16.msra.mxu0 %v6580
        %6666 = vmatprep.subr.bf16.mxu0 0
        %6667 = vmatpush1.bf16.msra.mxu0 %v6581
        %6668 = vmatprep.subr.bf16.mxu0 0
        %6669 = vmatpush1.bf16.msra.mxu0 %v6582
        %6670 = vmatprep.subr.bf16.mxu0 0
        %6671 = vmatpush1.bf16.msra.mxu0 %v6583
        %6672 = vmatprep.subr.bf16.mxu0 0
        %6673 = vmatpush1.bf16.msra.mxu0 %v6584
        %6674 = vmatprep.subr.bf16.mxu0 0
        %6675 = vmatpush1.bf16.msra.mxu0 %v6585
        %6676 = vmatprep.subr.bf16.mxu0 0
        %6677 = vmatpush1.bf16.msra.mxu0 %v6586
        %6678 = vmatprep.subr.bf16.mxu0 0
        %6679 = vmatpush1.bf16.msra.mxu0 %v6587
        %6680 = vmatprep.subr.bf16.mxu0 0
        %6681 = vmatpush1.bf16.msra.mxu0 %v6588
        %6682 = vmatprep.subr.bf16.mxu0 0
        %6683 = vmatpush1.bf16.msra.mxu0 %v6589
        %6684 = vmatprep.subr.bf16.mxu0 0
        %6685 = vmatpush1.bf16.msra.mxu0 %v6590
        %6686 = vmatprep.subr.bf16.mxu0 0
        %6687 = vmatpush1.bf16.msra.mxu0 %v6591
        %6688 = vmatprep.subr.bf16.mxu0 0
        %6689 = vmatpush1.bf16.msra.mxu0 %v6592
        %6690 = vmatprep.subr.bf16.mxu0 0
        %6691 = vmatpush1.bf16.msra.mxu0 %v6593
        %6692 = vmatprep.subr.bf16.mxu0 0
        %6693 = vmatpush1.bf16.msra.mxu0 %v6594
        %6694 = vmatprep.subr.bf16.mxu0 0
        %6695 = vmatpush1.bf16.msra.mxu0 %v6595
        %6696 = vmatprep.mubr.bf16.mxu0 %v6425
        %6697 = vmatmul.mubr.bf16.gmra.mrb[0].mxu0 %v6424
        %v6698 = vpop.f32.mrb[0].mxu0
        %v6699 = vadd.f32 0.0, %v6698
        %v6700 = vpop.f32.mrb[0].mxu0
        %v6701 = vpop.f32.mrb[0].mxu0
        %v6702 = vadd.f32 0.0, %v6701
        %v6703 = vpop.f32.mrb[0].mxu0
        %6704 = vmatprep.mubr.bf16.mxu0 %v6428
        %6705 = vmatmul.mubr.bf16.gmra.mrb[0].mxu0 %v6427
        %v6706 = vpop.f32.mrb[0].mxu0
        %v6707 = vadd.f32 0.0, %v6706
        %v6708 = vpop.f32.mrb[0].mxu0
        %v6709 = vpop.f32.mrb[0].mxu0
        %v6710 = vadd.f32 0.0, %v6709
        %v6711 = vpop.f32.mrb[0].mxu0
        %6712 = vmatprep.mubr.bf16.mxu0 %v6431
        %6713 = vmatmul.mubr.bf16.gmra.mrb[0].mxu0 %v6430
        %v6714 = vpop.f32.mrb[0].mxu0
        %v6715 = vadd.f32 0.0, %v6714
        %v6716 = vpop.f32.mrb[0].mxu0
        %v6717 = vpop.f32.mrb[0].mxu0
        %v6718 = vadd.f32 0.0, %v6717
        %v6719 = vpop.f32.mrb[0].mxu0
        %6720 = vmatprep.mubr.bf16.mxu0 %v6434
        %6721 = vmatmul.mubr.bf16.gmra.mrb[0].mxu0 %v6433
        %v6722 = vpop.f32.mrb[0].mxu0
        %v6723 = vadd.f32 0.0, %v6722
        %v6724 = vpop.f32.mrb[0].mxu0
        %v6725 = vpop.f32.mrb[0].mxu0
        %v6726 = vadd.f32 0.0, %v6725
        %v6727 = vpop.f32.mrb[0].mxu0
        %6728 = vmatprep.mubr.bf16.mxu0 %v6437
        %6729 = vmatmul.mubr.bf16.gmra.mrb[0].mxu0 %v6436
        %v6730 = vpop.f32.mrb[0].mxu0
        %v6731 = vadd.f32 0.0, %v6730
        %v6732 = vpop.f32.mrb[0].mxu0
        %v6733 = vpop.f32.mrb[0].mxu0
        %v6734 = vadd.f32 0.0, %v6733
        %v6735 = vpop.f32.mrb[0].mxu0
        %6736 = vmatprep.mubr.bf16.mxu0 %v6440
        %6737 = vmatmul.mubr.bf16.gmra.mrb[0].mxu0 %v6439
        %v6738 = vpop.f32.mrb[0].mxu0
        %v6739 = vadd.f32 0.0, %v6738
        %v6740 = vpop.f32.mrb[0].mxu0
        %v6741 = vpop.f32.mrb[0].mxu0
        %v6742 = vadd.f32 0.0, %v6741
        %v6743 = vpop.f32.mrb[0].mxu0
        %6744 = vmatprep.mubr.bf16.mxu0 %v6443
        %6745 = vmatmul.mubr.bf16.gmra.mrb[0].mxu0 %v6442
        %v6746 = vpop.f32.mrb[0].mxu0
        %v6747 = vadd.f32 0.0, %v6746
        %v6748 = vpop.f32.mrb[0].mxu0
        %v6749 = vpop.f32.mrb[0].mxu0
        %v6750 = vadd.f32 0.0, %v6749
        %v6751 = vpop.f32.mrb[0].mxu0
        %6752 = vmatprep.mubr.bf16.mxu0 %v6446
        %6753 = vmatmul.mubr.bf16.gmra.mrb[0].mxu0 %v6445
        %v6754 = vpop.f32.mrb[0].mxu0
        %v6755 = vadd.f32 0.0, %v6754
        %v6756 = vpop.f32.mrb[0].mxu0
        %v6757 = vpop.f32.mrb[0].mxu0
        %v6758 = vadd.f32 0.0, %v6757
        %v6759 = vpop.f32.mrb[0].mxu0
        %6760 = vmatprep.mubr.bf16.mxu0 %v6449
        %6761 = vmatmul.mubr.bf16.gmra.mrb[0].mxu0 %v6448
        %v6762 = vpop.f32.mrb[0].mxu0
        %v6763 = vadd.f32 0.0, %v6762
        %v6764 = vpop.f32.mrb[0].mxu0
        %v6765 = vpop.f32.mrb[0].mxu0
        %v6766 = vadd.f32 0.0, %v6765
        %v6767 = vpop.f32.mrb[0].mxu0
        %6768 = vmatprep.mubr.bf16.mxu0 %v6452
        %6769 = vmatmul.mubr.bf16.gmra.mrb[0].mxu0 %v6451
        %v6770 = vpop.f32.mrb[0].mxu0
        %v6771 = vadd.f32 0.0, %v6770
        %v6772 = vpop.f32.mrb[0].mxu0
        %v6773 = vpop.f32.mrb[0].mxu0
        %v6774 = vadd.f32 0.0, %v6773
        %v6775 = vpop.f32.mrb[0].mxu0
        %6776 = vmatprep.mubr.bf16.mxu0 %v6455
        %6777 = vmatmul.mubr.bf16.gmra.mrb[0].mxu0 %v6454
        %v6778 = vpop.f32.mrb[0].mxu0
        %v6779 = vadd.f32 0.0, %v6778
        %v6780 = vpop.f32.mrb[0].mxu0
        %v6781 = vpop.f32.mrb[0].mxu0
        %v6782 = vadd.f32 0.0, %v6781
        %v6783 = vpop.f32.mrb[0].mxu0
        %6784 = vmatprep.mubr.bf16.mxu0 %v6458
        %6785 = vmatmul.mubr.bf16.gmra.mrb[0].mxu0 %v6457
        %v6786 = vpop.f32.mrb[0].mxu0
        %v6787 = vadd.f32 0.0, %v6786
        %v6788 = vpop.f32.mrb[0].mxu0
        %v6789 = vpop.f32.mrb[0].mxu0
        %v6790 = vadd.f32 0.0, %v6789
        %v6791 = vpop.f32.mrb[0].mxu0
        %6792 = vmatprep.mubr.bf16.mxu0 %v6461
        %6793 = vmatmul.mubr.bf16.gmra.mrb[0].mxu0 %v6460
        %v6794 = vpop.f32.mrb[0].mxu0
        %v6795 = vadd.f32 0.0, %v6794
        %v6796 = vpop.f32.mrb[0].mxu0
        %v6797 = vpop.f32.mrb[0].mxu0
        %v6798 = vadd.f32 0.0, %v6797
        %v6799 = vpop.f32.mrb[0].mxu0
        %6800 = vmatprep.mubr.bf16.mxu0 %v6464
        %6801 = vmatmul.mubr.bf16.gmra.mrb[0].mxu0 %v6463
        %v6802 = vpop.f32.mrb[0].mxu0
        %v6803 = vadd.f32 0.0, %v6802
        %v6804 = vpop.f32.mrb[0].mxu0
        %v6805 = vpop.f32.mrb[0].mxu0
        %v6806 = vadd.f32 0.0, %v6805
        %v6807 = vpop.f32.mrb[0].mxu0
        %6808 = vmatprep.mubr.bf16.mxu0 %v6467
        %6809 = vmatmul.mubr.bf16.gmra.mrb[0].mxu0 %v6466
        %v6810 = vpop.f32.mrb[0].mxu0
        %v6811 = vadd.f32 0.0, %v6810
        %v6812 = vpop.f32.mrb[0].mxu0
        %v6813 = vpop.f32.mrb[0].mxu0
        %v6814 = vadd.f32 0.0, %v6813
        %v6815 = vpop.f32.mrb[0].mxu0
        %6816 = vmatprep.mubr.bf16.mxu0 %v6470
        %6817 = vmatmul.mubr.bf16.gmra.mrb[0].mxu0 %v6469
        %v6818 = vpop.f32.mrb[0].mxu0
        %v6819 = vadd.f32 0.0, %v6818
        %v6820 = vpop.f32.mrb[0].mxu0
        %v6821 = vpop.f32.mrb[0].mxu0
        %v6822 = vadd.f32 0.0, %v6821
        %v6823 = vpop.f32.mrb[0].mxu0
        %6824 = vdwg.mxu0
        %6825 = vmatprep.subr.bf16.mxu0 0
        %6826 = vmatpush1.bf16.msra.mxu0 %v6596
        %6827 = vmatprep.subr.bf16.mxu0 0
        %6828 = vmatpush1.bf16.msra.mxu0 %v6597
        %6829 = vmatprep.subr.bf16.mxu0 0
        %6830 = vmatpush1.bf16.msra.mxu0 0
        %6831 = vmatprep.subr.bf16.mxu0 0
        %6832 = vmatpush1.bf16.msra.mxu0 0
        %6833 = vmatprep.subr.bf16.mxu0 0
        %6834 = vmatpush1.bf16.msra.mxu0 0
        %6835 = vmatprep.subr.bf16.mxu0 0
        %6836 = vmatpush1.bf16.msra.mxu0 0
        %6837 = vmatprep.subr.bf16.mxu0 0
        %6838 = vmatpush1.bf16.msra.mxu0 0
        %6839 = vmatprep.subr.bf16.mxu0 0
        %6840 = vmatpush1.bf16.msra.mxu0 0
        %6841 = vmatprep.subr.bf16.mxu0 0
        %6842 = vmatpush1.bf16.msra.mxu0 0
        %6843 = vmatprep.subr.bf16.mxu0 0
        %6844 = vmatpush1.bf16.msra.mxu0 0
        %6845 = vmatprep.subr.bf16.mxu0 0
        %6846 = vmatpush1.bf16.msra.mxu0 0
        %6847 = vmatprep.subr.bf16.mxu0 0
        %6848 = vmatpush1.bf16.msra.mxu0 0
        %6849 = vmatprep.subr.bf16.mxu0 0
        %6850 = vmatpush1.bf16.msra.mxu0 0
        %6851 = vmatprep.subr.bf16.mxu0 0
        %6852 = vmatpush1.bf16.msra.mxu0 0
        %6853 = vmatprep.subr.bf16.mxu0 0
        %6854 = vmatpush1.bf16.msra.mxu0 0
        %6855 = vmatprep.subr.bf16.mxu0 0
        %6856 = vmatpush1.bf16.msra.mxu0 0
        %6857 = vmatprep.mubr.bf16.mxu0 0
        %6858 = vmatmul.mubr.bf16.gmra.mrb[0].mxu0 %v6617
        %v6859 = vpop.f32.mrb[0].mxu0
        %v6860 = vadd.f32 %v6699, %v6859
        %v6861 = vpop.f32.mrb[0].mxu0
        %v6862 = vpop.f32.mrb[0].mxu0
        %v6863 = vadd.f32 %v6702, %v6862
        %v6864 = vpop.f32.mrb[0].mxu0
        %6865 = vmatprep.mubr.bf16.mxu0 0
        %6866 = vmatmul.mubr.bf16.gmra.mrb[0].mxu0 %v6620
        %v6867 = vpop.f32.mrb[0].mxu0
        %v6868 = vadd.f32 %v6707, %v6867
        %v6869 = vpop.f32.mrb[0].mxu0
        %v6870 = vpop.f32.mrb[0].mxu0
        %v6871 = vadd.f32 %v6710, %v6870
        %v6872 = vpop.f32.mrb[0].mxu0
        %6873 = vmatprep.mubr.bf16.mxu0 0
        %6874 = vmatmul.mubr.bf16.gmra.mrb[0].mxu0 %v6623
        %v6875 = vpop.f32.mrb[0].mxu0
        %v6876 = vadd.f32 %v6715, %v6875
        %v6877 = vpop.f32.mrb[0].mxu0
        %v6878 = vpop.f32.mrb[0].mxu0
        %v6879 = vadd.f32 %v6718, %v6878
        %v6880 = vpop.f32.mrb[0].mxu0
        %6881 = vmatprep.mubr.bf16.mxu0 0
        %6882 = vmatmul.mubr.bf16.gmra.mrb[0].mxu0 %v6626
        %v6883 = vpop.f32.mrb[0].mxu0
        %v6884 = vadd.f32 %v6723, %v6883
        %v6885 = vpop.f32.mrb[0].mxu0
        %v6886 = vpop.f32.mrb[0].mxu0
        %v6887 = vadd.f32 %v6726, %v6886
        %v6888 = vpop.f32.mrb[0].mxu0
        %6889 = vmatprep.mubr.bf16.mxu0 0
        %6890 = vmatmul.mubr.bf16.gmra.mrb[0].mxu0 %v6629
        %v6891 = vpop.f32.mrb[0].mxu0
        %v6892 = vadd.f32 %v6731, %v6891
        %v6893 = vpop.f32.mrb[0].mxu0
        %v6894 = vpop.f32.mrb[0].mxu0
        %v6895 = vadd.f32 %v6734, %v6894
        %v6896 = vpop.f32.mrb[0].mxu0
        %6897 = vmatprep.mubr.bf16.mxu0 0
        %6898 = vmatmul.mubr.bf16.gmra.mrb[0].mxu0 %v6632
        %v6899 = vpop.f32.mrb[0].mxu0
        %v6900 = vadd.f32 %v6739, %v6899
        %v6901 = vpop.f32.mrb[0].mxu0
        %v6902 = vpop.f32.mrb[0].mxu0
        %v6903 = vadd.f32 %v6742, %v6902
        %v6904 = vpop.f32.mrb[0].mxu0
        %6905 = vmatprep.mubr.bf16.mxu0 0
        %6906 = vmatmul.mubr.bf16.gmra.mrb[0].mxu0 %v6635
        %v6907 = vpop.f32.mrb[0].mxu0
        %v6908 = vadd.f32 %v6747, %v6907
        %v6909 = vpop.f32.mrb[0].mxu0
        %v6910 = vpop.f32.mrb[0].mxu0
        %v6911 = vadd.f32 %v6750, %v6910
        %v6912 = vpop.f32.mrb[0].mxu0
        %6913 = vmatprep.mubr.bf16.mxu0 0
        %6914 = vmatmul.mubr.bf16.gmra.mrb[0].mxu0 %v6638
        %v6915 = vpop.f32.mrb[0].mxu0
        %v6916 = vadd.f32 %v6755, %v6915
        %v6917 = vpop.f32.mrb[0].mxu0
        %v6918 = vpop.f32.mrb[0].mxu0
        %v6919 = vadd.f32 %v6758, %v6918
        %v6920 = vpop.f32.mrb[0].mxu0
        %6921 = vmatprep.mubr.bf16.mxu0 0
        %6922 = vmatmul.mubr.bf16.gmra.mrb[0].mxu0 %v6641
        %v6923 = vpop.f32.mrb[0].mxu0
        %v6924 = vadd.f32 %v6763, %v6923
        %v6925 = vpop.f32.mrb[0].mxu0
        %v6926 = vpop.f32.mrb[0].mxu0
        %v6927 = vadd.f32 %v6766, %v6926
        %v6928 = vpop.f32.mrb[0].mxu0
        %6929 = vmatprep.mubr.bf16.mxu0 0
        %6930 = vmatmul.mubr.bf16.gmra.mrb[0].mxu0 %v6644
        %v6931 = vpop.f32.mrb[0].mxu0
        %v6932 = vadd.f32 %v6771, %v6931
        %v6933 = vpop.f32.mrb[0].mxu0
        %v6934 = vpop.f32.mrb[0].mxu0
        %v6935 = vadd.f32 %v6774, %v6934
        %v6936 = vpop.f32.mrb[0].mxu0
        %6937 = vmatprep.mubr.bf16.mxu0 0
        %6938 = vmatmul.mubr.bf16.gmra.mrb[0].mxu0 %v6647
        %v6939 = vpop.f32.mrb[0].mxu0
        %v6940 = vadd.f32 %v6779, %v6939
        %v6941 = vpop.f32.mrb[0].mxu0
        %v6942 = vpop.f32.mrb[0].mxu0
        %v6943 = vadd.f32 %v6782, %v6942
        %v6944 = vpop.f32.mrb[0].mxu0
        %6945 = vmatprep.mubr.bf16.mxu0 0
        %6946 = vmatmul.mubr.bf16.gmra.mrb[0].mxu0 %v6650
        %v6947 = vpop.f32.mrb[0].mxu0
        %v6948 = vadd.f32 %v6787, %v6947
        %v6949 = vpop.f32.mrb[0].mxu0
        %v6950 = vpop.f32.mrb[0].mxu0
        %v6951 = vadd.f32 %v6790, %v6950
        %v6952 = vpop.f32.mrb[0].mxu0
        %6953 = vmatprep.mubr.bf16.mxu0 0
        %6954 = vmatmul.mubr.bf16.gmra.mrb[0].mxu0 %v6653
        %v6955 = vpop.f32.mrb[0].mxu0
        %v6956 = vadd.f32 %v6795, %v6955
        %v6957 = vpop.f32.mrb[0].mxu0
        %v6958 = vpop.f32.mrb[0].mxu0
        %v6959 = vadd.f32 %v6798, %v6958
        %v6960 = vpop.f32.mrb[0].mxu0
        %6961 = vmatprep.mubr.bf16.mxu0 0
        %6962 = vmatmul.mubr.bf16.gmra.mrb[0].mxu0 %v6656
        %v6963 = vpop.f32.mrb[0].mxu0
        %v6964 = vadd.f32 %v6803, %v6963
        %v6965 = vpop.f32.mrb[0].mxu0
        %v6966 = vpop.f32.mrb[0].mxu0
        %v6967 = vadd.f32 %v6806, %v6966
        %v6968 = vpop.f32.mrb[0].mxu0
        %6969 = vmatprep.mubr.bf16.mxu0 0
        %6970 = vmatmul.mubr.bf16.gmra.mrb[0].mxu0 %v6659
        %v6971 = vpop.f32.mrb[0].mxu0
        %v6972 = vadd.f32 %v6811, %v6971
        %v6973 = vpop.f32.mrb[0].mxu0
        %v6974 = vpop.f32.mrb[0].mxu0
        %v6975 = vadd.f32 %v6814, %v6974
        %v6976 = vpop.f32.mrb[0].mxu0
        %6977 = vmatprep.mubr.bf16.mxu0 0
        %6978 = vmatmul.mubr.bf16.gmra.mrb[0].mxu0 %v6662
        %v6979 = vpop.f32.mrb[0].mxu0
        %v6980 = vadd.f32 %v6819, %v6979
        %v6981 = vpop.f32.mrb[0].mxu0
        %v6982 = vpop.f32.mrb[0].mxu0
        %v6983 = vadd.f32 %v6822, %v6982
        %v6984 = vpop.f32.mrb[0].mxu0
        %6985 = vdwg.mxu0
        %7018 = vrot.lane.b32.xlu0 %v6860, 24
        %v7019 = vpop.permute.xlu0 %7018
        %7020 = vrot.lane.b32.xlu0 %v6863, 24
        %v7021 = vpop.permute.xlu0 %7020
        %7022 = vrot.lane.b32.xlu0 %v6868, 24
        %v7023 = vpop.permute.xlu0 %7022
        %7024 = vrot.lane.b32.xlu0 %v6871, 24
        %v7025 = vpop.permute.xlu0 %7024
        %7026 = vrot.lane.b32.xlu0 %v6876, 24
        %v7027 = vpop.permute.xlu0 %7026
        %7028 = vrot.lane.b32.xlu0 %v6879, 24
        %v7029 = vpop.permute.xlu0 %7028
        %7030 = vrot.lane.b32.xlu0 %v6884, 24
        %v7031 = vpop.permute.xlu0 %7030
        %7032 = vrot.lane.b32.xlu0 %v6887, 24
        %v7033 = vpop.permute.xlu0 %7032
        %7034 = vrot.lane.b32.xlu0 %v6892, 24
        %v7035 = vpop.permute.xlu0 %7034
        %7036 = vrot.lane.b32.xlu0 %v6895, 24
        %v7037 = vpop.permute.xlu0 %7036
        %7038 = vrot.lane.b32.xlu0 %v6900, 24
        %v7039 = vpop.permute.xlu0 %7038
        %7040 = vrot.lane.b32.xlu0 %v6903, 24
        %v7041 = vpop.permute.xlu0 %7040
        %7042 = vrot.lane.b32.xlu0 %v6908, 24
        %v7043 = vpop.permute.xlu0 %7042
        %7044 = vrot.lane.b32.xlu0 %v6911, 24
        %v7045 = vpop.permute.xlu0 %7044
        %7046 = vrot.lane.b32.xlu0 %v6916, 24
        %v7047 = vpop.permute.xlu0 %7046
        %7048 = vrot.lane.b32.xlu0 %v6919, 24
        %v7049 = vpop.permute.xlu0 %7048
        %7050 = vrot.lane.b32.xlu0 %v6924, 24
        %v7051 = vpop.permute.xlu0 %7050
        %7052 = vrot.lane.b32.xlu0 %v6927, 24
        %v7053 = vpop.permute.xlu0 %7052
        %7054 = vrot.lane.b32.xlu0 %v6932, 24
        %v7055 = vpop.permute.xlu0 %7054
        %7056 = vrot.lane.b32.xlu0 %v6935, 24
        %v7057 = vpop.permute.xlu0 %7056
        %7058 = vrot.lane.b32.xlu0 %v6940, 24
        %v7059 = vpop.permute.xlu0 %7058
        %7060 = vrot.lane.b32.xlu0 %v6943, 24
        %v7061 = vpop.permute.xlu0 %7060
        %7062 = vrot.lane.b32.xlu0 %v6948, 24
        %v7063 = vpop.permute.xlu0 %7062
        %7064 = vrot.lane.b32.xlu0 %v6951, 24
        %v7065 = vpop.permute.xlu0 %7064
        %7066 = vrot.lane.b32.xlu0 %v6956, 24
        %v7067 = vpop.permute.xlu0 %7066
        %7068 = vrot.lane.b32.xlu0 %v6959, 24
        %v7069 = vpop.permute.xlu0 %7068
        %7070 = vrot.lane.b32.xlu0 %v6964, 24
        %v7071 = vpop.permute.xlu0 %7070
        %7072 = vrot.lane.b32.xlu0 %v6967, 24
        %v7073 = vpop.permute.xlu0 %7072
        %7074 = vrot.lane.b32.xlu0 %v6972, 24
        %v7075 = vpop.permute.xlu0 %7074
        %7076 = vrot.lane.b32.xlu0 %v6975, 24
        %v7077 = vpop.permute.xlu0 %7076
        %7078 = vrot.lane.b32.xlu0 %v6980, 24
        %v7079 = vpop.permute.xlu0 %7078
        %7080 = vrot.lane.b32.xlu0 %v6983, 24
        %v7081 = vpop.permute.xlu0 %7080
        %vm7114 = vcmask 261312
        %7115 = vst.msk [vmem:[#allocation2] sm:$0xff] %vm7114, %v7019
        %7116 = vst.msk [vmem:[#allocation2 + $0x8] sm:$0xff] %vm7114, %v7021
        %7117 = vst.msk [vmem:[#allocation2 + $0x10] sm:$0xff] %vm7114, %v7023
        %7118 = vst.msk [vmem:[#allocation2 + $0x18] sm:$0xff] %vm7114, %v7025
        %7119 = vst.msk [vmem:[#allocation2 + $0x20] sm:$0xff] %vm7114, %v7027
        %7120 = vst.msk [vmem:[#allocation2 + $0x28] sm:$0xff] %vm7114, %v7029
        %7121 = vst.msk [vmem:[#allocation2 + $0x30] sm:$0xff] %vm7114, %v7031
        %7122 = vst.msk [vmem:[#allocation2 + $0x38] sm:$0xff] %vm7114, %v7033
        %7123 = vst.msk [vmem:[#allocation2 + $0x40] sm:$0xff] %vm7114, %v7035
        %7124 = vst.msk [vmem:[#allocation2 + $0x48] sm:$0xff] %vm7114, %v7037
        %7125 = vst.msk [vmem:[#allocation2 + $0x50] sm:$0xff] %vm7114, %v7039
        %7126 = vst.msk [vmem:[#allocation2 + $0x58] sm:$0xff] %vm7114, %v7041
        %7127 = vst.msk [vmem:[#allocation2 + $0x60] sm:$0xff] %vm7114, %v7043
        %7128 = vst.msk [vmem:[#allocation2 + $0x68] sm:$0xff] %vm7114, %v7045
        %7129 = vst.msk [vmem:[#allocation2 + $0x70] sm:$0xff] %vm7114, %v7047
        %7130 = vst.msk [vmem:[#allocation2 + $0x78] sm:$0xff] %vm7114, %v7049
        %7131 = vst.msk [vmem:[#allocation2 + $0x80] sm:$0xff] %vm7114, %v7051
        %7132 = vst.msk [vmem:[#allocation2 + $0x88] sm:$0xff] %vm7114, %v7053
        %7133 = vst.msk [vmem:[#allocation2 + $0x90] sm:$0xff] %vm7114, %v7055
        %7134 = vst.msk [vmem:[#allocation2 + $0x98] sm:$0xff] %vm7114, %v7057
        %7135 = vst.msk [vmem:[#allocation2 + $0xa0] sm:$0xff] %vm7114, %v7059
        %7136 = vst.msk [vmem:[#allocation2 + $0xa8] sm:$0xff] %vm7114, %v7061
        %7137 = vst.msk [vmem:[#allocation2 + $0xb0] sm:$0xff] %vm7114, %v7063
        %7138 = vst.msk [vmem:[#allocation2 + $0xb8] sm:$0xff] %vm7114, %v7065
        %7139 = vst.msk [vmem:[#allocation2 + $0xc0] sm:$0xff] %vm7114, %v7067
        %7140 = vst.msk [vmem:[#allocation2 + $0xc8] sm:$0xff] %vm7114, %v7069
        %7141 = vst.msk [vmem:[#allocation2 + $0xd0] sm:$0xff] %vm7114, %v7071
        %7142 = vst.msk [vmem:[#allocation2 + $0xd8] sm:$0xff] %vm7114, %v7073
        %7143 = vst.msk [vmem:[#allocation2 + $0xe0] sm:$0xff] %vm7114, %v7075
        %7144 = vst.msk [vmem:[#allocation2 + $0xe8] sm:$0xff] %vm7114, %v7077
        %7145 = vst.msk [vmem:[#allocation2 + $0xf0] sm:$0xff] %vm7114, %v7079
        %7146 = vst.msk [vmem:[#allocation2 + $0xf8] sm:$0xff] %vm7114, %v7081
        %v7147 = vld [vmem:[%s29] sm:$0xff]
        %v7148 = vld [vmem:[%s29 + $0x8] sm:$0xff]
        %v7149 = vld [vmem:[%s29 + $0x10] sm:$0xff]
        %v7150 = vld [vmem:[%s29 + $0x18] sm:$0xff]
        %v7151 = vld [vmem:[%s29 + $0x20] sm:$0xff]
        %v7152 = vld [vmem:[%s29 + $0x28] sm:$0xff]
        %v7153 = vld [vmem:[%s29 + $0x30] sm:$0xff]
        %v7154 = vld [vmem:[%s29 + $0x38] sm:$0xff]
        %v7155 = vld [vmem:[#allocation2] sm:$0xff]
        %v7156 = vld [vmem:[#allocation2 + $0x8] sm:$0xff]
        %v7157 = vld [vmem:[#allocation2 + $0x10] sm:$0xff]
        %v7158 = vld [vmem:[#allocation2 + $0x18] sm:$0xff]
        %v7159 = vld [vmem:[#allocation2 + $0x20] sm:$0xff]
        %v7160 = vld [vmem:[#allocation2 + $0x28] sm:$0xff]
        %v7161 = vld [vmem:[#allocation2 + $0x30] sm:$0xff]
        %v7162 = vld [vmem:[#allocation2 + $0x38] sm:$0xff]
        %v7163 = vld [vmem:[#allocation2 + $0x40] sm:$0xff]
        %v7164 = vld [vmem:[#allocation2 + $0x48] sm:$0xff]
        %v7165 = vld [vmem:[#allocation2 + $0x50] sm:$0xff]
        %v7166 = vld [vmem:[#allocation2 + $0x58] sm:$0xff]
        %v7167 = vld [vmem:[#allocation2 + $0x60] sm:$0xff]
        %v7168 = vld [vmem:[#allocation2 + $0x68] sm:$0xff]
        %v7169 = vld [vmem:[#allocation2 + $0x70] sm:$0xff]
        %v7170 = vld [vmem:[#allocation2 + $0x78] sm:$0xff]
        %v7171 = vld [vmem:[#allocation2 + $0x80] sm:$0xff]
        %v7172 = vld [vmem:[#allocation2 + $0x88] sm:$0xff]
        %v7173 = vld [vmem:[#allocation2 + $0x90] sm:$0xff]
        %v7174 = vld [vmem:[#allocation2 + $0x98] sm:$0xff]
        %v7175 = vld [vmem:[#allocation2 + $0xa0] sm:$0xff]
        %v7176 = vld [vmem:[#allocation2 + $0xa8] sm:$0xff]
        %v7177 = vld [vmem:[#allocation2 + $0xb0] sm:$0xff]
        %v7178 = vld [vmem:[#allocation2 + $0xb8] sm:$0xff]
        %v7179 = vld [vmem:[#allocation2 + $0xc0] sm:$0xff]
        %v7180 = vld [vmem:[#allocation2 + $0xc8] sm:$0xff]
        %v7181 = vld [vmem:[#allocation2 + $0xd0] sm:$0xff]
        %v7182 = vld [vmem:[#allocation2 + $0xd8] sm:$0xff]
        %v7183 = vld [vmem:[#allocation2 + $0xe0] sm:$0xff]
        %v7184 = vld [vmem:[#allocation2 + $0xe8] sm:$0xff]
        %v7185 = vld [vmem:[#allocation2 + $0xf0] sm:$0xff]
        %v7186 = vld [vmem:[#allocation2 + $0xf8] sm:$0xff]
        %v7187 = vpack.c.bf16 %v7156, %v7155
        %v7188 = vpack.c.bf16 %v7158, %v7157
        %v7189 = vpack.c.bf16 %v7160, %v7159
        %v7190 = vpack.c.bf16 %v7162, %v7161
        %v7191 = vpack.c.bf16 %v7164, %v7163
        %v7192 = vpack.c.bf16 %v7166, %v7165
        %v7193 = vpack.c.bf16 %v7168, %v7167
        %v7194 = vpack.c.bf16 %v7170, %v7169
        %v7195 = vpack.c.bf16 %v7172, %v7171
        %v7196 = vpack.c.bf16 %v7174, %v7173
        %v7197 = vpack.c.bf16 %v7176, %v7175
        %v7198 = vpack.c.bf16 %v7178, %v7177
        %v7199 = vpack.c.bf16 %v7180, %v7179
        %v7200 = vpack.c.bf16 %v7182, %v7181
        %v7201 = vpack.c.bf16 %v7184, %v7183
        %v7202 = vpack.c.bf16 %v7186, %v7185
        %v7211 = vunpack.c.l.b16 %v7147
        %v7212 = vunpack.c.h.b16 %v7147
        %v7213 = vunpack.c.l.b16 %v7148
        %v7214 = vunpack.c.h.b16 %v7148
        %v7215 = vunpack.c.l.b16 %v7149
        %v7216 = vunpack.c.h.b16 %v7149
        %v7217 = vunpack.c.l.b16 %v7150
        %v7218 = vunpack.c.h.b16 %v7150
        %v7219 = vunpack.c.l.b16 %v7151
        %v7220 = vunpack.c.h.b16 %v7151
        %v7221 = vunpack.c.l.b16 %v7152
        %v7222 = vunpack.c.h.b16 %v7152
        %v7223 = vunpack.c.l.b16 %v7153
        %v7224 = vunpack.c.h.b16 %v7153
        %v7225 = vunpack.c.l.b16 %v7154
        %v7226 = vunpack.c.h.b16 %v7154
        %v7227 = vpack.c.b16 %v7213, %v7211
        %v7228 = vpack.c.b16 %v7214, %v7212
        %v7229 = vpack.c.b16 %v7217, %v7215
        %v7230 = vpack.c.b16 %v7218, %v7216
        %v7231 = vpack.c.b16 %v7221, %v7219
        %v7232 = vpack.c.b16 %v7222, %v7220
        %v7233 = vpack.c.b16 %v7225, %v7223
        %v7234 = vpack.c.b16 %v7226, %v7224
        %7243 = vmatprep.subr.bf16.mxu0 0
        %7244 = vmatpush1.bf16.msra.mxu0 %v7187
        %7245 = vmatprep.subr.bf16.mxu0 0
        %7246 = vmatpush1.bf16.msra.mxu0 %v7188
        %7247 = vmatprep.subr.bf16.mxu0 0
        %7248 = vmatpush1.bf16.msra.mxu0 %v7189
        %7249 = vmatprep.subr.bf16.mxu0 0
        %7250 = vmatpush1.bf16.msra.mxu0 %v7190
        %7251 = vmatprep.subr.bf16.mxu0 0
        %7252 = vmatpush1.bf16.msra.mxu0 %v7191
        %7253 = vmatprep.subr.bf16.mxu0 0
        %7254 = vmatpush1.bf16.msra.mxu0 %v7192
        %7255 = vmatprep.subr.bf16.mxu0 0
        %7256 = vmatpush1.bf16.msra.mxu0 %v7193
        %7257 = vmatprep.subr.bf16.mxu0 0
        %7258 = vmatpush1.bf16.msra.mxu0 %v7194
        %7259 = vmatprep.subr.bf16.mxu0 0
        %7260 = vmatpush1.bf16.msra.mxu0 %v7195
        %7261 = vmatprep.subr.bf16.mxu0 0
        %7262 = vmatpush1.bf16.msra.mxu0 %v7196
        %7263 = vmatprep.subr.bf16.mxu0 0
        %7264 = vmatpush1.bf16.msra.mxu0 %v7197
        %7265 = vmatprep.subr.bf16.mxu0 0
        %7266 = vmatpush1.bf16.msra.mxu0 %v7198
        %7267 = vmatprep.subr.bf16.mxu0 0
        %7268 = vmatpush1.bf16.msra.mxu0 %v7199
        %7269 = vmatprep.subr.bf16.mxu0 0
        %7270 = vmatpush1.bf16.msra.mxu0 %v7200
        %7271 = vmatprep.subr.bf16.mxu0 0
        %7272 = vmatpush1.bf16.msra.mxu0 %v7201
        %7273 = vmatprep.subr.bf16.mxu0 0
        %7274 = vmatpush1.bf16.msra.mxu0 %v7202
        %7275 = vmatprep.mubr.bf16.mxu0 %v7228
        %7276 = vmatmul.mubr.bf16.gmra.mrb[0].mxu0 %v7227
        %v7277 = vpop.f32.mrb[0].mxu0
        %v7278 = vadd.f32 0.0, %v7277
        %v7279 = vpop.f32.mrb[0].mxu0
        %v7280 = vpop.f32.mrb[0].mxu0
        %v7281 = vadd.f32 0.0, %v7280
        %v7282 = vpop.f32.mrb[0].mxu0
        %7283 = vmatprep.mubr.bf16.mxu0 %v7230
        %7284 = vmatmul.mubr.bf16.gmra.mrb[0].mxu0 %v7229
        %v7285 = vpop.f32.mrb[0].mxu0
        %v7286 = vadd.f32 0.0, %v7285
        %v7287 = vpop.f32.mrb[0].mxu0
        %v7288 = vpop.f32.mrb[0].mxu0
        %v7289 = vadd.f32 0.0, %v7288
        %v7290 = vpop.f32.mrb[0].mxu0
        %7291 = vmatprep.mubr.bf16.mxu0 %v7232
        %7292 = vmatmul.mubr.bf16.gmra.mrb[0].mxu0 %v7231
        %v7293 = vpop.f32.mrb[0].mxu0
        %v7294 = vadd.f32 0.0, %v7293
        %v7295 = vpop.f32.mrb[0].mxu0
        %v7296 = vpop.f32.mrb[0].mxu0
        %v7297 = vadd.f32 0.0, %v7296
        %v7298 = vpop.f32.mrb[0].mxu0
        %7299 = vmatprep.mubr.bf16.mxu0 %v7234
        %7300 = vmatmul.mubr.bf16.gmra.mrb[0].mxu0 %v7233
        %v7301 = vpop.f32.mrb[0].mxu0
        %v7302 = vadd.f32 0.0, %v7301
        %v7303 = vpop.f32.mrb[0].mxu0
        %v7304 = vpop.f32.mrb[0].mxu0
        %v7305 = vadd.f32 0.0, %v7304
        %v7306 = vpop.f32.mrb[0].mxu0
        %7307 = vdwg.mxu0
        %v7308 = vld [vmem:[%s31] sm:$0x1]
        %v7310 = vlaneseq
        %v7311 = vshrl.u32 %v7310, 7
        %v7312 = vsub.s32 0, %v7311
        %v7313 = vrot.slane %v7308, %v7312
        %v7315 = vmul.f32 %v7278, %v7313
        %v7316 = vmul.f32 %v7281, %v7313
        %v7317 = vmul.f32 %v7286, %v7313
        %v7318 = vmul.f32 %v7289, %v7313
        %v7319 = vmul.f32 %v7294, %v7313
        %v7320 = vmul.f32 %v7297, %v7313
        %v7321 = vmul.f32 %v7302, %v7313
        %v7322 = vmul.f32 %v7305, %v7313
        %v7323 = vld [vmem:[%s33] sm:$0x1]
        %v7325 = vlaneseq
        %v7326 = vshrl.u32 %v7325, 7
        %v7327 = vsub.s32 0, %v7326
        %v7328 = vrot.slane %v7323, %v7327
        %v7330 = vadd.f32 %v7315, %v7328
        %v7331 = vadd.f32 %v7316, %v7328
        %v7332 = vadd.f32 %v7317, %v7328
        %v7333 = vadd.f32 %v7318, %v7328
        %v7334 = vadd.f32 %v7319, %v7328
        %v7335 = vadd.f32 %v7320, %v7328
        %v7336 = vadd.f32 %v7321, %v7328
        %v7337 = vadd.f32 %v7322, %v7328
        %v7338 = vpack.c.bf16 %v7331, %v7330
        %v7339 = vpack.c.bf16 %v7333, %v7332
        %v7340 = vpack.c.bf16 %v7335, %v7334
        %v7341 = vpack.c.bf16 %v7337, %v7336
        %v7342 = vld [vmem:[%s35] sm:$0xf]
        %v7343 = vld [vmem:[%s35 + $0x4] sm:$0xf]
        %v7344 = vld [vmem:[%s35 + $0x8] sm:$0xf]
        %v7345 = vld [vmem:[%s35 + $0xc] sm:$0xf]
        %v7350 = vunpack.c.l.b16 %v7342
        %v7351 = vunpack.c.l.b16 %v7343
        %v7352 = vunpack.c.l.b16 %v7344
        %v7353 = vunpack.c.l.b16 %v7345
        %v7354 = vpack.c.b16 %v7351, %v7350
        %v7355 = vpack.c.b16 %v7353, %v7352
        %v7359 = vsel %vm1041, %v7338, 0
        %v7362 = vsel %vm1041, %v7339, 0
        %v7365 = vsel %vm1041, %v7340, 0
        %v7368 = vsel %vm1041, %v7341, 0
        %7370 = vmatprep.subr.bf16.mxu0 0
        %7371 = vmatpush1.bf16.msra.mxu0 %v7354
        %7372 = vmatprep.subr.bf16.mxu0 0
        %7373 = vmatpush1.bf16.msra.mxu0 %v7355
        %7374 = vmatprep.subr.bf16.mxu0 0
        %7375 = vmatpush1.bf16.msra.mxu0 0
        %7376 = vmatprep.subr.bf16.mxu0 0
        %7377 = vmatpush1.bf16.msra.mxu0 0
        %7378 = vmatprep.subr.bf16.mxu0 0
        %7379 = vmatpush1.bf16.msra.mxu0 0
        %7380 = vmatprep.subr.bf16.mxu0 0
        %7381 = vmatpush1.bf16.msra.mxu0 0
        %7382 = vmatprep.subr.bf16.mxu0 0
        %7383 = vmatpush1.bf16.msra.mxu0 0
        %7384 = vmatprep.subr.bf16.mxu0 0
        %7385 = vmatpush1.bf16.msra.mxu0 0
        %7386 = vmatprep.subr.bf16.mxu0 0
        %7387 = vmatpush1.bf16.msra.mxu0 0
        %7388 = vmatprep.subr.bf16.mxu0 0
        %7389 = vmatpush1.bf16.msra.mxu0 0
        %7390 = vmatprep.subr.bf16.mxu0 0
        %7391 = vmatpush1.bf16.msra.mxu0 0
        %7392 = vmatprep.subr.bf16.mxu0 0
        %7393 = vmatpush1.bf16.msra.mxu0 0
        %7394 = vmatprep.subr.bf16.mxu0 0
        %7395 = vmatpush1.bf16.msra.mxu0 0
        %7396 = vmatprep.subr.bf16.mxu0 0
        %7397 = vmatpush1.bf16.msra.mxu0 0
        %7398 = vmatprep.subr.bf16.mxu0 0
        %7399 = vmatpush1.bf16.msra.mxu0 0
        %7400 = vmatprep.subr.bf16.mxu0 0
        %7401 = vmatpush1.bf16.msra.mxu0 0
        %7402 = vmatprep.mubr.bf16.mxu0 0
        %7403 = vmatmul.mubr.bf16.gmra.mrb[0].mxu0 %v7359
        %v7404 = vpop.f32.mrb[0].mxu0
        %v7405 = vadd.f32 0.0, %v7404
        %v7406 = vpop.f32.mrb[0].mxu0
        %v7407 = vpop.f32.mrb[0].mxu0
        %v7408 = vadd.f32 0.0, %v7407
        %v7409 = vpop.f32.mrb[0].mxu0
        %7410 = vmatprep.mubr.bf16.mxu0 0
        %7411 = vmatmul.mubr.bf16.gmra.mrb[0].mxu0 %v7362
        %v7412 = vpop.f32.mrb[0].mxu0
        %v7413 = vadd.f32 0.0, %v7412
        %v7414 = vpop.f32.mrb[0].mxu0
        %v7415 = vpop.f32.mrb[0].mxu0
        %v7416 = vadd.f32 0.0, %v7415
        %v7417 = vpop.f32.mrb[0].mxu0
        %7418 = vmatprep.mubr.bf16.mxu0 0
        %7419 = vmatmul.mubr.bf16.gmra.mrb[0].mxu0 %v7365
        %v7420 = vpop.f32.mrb[0].mxu0
        %v7421 = vadd.f32 0.0, %v7420
        %v7422 = vpop.f32.mrb[0].mxu0
        %v7423 = vpop.f32.mrb[0].mxu0
        %v7424 = vadd.f32 0.0, %v7423
        %v7425 = vpop.f32.mrb[0].mxu0
        %7426 = vmatprep.mubr.bf16.mxu0 0
        %7427 = vmatmul.mubr.bf16.gmra.mrb[0].mxu0 %v7368
        %v7428 = vpop.f32.mrb[0].mxu0
        %v7429 = vadd.f32 0.0, %v7428
        %v7430 = vpop.f32.mrb[0].mxu0
        %v7431 = vpop.f32.mrb[0].mxu0
        %v7432 = vadd.f32 0.0, %v7431
        %v7433 = vpop.f32.mrb[0].mxu0
        %7434 = vdwg.mxu0
        %7435 = vst.msk [vmem:[#allocation5] sm:$0xff] %vm2705, %v7405
        %7436 = vst.msk [vmem:[#allocation5 + $0x8] sm:$0xff] %vm2705, %v7408
        %7437 = vst.msk [vmem:[#allocation5 + $0x10] sm:$0xff] %vm2705, %v7413
        %7438 = vst.msk [vmem:[#allocation5 + $0x18] sm:$0xff] %vm2705, %v7416
        %7439 = vst.msk [vmem:[#allocation5 + $0x20] sm:$0xff] %vm2705, %v7421
        %7440 = vst.msk [vmem:[#allocation5 + $0x28] sm:$0xff] %vm2705, %v7424
        %7441 = vst.msk [vmem:[#allocation5 + $0x30] sm:$0xff] %vm2705, %v7429
        %7442 = vst.msk [vmem:[#allocation5 + $0x38] sm:$0xff] %vm2705, %v7432
        %7443 = vst.msk [vmem:[#allocation6] sm:$0xff] %vm1041, 0.0
        %7444 = vst.msk [vmem:[#allocation6 + $0x8] sm:$0xff] %vm1041, 0.0
        %7445 = vst.msk [vmem:[#allocation6 + $0x10] sm:$0xff] %vm1041, 0.0
        %7446 = vst.msk [vmem:[#allocation6 + $0x18] sm:$0xff] %vm1041, 0.0
        %7447 = vst.msk [vmem:[#allocation6 + $0x20] sm:$0xff] %vm1041, 0.0
        %7448 = vst.msk [vmem:[#allocation6 + $0x28] sm:$0xff] %vm1041, 0.0
        %7449 = vst.msk [vmem:[#allocation6 + $0x30] sm:$0xff] %vm1041, 0.0
        %7450 = vst.msk [vmem:[#allocation6 + $0x38] sm:$0xff] %vm1041, 0.0
        %7451 = vst.msk [vmem:[#allocation6 + $0x40] sm:$0xff] %vm1041, 0.0
        %7452 = vst.msk [vmem:[#allocation6 + $0x48] sm:$0xff] %vm1041, 0.0
        %7453 = vst.msk [vmem:[#allocation6 + $0x50] sm:$0xff] %vm1041, 0.0
        %7454 = vst.msk [vmem:[#allocation6 + $0x58] sm:$0xff] %vm1041, 0.0
        %7455 = vst.msk [vmem:[#allocation6 + $0x60] sm:$0xff] %vm1041, 0.0
        %7456 = vst.msk [vmem:[#allocation6 + $0x68] sm:$0xff] %vm1041, 0.0
        %7457 = vst.msk [vmem:[#allocation6 + $0x70] sm:$0xff] %vm1041, 0.0
        %7458 = vst.msk [vmem:[#allocation6 + $0x78] sm:$0xff] %vm1041, 0.0
        %7459 = vst.msk [vmem:[#allocation6 + $0x80] sm:$0xff] %vm1041, 0.0
        %7460 = vst.msk [vmem:[#allocation6 + $0x88] sm:$0xff] %vm1041, 0.0
        %7461 = vst.msk [vmem:[#allocation6 + $0x90] sm:$0xff] %vm1041, 0.0
        %7462 = vst.msk [vmem:[#allocation6 + $0x98] sm:$0xff] %vm1041, 0.0
        %7463 = vst.msk [vmem:[#allocation6 + $0xa0] sm:$0xff] %vm1041, 0.0
        %7464 = vst.msk [vmem:[#allocation6 + $0xa8] sm:$0xff] %vm1041, 0.0
        %7465 = vst.msk [vmem:[#allocation6 + $0xb0] sm:$0xff] %vm1041, 0.0
        %7466 = vst.msk [vmem:[#allocation6 + $0xb8] sm:$0xff] %vm1041, 0.0
        %7467 = vst.msk [vmem:[#allocation6 + $0xc0] sm:$0xff] %vm1041, 0.0
        %7468 = vst.msk [vmem:[#allocation6 + $0xc8] sm:$0xff] %vm1041, 0.0
        %7469 = vst.msk [vmem:[#allocation6 + $0xd0] sm:$0xff] %vm1041, 0.0
        %7470 = vst.msk [vmem:[#allocation6 + $0xd8] sm:$0xff] %vm1041, 0.0
        %7471 = vst.msk [vmem:[#allocation6 + $0xe0] sm:$0xff] %vm1041, 0.0
        %7472 = vst.msk [vmem:[#allocation6 + $0xe8] sm:$0xff] %vm1041, 0.0
        %v7473 = vld [vmem:[#allocation5] sm:$0xff]
        %v7474 = vld [vmem:[#allocation5 + $0x8] sm:$0xff]
        %v7475 = vld [vmem:[#allocation5 + $0x10] sm:$0xff]
        %v7476 = vld [vmem:[#allocation5 + $0x18] sm:$0xff]
        %v7477 = vld [vmem:[#allocation5 + $0x20] sm:$0xff]
        %v7478 = vld [vmem:[#allocation5 + $0x28] sm:$0xff]
        %v7479 = vld [vmem:[#allocation5 + $0x30] sm:$0xff]
        %v7480 = vld [vmem:[#allocation5 + $0x38] sm:$0xff]
        %v7481 = vld [vmem:[%s37] sm:$0x1]
        %v7483 = vlaneseq
        %v7484 = vshrl.u32 %v7483, 7
        %v7485 = vsub.s32 0, %v7484
        %v7486 = vrot.slane %v7481, %v7485
        %v7488 = vmul.f32 %v7473, %v7486
        %v7489 = vmul.f32 %v7474, %v7486
        %v7490 = vmul.f32 %v7475, %v7486
        %v7491 = vmul.f32 %v7476, %v7486
        %v7492 = vmul.f32 %v7477, %v7486
        %v7493 = vmul.f32 %v7478, %v7486
        %v7494 = vmul.f32 %v7479, %v7486
        %v7495 = vmul.f32 %v7480, %v7486
        %v7496 = vld [vmem:[%s39] sm:$0x1]
        %v7498 = vlaneseq
        %v7499 = vshrl.u32 %v7498, 7
        %v7500 = vsub.s32 0, %v7499
        %v7501 = vrot.slane %v7496, %v7500
        %v7503 = vadd.f32 %v7488, %v7501
        %v7504 = vadd.f32 %v7489, %v7501
        %v7505 = vadd.f32 %v7490, %v7501
        %v7506 = vadd.f32 %v7491, %v7501
        %v7507 = vadd.f32 %v7492, %v7501
        %v7508 = vadd.f32 %v7493, %v7501
        %v7509 = vadd.f32 %v7494, %v7501
        %v7510 = vadd.f32 %v7495, %v7501
        %v7511 = vmax.f32 %v7503, 0.0
        %v7512 = vmax.f32 %v7504, 0.0
        %v7513 = vmax.f32 %v7505, 0.0
        %v7514 = vmax.f32 %v7506, 0.0
        %v7515 = vmax.f32 %v7507, 0.0
        %v7516 = vmax.f32 %v7508, 0.0
        %v7517 = vmax.f32 %v7509, 0.0
        %v7518 = vmax.f32 %v7510, 0.0
        %v7519 = vpack.c.bf16 %v7512, %v7511
        %v7520 = vpack.c.bf16 %v7514, %v7513
        %v7521 = vpack.c.bf16 %v7516, %v7515
        %v7522 = vpack.c.bf16 %v7518, %v7517
        %v7523 = vld [vmem:[%s41] sm:$0xf]
        %v7524 = vld [vmem:[%s41 + $0x4] sm:$0xf]
        %v7527 = vunpack.c.l.b16 %v7523
        %v7528 = vunpack.c.l.b16 %v7524
        %v7529 = vpack.c.b16 %v7528, %v7527
        %v7532 = vsel %vm2705, %v7519, 0
        %v7535 = vsel %vm2705, %v7520, 0
        %v7538 = vsel %vm2705, %v7521, 0
        %v7541 = vsel %vm2705, %v7522, 0
        %7543 = vmatprep.subr.bf16.mxu0 0
        %7544 = vmatpush1.bf16.msra.mxu0 %v7529
        %7545 = vmatprep.subr.bf16.mxu0 0
        %7546 = vmatpush1.bf16.msra.mxu0 0
        %7547 = vmatprep.subr.bf16.mxu0 0
        %7548 = vmatpush1.bf16.msra.mxu0 0
        %7549 = vmatprep.subr.bf16.mxu0 0
        %7550 = vmatpush1.bf16.msra.mxu0 0
        %7551 = vmatprep.subr.bf16.mxu0 0
        %7552 = vmatpush1.bf16.msra.mxu0 0
        %7553 = vmatprep.subr.bf16.mxu0 0
        %7554 = vmatpush1.bf16.msra.mxu0 0
        %7555 = vmatprep.subr.bf16.mxu0 0
        %7556 = vmatpush1.bf16.msra.mxu0 0
        %7557 = vmatprep.subr.bf16.mxu0 0
        %7558 = vmatpush1.bf16.msra.mxu0 0
        %7559 = vmatprep.subr.bf16.mxu0 0
        %7560 = vmatpush1.bf16.msra.mxu0 0
        %7561 = vmatprep.subr.bf16.mxu0 0
        %7562 = vmatpush1.bf16.msra.mxu0 0
        %7563 = vmatprep.subr.bf16.mxu0 0
        %7564 = vmatpush1.bf16.msra.mxu0 0
        %7565 = vmatprep.subr.bf16.mxu0 0
        %7566 = vmatpush1.bf16.msra.mxu0 0
        %7567 = vmatprep.subr.bf16.mxu0 0
        %7568 = vmatpush1.bf16.msra.mxu0 0
        %7569 = vmatprep.subr.bf16.mxu0 0
        %7570 = vmatpush1.bf16.msra.mxu0 0
        %7571 = vmatprep.subr.bf16.mxu0 0
        %7572 = vmatpush1.bf16.msra.mxu0 0
        %7573 = vmatprep.subr.bf16.mxu0 0
        %7574 = vmatpush1.bf16.msra.mxu0 0
        %7575 = vmatprep.mubr.bf16.mxu0 0
        %7576 = vmatmul.mubr.bf16.gmra.mrb[0].mxu0 %v7532
        %v7577 = vpop.f32.mrb[0].mxu0
        %v7578 = vadd.f32 0.0, %v7577
        %v7579 = vpop.f32.mrb[0].mxu0
        %v7580 = vpop.f32.mrb[0].mxu0
        %v7581 = vadd.f32 0.0, %v7580
        %v7582 = vpop.f32.mrb[0].mxu0
        %7583 = vmatprep.mubr.bf16.mxu0 0
        %7584 = vmatmul.mubr.bf16.gmra.mrb[0].mxu0 %v7535
        %v7585 = vpop.f32.mrb[0].mxu0
        %v7586 = vadd.f32 0.0, %v7585
        %v7587 = vpop.f32.mrb[0].mxu0
        %v7588 = vpop.f32.mrb[0].mxu0
        %v7589 = vadd.f32 0.0, %v7588
        %v7590 = vpop.f32.mrb[0].mxu0
        %7591 = vmatprep.mubr.bf16.mxu0 0
        %7592 = vmatmul.mubr.bf16.gmra.mrb[0].mxu0 %v7538
        %v7593 = vpop.f32.mrb[0].mxu0
        %v7594 = vadd.f32 0.0, %v7593
        %v7595 = vpop.f32.mrb[0].mxu0
        %v7596 = vpop.f32.mrb[0].mxu0
        %v7597 = vadd.f32 0.0, %v7596
        %v7598 = vpop.f32.mrb[0].mxu0
        %7599 = vmatprep.mubr.bf16.mxu0 0
        %7600 = vmatmul.mubr.bf16.gmra.mrb[0].mxu0 %v7541
        %v7601 = vpop.f32.mrb[0].mxu0
        %v7602 = vadd.f32 0.0, %v7601
        %v7603 = vpop.f32.mrb[0].mxu0
        %v7604 = vpop.f32.mrb[0].mxu0
        %v7605 = vadd.f32 0.0, %v7604
        %v7606 = vpop.f32.mrb[0].mxu0
        %7607 = vdwg.mxu0
        %v7608 = vld [vmem:[%s43] sm:$0x1]
        %v7610 = vlaneseq
        %v7611 = vshrl.u32 %v7610, 7
        %v7612 = vsub.s32 0, %v7611
        %v7613 = vrot.slane %v7608, %v7612
        %v7615 = vmul.f32 %v7578, %v7613
        %v7616 = vmul.f32 %v7581, %v7613
        %v7617 = vmul.f32 %v7586, %v7613
        %v7618 = vmul.f32 %v7589, %v7613
        %v7619 = vmul.f32 %v7594, %v7613
        %v7620 = vmul.f32 %v7597, %v7613
        %v7621 = vmul.f32 %v7602, %v7613
        %v7622 = vmul.f32 %v7605, %v7613
        %v7623 = vld [vmem:[%s45] sm:$0x1]
        %v7625 = vlaneseq
        %v7626 = vshrl.u32 %v7625, 7
        %v7627 = vsub.s32 0, %v7626
        %v7628 = vrot.slane %v7623, %v7627
        %v7630 = vadd.f32 %v7615, %v7628
        %v7631 = vadd.f32 %v7616, %v7628
        %v7632 = vadd.f32 %v7617, %v7628
        %v7633 = vadd.f32 %v7618, %v7628
        %v7634 = vadd.f32 %v7619, %v7628
        %v7635 = vadd.f32 %v7620, %v7628
        %v7636 = vadd.f32 %v7621, %v7628
        %v7637 = vadd.f32 %v7622, %v7628
        %v7638 = vmax.f32 %v7630, 0.0
        %v7639 = vmax.f32 %v7631, 0.0
        %v7640 = vmax.f32 %v7632, 0.0
        %v7641 = vmax.f32 %v7633, 0.0
        %v7642 = vmax.f32 %v7634, 0.0
        %v7643 = vmax.f32 %v7635, 0.0
        %v7644 = vmax.f32 %v7636, 0.0
        %v7645 = vmax.f32 %v7637, 0.0
        %s7646 = scalar_lea.vmem [#allocation6], 24
        %7647 = vst.msk [vmem:[%s7646 + $0x8] sm:$0xff] %vm1041, %v7638
        %7648 = vst.msk [vmem:[%s7646 + $0x20] sm:$0xff] %vm1041, %v7639
        %7649 = vst.msk [vmem:[%s7646 + $0x38] sm:$0xff] %vm1041, %v7640
        %7650 = vst.msk [vmem:[%s7646 + $0x50] sm:$0xff] %vm1041, %v7641
        %7651 = vst.msk [vmem:[%s7646 + $0x68] sm:$0xff] %vm1041, %v7642
        %7652 = vst.msk [vmem:[%s7646 + $0x80] sm:$0xff] %vm1041, %v7643
        %7653 = vst.msk [vmem:[%s7646 + $0x98] sm:$0xff] %vm1041, %v7644
        %7654 = vst.msk [vmem:[%s7646 + $0xb0] sm:$0xff] %vm1041, %v7645
        %v7655 = vld [vmem:[#allocation6 + $0x7] sm:$0xff]
        %v7656 = vld [vmem:[#allocation6 + $0x1f] sm:$0xff]
        %v7657 = vld [vmem:[#allocation6 + $0x37] sm:$0xff]
        %v7658 = vld [vmem:[#allocation6 + $0x4f] sm:$0xff]
        %v7659 = vld [vmem:[#allocation6 + $0x67] sm:$0xff]
        %v7660 = vld [vmem:[#allocation6 + $0x7f] sm:$0xff]
        %v7661 = vld [vmem:[#allocation6 + $0x97] sm:$0xff]
        %v7662 = vld [vmem:[#allocation6 + $0xaf] sm:$0xff]
        %v7663 = vpack.c.bf16 %v7656, %v7655
        %v7664 = vpack.c.bf16 %v7658, %v7657
        %v7665 = vpack.c.bf16 %v7660, %v7659
        %v7666 = vpack.c.bf16 %v7662, %v7661
        %7667 = vst.msk [vmem:[#allocation7] sm:$0xff] %vm1041, %v7663
        %7668 = vst.msk [vmem:[#allocation7 + $0x18] sm:$0xff] %vm1041, %v7664
        %7669 = vst.msk [vmem:[#allocation7 + $0x30] sm:$0xff] %vm1041, %v7665
        %7670 = vst.msk [vmem:[#allocation7 + $0x48] sm:$0xff] %vm1041, %v7666
        %v7671 = vld [vmem:[#allocation6 + $0x8] sm:$0xff]
        %v7672 = vld [vmem:[#allocation6 + $0x20] sm:$0xff]
        %v7673 = vld [vmem:[#allocation6 + $0x38] sm:$0xff]
        %v7674 = vld [vmem:[#allocation6 + $0x50] sm:$0xff]
        %v7675 = vld [vmem:[#allocation6 + $0x68] sm:$0xff]
        %v7676 = vld [vmem:[#allocation6 + $0x80] sm:$0xff]
        %v7677 = vld [vmem:[#allocation6 + $0x98] sm:$0xff]
        %v7678 = vld [vmem:[#allocation6 + $0xb0] sm:$0xff]
        %v7679 = vpack.c.bf16 %v7672, %v7671
        %v7680 = vpack.c.bf16 %v7674, %v7673
        %v7681 = vpack.c.bf16 %v7676, %v7675
        %v7682 = vpack.c.bf16 %v7678, %v7677
        %7687 = vrot.lane.b32.xlu0 %v7679, 32
        %v7688 = vpop.permute.xlu0 %7687
        %7689 = vrot.lane.b32.xlu0 %v7680, 32
        %v7690 = vpop.permute.xlu0 %7689
        %7691 = vrot.lane.b32.xlu0 %v7681, 32
        %v7692 = vpop.permute.xlu0 %7691
        %7693 = vrot.lane.b32.xlu0 %v7682, 32
        %v7694 = vpop.permute.xlu0 %7693
        %7699 = vst.msk [vmem:[#allocation7] sm:$0xff] %vm1355, %v7688
        %7700 = vst.msk [vmem:[#allocation7 + $0x18] sm:$0xff] %vm1355, %v7690
        %7701 = vst.msk [vmem:[#allocation7 + $0x30] sm:$0xff] %vm1355, %v7692
        %7702 = vst.msk [vmem:[#allocation7 + $0x48] sm:$0xff] %vm1355, %v7694
        %v7703 = vld [vmem:[#allocation6 + $0x9] sm:$0xff]
        %v7704 = vld [vmem:[#allocation6 + $0x21] sm:$0xff]
        %v7705 = vld [vmem:[#allocation6 + $0x39] sm:$0xff]
        %v7706 = vld [vmem:[#allocation6 + $0x51] sm:$0xff]
        %v7707 = vld [vmem:[#allocation6 + $0x69] sm:$0xff]
        %v7708 = vld [vmem:[#allocation6 + $0x81] sm:$0xff]
        %v7709 = vld [vmem:[#allocation6 + $0x99] sm:$0xff]
        %v7710 = vld [vmem:[#allocation6 + $0xb1] sm:$0xff]
        %v7711 = vpack.c.bf16 %v7704, %v7703
        %v7712 = vpack.c.bf16 %v7706, %v7705
        %v7713 = vpack.c.bf16 %v7708, %v7707
        %v7714 = vpack.c.bf16 %v7710, %v7709
        %7719 = vrot.lane.b32.xlu0 %v7711, 64
        %v7720 = vpop.permute.xlu0 %7719
        %7721 = vrot.lane.b32.xlu0 %v7712, 64
        %v7722 = vpop.permute.xlu0 %7721
        %7723 = vrot.lane.b32.xlu0 %v7713, 64
        %v7724 = vpop.permute.xlu0 %7723
        %7725 = vrot.lane.b32.xlu0 %v7714, 64
        %v7726 = vpop.permute.xlu0 %7725
        %7731 = vst.msk [vmem:[#allocation7] sm:$0xff] %vm1484, %v7720
        %7732 = vst.msk [vmem:[#allocation7 + $0x18] sm:$0xff] %vm1484, %v7722
        %7733 = vst.msk [vmem:[#allocation7 + $0x30] sm:$0xff] %vm1484, %v7724
        %7734 = vst.msk [vmem:[#allocation7 + $0x48] sm:$0xff] %vm1484, %v7726
        %v7735 = vld [vmem:[%s7646 + $0x7] sm:$0xff]
        %v7736 = vld [vmem:[%s7646 + $0x1f] sm:$0xff]
        %v7737 = vld [vmem:[%s7646 + $0x37] sm:$0xff]
        %v7738 = vld [vmem:[%s7646 + $0x4f] sm:$0xff]
        %v7739 = vld [vmem:[%s7646 + $0x67] sm:$0xff]
        %v7740 = vld [vmem:[%s7646 + $0x7f] sm:$0xff]
        %v7741 = vld [vmem:[%s7646 + $0x97] sm:$0xff]
        %v7742 = vld [vmem:[%s7646 + $0xaf] sm:$0xff]
        %v7743 = vpack.c.bf16 %v7736, %v7735
        %v7744 = vpack.c.bf16 %v7738, %v7737
        %v7745 = vpack.c.bf16 %v7740, %v7739
        %v7746 = vpack.c.bf16 %v7742, %v7741
        %7751 = vrot.lane.b32.xlu0 %v7743, 96
        %v7752 = vpop.permute.xlu0 %7751
        %7753 = vrot.lane.b32.xlu0 %v7744, 96
        %v7754 = vpop.permute.xlu0 %7753
        %7755 = vrot.lane.b32.xlu0 %v7745, 96
        %v7756 = vpop.permute.xlu0 %7755
        %7757 = vrot.lane.b32.xlu0 %v7746, 96
        %v7758 = vpop.permute.xlu0 %7757
        %7763 = vst.msk [vmem:[#allocation7] sm:$0xff] %vm1613, %v7752
        %7764 = vst.msk [vmem:[#allocation7 + $0x18] sm:$0xff] %vm1613, %v7754
        %7765 = vst.msk [vmem:[#allocation7 + $0x30] sm:$0xff] %vm1613, %v7756
        %7766 = vst.msk [vmem:[#allocation7 + $0x48] sm:$0xff] %vm1613, %v7758
        %v7767 = vld [vmem:[%s7646 + $0x8] sm:$0xff]
        %v7768 = vld [vmem:[%s7646 + $0x20] sm:$0xff]
        %v7769 = vld [vmem:[%s7646 + $0x38] sm:$0xff]
        %v7770 = vld [vmem:[%s7646 + $0x50] sm:$0xff]
        %v7771 = vld [vmem:[%s7646 + $0x68] sm:$0xff]
        %v7772 = vld [vmem:[%s7646 + $0x80] sm:$0xff]
        %v7773 = vld [vmem:[%s7646 + $0x98] sm:$0xff]
        %v7774 = vld [vmem:[%s7646 + $0xb0] sm:$0xff]
        %v7775 = vpack.c.bf16 %v7768, %v7767
        %v7776 = vpack.c.bf16 %v7770, %v7769
        %v7777 = vpack.c.bf16 %v7772, %v7771
        %v7778 = vpack.c.bf16 %v7774, %v7773
        %7779 = vst.msk [vmem:[#allocation7 + $0x8] sm:$0xff] %vm1041, %v7775
        %7780 = vst.msk [vmem:[#allocation7 + $0x20] sm:$0xff] %vm1041, %v7776
        %7781 = vst.msk [vmem:[#allocation7 + $0x38] sm:$0xff] %vm1041, %v7777
        %7782 = vst.msk [vmem:[#allocation7 + $0x50] sm:$0xff] %vm1041, %v7778
        %v7783 = vld [vmem:[%s7646 + $0x9] sm:$0xff]
        %v7784 = vld [vmem:[%s7646 + $0x21] sm:$0xff]
        %v7785 = vld [vmem:[%s7646 + $0x39] sm:$0xff]
        %v7786 = vld [vmem:[%s7646 + $0x51] sm:$0xff]
        %v7787 = vld [vmem:[%s7646 + $0x69] sm:$0xff]
        %v7788 = vld [vmem:[%s7646 + $0x81] sm:$0xff]
        %v7789 = vld [vmem:[%s7646 + $0x99] sm:$0xff]
        %v7790 = vld [vmem:[%s7646 + $0xb1] sm:$0xff]
        %v7791 = vpack.c.bf16 %v7784, %v7783
        %v7792 = vpack.c.bf16 %v7786, %v7785
        %v7793 = vpack.c.bf16 %v7788, %v7787
        %v7794 = vpack.c.bf16 %v7790, %v7789
        %7799 = vrot.lane.b32.xlu0 %v7791, 32
        %v7800 = vpop.permute.xlu0 %7799
        %7801 = vrot.lane.b32.xlu0 %v7792, 32
        %v7802 = vpop.permute.xlu0 %7801
        %7803 = vrot.lane.b32.xlu0 %v7793, 32
        %v7804 = vpop.permute.xlu0 %7803
        %7805 = vrot.lane.b32.xlu0 %v7794, 32
        %v7806 = vpop.permute.xlu0 %7805
        %7811 = vst.msk [vmem:[#allocation7 + $0x8] sm:$0xff] %vm1355, %v7800
        %7812 = vst.msk [vmem:[#allocation7 + $0x20] sm:$0xff] %vm1355, %v7802
        %7813 = vst.msk [vmem:[#allocation7 + $0x38] sm:$0xff] %vm1355, %v7804
        %7814 = vst.msk [vmem:[#allocation7 + $0x50] sm:$0xff] %vm1355, %v7806
        %s7815 = scalar_lea.vmem [#allocation6], 48
        %v7816 = vld [vmem:[%s7815 + $0x7] sm:$0xff]
        %v7817 = vld [vmem:[%s7815 + $0x1f] sm:$0xff]
        %v7818 = vld [vmem:[%s7815 + $0x37] sm:$0xff]
        %v7819 = vld [vmem:[%s7815 + $0x4f] sm:$0xff]
        %v7820 = vld [vmem:[%s7815 + $0x67] sm:$0xff]
        %v7821 = vld [vmem:[%s7815 + $0x7f] sm:$0xff]
        %v7822 = vld [vmem:[%s7815 + $0x97] sm:$0xff]
        %v7823 = vld [vmem:[%s7815 + $0xaf] sm:$0xff]
        %v7824 = vpack.c.bf16 %v7817, %v7816
        %v7825 = vpack.c.bf16 %v7819, %v7818
        %v7826 = vpack.c.bf16 %v7821, %v7820
        %v7827 = vpack.c.bf16 %v7823, %v7822
        %7832 = vrot.lane.b32.xlu0 %v7824, 64
        %v7833 = vpop.permute.xlu0 %7832
        %7834 = vrot.lane.b32.xlu0 %v7825, 64
        %v7835 = vpop.permute.xlu0 %7834
        %7836 = vrot.lane.b32.xlu0 %v7826, 64
        %v7837 = vpop.permute.xlu0 %7836
        %7838 = vrot.lane.b32.xlu0 %v7827, 64
        %v7839 = vpop.permute.xlu0 %7838
        %7844 = vst.msk [vmem:[#allocation7 + $0x8] sm:$0xff] %vm1484, %v7833
        %7845 = vst.msk [vmem:[#allocation7 + $0x20] sm:$0xff] %vm1484, %v7835
        %7846 = vst.msk [vmem:[#allocation7 + $0x38] sm:$0xff] %vm1484, %v7837
        %7847 = vst.msk [vmem:[#allocation7 + $0x50] sm:$0xff] %vm1484, %v7839
        %v7848 = vld [vmem:[%s7815 + $0x8] sm:$0xff]
        %v7849 = vld [vmem:[%s7815 + $0x20] sm:$0xff]
        %v7850 = vld [vmem:[%s7815 + $0x38] sm:$0xff]
        %v7851 = vld [vmem:[%s7815 + $0x50] sm:$0xff]
        %v7852 = vld [vmem:[%s7815 + $0x68] sm:$0xff]
        %v7853 = vld [vmem:[%s7815 + $0x80] sm:$0xff]
        %v7854 = vld [vmem:[%s7815 + $0x98] sm:$0xff]
        %v7855 = vld [vmem:[%s7815 + $0xb0] sm:$0xff]
        %v7856 = vpack.c.bf16 %v7849, %v7848
        %v7857 = vpack.c.bf16 %v7851, %v7850
        %v7858 = vpack.c.bf16 %v7853, %v7852
        %v7859 = vpack.c.bf16 %v7855, %v7854
        %7864 = vrot.lane.b32.xlu0 %v7856, 96
        %v7865 = vpop.permute.xlu0 %7864
        %7866 = vrot.lane.b32.xlu0 %v7857, 96
        %v7867 = vpop.permute.xlu0 %7866
        %7868 = vrot.lane.b32.xlu0 %v7858, 96
        %v7869 = vpop.permute.xlu0 %7868
        %7870 = vrot.lane.b32.xlu0 %v7859, 96
        %v7871 = vpop.permute.xlu0 %7870
        %7876 = vst.msk [vmem:[#allocation7 + $0x8] sm:$0xff] %vm1613, %v7865
        %7877 = vst.msk [vmem:[#allocation7 + $0x20] sm:$0xff] %vm1613, %v7867
        %7878 = vst.msk [vmem:[#allocation7 + $0x38] sm:$0xff] %vm1613, %v7869
        %7879 = vst.msk [vmem:[#allocation7 + $0x50] sm:$0xff] %vm1613, %v7871
        %v7880 = vld [vmem:[%s7815 + $0x9] sm:$0xff]
        %v7881 = vld [vmem:[%s7815 + $0x21] sm:$0xff]
        %v7882 = vld [vmem:[%s7815 + $0x39] sm:$0xff]
        %v7883 = vld [vmem:[%s7815 + $0x51] sm:$0xff]
        %v7884 = vld [vmem:[%s7815 + $0x69] sm:$0xff]
        %v7885 = vld [vmem:[%s7815 + $0x81] sm:$0xff]
        %v7886 = vld [vmem:[%s7815 + $0x99] sm:$0xff]
        %v7887 = vld [vmem:[%s7815 + $0xb1] sm:$0xff]
        %v7888 = vpack.c.bf16 %v7881, %v7880
        %v7889 = vpack.c.bf16 %v7883, %v7882
        %v7890 = vpack.c.bf16 %v7885, %v7884
        %v7891 = vpack.c.bf16 %v7887, %v7886
        %7892 = vst.msk [vmem:[#allocation7 + $0x10] sm:$0xff] %vm1041, %v7888
        %7893 = vst.msk [vmem:[#allocation7 + $0x28] sm:$0xff] %vm1041, %v7889
        %7894 = vst.msk [vmem:[#allocation7 + $0x40] sm:$0xff] %vm1041, %v7890
        %7895 = vst.msk [vmem:[#allocation7 + $0x58] sm:$0xff] %vm1041, %v7891
        %v7896 = vld [vmem:[#allocation7] sm:$0xff]
        %v7897 = vld [vmem:[#allocation7 + $0x8] sm:$0xff]
        %v7898 = vld [vmem:[#allocation7 + $0x10] sm:$0xff]
        %v7899 = vld [vmem:[#allocation7 + $0x18] sm:$0xff]
        %v7900 = vld [vmem:[#allocation7 + $0x20] sm:$0xff]
        %v7901 = vld [vmem:[#allocation7 + $0x28] sm:$0xff]
        %v7902 = vld [vmem:[#allocation7 + $0x30] sm:$0xff]
        %v7903 = vld [vmem:[#allocation7 + $0x38] sm:$0xff]
        %v7904 = vld [vmem:[#allocation7 + $0x40] sm:$0xff]
        %v7905 = vld [vmem:[#allocation7 + $0x48] sm:$0xff]
        %v7906 = vld [vmem:[#allocation7 + $0x50] sm:$0xff]
        %v7907 = vld [vmem:[#allocation7 + $0x58] sm:$0xff]
        %v7908 = vld [vmem:[%s47] sm:$0xf]
        %v7909 = vld [vmem:[%s47 + $0x4] sm:$0xf]
        %v7910 = vld [vmem:[%s47 + $0x8] sm:$0xf]
        %v7911 = vld [vmem:[%s47 + $0xc] sm:$0xf]
        %v7912 = vld [vmem:[%s47 + $0x10] sm:$0xf]
        %v7913 = vld [vmem:[%s47 + $0x14] sm:$0xf]
        %v7914 = vld [vmem:[%s47 + $0x18] sm:$0xf]
        %v7915 = vld [vmem:[%s47 + $0x1c] sm:$0xf]
        %v7916 = vld [vmem:[%s47 + $0x20] sm:$0xf]
        %v7917 = vld [vmem:[%s47 + $0x24] sm:$0xf]
        %v7918 = vld [vmem:[%s47 + $0x28] sm:$0xf]
        %v7919 = vld [vmem:[%s47 + $0x2c] sm:$0xf]
        %v7920 = vld [vmem:[%s47 + $0x30] sm:$0xf]
        %v7921 = vld [vmem:[%s47 + $0x34] sm:$0xf]
        %v7922 = vld [vmem:[%s47 + $0x38] sm:$0xf]
        %v7923 = vld [vmem:[%s47 + $0x3c] sm:$0xf]
        %v7924 = vld [vmem:[%s47 + $0x40] sm:$0xf]
        %v7925 = vld [vmem:[%s47 + $0x44] sm:$0xf]
        %v7926 = vld [vmem:[%s47 + $0x48] sm:$0xf]
        %v7927 = vld [vmem:[%s47 + $0x4c] sm:$0xf]
        %v7928 = vld [vmem:[%s47 + $0x50] sm:$0xf]
        %v7929 = vld [vmem:[%s47 + $0x54] sm:$0xf]
        %v7930 = vld [vmem:[%s47 + $0x58] sm:$0xf]
        %v7931 = vld [vmem:[%s47 + $0x5c] sm:$0xf]
        %v7932 = vld [vmem:[%s47 + $0x60] sm:$0xf]
        %v7933 = vld [vmem:[%s47 + $0x64] sm:$0xf]
        %v7934 = vld [vmem:[%s47 + $0x68] sm:$0xf]
        %v7935 = vld [vmem:[%s47 + $0x6c] sm:$0xf]
        %v7936 = vld [vmem:[%s47 + $0x70] sm:$0xf]
        %v7937 = vld [vmem:[%s47 + $0x74] sm:$0xf]
        %v7938 = vld [vmem:[%s47 + $0x78] sm:$0xf]
        %v7939 = vld [vmem:[%s47 + $0x7c] sm:$0xf]
        %v7940 = vld [vmem:[%s47 + $0x80] sm:$0xf]
        %v7941 = vld [vmem:[%s47 + $0x84] sm:$0xf]
        %v7942 = vld [vmem:[%s47 + $0x88] sm:$0xf]
        %v7943 = vld [vmem:[%s47 + $0x8c] sm:$0xf]
        %v7980 = vunpack.c.l.b16 %v7908
        %v7981 = vunpack.c.l.b16 %v7909
        %v7982 = vunpack.c.l.b16 %v7910
        %v7983 = vunpack.c.l.b16 %v7911
        %v7984 = vunpack.c.l.b16 %v7912
        %v7985 = vunpack.c.l.b16 %v7913
        %v7986 = vunpack.c.l.b16 %v7914
        %v7987 = vunpack.c.l.b16 %v7915
        %v7988 = vunpack.c.l.b16 %v7916
        %v7989 = vunpack.c.l.b16 %v7917
        %v7990 = vunpack.c.l.b16 %v7918
        %v7991 = vunpack.c.l.b16 %v7919
        %v7992 = vunpack.c.l.b16 %v7920
        %v7993 = vunpack.c.l.b16 %v7921
        %v7994 = vunpack.c.l.b16 %v7922
        %v7995 = vunpack.c.l.b16 %v7923
        %v7996 = vunpack.c.l.b16 %v7924
        %v7997 = vunpack.c.l.b16 %v7925
        %v7998 = vunpack.c.l.b16 %v7926
        %v7999 = vunpack.c.l.b16 %v7927
        %v8000 = vunpack.c.l.b16 %v7928
        %v8001 = vunpack.c.l.b16 %v7929
        %v8002 = vunpack.c.l.b16 %v7930
        %v8003 = vunpack.c.l.b16 %v7931
        %v8004 = vunpack.c.l.b16 %v7932
        %v8005 = vunpack.c.l.b16 %v7933
        %v8006 = vunpack.c.l.b16 %v7934
        %v8007 = vunpack.c.l.b16 %v7935
        %v8008 = vunpack.c.l.b16 %v7936
        %v8009 = vunpack.c.l.b16 %v7937
        %v8010 = vunpack.c.l.b16 %v7938
        %v8011 = vunpack.c.l.b16 %v7939
        %v8012 = vunpack.c.l.b16 %v7940
        %v8013 = vunpack.c.l.b16 %v7941
        %v8014 = vunpack.c.l.b16 %v7942
        %v8015 = vunpack.c.l.b16 %v7943
        %v8016 = vpack.c.b16 %v7981, %v7980
        %v8017 = vpack.c.b16 %v7983, %v7982
        %v8018 = vpack.c.b16 %v7985, %v7984
        %v8019 = vpack.c.b16 %v7987, %v7986
        %v8020 = vpack.c.b16 %v7989, %v7988
        %v8021 = vpack.c.b16 %v7991, %v7990
        %v8022 = vpack.c.b16 %v7993, %v7992
        %v8023 = vpack.c.b16 %v7995, %v7994
        %v8024 = vpack.c.b16 %v7997, %v7996
        %v8025 = vpack.c.b16 %v7999, %v7998
        %v8026 = vpack.c.b16 %v8001, %v8000
        %v8027 = vpack.c.b16 %v8003, %v8002
        %v8028 = vpack.c.b16 %v8005, %v8004
        %v8029 = vpack.c.b16 %v8007, %v8006
        %v8030 = vpack.c.b16 %v8009, %v8008
        %v8031 = vpack.c.b16 %v8011, %v8010
        %v8032 = vpack.c.b16 %v8013, %v8012
        %v8033 = vpack.c.b16 %v8015, %v8014
        %v8053 = vsel %vm1041, %v7898, 0
        %v8056 = vsel %vm1041, %v7901, 0
        %v8059 = vsel %vm1041, %v7904, 0
        %v8062 = vsel %vm1041, %v7907, 0
        %8064 = vmatprep.subr.bf16.mxu0 0
        %8065 = vmatpush1.bf16.msra.mxu0 %v8016
        %8066 = vmatprep.subr.bf16.mxu0 0
        %8067 = vmatpush1.bf16.msra.mxu0 %v8017
        %8068 = vmatprep.subr.bf16.mxu0 0
        %8069 = vmatpush1.bf16.msra.mxu0 %v8018
        %8070 = vmatprep.subr.bf16.mxu0 0
        %8071 = vmatpush1.bf16.msra.mxu0 %v8019
        %8072 = vmatprep.subr.bf16.mxu0 0
        %8073 = vmatpush1.bf16.msra.mxu0 %v8020
        %8074 = vmatprep.subr.bf16.mxu0 0
        %8075 = vmatpush1.bf16.msra.mxu0 %v8021
        %8076 = vmatprep.subr.bf16.mxu0 0
        %8077 = vmatpush1.bf16.msra.mxu0 %v8022
        %8078 = vmatprep.subr.bf16.mxu0 0
        %8079 = vmatpush1.bf16.msra.mxu0 %v8023
        %8080 = vmatprep.subr.bf16.mxu0 0
        %8081 = vmatpush1.bf16.msra.mxu0 %v8024
        %8082 = vmatprep.subr.bf16.mxu0 0
        %8083 = vmatpush1.bf16.msra.mxu0 %v8025
        %8084 = vmatprep.subr.bf16.mxu0 0
        %8085 = vmatpush1.bf16.msra.mxu0 %v8026
        %8086 = vmatprep.subr.bf16.mxu0 0
        %8087 = vmatpush1.bf16.msra.mxu0 %v8027
        %8088 = vmatprep.subr.bf16.mxu0 0
        %8089 = vmatpush1.bf16.msra.mxu0 %v8028
        %8090 = vmatprep.subr.bf16.mxu0 0
        %8091 = vmatpush1.bf16.msra.mxu0 %v8029
        %8092 = vmatprep.subr.bf16.mxu0 0
        %8093 = vmatpush1.bf16.msra.mxu0 %v8030
        %8094 = vmatprep.subr.bf16.mxu0 0
        %8095 = vmatpush1.bf16.msra.mxu0 %v8031
        %8096 = vmatprep.mubr.bf16.mxu0 %v7897
        %8097 = vmatmul.mubr.bf16.gmra.mrb[0].mxu0 %v7896
        %v8098 = vpop.f32.mrb[0].mxu0
        %v8099 = vadd.f32 0.0, %v8098
        %v8100 = vpop.f32.mrb[0].mxu0
        %v8101 = vpop.f32.mrb[0].mxu0
        %v8102 = vadd.f32 0.0, %v8101
        %v8103 = vpop.f32.mrb[0].mxu0
        %8104 = vmatprep.mubr.bf16.mxu0 %v7900
        %8105 = vmatmul.mubr.bf16.gmra.mrb[0].mxu0 %v7899
        %v8106 = vpop.f32.mrb[0].mxu0
        %v8107 = vadd.f32 0.0, %v8106
        %v8108 = vpop.f32.mrb[0].mxu0
        %v8109 = vpop.f32.mrb[0].mxu0
        %v8110 = vadd.f32 0.0, %v8109
        %v8111 = vpop.f32.mrb[0].mxu0
        %8112 = vmatprep.mubr.bf16.mxu0 %v7903
        %8113 = vmatmul.mubr.bf16.gmra.mrb[0].mxu0 %v7902
        %v8114 = vpop.f32.mrb[0].mxu0
        %v8115 = vadd.f32 0.0, %v8114
        %v8116 = vpop.f32.mrb[0].mxu0
        %v8117 = vpop.f32.mrb[0].mxu0
        %v8118 = vadd.f32 0.0, %v8117
        %v8119 = vpop.f32.mrb[0].mxu0
        %8120 = vmatprep.mubr.bf16.mxu0 %v7906
        %8121 = vmatmul.mubr.bf16.gmra.mrb[0].mxu0 %v7905
        %v8122 = vpop.f32.mrb[0].mxu0
        %v8123 = vadd.f32 0.0, %v8122
        %v8124 = vpop.f32.mrb[0].mxu0
        %v8125 = vpop.f32.mrb[0].mxu0
        %v8126 = vadd.f32 0.0, %v8125
        %v8127 = vpop.f32.mrb[0].mxu0
        %8128 = vdwg.mxu0
        %8129 = vmatprep.subr.bf16.mxu0 0
        %8130 = vmatpush1.bf16.msra.mxu0 %v8032
        %8131 = vmatprep.subr.bf16.mxu0 0
        %8132 = vmatpush1.bf16.msra.mxu0 %v8033
        %8133 = vmatprep.subr.bf16.mxu0 0
        %8134 = vmatpush1.bf16.msra.mxu0 0
        %8135 = vmatprep.subr.bf16.mxu0 0
        %8136 = vmatpush1.bf16.msra.mxu0 0
        %8137 = vmatprep.subr.bf16.mxu0 0
        %8138 = vmatpush1.bf16.msra.mxu0 0
        %8139 = vmatprep.subr.bf16.mxu0 0
        %8140 = vmatpush1.bf16.msra.mxu0 0
        %8141 = vmatprep.subr.bf16.mxu0 0
        %8142 = vmatpush1.bf16.msra.mxu0 0
        %8143 = vmatprep.subr.bf16.mxu0 0
        %8144 = vmatpush1.bf16.msra.mxu0 0
        %8145 = vmatprep.subr.bf16.mxu0 0
        %8146 = vmatpush1.bf16.msra.mxu0 0
        %8147 = vmatprep.subr.bf16.mxu0 0
        %8148 = vmatpush1.bf16.msra.mxu0 0
        %8149 = vmatprep.subr.bf16.mxu0 0
        %8150 = vmatpush1.bf16.msra.mxu0 0
        %8151 = vmatprep.subr.bf16.mxu0 0
        %8152 = vmatpush1.bf16.msra.mxu0 0
        %8153 = vmatprep.subr.bf16.mxu0 0
        %8154 = vmatpush1.bf16.msra.mxu0 0
        %8155 = vmatprep.subr.bf16.mxu0 0
        %8156 = vmatpush1.bf16.msra.mxu0 0
        %8157 = vmatprep.subr.bf16.mxu0 0
        %8158 = vmatpush1.bf16.msra.mxu0 0
        %8159 = vmatprep.subr.bf16.mxu0 0
        %8160 = vmatpush1.bf16.msra.mxu0 0
        %8161 = vmatprep.mubr.bf16.mxu0 0
        %8162 = vmatmul.mubr.bf16.gmra.mrb[0].mxu0 %v8053
        %v8163 = vpop.f32.mrb[0].mxu0
        %v8164 = vadd.f32 %v8099, %v8163
        %v8165 = vpop.f32.mrb[0].mxu0
        %v8166 = vpop.f32.mrb[0].mxu0
        %v8167 = vadd.f32 %v8102, %v8166
        %v8168 = vpop.f32.mrb[0].mxu0
        %8169 = vmatprep.mubr.bf16.mxu0 0
        %8170 = vmatmul.mubr.bf16.gmra.mrb[0].mxu0 %v8056
        %v8171 = vpop.f32.mrb[0].mxu0
        %v8172 = vadd.f32 %v8107, %v8171
        %v8173 = vpop.f32.mrb[0].mxu0
        %v8174 = vpop.f32.mrb[0].mxu0
        %v8175 = vadd.f32 %v8110, %v8174
        %v8176 = vpop.f32.mrb[0].mxu0
        %8177 = vmatprep.mubr.bf16.mxu0 0
        %8178 = vmatmul.mubr.bf16.gmra.mrb[0].mxu0 %v8059
        %v8179 = vpop.f32.mrb[0].mxu0
        %v8180 = vadd.f32 %v8115, %v8179
        %v8181 = vpop.f32.mrb[0].mxu0
        %v8182 = vpop.f32.mrb[0].mxu0
        %v8183 = vadd.f32 %v8118, %v8182
        %v8184 = vpop.f32.mrb[0].mxu0
        %8185 = vmatprep.mubr.bf16.mxu0 0
        %8186 = vmatmul.mubr.bf16.gmra.mrb[0].mxu0 %v8062
        %v8187 = vpop.f32.mrb[0].mxu0
        %v8188 = vadd.f32 %v8123, %v8187
        %v8189 = vpop.f32.mrb[0].mxu0
        %v8190 = vpop.f32.mrb[0].mxu0
        %v8191 = vadd.f32 %v8126, %v8190
        %v8192 = vpop.f32.mrb[0].mxu0
        %8193 = vdwg.mxu0
        %8202 = vrot.lane.b32.xlu0 %v8164, 16
        %v8203 = vpop.permute.xlu0 %8202
        %8204 = vrot.lane.b32.xlu0 %v8167, 16
        %v8205 = vpop.permute.xlu0 %8204
        %8206 = vrot.lane.b32.xlu0 %v8172, 16
        %v8207 = vpop.permute.xlu0 %8206
        %8208 = vrot.lane.b32.xlu0 %v8175, 16
        %v8209 = vpop.permute.xlu0 %8208
        %8210 = vrot.lane.b32.xlu0 %v8180, 16
        %v8211 = vpop.permute.xlu0 %8210
        %8212 = vrot.lane.b32.xlu0 %v8183, 16
        %v8213 = vpop.permute.xlu0 %8212
        %8214 = vrot.lane.b32.xlu0 %v8188, 16
        %v8215 = vpop.permute.xlu0 %8214
        %8216 = vrot.lane.b32.xlu0 %v8191, 16
        %v8217 = vpop.permute.xlu0 %8216
        %8226 = vst.msk [vmem:[#allocation5] sm:$0xff] %vm4905, %v8203
        %8227 = vst.msk [vmem:[#allocation5 + $0x8] sm:$0xff] %vm4905, %v8205
        %8228 = vst.msk [vmem:[#allocation5 + $0x10] sm:$0xff] %vm4905, %v8207
        %8229 = vst.msk [vmem:[#allocation5 + $0x18] sm:$0xff] %vm4905, %v8209
        %8230 = vst.msk [vmem:[#allocation5 + $0x20] sm:$0xff] %vm4905, %v8211
        %8231 = vst.msk [vmem:[#allocation5 + $0x28] sm:$0xff] %vm4905, %v8213
        %8232 = vst.msk [vmem:[#allocation5 + $0x30] sm:$0xff] %vm4905, %v8215
        %8233 = vst.msk [vmem:[#allocation5 + $0x38] sm:$0xff] %vm4905, %v8217
        %v8234 = vld [vmem:[#allocation5] sm:$0xff]
        %v8235 = vld [vmem:[#allocation5 + $0x8] sm:$0xff]
        %v8236 = vld [vmem:[#allocation5 + $0x10] sm:$0xff]
        %v8237 = vld [vmem:[#allocation5 + $0x18] sm:$0xff]
        %v8238 = vld [vmem:[#allocation5 + $0x20] sm:$0xff]
        %v8239 = vld [vmem:[#allocation5 + $0x28] sm:$0xff]
        %v8240 = vld [vmem:[#allocation5 + $0x30] sm:$0xff]
        %v8241 = vld [vmem:[#allocation5 + $0x38] sm:$0xff]
        %v8242 = vld [vmem:[%s49] sm:$0x1]
        %v8244 = vlaneseq
        %v8245 = vshrl.u32 %v8244, 7
        %v8246 = vsub.s32 0, %v8245
        %v8247 = vrot.slane %v8242, %v8246
        %v8249 = vmul.f32 %v8234, %v8247
        %v8250 = vmul.f32 %v8235, %v8247
        %v8251 = vmul.f32 %v8236, %v8247
        %v8252 = vmul.f32 %v8237, %v8247
        %v8253 = vmul.f32 %v8238, %v8247
        %v8254 = vmul.f32 %v8239, %v8247
        %v8255 = vmul.f32 %v8240, %v8247
        %v8256 = vmul.f32 %v8241, %v8247
        %v8257 = vld [vmem:[%s51] sm:$0x1]
        %v8259 = vlaneseq
        %v8260 = vshrl.u32 %v8259, 7
        %v8261 = vsub.s32 0, %v8260
        %v8262 = vrot.slane %v8257, %v8261
        %v8264 = vadd.f32 %v8249, %v8262
        %v8265 = vadd.f32 %v8250, %v8262
        %v8266 = vadd.f32 %v8251, %v8262
        %v8267 = vadd.f32 %v8252, %v8262
        %v8268 = vadd.f32 %v8253, %v8262
        %v8269 = vadd.f32 %v8254, %v8262
        %v8270 = vadd.f32 %v8255, %v8262
        %v8271 = vadd.f32 %v8256, %v8262
        %v8272 = vmax.f32 %v8264, 0.0
        %v8273 = vmax.f32 %v8265, 0.0
        %v8274 = vmax.f32 %v8266, 0.0
        %v8275 = vmax.f32 %v8267, 0.0
        %v8276 = vmax.f32 %v8268, 0.0
        %v8277 = vmax.f32 %v8269, 0.0
        %v8278 = vmax.f32 %v8270, 0.0
        %v8279 = vmax.f32 %v8271, 0.0
        %v8280 = vpack.c.bf16 %v8273, %v8272
        %v8281 = vpack.c.bf16 %v8275, %v8274
        %v8282 = vpack.c.bf16 %v8277, %v8276
        %v8283 = vpack.c.bf16 %v8279, %v8278
        %v8284 = vld [vmem:[%s53] sm:$0xf]
        %v8285 = vld [vmem:[%s53 + $0x4] sm:$0xf]
        %v8286 = vld [vmem:[%s53 + $0x8] sm:$0xf]
        %v8290 = vunpack.c.l.b16 %v8284
        %v8291 = vunpack.c.l.b16 %v8285
        %v8292 = vunpack.c.l.b16 %v8286
        %v8293 = vpack.c.b16 %v8291, %v8290
        %v8294 = vpack.c.b16 %v8292, %v8292
        %v8297 = vsel %vm5108, %v8280, 0
        %v8300 = vsel %vm5108, %v8281, 0
        %v8303 = vsel %vm5108, %v8282, 0
        %v8306 = vsel %vm5108, %v8283, 0
        %v8309 = vsel %vm5157, %v8294, 0
        %8311 = vmatprep.subr.bf16.mxu0 0
        %8312 = vmatpush1.bf16.msra.mxu0 %v8293
        %8313 = vmatprep.subr.bf16.mxu0 0
        %8314 = vmatpush1.bf16.msra.mxu0 %v8309
        %8315 = vmatprep.subr.bf16.mxu0 0
        %8316 = vmatpush1.bf16.msra.mxu0 0
        %8317 = vmatprep.subr.bf16.mxu0 0
        %8318 = vmatpush1.bf16.msra.mxu0 0
        %8319 = vmatprep.subr.bf16.mxu0 0
        %8320 = vmatpush1.bf16.msra.mxu0 0
        %8321 = vmatprep.subr.bf16.mxu0 0
        %8322 = vmatpush1.bf16.msra.mxu0 0
        %8323 = vmatprep.subr.bf16.mxu0 0
        %8324 = vmatpush1.bf16.msra.mxu0 0
        %8325 = vmatprep.subr.bf16.mxu0 0
        %8326 = vmatpush1.bf16.msra.mxu0 0
        %8327 = vmatprep.subr.bf16.mxu0 0
        %8328 = vmatpush1.bf16.msra.mxu0 0
        %8329 = vmatprep.subr.bf16.mxu0 0
        %8330 = vmatpush1.bf16.msra.mxu0 0
        %8331 = vmatprep.subr.bf16.mxu0 0
        %8332 = vmatpush1.bf16.msra.mxu0 0
        %8333 = vmatprep.subr.bf16.mxu0 0
        %8334 = vmatpush1.bf16.msra.mxu0 0
        %8335 = vmatprep.subr.bf16.mxu0 0
        %8336 = vmatpush1.bf16.msra.mxu0 0
        %8337 = vmatprep.subr.bf16.mxu0 0
        %8338 = vmatpush1.bf16.msra.mxu0 0
        %8339 = vmatprep.subr.bf16.mxu0 0
        %8340 = vmatpush1.bf16.msra.mxu0 0
        %8341 = vmatprep.subr.bf16.mxu0 0
        %8342 = vmatpush1.bf16.msra.mxu0 0
        %8343 = vmatprep.mubr.bf16.mxu0 0
        %8344 = vmatmul.mubr.bf16.gmra.mrb[0].mxu0 %v8297
        %v8345 = vpop.f32.mrb[0].mxu0
        %v8346 = vadd.f32 0.0, %v8345
        %v8347 = vpop.f32.mrb[0].mxu0
        %v8348 = vpop.f32.mrb[0].mxu0
        %v8349 = vadd.f32 0.0, %v8348
        %v8350 = vpop.f32.mrb[0].mxu0
        %8351 = vmatprep.mubr.bf16.mxu0 0
        %8352 = vmatmul.mubr.bf16.gmra.mrb[0].mxu0 %v8300
        %v8353 = vpop.f32.mrb[0].mxu0
        %v8354 = vadd.f32 0.0, %v8353
        %v8355 = vpop.f32.mrb[0].mxu0
        %v8356 = vpop.f32.mrb[0].mxu0
        %v8357 = vadd.f32 0.0, %v8356
        %v8358 = vpop.f32.mrb[0].mxu0
        %8359 = vmatprep.mubr.bf16.mxu0 0
        %8360 = vmatmul.mubr.bf16.gmra.mrb[0].mxu0 %v8303
        %v8361 = vpop.f32.mrb[0].mxu0
        %v8362 = vadd.f32 0.0, %v8361
        %v8363 = vpop.f32.mrb[0].mxu0
        %v8364 = vpop.f32.mrb[0].mxu0
        %v8365 = vadd.f32 0.0, %v8364
        %v8366 = vpop.f32.mrb[0].mxu0
        %8367 = vmatprep.mubr.bf16.mxu0 0
        %8368 = vmatmul.mubr.bf16.gmra.mrb[0].mxu0 %v8306
        %v8369 = vpop.f32.mrb[0].mxu0
        %v8370 = vadd.f32 0.0, %v8369
        %v8371 = vpop.f32.mrb[0].mxu0
        %v8372 = vpop.f32.mrb[0].mxu0
        %v8373 = vadd.f32 0.0, %v8372
        %v8374 = vpop.f32.mrb[0].mxu0
        %8375 = vdwg.mxu0
        %v8376 = vld [vmem:[%s55] sm:$0x1]
        %v8378 = vlaneseq
        %v8379 = vshrl.u32 %v8378, 7
        %v8380 = vsub.s32 0, %v8379
        %v8381 = vrot.slane %v8376, %v8380
        %v8383 = vmul.f32 %v8346, %v8381
        %v8384 = vmul.f32 %v8349, %v8381
        %v8385 = vmul.f32 %v8354, %v8381
        %v8386 = vmul.f32 %v8357, %v8381
        %v8387 = vmul.f32 %v8362, %v8381
        %v8388 = vmul.f32 %v8365, %v8381
        %v8389 = vmul.f32 %v8370, %v8381
        %v8390 = vmul.f32 %v8373, %v8381
        %v8391 = vld [vmem:[%s57] sm:$0x1]
        %v8393 = vlaneseq
        %v8394 = vshrl.u32 %v8393, 7
        %v8395 = vsub.s32 0, %v8394
        %v8396 = vrot.slane %v8391, %v8395
        %v8398 = vadd.f32 %v8383, %v8396
        %v8399 = vadd.f32 %v8384, %v8396
        %v8400 = vadd.f32 %v8385, %v8396
        %v8401 = vadd.f32 %v8386, %v8396
        %v8402 = vadd.f32 %v8387, %v8396
        %v8403 = vadd.f32 %v8388, %v8396
        %v8404 = vadd.f32 %v8389, %v8396
        %v8405 = vadd.f32 %v8390, %v8396
        %v8406 = vmax.f32 %v8398, 0.0
        %v8407 = vmax.f32 %v8399, 0.0
        %v8408 = vmax.f32 %v8400, 0.0
        %v8409 = vmax.f32 %v8401, 0.0
        %v8410 = vmax.f32 %v8402, 0.0
        %v8411 = vmax.f32 %v8403, 0.0
        %v8412 = vmax.f32 %v8404, 0.0
        %v8413 = vmax.f32 %v8405, 0.0
        %8414 = vst.msk [vmem:[%s7646 + $0x8] sm:$0xff] %vm1041, %v8406
        %8415 = vst.msk [vmem:[%s7646 + $0x20] sm:$0xff] %vm1041, %v8407
        %8416 = vst.msk [vmem:[%s7646 + $0x38] sm:$0xff] %vm1041, %v8408
        %8417 = vst.msk [vmem:[%s7646 + $0x50] sm:$0xff] %vm1041, %v8409
        %8418 = vst.msk [vmem:[%s7646 + $0x68] sm:$0xff] %vm1041, %v8410
        %8419 = vst.msk [vmem:[%s7646 + $0x80] sm:$0xff] %vm1041, %v8411
        %8420 = vst.msk [vmem:[%s7646 + $0x98] sm:$0xff] %vm1041, %v8412
        %8421 = vst.msk [vmem:[%s7646 + $0xb0] sm:$0xff] %vm1041, %v8413
        %v8422 = vld [vmem:[#allocation6 + $0x7] sm:$0xff]
        %v8423 = vld [vmem:[#allocation6 + $0x1f] sm:$0xff]
        %v8424 = vld [vmem:[#allocation6 + $0x37] sm:$0xff]
        %v8425 = vld [vmem:[#allocation6 + $0x4f] sm:$0xff]
        %v8426 = vld [vmem:[#allocation6 + $0x67] sm:$0xff]
        %v8427 = vld [vmem:[#allocation6 + $0x7f] sm:$0xff]
        %v8428 = vld [vmem:[#allocation6 + $0x97] sm:$0xff]
        %v8429 = vld [vmem:[#allocation6 + $0xaf] sm:$0xff]
        %v8430 = vpack.c.bf16 %v8423, %v8422
        %v8431 = vpack.c.bf16 %v8425, %v8424
        %v8432 = vpack.c.bf16 %v8427, %v8426
        %v8433 = vpack.c.bf16 %v8429, %v8428
        %8434 = vst.msk [vmem:[#allocation7] sm:$0xff] %vm1041, %v8430
        %8435 = vst.msk [vmem:[#allocation7 + $0x18] sm:$0xff] %vm1041, %v8431
        %8436 = vst.msk [vmem:[#allocation7 + $0x30] sm:$0xff] %vm1041, %v8432
        %8437 = vst.msk [vmem:[#allocation7 + $0x48] sm:$0xff] %vm1041, %v8433
        %v8438 = vld [vmem:[#allocation6 + $0x8] sm:$0xff]
        %v8439 = vld [vmem:[#allocation6 + $0x20] sm:$0xff]
        %v8440 = vld [vmem:[#allocation6 + $0x38] sm:$0xff]
        %v8441 = vld [vmem:[#allocation6 + $0x50] sm:$0xff]
        %v8442 = vld [vmem:[#allocation6 + $0x68] sm:$0xff]
        %v8443 = vld [vmem:[#allocation6 + $0x80] sm:$0xff]
        %v8444 = vld [vmem:[#allocation6 + $0x98] sm:$0xff]
        %v8445 = vld [vmem:[#allocation6 + $0xb0] sm:$0xff]
        %v8446 = vpack.c.bf16 %v8439, %v8438
        %v8447 = vpack.c.bf16 %v8441, %v8440
        %v8448 = vpack.c.bf16 %v8443, %v8442
        %v8449 = vpack.c.bf16 %v8445, %v8444
        %8454 = vrot.lane.b32.xlu0 %v8446, 32
        %v8455 = vpop.permute.xlu0 %8454
        %8456 = vrot.lane.b32.xlu0 %v8447, 32
        %v8457 = vpop.permute.xlu0 %8456
        %8458 = vrot.lane.b32.xlu0 %v8448, 32
        %v8459 = vpop.permute.xlu0 %8458
        %8460 = vrot.lane.b32.xlu0 %v8449, 32
        %v8461 = vpop.permute.xlu0 %8460
        %8466 = vst.msk [vmem:[#allocation7] sm:$0xff] %vm1355, %v8455
        %8467 = vst.msk [vmem:[#allocation7 + $0x18] sm:$0xff] %vm1355, %v8457
        %8468 = vst.msk [vmem:[#allocation7 + $0x30] sm:$0xff] %vm1355, %v8459
        %8469 = vst.msk [vmem:[#allocation7 + $0x48] sm:$0xff] %vm1355, %v8461
        %v8470 = vld [vmem:[#allocation6 + $0x9] sm:$0xff]
        %v8471 = vld [vmem:[#allocation6 + $0x21] sm:$0xff]
        %v8472 = vld [vmem:[#allocation6 + $0x39] sm:$0xff]
        %v8473 = vld [vmem:[#allocation6 + $0x51] sm:$0xff]
        %v8474 = vld [vmem:[#allocation6 + $0x69] sm:$0xff]
        %v8475 = vld [vmem:[#allocation6 + $0x81] sm:$0xff]
        %v8476 = vld [vmem:[#allocation6 + $0x99] sm:$0xff]
        %v8477 = vld [vmem:[#allocation6 + $0xb1] sm:$0xff]
        %v8478 = vpack.c.bf16 %v8471, %v8470
        %v8479 = vpack.c.bf16 %v8473, %v8472
        %v8480 = vpack.c.bf16 %v8475, %v8474
        %v8481 = vpack.c.bf16 %v8477, %v8476
        %8486 = vrot.lane.b32.xlu0 %v8478, 64
        %v8487 = vpop.permute.xlu0 %8486
        %8488 = vrot.lane.b32.xlu0 %v8479, 64
        %v8489 = vpop.permute.xlu0 %8488
        %8490 = vrot.lane.b32.xlu0 %v8480, 64
        %v8491 = vpop.permute.xlu0 %8490
        %8492 = vrot.lane.b32.xlu0 %v8481, 64
        %v8493 = vpop.permute.xlu0 %8492
        %8498 = vst.msk [vmem:[#allocation7] sm:$0xff] %vm1484, %v8487
        %8499 = vst.msk [vmem:[#allocation7 + $0x18] sm:$0xff] %vm1484, %v8489
        %8500 = vst.msk [vmem:[#allocation7 + $0x30] sm:$0xff] %vm1484, %v8491
        %8501 = vst.msk [vmem:[#allocation7 + $0x48] sm:$0xff] %vm1484, %v8493
        %v8502 = vld [vmem:[%s7646 + $0x7] sm:$0xff]
        %v8503 = vld [vmem:[%s7646 + $0x1f] sm:$0xff]
        %v8504 = vld [vmem:[%s7646 + $0x37] sm:$0xff]
        %v8505 = vld [vmem:[%s7646 + $0x4f] sm:$0xff]
        %v8506 = vld [vmem:[%s7646 + $0x67] sm:$0xff]
        %v8507 = vld [vmem:[%s7646 + $0x7f] sm:$0xff]
        %v8508 = vld [vmem:[%s7646 + $0x97] sm:$0xff]
        %v8509 = vld [vmem:[%s7646 + $0xaf] sm:$0xff]
        %v8510 = vpack.c.bf16 %v8503, %v8502
        %v8511 = vpack.c.bf16 %v8505, %v8504
        %v8512 = vpack.c.bf16 %v8507, %v8506
        %v8513 = vpack.c.bf16 %v8509, %v8508
        %8518 = vrot.lane.b32.xlu0 %v8510, 96
        %v8519 = vpop.permute.xlu0 %8518
        %8520 = vrot.lane.b32.xlu0 %v8511, 96
        %v8521 = vpop.permute.xlu0 %8520
        %8522 = vrot.lane.b32.xlu0 %v8512, 96
        %v8523 = vpop.permute.xlu0 %8522
        %8524 = vrot.lane.b32.xlu0 %v8513, 96
        %v8525 = vpop.permute.xlu0 %8524
        %8530 = vst.msk [vmem:[#allocation7] sm:$0xff] %vm1613, %v8519
        %8531 = vst.msk [vmem:[#allocation7 + $0x18] sm:$0xff] %vm1613, %v8521
        %8532 = vst.msk [vmem:[#allocation7 + $0x30] sm:$0xff] %vm1613, %v8523
        %8533 = vst.msk [vmem:[#allocation7 + $0x48] sm:$0xff] %vm1613, %v8525
        %v8534 = vld [vmem:[%s7646 + $0x8] sm:$0xff]
        %v8535 = vld [vmem:[%s7646 + $0x20] sm:$0xff]
        %v8536 = vld [vmem:[%s7646 + $0x38] sm:$0xff]
        %v8537 = vld [vmem:[%s7646 + $0x50] sm:$0xff]
        %v8538 = vld [vmem:[%s7646 + $0x68] sm:$0xff]
        %v8539 = vld [vmem:[%s7646 + $0x80] sm:$0xff]
        %v8540 = vld [vmem:[%s7646 + $0x98] sm:$0xff]
        %v8541 = vld [vmem:[%s7646 + $0xb0] sm:$0xff]
        %v8542 = vpack.c.bf16 %v8535, %v8534
        %v8543 = vpack.c.bf16 %v8537, %v8536
        %v8544 = vpack.c.bf16 %v8539, %v8538
        %v8545 = vpack.c.bf16 %v8541, %v8540
        %8546 = vst.msk [vmem:[#allocation7 + $0x8] sm:$0xff] %vm1041, %v8542
        %8547 = vst.msk [vmem:[#allocation7 + $0x20] sm:$0xff] %vm1041, %v8543
        %8548 = vst.msk [vmem:[#allocation7 + $0x38] sm:$0xff] %vm1041, %v8544
        %8549 = vst.msk [vmem:[#allocation7 + $0x50] sm:$0xff] %vm1041, %v8545
        %v8550 = vld [vmem:[%s7646 + $0x9] sm:$0xff]
        %v8551 = vld [vmem:[%s7646 + $0x21] sm:$0xff]
        %v8552 = vld [vmem:[%s7646 + $0x39] sm:$0xff]
        %v8553 = vld [vmem:[%s7646 + $0x51] sm:$0xff]
        %v8554 = vld [vmem:[%s7646 + $0x69] sm:$0xff]
        %v8555 = vld [vmem:[%s7646 + $0x81] sm:$0xff]
        %v8556 = vld [vmem:[%s7646 + $0x99] sm:$0xff]
        %v8557 = vld [vmem:[%s7646 + $0xb1] sm:$0xff]
        %v8558 = vpack.c.bf16 %v8551, %v8550
        %v8559 = vpack.c.bf16 %v8553, %v8552
        %v8560 = vpack.c.bf16 %v8555, %v8554
        %v8561 = vpack.c.bf16 %v8557, %v8556
        %8566 = vrot.lane.b32.xlu0 %v8558, 32
        %v8567 = vpop.permute.xlu0 %8566
        %8568 = vrot.lane.b32.xlu0 %v8559, 32
        %v8569 = vpop.permute.xlu0 %8568
        %8570 = vrot.lane.b32.xlu0 %v8560, 32
        %v8571 = vpop.permute.xlu0 %8570
        %8572 = vrot.lane.b32.xlu0 %v8561, 32
        %v8573 = vpop.permute.xlu0 %8572
        %8578 = vst.msk [vmem:[#allocation7 + $0x8] sm:$0xff] %vm1355, %v8567
        %8579 = vst.msk [vmem:[#allocation7 + $0x20] sm:$0xff] %vm1355, %v8569
        %8580 = vst.msk [vmem:[#allocation7 + $0x38] sm:$0xff] %vm1355, %v8571
        %8581 = vst.msk [vmem:[#allocation7 + $0x50] sm:$0xff] %vm1355, %v8573
        %v8582 = vld [vmem:[%s7815 + $0x7] sm:$0xff]
        %v8583 = vld [vmem:[%s7815 + $0x1f] sm:$0xff]
        %v8584 = vld [vmem:[%s7815 + $0x37] sm:$0xff]
        %v8585 = vld [vmem:[%s7815 + $0x4f] sm:$0xff]
        %v8586 = vld [vmem:[%s7815 + $0x67] sm:$0xff]
        %v8587 = vld [vmem:[%s7815 + $0x7f] sm:$0xff]
        %v8588 = vld [vmem:[%s7815 + $0x97] sm:$0xff]
        %v8589 = vld [vmem:[%s7815 + $0xaf] sm:$0xff]
        %v8590 = vpack.c.bf16 %v8583, %v8582
        %v8591 = vpack.c.bf16 %v8585, %v8584
        %v8592 = vpack.c.bf16 %v8587, %v8586
        %v8593 = vpack.c.bf16 %v8589, %v8588
        %8598 = vrot.lane.b32.xlu0 %v8590, 64
        %v8599 = vpop.permute.xlu0 %8598
        %8600 = vrot.lane.b32.xlu0 %v8591, 64
        %v8601 = vpop.permute.xlu0 %8600
        %8602 = vrot.lane.b32.xlu0 %v8592, 64
        %v8603 = vpop.permute.xlu0 %8602
        %8604 = vrot.lane.b32.xlu0 %v8593, 64
        %v8605 = vpop.permute.xlu0 %8604
        %8610 = vst.msk [vmem:[#allocation7 + $0x8] sm:$0xff] %vm1484, %v8599
        %8611 = vst.msk [vmem:[#allocation7 + $0x20] sm:$0xff] %vm1484, %v8601
        %8612 = vst.msk [vmem:[#allocation7 + $0x38] sm:$0xff] %vm1484, %v8603
        %8613 = vst.msk [vmem:[#allocation7 + $0x50] sm:$0xff] %vm1484, %v8605
        %v8614 = vld [vmem:[%s7815 + $0x8] sm:$0xff]
        %v8615 = vld [vmem:[%s7815 + $0x20] sm:$0xff]
        %v8616 = vld [vmem:[%s7815 + $0x38] sm:$0xff]
        %v8617 = vld [vmem:[%s7815 + $0x50] sm:$0xff]
        %v8618 = vld [vmem:[%s7815 + $0x68] sm:$0xff]
        %v8619 = vld [vmem:[%s7815 + $0x80] sm:$0xff]
        %v8620 = vld [vmem:[%s7815 + $0x98] sm:$0xff]
        %v8621 = vld [vmem:[%s7815 + $0xb0] sm:$0xff]
        %v8622 = vpack.c.bf16 %v8615, %v8614
        %v8623 = vpack.c.bf16 %v8617, %v8616
        %v8624 = vpack.c.bf16 %v8619, %v8618
        %v8625 = vpack.c.bf16 %v8621, %v8620
        %8630 = vrot.lane.b32.xlu0 %v8622, 96
        %v8631 = vpop.permute.xlu0 %8630
        %8632 = vrot.lane.b32.xlu0 %v8623, 96
        %v8633 = vpop.permute.xlu0 %8632
        %8634 = vrot.lane.b32.xlu0 %v8624, 96
        %v8635 = vpop.permute.xlu0 %8634
        %8636 = vrot.lane.b32.xlu0 %v8625, 96
        %v8637 = vpop.permute.xlu0 %8636
        %8642 = vst.msk [vmem:[#allocation7 + $0x8] sm:$0xff] %vm1613, %v8631
        %8643 = vst.msk [vmem:[#allocation7 + $0x20] sm:$0xff] %vm1613, %v8633
        %8644 = vst.msk [vmem:[#allocation7 + $0x38] sm:$0xff] %vm1613, %v8635
        %8645 = vst.msk [vmem:[#allocation7 + $0x50] sm:$0xff] %vm1613, %v8637
        %v8646 = vld [vmem:[%s7815 + $0x9] sm:$0xff]
        %v8647 = vld [vmem:[%s7815 + $0x21] sm:$0xff]
        %v8648 = vld [vmem:[%s7815 + $0x39] sm:$0xff]
        %v8649 = vld [vmem:[%s7815 + $0x51] sm:$0xff]
        %v8650 = vld [vmem:[%s7815 + $0x69] sm:$0xff]
        %v8651 = vld [vmem:[%s7815 + $0x81] sm:$0xff]
        %v8652 = vld [vmem:[%s7815 + $0x99] sm:$0xff]
        %v8653 = vld [vmem:[%s7815 + $0xb1] sm:$0xff]
        %v8654 = vpack.c.bf16 %v8647, %v8646
        %v8655 = vpack.c.bf16 %v8649, %v8648
        %v8656 = vpack.c.bf16 %v8651, %v8650
        %v8657 = vpack.c.bf16 %v8653, %v8652
        %8658 = vst.msk [vmem:[#allocation7 + $0x10] sm:$0xff] %vm1041, %v8654
        %8659 = vst.msk [vmem:[#allocation7 + $0x28] sm:$0xff] %vm1041, %v8655
        %8660 = vst.msk [vmem:[#allocation7 + $0x40] sm:$0xff] %vm1041, %v8656
        %8661 = vst.msk [vmem:[#allocation7 + $0x58] sm:$0xff] %vm1041, %v8657
        %v8662 = vld [vmem:[#allocation7] sm:$0xff]
        %v8663 = vld [vmem:[#allocation7 + $0x8] sm:$0xff]
        %v8664 = vld [vmem:[#allocation7 + $0x10] sm:$0xff]
        %v8665 = vld [vmem:[#allocation7 + $0x18] sm:$0xff]
        %v8666 = vld [vmem:[#allocation7 + $0x20] sm:$0xff]
        %v8667 = vld [vmem:[#allocation7 + $0x28] sm:$0xff]
        %v8668 = vld [vmem:[#allocation7 + $0x30] sm:$0xff]
        %v8669 = vld [vmem:[#allocation7 + $0x38] sm:$0xff]
        %v8670 = vld [vmem:[#allocation7 + $0x40] sm:$0xff]
        %v8671 = vld [vmem:[#allocation7 + $0x48] sm:$0xff]
        %v8672 = vld [vmem:[#allocation7 + $0x50] sm:$0xff]
        %v8673 = vld [vmem:[#allocation7 + $0x58] sm:$0xff]
        %v8674 = vld [vmem:[%s59] sm:$0xf]
        %v8675 = vld [vmem:[%s59 + $0x4] sm:$0xf]
        %v8676 = vld [vmem:[%s59 + $0x8] sm:$0xf]
        %v8677 = vld [vmem:[%s59 + $0xc] sm:$0xf]
        %v8678 = vld [vmem:[%s59 + $0x10] sm:$0xf]
        %v8679 = vld [vmem:[%s59 + $0x14] sm:$0xf]
        %v8680 = vld [vmem:[%s59 + $0x18] sm:$0xf]
        %v8681 = vld [vmem:[%s59 + $0x1c] sm:$0xf]
        %v8682 = vld [vmem:[%s59 + $0x20] sm:$0xf]
        %v8683 = vld [vmem:[%s59 + $0x24] sm:$0xf]
        %v8684 = vld [vmem:[%s59 + $0x28] sm:$0xf]
        %v8685 = vld [vmem:[%s59 + $0x2c] sm:$0xf]
        %v8686 = vld [vmem:[%s59 + $0x30] sm:$0xf]
        %v8687 = vld [vmem:[%s59 + $0x34] sm:$0xf]
        %v8688 = vld [vmem:[%s59 + $0x38] sm:$0xf]
        %v8689 = vld [vmem:[%s59 + $0x3c] sm:$0xf]
        %v8690 = vld [vmem:[%s59 + $0x40] sm:$0xf]
        %v8691 = vld [vmem:[%s59 + $0x44] sm:$0xf]
        %v8692 = vld [vmem:[%s59 + $0x48] sm:$0xf]
        %v8693 = vld [vmem:[%s59 + $0x4c] sm:$0xf]
        %v8694 = vld [vmem:[%s59 + $0x50] sm:$0xf]
        %v8695 = vld [vmem:[%s59 + $0x54] sm:$0xf]
        %v8696 = vld [vmem:[%s59 + $0x58] sm:$0xf]
        %v8697 = vld [vmem:[%s59 + $0x5c] sm:$0xf]
        %v8698 = vld [vmem:[%s59 + $0x60] sm:$0xf]
        %v8699 = vld [vmem:[%s59 + $0x64] sm:$0xf]
        %v8700 = vld [vmem:[%s59 + $0x68] sm:$0xf]
        %v8701 = vld [vmem:[%s59 + $0x6c] sm:$0xf]
        %v8702 = vld [vmem:[%s59 + $0x70] sm:$0xf]
        %v8703 = vld [vmem:[%s59 + $0x74] sm:$0xf]
        %v8704 = vld [vmem:[%s59 + $0x78] sm:$0xf]
        %v8705 = vld [vmem:[%s59 + $0x7c] sm:$0xf]
        %v8706 = vld [vmem:[%s59 + $0x80] sm:$0xf]
        %v8707 = vld [vmem:[%s59 + $0x84] sm:$0xf]
        %v8708 = vld [vmem:[%s59 + $0x88] sm:$0xf]
        %v8709 = vld [vmem:[%s59 + $0x8c] sm:$0xf]
        %v8746 = vunpack.c.l.b16 %v8674
        %v8747 = vunpack.c.l.b16 %v8675
        %v8748 = vunpack.c.l.b16 %v8676
        %v8749 = vunpack.c.l.b16 %v8677
        %v8750 = vunpack.c.l.b16 %v8678
        %v8751 = vunpack.c.l.b16 %v8679
        %v8752 = vunpack.c.l.b16 %v8680
        %v8753 = vunpack.c.l.b16 %v8681
        %v8754 = vunpack.c.l.b16 %v8682
        %v8755 = vunpack.c.l.b16 %v8683
        %v8756 = vunpack.c.l.b16 %v8684
        %v8757 = vunpack.c.l.b16 %v8685
        %v8758 = vunpack.c.l.b16 %v8686
        %v8759 = vunpack.c.l.b16 %v8687
        %v8760 = vunpack.c.l.b16 %v8688
        %v8761 = vunpack.c.l.b16 %v8689
        %v8762 = vunpack.c.l.b16 %v8690
        %v8763 = vunpack.c.l.b16 %v8691
        %v8764 = vunpack.c.l.b16 %v8692
        %v8765 = vunpack.c.l.b16 %v8693
        %v8766 = vunpack.c.l.b16 %v8694
        %v8767 = vunpack.c.l.b16 %v8695
        %v8768 = vunpack.c.l.b16 %v8696
        %v8769 = vunpack.c.l.b16 %v8697
        %v8770 = vunpack.c.l.b16 %v8698
        %v8771 = vunpack.c.l.b16 %v8699
        %v8772 = vunpack.c.l.b16 %v8700
        %v8773 = vunpack.c.l.b16 %v8701
        %v8774 = vunpack.c.l.b16 %v8702
        %v8775 = vunpack.c.l.b16 %v8703
        %v8776 = vunpack.c.l.b16 %v8704
        %v8777 = vunpack.c.l.b16 %v8705
        %v8778 = vunpack.c.l.b16 %v8706
        %v8779 = vunpack.c.l.b16 %v8707
        %v8780 = vunpack.c.l.b16 %v8708
        %v8781 = vunpack.c.l.b16 %v8709
        %v8782 = vpack.c.b16 %v8747, %v8746
        %v8783 = vpack.c.b16 %v8749, %v8748
        %v8784 = vpack.c.b16 %v8751, %v8750
        %v8785 = vpack.c.b16 %v8753, %v8752
        %v8786 = vpack.c.b16 %v8755, %v8754
        %v8787 = vpack.c.b16 %v8757, %v8756
        %v8788 = vpack.c.b16 %v8759, %v8758
        %v8789 = vpack.c.b16 %v8761, %v8760
        %v8790 = vpack.c.b16 %v8763, %v8762
        %v8791 = vpack.c.b16 %v8765, %v8764
        %v8792 = vpack.c.b16 %v8767, %v8766
        %v8793 = vpack.c.b16 %v8769, %v8768
        %v8794 = vpack.c.b16 %v8771, %v8770
        %v8795 = vpack.c.b16 %v8773, %v8772
        %v8796 = vpack.c.b16 %v8775, %v8774
        %v8797 = vpack.c.b16 %v8777, %v8776
        %v8798 = vpack.c.b16 %v8779, %v8778
        %v8799 = vpack.c.b16 %v8781, %v8780
        %v8819 = vsel %vm1041, %v8664, 0
        %v8822 = vsel %vm1041, %v8667, 0
        %v8825 = vsel %vm1041, %v8670, 0
        %v8828 = vsel %vm1041, %v8673, 0
        %8830 = vmatprep.subr.bf16.mxu0 0
        %8831 = vmatpush1.bf16.msra.mxu0 %v8782
        %8832 = vmatprep.subr.bf16.mxu0 0
        %8833 = vmatpush1.bf16.msra.mxu0 %v8783
        %8834 = vmatprep.subr.bf16.mxu0 0
        %8835 = vmatpush1.bf16.msra.mxu0 %v8784
        %8836 = vmatprep.subr.bf16.mxu0 0
        %8837 = vmatpush1.bf16.msra.mxu0 %v8785
        %8838 = vmatprep.subr.bf16.mxu0 0
        %8839 = vmatpush1.bf16.msra.mxu0 %v8786
        %8840 = vmatprep.subr.bf16.mxu0 0
        %8841 = vmatpush1.bf16.msra.mxu0 %v8787
        %8842 = vmatprep.subr.bf16.mxu0 0
        %8843 = vmatpush1.bf16.msra.mxu0 %v8788
        %8844 = vmatprep.subr.bf16.mxu0 0
        %8845 = vmatpush1.bf16.msra.mxu0 %v8789
        %8846 = vmatprep.subr.bf16.mxu0 0
        %8847 = vmatpush1.bf16.msra.mxu0 %v8790
        %8848 = vmatprep.subr.bf16.mxu0 0
        %8849 = vmatpush1.bf16.msra.mxu0 %v8791
        %8850 = vmatprep.subr.bf16.mxu0 0
        %8851 = vmatpush1.bf16.msra.mxu0 %v8792
        %8852 = vmatprep.subr.bf16.mxu0 0
        %8853 = vmatpush1.bf16.msra.mxu0 %v8793
        %8854 = vmatprep.subr.bf16.mxu0 0
        %8855 = vmatpush1.bf16.msra.mxu0 %v8794
        %8856 = vmatprep.subr.bf16.mxu0 0
        %8857 = vmatpush1.bf16.msra.mxu0 %v8795
        %8858 = vmatprep.subr.bf16.mxu0 0
        %8859 = vmatpush1.bf16.msra.mxu0 %v8796
        %8860 = vmatprep.subr.bf16.mxu0 0
        %8861 = vmatpush1.bf16.msra.mxu0 %v8797
        %8862 = vmatprep.mubr.bf16.mxu0 %v8663
        %8863 = vmatmul.mubr.bf16.gmra.mrb[0].mxu0 %v8662
        %v8864 = vpop.f32.mrb[0].mxu0
        %v8865 = vadd.f32 0.0, %v8864
        %v8866 = vpop.f32.mrb[0].mxu0
        %v8867 = vpop.f32.mrb[0].mxu0
        %v8868 = vadd.f32 0.0, %v8867
        %v8869 = vpop.f32.mrb[0].mxu0
        %8870 = vmatprep.mubr.bf16.mxu0 %v8666
        %8871 = vmatmul.mubr.bf16.gmra.mrb[0].mxu0 %v8665
        %v8872 = vpop.f32.mrb[0].mxu0
        %v8873 = vadd.f32 0.0, %v8872
        %v8874 = vpop.f32.mrb[0].mxu0
        %v8875 = vpop.f32.mrb[0].mxu0
        %v8876 = vadd.f32 0.0, %v8875
        %v8877 = vpop.f32.mrb[0].mxu0
        %8878 = vmatprep.mubr.bf16.mxu0 %v8669
        %8879 = vmatmul.mubr.bf16.gmra.mrb[0].mxu0 %v8668
        %v8880 = vpop.f32.mrb[0].mxu0
        %v8881 = vadd.f32 0.0, %v8880
        %v8882 = vpop.f32.mrb[0].mxu0
        %v8883 = vpop.f32.mrb[0].mxu0
        %v8884 = vadd.f32 0.0, %v8883
        %v8885 = vpop.f32.mrb[0].mxu0
        %8886 = vmatprep.mubr.bf16.mxu0 %v8672
        %8887 = vmatmul.mubr.bf16.gmra.mrb[0].mxu0 %v8671
        %v8888 = vpop.f32.mrb[0].mxu0
        %v8889 = vadd.f32 0.0, %v8888
        %v8890 = vpop.f32.mrb[0].mxu0
        %v8891 = vpop.f32.mrb[0].mxu0
        %v8892 = vadd.f32 0.0, %v8891
        %v8893 = vpop.f32.mrb[0].mxu0
        %8894 = vdwg.mxu0
        %8895 = vmatprep.subr.bf16.mxu0 0
        %8896 = vmatpush1.bf16.msra.mxu0 %v8798
        %8897 = vmatprep.subr.bf16.mxu0 0
        %8898 = vmatpush1.bf16.msra.mxu0 %v8799
        %8899 = vmatprep.subr.bf16.mxu0 0
        %8900 = vmatpush1.bf16.msra.mxu0 0
        %8901 = vmatprep.subr.bf16.mxu0 0
        %8902 = vmatpush1.bf16.msra.mxu0 0
        %8903 = vmatprep.subr.bf16.mxu0 0
        %8904 = vmatpush1.bf16.msra.mxu0 0
        %8905 = vmatprep.subr.bf16.mxu0 0
        %8906 = vmatpush1.bf16.msra.mxu0 0
        %8907 = vmatprep.subr.bf16.mxu0 0
        %8908 = vmatpush1.bf16.msra.mxu0 0
        %8909 = vmatprep.subr.bf16.mxu0 0
        %8910 = vmatpush1.bf16.msra.mxu0 0
        %8911 = vmatprep.subr.bf16.mxu0 0
        %8912 = vmatpush1.bf16.msra.mxu0 0
        %8913 = vmatprep.subr.bf16.mxu0 0
        %8914 = vmatpush1.bf16.msra.mxu0 0
        %8915 = vmatprep.subr.bf16.mxu0 0
        %8916 = vmatpush1.bf16.msra.mxu0 0
        %8917 = vmatprep.subr.bf16.mxu0 0
        %8918 = vmatpush1.bf16.msra.mxu0 0
        %8919 = vmatprep.subr.bf16.mxu0 0
        %8920 = vmatpush1.bf16.msra.mxu0 0
        %8921 = vmatprep.subr.bf16.mxu0 0
        %8922 = vmatpush1.bf16.msra.mxu0 0
        %8923 = vmatprep.subr.bf16.mxu0 0
        %8924 = vmatpush1.bf16.msra.mxu0 0
        %8925 = vmatprep.subr.bf16.mxu0 0
        %8926 = vmatpush1.bf16.msra.mxu0 0
        %8927 = vmatprep.mubr.bf16.mxu0 0
        %8928 = vmatmul.mubr.bf16.gmra.mrb[0].mxu0 %v8819
        %v8929 = vpop.f32.mrb[0].mxu0
        %v8930 = vadd.f32 %v8865, %v8929
        %v8931 = vpop.f32.mrb[0].mxu0
        %v8932 = vpop.f32.mrb[0].mxu0
        %v8933 = vadd.f32 %v8868, %v8932
        %v8934 = vpop.f32.mrb[0].mxu0
        %8935 = vmatprep.mubr.bf16.mxu0 0
        %8936 = vmatmul.mubr.bf16.gmra.mrb[0].mxu0 %v8822
        %v8937 = vpop.f32.mrb[0].mxu0
        %v8938 = vadd.f32 %v8873, %v8937
        %v8939 = vpop.f32.mrb[0].mxu0
        %v8940 = vpop.f32.mrb[0].mxu0
        %v8941 = vadd.f32 %v8876, %v8940
        %v8942 = vpop.f32.mrb[0].mxu0
        %8943 = vmatprep.mubr.bf16.mxu0 0
        %8944 = vmatmul.mubr.bf16.gmra.mrb[0].mxu0 %v8825
        %v8945 = vpop.f32.mrb[0].mxu0
        %v8946 = vadd.f32 %v8881, %v8945
        %v8947 = vpop.f32.mrb[0].mxu0
        %v8948 = vpop.f32.mrb[0].mxu0
        %v8949 = vadd.f32 %v8884, %v8948
        %v8950 = vpop.f32.mrb[0].mxu0
        %8951 = vmatprep.mubr.bf16.mxu0 0
        %8952 = vmatmul.mubr.bf16.gmra.mrb[0].mxu0 %v8828
        %v8953 = vpop.f32.mrb[0].mxu0
        %v8954 = vadd.f32 %v8889, %v8953
        %v8955 = vpop.f32.mrb[0].mxu0
        %v8956 = vpop.f32.mrb[0].mxu0
        %v8957 = vadd.f32 %v8892, %v8956
        %v8958 = vpop.f32.mrb[0].mxu0
        %8959 = vdwg.mxu0
        %8968 = vrot.lane.b32.xlu0 %v8930, 24
        %v8969 = vpop.permute.xlu0 %8968
        %8970 = vrot.lane.b32.xlu0 %v8933, 24
        %v8971 = vpop.permute.xlu0 %8970
        %8972 = vrot.lane.b32.xlu0 %v8938, 24
        %v8973 = vpop.permute.xlu0 %8972
        %8974 = vrot.lane.b32.xlu0 %v8941, 24
        %v8975 = vpop.permute.xlu0 %8974
        %8976 = vrot.lane.b32.xlu0 %v8946, 24
        %v8977 = vpop.permute.xlu0 %8976
        %8978 = vrot.lane.b32.xlu0 %v8949, 24
        %v8979 = vpop.permute.xlu0 %8978
        %8980 = vrot.lane.b32.xlu0 %v8954, 24
        %v8981 = vpop.permute.xlu0 %8980
        %8982 = vrot.lane.b32.xlu0 %v8957, 24
        %v8983 = vpop.permute.xlu0 %8982
        %8992 = vst.msk [vmem:[#allocation5] sm:$0xff] %vm7114, %v8969
        %8993 = vst.msk [vmem:[#allocation5 + $0x8] sm:$0xff] %vm7114, %v8971
        %8994 = vst.msk [vmem:[#allocation5 + $0x10] sm:$0xff] %vm7114, %v8973
        %8995 = vst.msk [vmem:[#allocation5 + $0x18] sm:$0xff] %vm7114, %v8975
        %8996 = vst.msk [vmem:[#allocation5 + $0x20] sm:$0xff] %vm7114, %v8977
        %8997 = vst.msk [vmem:[#allocation5 + $0x28] sm:$0xff] %vm7114, %v8979
        %8998 = vst.msk [vmem:[#allocation5 + $0x30] sm:$0xff] %vm7114, %v8981
        %8999 = vst.msk [vmem:[#allocation5 + $0x38] sm:$0xff] %vm7114, %v8983
        %v9000 = vld [vmem:[#allocation5] sm:$0xff]
        %v9001 = vld [vmem:[#allocation5 + $0x8] sm:$0xff]
        %v9002 = vld [vmem:[#allocation5 + $0x10] sm:$0xff]
        %v9003 = vld [vmem:[#allocation5 + $0x18] sm:$0xff]
        %v9004 = vld [vmem:[#allocation5 + $0x20] sm:$0xff]
        %v9005 = vld [vmem:[#allocation5 + $0x28] sm:$0xff]
        %v9006 = vld [vmem:[#allocation5 + $0x30] sm:$0xff]
        %v9007 = vld [vmem:[#allocation5 + $0x38] sm:$0xff]
        %v9008 = vld [vmem:[%s61] sm:$0x1]
        %v9010 = vlaneseq
        %v9011 = vshrl.u32 %v9010, 7
        %v9012 = vsub.s32 0, %v9011
        %v9013 = vrot.slane %v9008, %v9012
        %v9015 = vmul.f32 %v9000, %v9013
        %v9016 = vmul.f32 %v9001, %v9013
        %v9017 = vmul.f32 %v9002, %v9013
        %v9018 = vmul.f32 %v9003, %v9013
        %v9019 = vmul.f32 %v9004, %v9013
        %v9020 = vmul.f32 %v9005, %v9013
        %v9021 = vmul.f32 %v9006, %v9013
        %v9022 = vmul.f32 %v9007, %v9013
        %v9023 = vld [vmem:[%s63] sm:$0x1]
        %v9025 = vlaneseq
        %v9026 = vshrl.u32 %v9025, 7
        %v9027 = vsub.s32 0, %v9026
        %v9028 = vrot.slane %v9023, %v9027
        %v9030 = vadd.f32 %v9015, %v9028
        %v9031 = vadd.f32 %v9016, %v9028
        %v9032 = vadd.f32 %v9017, %v9028
        %v9033 = vadd.f32 %v9018, %v9028
        %v9034 = vadd.f32 %v9019, %v9028
        %v9035 = vadd.f32 %v9020, %v9028
        %v9036 = vadd.f32 %v9021, %v9028
        %v9037 = vadd.f32 %v9022, %v9028
        %v9038 = vmax.f32 %v9030, 0.0
        %v9039 = vmax.f32 %v9031, 0.0
        %v9040 = vmax.f32 %v9032, 0.0
        %v9041 = vmax.f32 %v9033, 0.0
        %v9042 = vmax.f32 %v9034, 0.0
        %v9043 = vmax.f32 %v9035, 0.0
        %v9044 = vmax.f32 %v9036, 0.0
        %v9045 = vmax.f32 %v9037, 0.0
        %v9046 = vld [vmem:[%s65] sm:$0xff]
        %v9047 = vld [vmem:[%s65 + $0x8] sm:$0xff]
        %v9048 = vld [vmem:[%s65 + $0x10] sm:$0xff]
        %v9049 = vld [vmem:[%s65 + $0x18] sm:$0xff]
        %v9051 = vsel %vm1041, %v9038, 0
        %v9054 = vsel %vm1041, %v9039, 0
        %v9057 = vsel %vm1041, %v9040, 0
        %v9060 = vsel %vm1041, %v9041, 0
        %v9063 = vsel %vm1041, %v9042, 0
        %v9066 = vsel %vm1041, %v9043, 0
        %v9069 = vsel %vm1041, %v9044, 0
        %v9072 = vsel %vm1041, %v9045, 0
        %9074 = vmatprep.subr.mxu0 0.0
        %9075 = vmatpush1.msra.mxu0 %v9046
        %9076 = vmatprep.subr.mxu0 0.0
        %9077 = vmatpush1.msra.mxu0 %v9047
        %9078 = vmatprep.subr.mxu0 0.0
        %9079 = vmatpush1.msra.mxu0 %v9048
        %9080 = vmatprep.subr.mxu0 0.0
        %9081 = vmatpush1.msra.mxu0 %v9049
        %9082 = vmatprep.subr.mxu0 0.0
        %9083 = vmatpush1.msra.mxu0 0.0
        %9084 = vmatprep.subr.mxu0 0.0
        %9085 = vmatpush1.msra.mxu0 0.0
        %9086 = vmatprep.subr.mxu0 0.0
        %9087 = vmatpush1.msra.mxu0 0.0
        %9088 = vmatprep.subr.mxu0 0.0
        %9089 = vmatpush1.msra.mxu0 0.0
        %9090 = vmatprep.subr.mxu0 0.0
        %9091 = vmatpush1.msra.mxu0 0.0
        %9092 = vmatprep.subr.mxu0 0.0
        %9093 = vmatpush1.msra.mxu0 0.0
        %9094 = vmatprep.subr.mxu0 0.0
        %9095 = vmatpush1.msra.mxu0 0.0
        %9096 = vmatprep.subr.mxu0 0.0
        %9097 = vmatpush1.msra.mxu0 0.0
        %9098 = vmatprep.subr.mxu0 0.0
        %9099 = vmatpush1.msra.mxu0 0.0
        %9100 = vmatprep.subr.mxu0 0.0
        %9101 = vmatpush1.msra.mxu0 0.0
        %9102 = vmatprep.subr.mxu0 0.0
        %9103 = vmatpush1.msra.mxu0 0.0
        %9104 = vmatprep.subr.mxu0 0.0
        %9105 = vmatpush1.msra.mxu0 0.0
        %9106 = vmatprep.subr.mxu0 0.0
        %9107 = vmatpush1.msra.mxu0 0.0
        %9108 = vmatprep.subr.mxu0 0.0
        %9109 = vmatpush1.msra.mxu0 0.0
        %9110 = vmatprep.subr.mxu0 0.0
        %9111 = vmatpush1.msra.mxu0 0.0
        %9112 = vmatprep.subr.mxu0 0.0
        %9113 = vmatpush1.msra.mxu0 0.0
        %9114 = vmatprep.subr.mxu0 0.0
        %9115 = vmatpush1.msra.mxu0 0.0
        %9116 = vmatprep.subr.mxu0 0.0
        %9117 = vmatpush1.msra.mxu0 0.0
        %9118 = vmatprep.subr.mxu0 0.0
        %9119 = vmatpush1.msra.mxu0 0.0
        %9120 = vmatprep.subr.mxu0 0.0
        %9121 = vmatpush1.msra.mxu0 0.0
        %9122 = vmatprep.subr.mxu0 0.0
        %9123 = vmatpush1.msra.mxu0 0.0
        %9124 = vmatprep.subr.mxu0 0.0
        %9125 = vmatpush1.msra.mxu0 0.0
        %9126 = vmatprep.subr.mxu0 0.0
        %9127 = vmatpush1.msra.mxu0 0.0
        %9128 = vmatprep.subr.mxu0 0.0
        %9129 = vmatpush1.msra.mxu0 0.0
        %9130 = vmatprep.subr.mxu0 0.0
        %9131 = vmatpush1.msra.mxu0 0.0
        %9132 = vmatprep.subr.mxu0 0.0
        %9133 = vmatpush1.msra.mxu0 0.0
        %9134 = vmatprep.subr.mxu0 0.0
        %9135 = vmatpush1.msra.mxu0 0.0
        %9136 = vmatprep.subr.mxu0 0.0
        %9137 = vmatpush1.msra.mxu0 0.0
        %9138 = vmatprep.mubr.f32.mxu0 0.0
        %9139 = vmatmul.mubr.f32.gmra.mrb[0].mxu0 %v9051
        %v9140 = vpop.f32.mrb[0].mxu0
        %v9141 = vadd.f32 0.0, %v9140
        %v9142 = vpop.f32.mrb[0].mxu0
        %9143 = vmatprep.mubr.f32.mxu0 0.0
        %9144 = vmatmul.mubr.f32.gmra.mrb[0].mxu0 %v9054
        %v9145 = vpop.f32.mrb[0].mxu0
        %v9146 = vadd.f32 0.0, %v9145
        %v9147 = vpop.f32.mrb[0].mxu0
        %9148 = vmatprep.mubr.f32.mxu0 0.0
        %9149 = vmatmul.mubr.f32.gmra.mrb[0].mxu0 %v9057
        %v9150 = vpop.f32.mrb[0].mxu0
        %v9151 = vadd.f32 0.0, %v9150
        %v9152 = vpop.f32.mrb[0].mxu0
        %9153 = vmatprep.mubr.f32.mxu0 0.0
        %9154 = vmatmul.mubr.f32.gmra.mrb[0].mxu0 %v9060
        %v9155 = vpop.f32.mrb[0].mxu0
        %v9156 = vadd.f32 0.0, %v9155
        %v9157 = vpop.f32.mrb[0].mxu0
        %9158 = vmatprep.mubr.f32.mxu0 0.0
        %9159 = vmatmul.mubr.f32.gmra.mrb[0].mxu0 %v9063
        %v9160 = vpop.f32.mrb[0].mxu0
        %v9161 = vadd.f32 0.0, %v9160
        %v9162 = vpop.f32.mrb[0].mxu0
        %9163 = vmatprep.mubr.f32.mxu0 0.0
        %9164 = vmatmul.mubr.f32.gmra.mrb[0].mxu0 %v9066
        %v9165 = vpop.f32.mrb[0].mxu0
        %v9166 = vadd.f32 0.0, %v9165
        %v9167 = vpop.f32.mrb[0].mxu0
        %9168 = vmatprep.mubr.f32.mxu0 0.0
        %9169 = vmatmul.mubr.f32.gmra.mrb[0].mxu0 %v9069
        %v9170 = vpop.f32.mrb[0].mxu0
        %v9171 = vadd.f32 0.0, %v9170
        %v9172 = vpop.f32.mrb[0].mxu0
        %9173 = vmatprep.mubr.f32.mxu0 0.0
        %9174 = vmatmul.mubr.f32.gmra.mrb[0].mxu0 %v9072
        %v9175 = vpop.f32.mrb[0].mxu0
        %v9176 = vadd.f32 0.0, %v9175
        %v9177 = vpop.f32.mrb[0].mxu0
        %9178 = vdwg.mxu0
        %vm9179 = vcmask 80896
        %v9180 = vsel %vm9179, %v9141, 0.0
        %v9181 = vsel %vm9179, %v9146, 0.0
        %v9182 = vadd.f32 %v9180, %v9181
        %v9183 = vsel %vm9179, %v9151, 0.0
        %v9184 = vadd.f32 %v9182, %v9183
        %v9185 = vsel %vm9179, %v9156, 0.0
        %v9186 = vadd.f32 %v9184, %v9185
        %v9187 = vsel %vm9179, %v9161, 0.0
        %v9188 = vadd.f32 %v9186, %v9187
        %v9189 = vsel %vm9179, %v9166, 0.0
        %v9190 = vadd.f32 %v9188, %v9189
        %v9191 = vsel %vm9179, %v9171, 0.0
        %v9192 = vadd.f32 %v9190, %v9191
        %v9193 = vsel %vm9179, %v9176, 0.0
        %v9194 = vadd.f32 %v9192, %v9193
        %v9195 = vrot.slane %v9194, 4
        %v9196 = vadd.f32 %v9194, %v9195
        %v9197 = vrot.slane %v9196, 2
        %v9198 = vadd.f32 %v9196, %v9197
        %v9199 = vrot.slane %v9198, 1
        %v9200 = vadd.f32 %v9198, %v9199
        %v9201 = vmul.f32 %v9200, 0.015625
        %v9202 = vld [vmem:[%s67] sm:$0x1]
        %v9203 = vadd.f32 %v9201, %v9202
        %vm9204 = vcmask 73728
        %9205 = vst.msk [vmem:[%s1034] sm:$0x1] %vm9204, %v9203
        %s9206 = sand.u32 %s810, 1
        %s9207 = scalar_lea.sflag [#allocation9], %s9206
        %s9208 = sand.u32 %s810, 1
        %s9209 = scalar_lea.vmem [#allocation8], %s9208
        // Predicated region
        $region157: #{_lambda_.1} parent=155 // pred_check
          %p9210 = pneg %p820
        $region158: #{_lambda_.1} parent=155 // pred_check_branch
          %9212 = sbr.rel (%p9210) target = $region160
        $region159: #{_lambda_.1} parent=155 // pred_region
          %s9214 = ssub.s32 16, 16
          %9215 = vsyncadd %s9207, %s9214
          %s9216 = smul.addr %s83, 16
          %s9217 = scalar_lea.hbm %s69, %s9216
          %s9219 = sshll.u32 %s9209, 4
          %s9220 = int_to_ptr.vmem [resolvable:$true] %s9219
          %9222 = dma.vmem_to_hbm [thread:$0]  %s9220, 16, %s9217, %s9207
        $region160: #{_lambda_.1} parent=155 // pred_fallthru
          _
      $region156: #{_lambda_.1} parent=5 // pred_fallthru
        _
      %p9223 = scmp.le.s32.totalorder 2, %s78
      // Predicated region
      $region161: #{_lambda_.1} parent=5 // pred_check
        %p9224 = pneg %p9223
      $region162: #{_lambda_.1} parent=5 // pred_check_branch
        %9226 = sbr.rel (%p9224) target = $region164
      $region163: #{_lambda_.1} parent=5 // pred_region
        %s9227 = ssub.s32 %s78, 2
        // Predicated region
        $region165: #{_lambda_.1} parent=163 // pred_check
          %p9228 = pneg %p826
        $region166: #{_lambda_.1} parent=163 // pred_check_branch
          %9230 = sbr.rel (%p9228) target = $region168
        $region167: #{_lambda_.1} parent=163 // pred_region
          %s9231 = sand.u32 %s811, 1
          %s9232 = scalar_lea.sflag [#allocation9], %s9231
          %s9233 = sand.u32 %s811, 1
          %s9234 = scalar_lea.vmem [#allocation8], %s9233
          %9235 = dma.done %s9232, 16
        $region168: #{_lambda_.1} parent=163 // pred_fallthru
          _
      $region164: #{_lambda_.1} parent=5 // pred_fallthru
        _
    $region6: #{_lambda_.1} parent=1 // loop_footer
      %s82 = sadd.s32 1, %s78
    $region7: #{_lambda_.1} parent=1 // loop_footer_branch
      %77 = sbr.rel target = $region3
    $region8: #{_lambda_.1} parent=1 // loop_exit
      _
    %9236 = vsyncpa [#allocation9], 1
    %s9237 = scalar_lea.sflag [#allocation9], 1
    %9238 = vsyncpa %s9237, 1

</llo_original>
